<compile_context>
chip_gen: v6e
topology: v6e:2x2x1
jax: 0.10.0
libtpu: 0.0.40
codegen_flags: <defaults>
</compile_context>

<pallas_src>
import numpy as np
import jax
import jax.numpy as jnp
from jax.experimental import pallas as pl
from jax.experimental.pallas import tpu as pltpu

_EPS = 1e-5

# Canvas row margins: every shifted-slice read stays inside its scratch buffer.
# Margins are never read when computing a *valid* output row; garbage that leaks
# into pad-ring rows is squashed by jnp.where, so margins are never zero-filled.
_MA = 32   # stem phase-canvas stack (four 16x16 canvases, max negative tap shift 17)
_M1 = 32   # 16x16 canvases m1 / t   (max |tap shift| 17)
_M2 = 16   # layer2 phase-canvas stack (four 9x9 canvases, max negative tap shift 10)
_M3 = 16   # 9x9 canvas c1             (max |tap shift| 10)

# (di of a 3-tap stride-2 window) -> (2x2 phase parity, +shift on the phase grid)
_S2_TAP = ((0, 0), (1, 0), (0, 1))


# --------------------------- in-kernel conv helpers ---------------------------

def _tap_groups(starts, cin):
    """Group tap row-offsets so each group's lane-concatenated LHS has K = 128."""
    tpg = max(1, 128 // cin)
    groups = []
    for g0 in range(0, len(starts), tpg):
        g = list(starts[g0:g0 + tpg])
        while len(g) < tpg:
            g.append(g[-1])                     # dummy tap (its weights are zero)
        groups.append(g)
    return groups


def _conv(canvas_ref, groups, n_rows, w_ref):
    """sum_g  concat_lanes(tap slices of group g) @ w_ref[g]   (K=128 MXU dots)."""
    acc = None
    for g, starts in enumerate(groups):
        lhs = jnp.concatenate([canvas_ref[s:s + n_rows, :] for s in starts], axis=1)
        part = jnp.dot(lhs.astype(jnp.bfloat16), w_ref[g],
                       preferred_element_type=jnp.float32)
        acc = part if acc is None else acc + part
    return acc


# --------------------------------- the kernel ---------------------------------

def _fused_kernel(lhs_ref, ms_ref, m16_ref, m9_ref,
                  w1_ref, b1_ref, l1a_w, l1a_b, l1b_w, l1b_b, p_ref,
                  l2a_w, l2a_b, ds_w, ds_b, l2b_w, l2b_b, fc_w, fc_b,
                  o_ref,
                  a_ref, m1_ref, t_ref, ph2_ref, c1_ref):
    f32 = jnp.float32
    valid_stem = ms_ref[...] > 0.5          # (1024, 1) conv1-output validity
    interior16 = m16_ref[...] > 0.5         # (256, 1)  14x14 interior of 16x16 canvas
    interior9 = m9_ref[...] > 0.5           # (81, 1)   7x7  interior of 9x9 canvas
    c1ch = w1_ref.shape[1]                  # 32
    c2ch = ds_w.shape[1]                    # 64

    # ---- conv1 7x7/s2/p3 + BN + ReLU: one K=128 dot.  Rows are already laid out as
    #      the four 2x2-phase 16x16 canvases of the 1-padded 28x28 conv1 output.
    a = jnp.dot(lhs_ref[...], w1_ref[...], preferred_element_type=f32) + b1_ref[...]
    a_ref[_MA:_MA + 1024, :] = jnp.where(valid_stem, jnp.maximum(a, 0.0), 0.0)

    # ---- MaxPool2d(3, s=2, p=1): 9 (phase, unit-shift) taps; zero pad is exact
    #      because the conv1 output is post-ReLU (>= 0).
    m = None
    for di in range(3):
        pa, ro = _S2_TAP[di]
        for dj in range(3):
            pb, co = _S2_TAP[dj]
            s = _MA + (pa * 2 + pb) * 256 + (ro - 1) * 16 + (co - 1)
            tap = a_ref[s:s + 256, :]
            m = tap if m is None else jnp.maximum(m, tap)
    m1_ref[_M1:_M1 + 256, :] = jnp.where(interior16, m, 0.0)

    # ---- layer1 BasicBlock (stride 1): conv3x3+BN+ReLU, conv3x3+BN, +identity, ReLU
    g16 = _tap_groups([_M1 + (di - 1) * 16 + (dj - 1)
                       for di in range(3) for dj in range(3)], c1ch)
    acc = _conv(m1_ref, g16, 256, l1a_w)
    t_ref[_M1:_M1 + 256, :] = jnp.where(
        interior16, jnp.maximum(acc + l1a_b[...], 0.0), 0.0)

    acc = _conv(t_ref, g16, 256, l1b_w)
    l1 = jnp.where(interior16,
                   jnp.maximum(acc + l1b_b[...] + m1_ref[_M1:_M1 + 256, :], 0.0), 0.0)

    # TODO(synk): nn.Dropout2d(p=0.3) is train-time RNG masking; identity at inference.

    # ---- relayout l1 into the four 2x2-phase 9x9 canvases of its 1-padded 16x16
    #      canvas with a single 0/1 gather matmul (stride-2 -> unit-stride taps).
    ph2 = jnp.dot(p_ref[...], l1.astype(jnp.bfloat16), preferred_element_type=f32)
    ph2_ref[_M2:_M2 + 324, :] = ph2

    # ---- layer2 conv3x3 / stride 2 / pad 1 (32->64) + BN + ReLU
    taps2 = []
    for di in range(3):
        pa, ro = _S2_TAP[di]
        for dj in range(3):
            pb, co = _S2_TAP[dj]
            taps2.append(_M2 + (pa * 2 + pb) * 81 + (ro - 1) * 9 + (co - 1))
    acc = _conv(ph2_ref, _tap_groups(taps2, c1ch), 81, l2a_w)
    c1_ref[_M3:_M3 + 81, :] = jnp.where(
        interior9, jnp.maximum(acc + l2a_b[...], 0.0), 0.0)

    # ---- downsample conv1x1 / stride 2 + BN  (reads phase (1,1), shift -10)
    ds_start = _M2 + 3 * 81 - 10
    ident = jnp.dot(ph2_ref[ds_start:ds_start + 81, :].astype(jnp.bfloat16),
                    ds_w[...], preferred_element_type=f32) + ds_b[...]

    # ---- layer2 conv3x3 / stride 1 / pad 1 (64->64) + BN, residual add, ReLU
    g9 = _tap_groups([_M3 + (di - 1) * 9 + (dj - 1)
                      for di in range(3) for dj in range(3)], c2ch)
    acc = _conv(c1_ref, g9, 81, l2b_w)
    feat = jnp.maximum(acc + l2b_b[...] + ident, 0.0)                    # (81, 64)

    # ---- AvgPool2d(7) (masked row reduction) + Linear + Sigmoid
    pooled = jnp.sum(jnp.where(interior9, feat, 0.0), axis=0, keepdims=True) * (1.0 / 49.0)
    logits = jnp.dot(pooled, fc_w[...], preferred_element_type=f32) + fc_b[...]
    o_ref[...] = jax.nn.sigmoid(logits)


# ------------------------------ host-side helpers ------------------------------

def _stem_im2col(x):
    """im2col of conv1(7x7,s2,p3), rows laid out as the four 2x2-phase 16x16 canvases
    of the 1-padded 28x28 conv1 output (the exact layout the in-kernel maxpool reads).
    Output: (N, 1024, 128) bf16, lane-dense."""
    n, h, w, c = x.shape
    assert h == 56 and w == 56 and 49 * c <= 128
    xp = jnp.pad(x, ((0, 0), (3, 3), (3, 3), (0, 0)))                     # (N,62,62,C)
    taps = [xp[:, ki:ki + 56:2, kj:kj + 56:2, :]
            for ki in range(7) for kj in range(7)]                        # 49 x (N,28,28,C)
    patches = jnp.concatenate(taps, axis=-1)                              # (N,28,28,49C)
    pp = jnp.pad(patches, ((0, 0), (1, 1), (1, 1), (0, 0)))               # (N,30,30,49C)
    blocks = []
    for a in range(2):
        for b in range(2):
            ph = jnp.pad(pp[:, a::2, b::2, :], ((0, 0), (0, 1), (0, 1), (0, 0)))
            blocks.append(ph.reshape(n, 256, 49 * c))
    lhs = jnp.concatenate(blocks, axis=1)                                 # (N,1024,49C)
    return jnp.pad(lhs, ((0, 0), (0, 0), (0, 128 - 49 * c))).astype(jnp.bfloat16)


def _interior_mask(h, w):
    m = np.zeros((h, w, 1), np.float32)
    m[1:h - 1, 1:w - 1] = 1.0
    return jnp.asarray(m.reshape(h * w, 1))


def _stem_valid_mask():
    m = np.zeros((4, 16, 16, 1), np.float32)
    for a in range(2):
        for b in range(2):
            m[a * 2 + b, 1 - a:15 - a, 1 - b:15 - b] = 1.0
    return jnp.asarray(m.reshape(1024, 1))


def _s2d_gather_matrix():
    """0/1 matrix turning the 16x16 l1 canvas into its four 9x9-phase canvases."""
    pm = np.zeros((4, 9, 9, 256), np.float32)
    for a in range(2):
        for b in range(2):
            for s in range(8):
                for t in range(8):
                    pm[a * 2 + b, s, t, (2 * s + a) * 16 + (2 * t + b)] = 1.0
    return jnp.asarray(pm.reshape(324, 256), jnp.bfloat16)


# -------------------------------- parameters -----------------------------------

def init_params(key, num_channels=2, num_classes=1):
    """PyTorch-equivalent parameters (BasicBlock, layers=(1,1)), eval-mode BN stats."""
    keys = iter(jax.random.split(key, 16))

    def conv_w(kh, kw, cin, cout):
        std = (2.0 / (kh * kw * cout)) ** 0.5                 # matches module __init__
        return jax.random.normal(next(keys), (kh, kw, cin, cout), jnp.float32) * std

    def bn(c):
        return {"gamma": jnp.ones((c,), jnp.float32), "beta": jnp.zeros((c,), jnp.float32),
                "mean": jnp.zeros((c,), jnp.float32), "var": jnp.ones((c,), jnp.float32)}

    p = {"conv1_w": conv_w(7, 7, num_channels, 32), "bn1": bn(32),
         "l1_w1": conv_w(3, 3, 32, 32), "l1_bn1": bn(32),
         "l1_w2": conv_w(3, 3, 32, 32), "l1_bn2": bn(32),
         "l2_w1": conv_w(3, 3, 32, 64), "l2_bn1": bn(64),
         "l2_w2": conv_w(3, 3, 64, 64), "l2_bn2": bn(64),
         "l2_dsw": conv_w(1, 1, 32, 64), "l2_dsbn": bn(64)}
    bound = 1.0 / (64 ** 0.5)                                 # nn.Linear default init
    p["fc_w"] = jax.random.uniform(next(keys), (64, num_classes), jnp.float32, -bound, bound)
    p["fc_b"] = jax.random.uniform(next(keys), (num_classes,), jnp.float32, -bound, bound)
    return p


def prepare_params(p):
    """Fold eval-mode BN into the conv weights/biases and repack for the kernel."""
    def fold(w, bn):
        scale = bn["gamma"] / jnp.sqrt(bn["var"] + _EPS)
        bias = (bn["beta"] - bn["mean"] * scale)[None, :].astype(jnp.float32)
        return w * scale[None, None, None, :], bias

    def pack3(w, bn):                      # (3,3,cin,cout) -> (G, 128, cout) bf16
        w, b = fold(w, bn)
        cin = w.shape[2]
        taps = [w[di, dj] for di in range(3) for dj in range(3)]     # (cin, cout) each
        tpg = max(1, 128 // cin)
        groups = []
        for g0 in range(0, 9, tpg):
            g = taps[g0:g0 + tpg]
            g = g + [jnp.zeros_like(taps[0])] * (tpg - len(g))       # zero dummy taps
            groups.append(jnp.concatenate(g, axis=0))                # (tpg*cin, cout)
        return jnp.stack(groups, axis=0).astype(jnp.bfloat16), b

    kp = {}
    w1, kp["b1"] = fold(p["conv1_w"], p["bn1"])                      # (7,7,C,32)
    k = w1.shape[0] * w1.shape[1] * w1.shape[2]
    kp["w1"] = jnp.pad(w1.reshape(k, w1.shape[3]),
                       ((0, 128 - k), (0, 0))).astype(jnp.bfloat16)  # (128, 32)

    kp["l1a_w"], kp["l1a_b"] = pack3(p["l1_w1"], p["l1_bn1"])
    kp["l1b_w"], kp["l1b_b"] = pack3(p["l1_w2"], p["l1_bn2"])
    kp["l2a_w"], kp["l2a_b"] = pack3(p["l2_w1"], p["l2_bn1"])
    kp["l2b_w"], kp["l2b_b"] = pack3(p["l2_w2"], p["l2_bn2"])
    dsw, kp["ds_b"] = fold(p["l2_dsw"], p["l2_dsbn"])
    kp["ds_w"] = dsw.reshape(dsw.shape[2], dsw.shape[3]).astype(jnp.bfloat16)
    kp["fc_w"] = p["fc_w"]
    kp["fc_b"] = p["fc_b"][None, :]

    kp["mask_stem"] = _stem_valid_mask()        # (1024, 1)
    kp["mask16"] = _interior_mask(16, 16)       # (256, 1)
    kp["mask9"] = _interior_mask(9, 9)          # (81, 1)
    kp["s2d_p"] = _s2d_gather_matrix()          # (324, 256) bf16
    return kp


# ------------------------------- model forward ---------------------------------

def resnetlike_forward(kp, x_nchw):
    """Inference forward of ResNetLike (BasicBlock, layers=(1,1)) as one Pallas kernel."""
    n = x_nchw.shape[0]
    nc = kp["fc_w"].shape[1]
    c1ch = kp["w1"].shape[1]                    # 32
    c2ch = kp["ds_w"].shape[1]                  # 64

    x = jnp.transpose(x_nchw, (0, 2, 3, 1)).astype(jnp.float32)     # NCHW -> NHWC
    lhs = _stem_im2col(x)                                           # (N, 1024, 128) bf16

    consts = [kp["mask_stem"], kp["mask16"], kp["mask9"],
              kp["w1"], kp["b1"], kp["l1a_w"], kp["l1a_b"], kp["l1b_w"], kp["l1b_b"],
              kp["s2d_p"], kp["l2a_w"], kp["l2a_b"], kp["ds_w"], kp["ds_b"],
              kp["l2b_w"], kp["l2b_b"], kp["fc_w"], kp["fc_b"]]

    def const_spec(arr):
        nd = arr.ndim
        return pl.BlockSpec(tuple(arr.shape), lambda i: (0,) * nd)

    out = pl.pallas_call(
        _fused_kernel,
        out_shape=jax.ShapeDtypeStruct((n, 1, nc), jnp.float32),
        grid=(n,),
        in_specs=[pl.BlockSpec((None, 1024, 128), lambda i: (i, 0, 0))]
                 + [const_spec(a) for a in consts],
        out_specs=pl.BlockSpec((None, 1, nc), lambda i: (i, 0, 0)),
        scratch_shapes=[
            pltpu.VMEM((_MA + 1024, c1ch), jnp.float32),            # stem phase canvases
            pltpu.VMEM((_M1 + 256 + _M1, c1ch), jnp.float32),       # maxpool output m1
            pltpu.VMEM((_M1 + 256 + _M1, c1ch), jnp.float32),       # layer1 convA output
            pltpu.VMEM((_M2 + 324 + _M2, c1ch), jnp.float32),       # layer2 input phases
            pltpu.VMEM((_M3 + 81 + _M3, c2ch), jnp.float32),        # layer2 convA output
        ],
        compiler_params=pltpu.CompilerParams(
            dimension_semantics=("parallel",)),
    )(lhs, *consts)
    return out.reshape(n, nc)


# ------------------------------------ main --------------------------------------

if __name__ == "__main__":
    key = jax.random.PRNGKey(0)
    pkey, xkey = jax.random.split(key)

    params = init_params(pkey, num_channels=2, num_classes=1)
    kp = prepare_params(params)

    # Smallest spatial size consistent with the module's stride/pool chain:
    # 56 -> conv1/2 -> 28 -> maxpool/2 -> 14 -> layer2/2 -> 7 -> AvgPool2d(7) -> 1
    x = jax.random.normal(xkey, (2, 2, 56, 56), jnp.float32)        # NCHW, like PyTorch

    fwd = jax.jit(resnetlike_forward)
    out = jax.block_until_ready(fwd(kp, x))

    assert out.shape == (2, 1)
    assert bool(jnp.all(jnp.isfinite(out)))
    assert bool(jnp.all((out >= 0.0) & (out <= 1.0)))
    print("KERNEL_OK")
</pallas_src>

<mosaic_0001>
module attributes {stable_mosaic.version = 11 : i64} {
  func.func @_fused_kernel(%arg0: i32, %arg1: memref<1x1024x128xbf16, #tpu.memory_space<vmem>>, %arg2: memref<1024x1xf32, #tpu.memory_space<vmem>>, %arg3: memref<256x1xf32, #tpu.memory_space<vmem>>, %arg4: memref<81x1xf32, #tpu.memory_space<vmem>>, %arg5: memref<128x32xbf16, #tpu.memory_space<vmem>>, %arg6: memref<1x32xf32, #tpu.memory_space<vmem>>, %arg7: memref<3x128x32xbf16, #tpu.memory_space<vmem>>, %arg8: memref<1x32xf32, #tpu.memory_space<vmem>>, %arg9: memref<3x128x32xbf16, #tpu.memory_space<vmem>>, %arg10: memref<1x32xf32, #tpu.memory_space<vmem>>, %arg11: memref<324x256xbf16, #tpu.memory_space<vmem>>, %arg12: memref<3x128x64xbf16, #tpu.memory_space<vmem>>, %arg13: memref<1x64xf32, #tpu.memory_space<vmem>>, %arg14: memref<32x64xbf16, #tpu.memory_space<vmem>>, %arg15: memref<1x64xf32, #tpu.memory_space<vmem>>, %arg16: memref<5x128x64xbf16, #tpu.memory_space<vmem>>, %arg17: memref<1x64xf32, #tpu.memory_space<vmem>>, %arg18: memref<64x1xf32, #tpu.memory_space<vmem>>, %arg19: memref<1x1xf32, #tpu.memory_space<vmem>>, %arg20: memref<1x1x1xf32, #tpu.memory_space<vmem>>, %arg21: memref<1056x32xf32, #tpu.memory_space<vmem>>, %arg22: memref<320x32xf32, #tpu.memory_space<vmem>>, %arg23: memref<320x32xf32, #tpu.memory_space<vmem>>, %arg24: memref<356x32xf32, #tpu.memory_space<vmem>>, %arg25: memref<113x64xf32, #tpu.memory_space<vmem>>) attributes {dimension_semantics = [#tpu.dimension_semantics<parallel>], iteration_bounds = array<i64: 2>, scalar_prefetch = 0 : i64, scratch_operands = 5 : i64, tpu.core_type = #tpu.core_type<tc>, window_params = [{transform_indices = @transform_0, window_bounds = array<i64: 1, 1024, 128>}, {pipeline_mode = #tpu.pipeline_mode<synchronous>, transform_indices = @transform_1, window_bounds = array<i64: 1024, 1>}, {pipeline_mode = #tpu.pipeline_mode<synchronous>, transform_indices = @transform_2, window_bounds = array<i64: 256, 1>}, {pipeline_mode = #tpu.pipeline_mode<synchronous>, transform_indices = @transform_3, window_bounds = array<i64: 81, 1>}, {pipeline_mode = #tpu.pipeline_mode<synchronous>, transform_indices = @transform_4, window_bounds = array<i64: 128, 32>}, {pipeline_mode = #tpu.pipeline_mode<synchronous>, transform_indices = @transform_5, window_bounds = array<i64: 1, 32>}, {pipeline_mode = #tpu.pipeline_mode<synchronous>, transform_indices = @transform_6, window_bounds = array<i64: 3, 128, 32>}, {pipeline_mode = #tpu.pipeline_mode<synchronous>, transform_indices = @transform_7, window_bounds = array<i64: 1, 32>}, {pipeline_mode = #tpu.pipeline_mode<synchronous>, transform_indices = @transform_8, window_bounds = array<i64: 3, 128, 32>}, {pipeline_mode = #tpu.pipeline_mode<synchronous>, transform_indices = @transform_9, window_bounds = array<i64: 1, 32>}, {pipeline_mode = #tpu.pipeline_mode<synchronous>, transform_indices = @transform_10, window_bounds = array<i64: 324, 256>}, {pipeline_mode = #tpu.pipeline_mode<synchronous>, transform_indices = @transform_11, window_bounds = array<i64: 3, 128, 64>}, {pipeline_mode = #tpu.pipeline_mode<synchronous>, transform_indices = @transform_12, window_bounds = array<i64: 1, 64>}, {pipeline_mode = #tpu.pipeline_mode<synchronous>, transform_indices = @transform_13, window_bounds = array<i64: 32, 64>}, {pipeline_mode = #tpu.pipeline_mode<synchronous>, transform_indices = @transform_14, window_bounds = array<i64: 1, 64>}, {pipeline_mode = #tpu.pipeline_mode<synchronous>, transform_indices = @transform_15, window_bounds = array<i64: 5, 128, 64>}, {pipeline_mode = #tpu.pipeline_mode<synchronous>, transform_indices = @transform_16, window_bounds = array<i64: 1, 64>}, {pipeline_mode = #tpu.pipeline_mode<synchronous>, transform_indices = @transform_17, window_bounds = array<i64: 64, 1>}, {pipeline_mode = #tpu.pipeline_mode<synchronous>, transform_indices = @transform_18, window_bounds = array<i64: 1, 1>}, {transform_indices = @transform_19, window_bounds = array<i64: 1, 1, 1>}]} {
    %c0 = arith.constant 0 : index
    %c0_0 = arith.constant 0 : index
    %0 = vector.load %arg2[%c0, %c0_0] : memref<1024x1xf32, #tpu.memory_space<vmem>>, vector<1024x1xf32>
    %cst = arith.constant 5.000000e-01 : f32
    %1 = vector.broadcast %cst : f32 to vector<1024x1xf32>
    %2 = arith.cmpf ogt, %0, %1 : vector<1024x1xf32>
    %c0_1 = arith.constant 0 : index
    %c0_2 = arith.constant 0 : index
    %3 = vector.load %arg3[%c0_1, %c0_2] : memref<256x1xf32, #tpu.memory_space<vmem>>, vector<256x1xf32>
    %cst_3 = arith.constant 5.000000e-01 : f32
    %4 = vector.broadcast %cst_3 : f32 to vector<256x1xf32>
    %5 = arith.cmpf ogt, %3, %4 : vector<256x1xf32>
    %c0_4 = arith.constant 0 : index
    %c0_5 = arith.constant 0 : index
    %6 = vector.load %arg4[%c0_4, %c0_5] : memref<81x1xf32, #tpu.memory_space<vmem>>, vector<81x1xf32>
    %cst_6 = arith.constant 5.000000e-01 : f32
    %7 = vector.broadcast %cst_6 : f32 to vector<81x1xf32>
    %8 = arith.cmpf ogt, %6, %7 : vector<81x1xf32>
    %c0_7 = arith.constant 0 : index
    %c0_8 = arith.constant 0 : index
    %c0_9 = arith.constant 0 : index
    %9 = vector.load %arg1[%c0_7, %c0_8, %c0_9] : memref<1x1024x128xbf16, #tpu.memory_space<vmem>>, vector<1x1024x128xbf16>
    %10 = vector.shape_cast %9 : vector<1x1024x128xbf16> to vector<1024x128xbf16>
    %c0_10 = arith.constant 0 : index
    %c0_11 = arith.constant 0 : index
    %11 = vector.load %arg5[%c0_10, %c0_11] : memref<128x32xbf16, #tpu.memory_space<vmem>>, vector<128x32xbf16>
    %cst_12 = arith.constant dense<0.000000e+00> : vector<1024x32xf32>
    %12 = tpu.matmul %10, %11, %cst_12 {dimension_numbers = #tpu.dot_dimension_numbers<[1], [0], [0], [1], [0, 0, 1, 1], [], []>} : vector<1024x128xbf16>, vector<128x32xbf16>, vector<1024x32xf32> -> vector<1024x32xf32>
    %c0_13 = arith.constant 0 : index
    %c0_14 = arith.constant 0 : index
    %13 = vector.load %arg6[%c0_13, %c0_14] : memref<1x32xf32, #tpu.memory_space<vmem>>, vector<1x32xf32>
    %14 = vector.broadcast %13 : vector<1x32xf32> to vector<1024x32xf32>
    %15 = arith.addf %12, %14 : vector<1024x32xf32>
    %cst_15 = arith.constant 0.000000e+00 : f32
    %16 = vector.broadcast %cst_15 : f32 to vector<1024x32xf32>
    %17 = arith.maximumf %15, %16 : vector<1024x32xf32>
    %cst_16 = arith.constant 0.000000e+00 : f32
    %18 = vector.shape_cast %2 : vector<1024x1xi1> to vector<1024x1xi1>
    %19 = vector.broadcast %18 : vector<1024x1xi1> to vector<1024x32xi1>
    %20 = vector.broadcast %cst_16 : f32 to vector<1024x32xf32>
    %21 = arith.select %19, %17, %20 : vector<1024x32xi1>, vector<1024x32xf32>
    %c32 = arith.constant 32 : index
    %c0_17 = arith.constant 0 : index
    %22 = vector.load %arg21[%c32, %c0_17] : memref<1056x32xf32, #tpu.memory_space<vmem>>, vector<1024x32xf32>
    tpu.vector_store %arg21[%c32, %c0_17], %21 {strides = array<i32>} : memref<1056x32xf32, #tpu.memory_space<vmem>>, vector<1024x32xf32>,
    %c15 = arith.constant 15 : index
    %c0_18 = arith.constant 0 : index
    %23 = vector.load %arg21[%c15, %c0_18] : memref<1056x32xf32, #tpu.memory_space<vmem>>, vector<256x32xf32>
    %c271 = arith.constant 271 : index
    %c0_19 = arith.constant 0 : index
    %24 = vector.load %arg21[%c271, %c0_19] : memref<1056x32xf32, #tpu.memory_space<vmem>>, vector<256x32xf32>
    %25 = arith.maximumf %23, %24 : vector<256x32xf32>
    %c16 = arith.constant 16 : index
    %c0_20 = arith.constant 0 : index
    %26 = vector.load %arg21[%c16, %c0_20] : memref<1056x32xf32, #tpu.memory_space<vmem>>, vector<256x32xf32>
    %27 = arith.maximumf %25, %26 : vector<256x32xf32>
    %c527 = arith.constant 527 : index
    %c0_21 = arith.constant 0 : index
    %28 = vector.load %arg21[%c527, %c0_21] : memref<1056x32xf32, #tpu.memory_space<vmem>>, vector<256x32xf32>
    %29 = arith.maximumf %27, %28 : vector<256x32xf32>
    %c783 = arith.constant 783 : index
    %c0_22 = arith.constant 0 : index
    %30 = vector.load %arg21[%c783, %c0_22] : memref<1056x32xf32, #tpu.memory_space<vmem>>, vector<256x32xf32>
    %31 = arith.maximumf %29, %30 : vector<256x32xf32>
    %c528 = arith.constant 528 : index
    %c0_23 = arith.constant 0 : index
    %32 = vector.load %arg21[%c528, %c0_23] : memref<1056x32xf32, #tpu.memory_space<vmem>>, vector<256x32xf32>
    %33 = arith.maximumf %31, %32 : vector<256x32xf32>
    %c31 = arith.constant 31 : index
    %c0_24 = arith.constant 0 : index
    %34 = vector.load %arg21[%c31, %c0_24] : memref<1056x32xf32, #tpu.memory_space<vmem>>, vector<256x32xf32>
    %35 = arith.maximumf %33, %34 : vector<256x32xf32>
    %c287 = arith.constant 287 : index
    %c0_25 = arith.constant 0 : index
    %36 = vector.load %arg21[%c287, %c0_25] : memref<1056x32xf32, #tpu.memory_space<vmem>>, vector<256x32xf32>
    %37 = arith.maximumf %35, %36 : vector<256x32xf32>
    %c32_26 = arith.constant 32 : index
    %c0_27 = arith.constant 0 : index
    %38 = vector.load %arg21[%c32_26, %c0_27] : memref<1056x32xf32, #tpu.memory_space<vmem>>, vector<256x32xf32>
    %39 = arith.maximumf %37, %38 : vector<256x32xf32>
    %cst_28 = arith.constant 0.000000e+00 : f32
    %40 = vector.shape_cast %5 : vector<256x1xi1> to vector<256x1xi1>
    %41 = vector.broadcast %40 : vector<256x1xi1> to vector<256x32xi1>
    %42 = vector.broadcast %cst_28 : f32 to vector<256x32xf32>
    %43 = arith.select %41, %39, %42 : vector<256x32xi1>, vector<256x32xf32>
    %c32_29 = arith.constant 32 : index
    %c0_30 = arith.constant 0 : index
    %44 = vector.load %arg22[%c32_29, %c0_30] : memref<320x32xf32, #tpu.memory_space<vmem>>, vector<256x32xf32>
    tpu.vector_store %arg22[%c32_29, %c0_30], %43 {strides = array<i32>} : memref<320x32xf32, #tpu.memory_space<vmem>>, vector<256x32xf32>,
    %c15_31 = arith.constant 15 : index
    %c0_32 = arith.constant 0 : index
    %45 = vector.load %arg22[%c15_31, %c0_32] : memref<320x32xf32, #tpu.memory_space<vmem>>, vector<256x32xf32>
    %c16_33 = arith.constant 16 : index
    %c0_34 = arith.constant 0 : index
    %46 = vector.load %arg22[%c16_33, %c0_34] : memref<320x32xf32, #tpu.memory_space<vmem>>, vector<256x32xf32>
    %c17 = arith.constant 17 : index
    %c0_35 = arith.constant 0 : index
    %47 = vector.load %arg22[%c17, %c0_35] : memref<320x32xf32, #tpu.memory_space<vmem>>, vector<256x32xf32>
    %c31_36 = arith.constant 31 : index
    %c0_37 = arith.constant 0 : index
    %48 = vector.load %arg22[%c31_36, %c0_37] : memref<320x32xf32, #tpu.memory_space<vmem>>, vector<256x32xf32>
    %49 = tpu.concatenate %45, %46, %47, %48 in 1 : vector<256x32xf32>, vector<256x32xf32>, vector<256x32xf32>, vector<256x32xf32> -> vector<256x128xf32>
    %50 = arith.truncf %49 : vector<256x128xf32> to vector<256x128xbf16>
    %c0_38 = arith.constant 0 : index
    %c0_39 = arith.constant 0 : index
    %c0_40 = arith.constant 0 : index
    %51 = vector.load %arg7[%c0_38, %c0_39, %c0_40] : memref<3x128x32xbf16, #tpu.memory_space<vmem>>, vector<1x128x32xbf16>
    %52 = vector.shape_cast %51 : vector<1x128x32xbf16> to vector<128x32xbf16>
    %cst_41 = arith.constant dense<0.000000e+00> : vector<256x32xf32>
    %53 = tpu.matmul %50, %52, %cst_41 {dimension_numbers = #tpu.dot_dimension_numbers<[1], [0], [0], [1], [0, 0, 1, 1], [], []>} : vector<256x128xbf16>, vector<128x32xbf16>, vector<256x32xf32> -> vector<256x32xf32>
    %c32_42 = arith.constant 32 : index
    %c0_43 = arith.constant 0 : index
    %54 = vector.load %arg22[%c32_42, %c0_43] : memref<320x32xf32, #tpu.memory_space<vmem>>, vector<256x32xf32>
    %c33 = arith.constant 33 : index
    %c0_44 = arith.constant 0 : index
    %55 = vector.load %arg22[%c33, %c0_44] : memref<320x32xf32, #tpu.memory_space<vmem>>, vector<256x32xf32>
    %c47 = arith.constant 47 : index
    %c0_45 = arith.constant 0 : index
    %56 = vector.load %arg22[%c47, %c0_45] : memref<320x32xf32, #tpu.memory_space<vmem>>, vector<256x32xf32>
    %c48 = arith.constant 48 : index
    %c0_46 = arith.constant 0 : index
    %57 = vector.load %arg22[%c48, %c0_46] : memref<320x32xf32, #tpu.memory_space<vmem>>, vector<256x32xf32>
    %58 = tpu.concatenate %54, %55, %56, %57 in 1 : vector<256x32xf32>, vector<256x32xf32>, vector<256x32xf32>, vector<256x32xf32> -> vector<256x128xf32>
    %59 = arith.truncf %58 : vector<256x128xf32> to vector<256x128xbf16>
    %c1 = arith.constant 1 : index
    %c0_47 = arith.constant 0 : index
    %c0_48 = arith.constant 0 : index
    %60 = vector.load %arg7[%c1, %c0_47, %c0_48] : memref<3x128x32xbf16, #tpu.memory_space<vmem>>, vector<1x128x32xbf16>
    %61 = vector.shape_cast %60 : vector<1x128x32xbf16> to vector<128x32xbf16>
    %cst_49 = arith.constant dense<0.000000e+00> : vector<256x32xf32>
    %62 = tpu.matmul %59, %61, %cst_49 {dimension_numbers = #tpu.dot_dimension_numbers<[1], [0], [0], [1], [0, 0, 1, 1], [], []>} : vector<256x128xbf16>, vector<128x32xbf16>, vector<256x32xf32> -> vector<256x32xf32>
    %63 = arith.addf %53, %62 : vector<256x32xf32>
    %c49 = arith.constant 49 : index
    %c0_50 = arith.constant 0 : index
    %64 = vector.load %arg22[%c49, %c0_50] : memref<320x32xf32, #tpu.memory_space<vmem>>, vector<256x32xf32>
    %c49_51 = arith.constant 49 : index
    %c0_52 = arith.constant 0 : index
    %65 = vector.load %arg22[%c49_51, %c0_52] : memref<320x32xf32, #tpu.memory_space<vmem>>, vector<256x32xf32>
    %c49_53 = arith.constant 49 : index
    %c0_54 = arith.constant 0 : index
    %66 = vector.load %arg22[%c49_53, %c0_54] : memref<320x32xf32, #tpu.memory_space<vmem>>, vector<256x32xf32>
    %c49_55 = arith.constant 49 : index
    %c0_56 = arith.constant 0 : index
    %67 = vector.load %arg22[%c49_55, %c0_56] : memref<320x32xf32, #tpu.memory_space<vmem>>, vector<256x32xf32>
    %68 = tpu.concatenate %64, %65, %66, %67 in 1 : vector<256x32xf32>, vector<256x32xf32>, vector<256x32xf32>, vector<256x32xf32> -> vector<256x128xf32>
    %69 = arith.truncf %68 : vector<256x128xf32> to vector<256x128xbf16>
    %c2 = arith.constant 2 : index
    %c0_57 = arith.constant 0 : index
    %c0_58 = arith.constant 0 : index
    %70 = vector.load %arg7[%c2, %c0_57, %c0_58] : memref<3x128x32xbf16, #tpu.memory_space<vmem>>, vector<1x128x32xbf16>
    %71 = vector.shape_cast %70 : vector<1x128x32xbf16> to vector<128x32xbf16>
    %cst_59 = arith.constant dense<0.000000e+00> : vector<256x32xf32>
    %72 = tpu.matmul %69, %71, %cst_59 {dimension_numbers = #tpu.dot_dimension_numbers<[1], [0], [0], [1], [0, 0, 1, 1], [], []>} : vector<256x128xbf16>, vector<128x32xbf16>, vector<256x32xf32> -> vector<256x32xf32>
    %73 = arith.addf %63, %72 : vector<256x32xf32>
    %c0_60 = arith.constant 0 : index
    %c0_61 = arith.constant 0 : index
    %74 = vector.load %arg8[%c0_60, %c0_61] : memref<1x32xf32, #tpu.memory_space<vmem>>, vector<1x32xf32>
    %75 = vector.broadcast %74 : vector<1x32xf32> to vector<256x32xf32>
    %76 = arith.addf %73, %75 : vector<256x32xf32>
    %cst_62 = arith.constant 0.000000e+00 : f32
    %77 = vector.broadcast %cst_62 : f32 to vector<256x32xf32>
    %78 = arith.maximumf %76, %77 : vector<256x32xf32>
    %cst_63 = arith.constant 0.000000e+00 : f32
    %79 = vector.shape_cast %5 : vector<256x1xi1> to vector<256x1xi1>
    %80 = vector.broadcast %79 : vector<256x1xi1> to vector<256x32xi1>
    %81 = vector.broadcast %cst_63 : f32 to vector<256x32xf32>
    %82 = arith.select %80, %78, %81 : vector<256x32xi1>, vector<256x32xf32>
    %c32_64 = arith.constant 32 : index
    %c0_65 = arith.constant 0 : index
    %83 = vector.load %arg23[%c32_64, %c0_65] : memref<320x32xf32, #tpu.memory_space<vmem>>, vector<256x32xf32>
    tpu.vector_store %arg23[%c32_64, %c0_65], %82 {strides = array<i32>} : memref<320x32xf32, #tpu.memory_space<vmem>>, vector<256x32xf32>,
    %c15_66 = arith.constant 15 : index
    %c0_67 = arith.constant 0 : index
    %84 = vector.load %arg23[%c15_66, %c0_67] : memref<320x32xf32, #tpu.memory_space<vmem>>, vector<256x32xf32>
    %c16_68 = arith.constant 16 : index
    %c0_69 = arith.constant 0 : index
    %85 = vector.load %arg23[%c16_68, %c0_69] : memref<320x32xf32, #tpu.memory_space<vmem>>, vector<256x32xf32>
    %c17_70 = arith.constant 17 : index
    %c0_71 = arith.constant 0 : index
    %86 = vector.load %arg23[%c17_70, %c0_71] : memref<320x32xf32, #tpu.memory_space<vmem>>, vector<256x32xf32>
    %c31_72 = arith.constant 31 : index
    %c0_73 = arith.constant 0 : index
    %87 = vector.load %arg23[%c31_72, %c0_73] : memref<320x32xf32, #tpu.memory_space<vmem>>, vector<256x32xf32>
    %88 = tpu.concatenate %84, %85, %86, %87 in 1 : vector<256x32xf32>, vector<256x32xf32>, vector<256x32xf32>, vector<256x32xf32> -> vector<256x128xf32>
    %89 = arith.truncf %88 : vector<256x128xf32> to vector<256x128xbf16>
    %c0_74 = arith.constant 0 : index
    %c0_75 = arith.constant 0 : index
    %c0_76 = arith.constant 0 : index
    %90 = vector.load %arg9[%c0_74, %c0_75, %c0_76] : memref<3x128x32xbf16, #tpu.memory_space<vmem>>, vector<1x128x32xbf16>
    %91 = vector.shape_cast %90 : vector<1x128x32xbf16> to vector<128x32xbf16>
    %cst_77 = arith.constant dense<0.000000e+00> : vector<256x32xf32>
    %92 = tpu.matmul %89, %91, %cst_77 {dimension_numbers = #tpu.dot_dimension_numbers<[1], [0], [0], [1], [0, 0, 1, 1], [], []>} : vector<256x128xbf16>, vector<128x32xbf16>, vector<256x32xf32> -> vector<256x32xf32>
    %c32_78 = arith.constant 32 : index
    %c0_79 = arith.constant 0 : index
    %93 = vector.load %arg23[%c32_78, %c0_79] : memref<320x32xf32, #tpu.memory_space<vmem>>, vector<256x32xf32>
    %c33_80 = arith.constant 33 : index
    %c0_81 = arith.constant 0 : index
    %94 = vector.load %arg23[%c33_80, %c0_81] : memref<320x32xf32, #tpu.memory_space<vmem>>, vector<256x32xf32>
    %c47_82 = arith.constant 47 : index
    %c0_83 = arith.constant 0 : index
    %95 = vector.load %arg23[%c47_82, %c0_83] : memref<320x32xf32, #tpu.memory_space<vmem>>, vector<256x32xf32>
    %c48_84 = arith.constant 48 : index
    %c0_85 = arith.constant 0 : index
    %96 = vector.load %arg23[%c48_84, %c0_85] : memref<320x32xf32, #tpu.memory_space<vmem>>, vector<256x32xf32>
    %97 = tpu.concatenate %93, %94, %95, %96 in 1 : vector<256x32xf32>, vector<256x32xf32>, vector<256x32xf32>, vector<256x32xf32> -> vector<256x128xf32>
    %98 = arith.truncf %97 : vector<256x128xf32> to vector<256x128xbf16>
    %c1_86 = arith.constant 1 : index
    %c0_87 = arith.constant 0 : index
    %c0_88 = arith.constant 0 : index
    %99 = vector.load %arg9[%c1_86, %c0_87, %c0_88] : memref<3x128x32xbf16, #tpu.memory_space<vmem>>, vector<1x128x32xbf16>
    %100 = vector.shape_cast %99 : vector<1x128x32xbf16> to vector<128x32xbf16>
    %cst_89 = arith.constant dense<0.000000e+00> : vector<256x32xf32>
    %101 = tpu.matmul %98, %100, %cst_89 {dimension_numbers = #tpu.dot_dimension_numbers<[1], [0], [0], [1], [0, 0, 1, 1], [], []>} : vector<256x128xbf16>, vector<128x32xbf16>, vector<256x32xf32> -> vector<256x32xf32>
    %102 = arith.addf %92, %101 : vector<256x32xf32>
    %c49_90 = arith.constant 49 : index
    %c0_91 = arith.constant 0 : index
    %103 = vector.load %arg23[%c49_90, %c0_91] : memref<320x32xf32, #tpu.memory_space<vmem>>, vector<256x32xf32>
    %c49_92 = arith.constant 49 : index
    %c0_93 = arith.constant 0 : index
    %104 = vector.load %arg23[%c49_92, %c0_93] : memref<320x32xf32, #tpu.memory_space<vmem>>, vector<256x32xf32>
    %c49_94 = arith.constant 49 : index
    %c0_95 = arith.constant 0 : index
    %105 = vector.load %arg23[%c49_94, %c0_95] : memref<320x32xf32, #tpu.memory_space<vmem>>, vector<256x32xf32>
    %c49_96 = arith.constant 49 : index
    %c0_97 = arith.constant 0 : index
    %106 = vector.load %arg23[%c49_96, %c0_97] : memref<320x32xf32, #tpu.memory_space<vmem>>, vector<256x32xf32>
    %107 = tpu.concatenate %103, %104, %105, %106 in 1 : vector<256x32xf32>, vector<256x32xf32>, vector<256x32xf32>, vector<256x32xf32> -> vector<256x128xf32>
    %108 = arith.truncf %107 : vector<256x128xf32> to vector<256x128xbf16>
    %c2_98 = arith.constant 2 : index
    %c0_99 = arith.constant 0 : index
    %c0_100 = arith.constant 0 : index
    %109 = vector.load %arg9[%c2_98, %c0_99, %c0_100] : memref<3x128x32xbf16, #tpu.memory_space<vmem>>, vector<1x128x32xbf16>
    %110 = vector.shape_cast %109 : vector<1x128x32xbf16> to vector<128x32xbf16>
    %cst_101 = arith.constant dense<0.000000e+00> : vector<256x32xf32>
    %111 = tpu.matmul %108, %110, %cst_101 {dimension_numbers = #tpu.dot_dimension_numbers<[1], [0], [0], [1], [0, 0, 1, 1], [], []>} : vector<256x128xbf16>, vector<128x32xbf16>, vector<256x32xf32> -> vector<256x32xf32>
    %112 = arith.addf %102, %111 : vector<256x32xf32>
    %c0_102 = arith.constant 0 : index
    %c0_103 = arith.constant 0 : index
    %113 = vector.load %arg10[%c0_102, %c0_103] : memref<1x32xf32, #tpu.memory_space<vmem>>, vector<1x32xf32>
    %114 = vector.broadcast %113 : vector<1x32xf32> to vector<256x32xf32>
    %115 = arith.addf %112, %114 : vector<256x32xf32>
    %c32_104 = arith.constant 32 : index
    %c0_105 = arith.constant 0 : index
    %116 = vector.load %arg22[%c32_104, %c0_105] : memref<320x32xf32, #tpu.memory_space<vmem>>, vector<256x32xf32>
    %117 = arith.addf %115, %116 : vector<256x32xf32>
    %cst_106 = arith.constant 0.000000e+00 : f32
    %118 = vector.broadcast %cst_106 : f32 to vector<256x32xf32>
    %119 = arith.maximumf %117, %118 : vector<256x32xf32>
    %cst_107 = arith.constant 0.000000e+00 : f32
    %120 = vector.shape_cast %5 : vector<256x1xi1> to vector<256x1xi1>
    %121 = vector.broadcast %120 : vector<256x1xi1> to vector<256x32xi1>
    %122 = vector.broadcast %cst_107 : f32 to vector<256x32xf32>
    %123 = arith.select %121, %119, %122 : vector<256x32xi1>, vector<256x32xf32>
    %c0_108 = arith.constant 0 : index
    %c0_109 = arith.constant 0 : index
    %124 = vector.load %arg11[%c0_108, %c0_109] : memref<324x256xbf16, #tpu.memory_space<vmem>>, vector<324x256xbf16>
    %125 = arith.truncf %123 : vector<256x32xf32> to vector<256x32xbf16>
    %cst_110 = arith.constant dense<0.000000e+00> : vector<324x32xf32>
    %126 = tpu.matmul %124, %125, %cst_110 {dimension_numbers = #tpu.dot_dimension_numbers<[1], [0], [0], [1], [0, 0, 1, 1], [], []>} : vector<324x256xbf16>, vector<256x32xbf16>, vector<324x32xf32> -> vector<324x32xf32>
    %c16_111 = arith.constant 16 : index
    %c0_112 = arith.constant 0 : index
    %127 = vector.load %arg24[%c16_111, %c0_112] : memref<356x32xf32, #tpu.memory_space<vmem>>, vector<324x32xf32>
    tpu.vector_store %arg24[%c16_111, %c0_112], %126 {strides = array<i32>} : memref<356x32xf32, #tpu.memory_space<vmem>>, vector<324x32xf32>,
    %c6 = arith.constant 6 : index
    %c0_113 = arith.constant 0 : index
    %128 = vector.load %arg24[%c6, %c0_113] : memref<356x32xf32, #tpu.memory_space<vmem>>, vector<81x32xf32>
    %c87 = arith.constant 87 : index
    %c0_114 = arith.constant 0 : index
    %129 = vector.load %arg24[%c87, %c0_114] : memref<356x32xf32, #tpu.memory_space<vmem>>, vector<81x32xf32>
    %c7 = arith.constant 7 : index
    %c0_115 = arith.constant 0 : index
    %130 = vector.load %arg24[%c7, %c0_115] : memref<356x32xf32, #tpu.memory_space<vmem>>, vector<81x32xf32>
    %c168 = arith.constant 168 : index
    %c0_116 = arith.constant 0 : index
    %131 = vector.load %arg24[%c168, %c0_116] : memref<356x32xf32, #tpu.memory_space<vmem>>, vector<81x32xf32>
    %132 = tpu.concatenate %128, %129, %130, %131 in 1 : vector<81x32xf32>, vector<81x32xf32>, vector<81x32xf32>, vector<81x32xf32> -> vector<81x128xf32>
    %133 = arith.truncf %132 : vector<81x128xf32> to vector<81x128xbf16>
    %c0_117 = arith.constant 0 : index
    %c0_118 = arith.constant 0 : index
    %c0_119 = arith.constant 0 : index
    %134 = vector.load %arg12[%c0_117, %c0_118, %c0_119] : memref<3x128x64xbf16, #tpu.memory_space<vmem>>, vector<1x128x64xbf16>
    %135 = vector.shape_cast %134 : vector<1x128x64xbf16> to vector<128x64xbf16>
    %cst_120 = arith.constant dense<0.000000e+00> : vector<81x64xf32>
    %136 = tpu.matmul %133, %135, %cst_120 {dimension_numbers = #tpu.dot_dimension_numbers<[1], [0], [0], [1], [0, 0, 1, 1], [], []>} : vector<81x128xbf16>, vector<128x64xbf16>, vector<81x64xf32> -> vector<81x64xf32>
    %c249 = arith.constant 249 : index
    %c0_121 = arith.constant 0 : index
    %137 = vector.load %arg24[%c249, %c0_121] : memref<356x32xf32, #tpu.memory_space<vmem>>, vector<81x32xf32>
    %c169 = arith.constant 169 : index
    %c0_122 = arith.constant 0 : index
    %138 = vector.load %arg24[%c169, %c0_122] : memref<356x32xf32, #tpu.memory_space<vmem>>, vector<81x32xf32>
    %c15_123 = arith.constant 15 : index
    %c0_124 = arith.constant 0 : index
    %139 = vector.load %arg24[%c15_123, %c0_124] : memref<356x32xf32, #tpu.memory_space<vmem>>, vector<81x32xf32>
    %c96 = arith.constant 96 : index
    %c0_125 = arith.constant 0 : index
    %140 = vector.load %arg24[%c96, %c0_125] : memref<356x32xf32, #tpu.memory_space<vmem>>, vector<81x32xf32>
    %141 = tpu.concatenate %137, %138, %139, %140 in 1 : vector<81x32xf32>, vector<81x32xf32>, vector<81x32xf32>, vector<81x32xf32> -> vector<81x128xf32>
    %142 = arith.truncf %141 : vector<81x128xf32> to vector<81x128xbf16>
    %c1_126 = arith.constant 1 : index
    %c0_127 = arith.constant 0 : index
    %c0_128 = arith.constant 0 : index
    %143 = vector.load %arg12[%c1_126, %c0_127, %c0_128] : memref<3x128x64xbf16, #tpu.memory_space<vmem>>, vector<1x128x64xbf16>
    %144 = vector.shape_cast %143 : vector<1x128x64xbf16> to vector<128x64xbf16>
    %cst_129 = arith.constant dense<0.000000e+00> : vector<81x64xf32>
    %145 = tpu.matmul %142, %144, %cst_129 {dimension_numbers = #tpu.dot_dimension_numbers<[1], [0], [0], [1], [0, 0, 1, 1], [], []>} : vector<81x128xbf16>, vector<128x64xbf16>, vector<81x64xf32> -> vector<81x64xf32>
    %146 = arith.addf %136, %145 : vector<81x64xf32>
    %c16_130 = arith.constant 16 : index
    %c0_131 = arith.constant 0 : index
    %147 = vector.load %arg24[%c16_130, %c0_131] : memref<356x32xf32, #tpu.memory_space<vmem>>, vector<81x32xf32>
    %c16_132 = arith.constant 16 : index
    %c0_133 = arith.constant 0 : index
    %148 = vector.load %arg24[%c16_132, %c0_133] : memref<356x32xf32, #tpu.memory_space<vmem>>, vector<81x32xf32>
    %c16_134 = arith.constant 16 : index
    %c0_135 = arith.constant 0 : index
    %149 = vector.load %arg24[%c16_134, %c0_135] : memref<356x32xf32, #tpu.memory_space<vmem>>, vector<81x32xf32>
    %c16_136 = arith.constant 16 : index
    %c0_137 = arith.constant 0 : index
    %150 = vector.load %arg24[%c16_136, %c0_137] : memref<356x32xf32, #tpu.memory_space<vmem>>, vector<81x32xf32>
    %151 = tpu.concatenate %147, %148, %149, %150 in 1 : vector<81x32xf32>, vector<81x32xf32>, vector<81x32xf32>, vector<81x32xf32> -> vector<81x128xf32>
    %152 = arith.truncf %151 : vector<81x128xf32> to vector<81x128xbf16>
    %c2_138 = arith.constant 2 : index
    %c0_139 = arith.constant 0 : index
    %c0_140 = arith.constant 0 : index
    %153 = vector.load %arg12[%c2_138, %c0_139, %c0_140] : memref<3x128x64xbf16, #tpu.memory_space<vmem>>, vector<1x128x64xbf16>
    %154 = vector.shape_cast %153 : vector<1x128x64xbf16> to vector<128x64xbf16>
    %cst_141 = arith.constant dense<0.000000e+00> : vector<81x64xf32>
    %155 = tpu.matmul %152, %154, %cst_141 {dimension_numbers = #tpu.dot_dimension_numbers<[1], [0], [0], [1], [0, 0, 1, 1], [], []>} : vector<81x128xbf16>, vector<128x64xbf16>, vector<81x64xf32> -> vector<81x64xf32>
    %156 = arith.addf %146, %155 : vector<81x64xf32>
    %c0_142 = arith.constant 0 : index
    %c0_143 = arith.constant 0 : index
    %157 = vector.load %arg13[%c0_142, %c0_143] : memref<1x64xf32, #tpu.memory_space<vmem>>, vector<1x64xf32>
    %158 = vector.broadcast %157 : vector<1x64xf32> to vector<81x64xf32>
    %159 = arith.addf %156, %158 : vector<81x64xf32>
    %cst_144 = arith.constant 0.000000e+00 : f32
    %160 = vector.broadcast %cst_144 : f32 to vector<81x64xf32>
    %161 = arith.maximumf %159, %160 : vector<81x64xf32>
    %cst_145 = arith.constant 0.000000e+00 : f32
    %162 = vector.shape_cast %8 : vector<81x1xi1> to vector<81x1xi1>
    %163 = vector.broadcast %162 : vector<81x1xi1> to vector<81x64xi1>
    %164 = vector.broadcast %cst_145 : f32 to vector<81x64xf32>
    %165 = arith.select %163, %161, %164 : vector<81x64xi1>, vector<81x64xf32>
    %c16_146 = arith.constant 16 : index
    %c0_147 = arith.constant 0 : index
    %166 = vector.load %arg25[%c16_146, %c0_147] : memref<113x64xf32, #tpu.memory_space<vmem>>, vector<81x64xf32>
    tpu.vector_store %arg25[%c16_146, %c0_147], %165 {strides = array<i32>} : memref<113x64xf32, #tpu.memory_space<vmem>>, vector<81x64xf32>,
    %c249_148 = arith.constant 249 : index
    %c0_149 = arith.constant 0 : index
    %167 = vector.load %arg24[%c249_148, %c0_149] : memref<356x32xf32, #tpu.memory_space<vmem>>, vector<81x32xf32>
    %168 = arith.truncf %167 : vector<81x32xf32> to vector<81x32xbf16>
    %c0_150 = arith.constant 0 : index
    %c0_151 = arith.constant 0 : index
    %169 = vector.load %arg14[%c0_150, %c0_151] : memref<32x64xbf16, #tpu.memory_space<vmem>>, vector<32x64xbf16>
    %cst_152 = arith.constant dense<0.000000e+00> : vector<81x64xf32>
    %170 = tpu.matmul %168, %169, %cst_152 {dimension_numbers = #tpu.dot_dimension_numbers<[1], [0], [0], [1], [0, 0, 1, 1], [], []>} : vector<81x32xbf16>, vector<32x64xbf16>, vector<81x64xf32> -> vector<81x64xf32>
    %c0_153 = arith.constant 0 : index
    %c0_154 = arith.constant 0 : index
    %171 = vector.load %arg15[%c0_153, %c0_154] : memref<1x64xf32, #tpu.memory_space<vmem>>, vector<1x64xf32>
    %172 = vector.broadcast %171 : vector<1x64xf32> to vector<81x64xf32>
    %173 = arith.addf %170, %172 : vector<81x64xf32>
    %c6_155 = arith.constant 6 : index
    %c0_156 = arith.constant 0 : index
    %174 = vector.load %arg25[%c6_155, %c0_156] : memref<113x64xf32, #tpu.memory_space<vmem>>, vector<81x64xf32>
    %c7_157 = arith.constant 7 : index
    %c0_158 = arith.constant 0 : index
    %175 = vector.load %arg25[%c7_157, %c0_158] : memref<113x64xf32, #tpu.memory_space<vmem>>, vector<81x64xf32>
    %176 = tpu.concatenate %174, %175 in 1 : vector<81x64xf32>, vector<81x64xf32> -> vector<81x128xf32>
    %177 = arith.truncf %176 : vector<81x128xf32> to vector<81x128xbf16>
    %c0_159 = arith.constant 0 : index
    %c0_160 = arith.constant 0 : index
    %c0_161 = arith.constant 0 : index
    %178 = vector.load %arg16[%c0_159, %c0_160, %c0_161] : memref<5x128x64xbf16, #tpu.memory_space<vmem>>, vector<1x128x64xbf16>
    %179 = vector.shape_cast %178 : vector<1x128x64xbf16> to vector<128x64xbf16>
    %cst_162 = arith.constant dense<0.000000e+00> : vector<81x64xf32>
    %180 = tpu.matmul %177, %179, %cst_162 {dimension_numbers = #tpu.dot_dimension_numbers<[1], [0], [0], [1], [0, 0, 1, 1], [], []>} : vector<81x128xbf16>, vector<128x64xbf16>, vector<81x64xf32> -> vector<81x64xf32>
    %c8 = arith.constant 8 : index
    %c0_163 = arith.constant 0 : index
    %181 = vector.load %arg25[%c8, %c0_163] : memref<113x64xf32, #tpu.memory_space<vmem>>, vector<81x64xf32>
    %c15_164 = arith.constant 15 : index
    %c0_165 = arith.constant 0 : index
    %182 = vector.load %arg25[%c15_164, %c0_165] : memref<113x64xf32, #tpu.memory_space<vmem>>, vector<81x64xf32>
    %183 = tpu.concatenate %181, %182 in 1 : vector<81x64xf32>, vector<81x64xf32> -> vector<81x128xf32>
    %184 = arith.truncf %183 : vector<81x128xf32> to vector<81x128xbf16>
    %c1_166 = arith.constant 1 : index
    %c0_167 = arith.constant 0 : index
    %c0_168 = arith.constant 0 : index
    %185 = vector.load %arg16[%c1_166, %c0_167, %c0_168] : memref<5x128x64xbf16, #tpu.memory_space<vmem>>, vector<1x128x64xbf16>
    %186 = vector.shape_cast %185 : vector<1x128x64xbf16> to vector<128x64xbf16>
    %cst_169 = arith.constant dense<0.000000e+00> : vector<81x64xf32>
    %187 = tpu.matmul %184, %186, %cst_169 {dimension_numbers = #tpu.dot_dimension_numbers<[1], [0], [0], [1], [0, 0, 1, 1], [], []>} : vector<81x128xbf16>, vector<128x64xbf16>, vector<81x64xf32> -> vector<81x64xf32>
    %188 = arith.addf %180, %187 : vector<81x64xf32>
    %c16_170 = arith.constant 16 : index
    %c0_171 = arith.constant 0 : index
    %189 = vector.load %arg25[%c16_170, %c0_171] : memref<113x64xf32, #tpu.memory_space<vmem>>, vector<81x64xf32>
    %c17_172 = arith.constant 17 : index
    %c0_173 = arith.constant 0 : index
    %190 = vector.load %arg25[%c17_172, %c0_173] : memref<113x64xf32, #tpu.memory_space<vmem>>, vector<81x64xf32>
    %191 = tpu.concatenate %189, %190 in 1 : vector<81x64xf32>, vector<81x64xf32> -> vector<81x128xf32>
    %192 = arith.truncf %191 : vector<81x128xf32> to vector<81x128xbf16>
    %c2_174 = arith.constant 2 : index
    %c0_175 = arith.constant 0 : index
    %c0_176 = arith.constant 0 : index
    %193 = vector.load %arg16[%c2_174, %c0_175, %c0_176] : memref<5x128x64xbf16, #tpu.memory_space<vmem>>, vector<1x128x64xbf16>
    %194 = vector.shape_cast %193 : vector<1x128x64xbf16> to vector<128x64xbf16>
    %cst_177 = arith.constant dense<0.000000e+00> : vector<81x64xf32>
    %195 = tpu.matmul %192, %194, %cst_177 {dimension_numbers = #tpu.dot_dimension_numbers<[1], [0], [0], [1], [0, 0, 1, 1], [], []>} : vector<81x128xbf16>, vector<128x64xbf16>, vector<81x64xf32> -> vector<81x64xf32>
    %196 = arith.addf %188, %195 : vector<81x64xf32>
    %c24 = arith.constant 24 : index
    %c0_178 = arith.constant 0 : index
    %197 = vector.load %arg25[%c24, %c0_178] : memref<113x64xf32, #tpu.memory_space<vmem>>, vector<81x64xf32>
    %c25 = arith.constant 25 : index
    %c0_179 = arith.constant 0 : index
    %198 = vector.load %arg25[%c25, %c0_179] : memref<113x64xf32, #tpu.memory_space<vmem>>, vector<81x64xf32>
    %199 = tpu.concatenate %197, %198 in 1 : vector<81x64xf32>, vector<81x64xf32> -> vector<81x128xf32>
    %200 = arith.truncf %199 : vector<81x128xf32> to vector<81x128xbf16>
    %c3 = arith.constant 3 : index
    %c0_180 = arith.constant 0 : index
    %c0_181 = arith.constant 0 : index
    %201 = vector.load %arg16[%c3, %c0_180, %c0_181] : memref<5x128x64xbf16, #tpu.memory_space<vmem>>, vector<1x128x64xbf16>
    %202 = vector.shape_cast %201 : vector<1x128x64xbf16> to vector<128x64xbf16>
    %cst_182 = arith.constant dense<0.000000e+00> : vector<81x64xf32>
    %203 = tpu.matmul %200, %202, %cst_182 {dimension_numbers = #tpu.dot_dimension_numbers<[1], [0], [0], [1], [0, 0, 1, 1], [], []>} : vector<81x128xbf16>, vector<128x64xbf16>, vector<81x64xf32> -> vector<81x64xf32>
    %204 = arith.addf %196, %203 : vector<81x64xf32>
    %c26 = arith.constant 26 : index
    %c0_183 = arith.constant 0 : index
    %205 = vector.load %arg25[%c26, %c0_183] : memref<113x64xf32, #tpu.memory_space<vmem>>, vector<81x64xf32>
    %c26_184 = arith.constant 26 : index
    %c0_185 = arith.constant 0 : index
    %206 = vector.load %arg25[%c26_184, %c0_185] : memref<113x64xf32, #tpu.memory_space<vmem>>, vector<81x64xf32>
    %207 = tpu.concatenate %205, %206 in 1 : vector<81x64xf32>, vector<81x64xf32> -> vector<81x128xf32>
    %208 = arith.truncf %207 : vector<81x128xf32> to vector<81x128xbf16>
    %c4 = arith.constant 4 : index
    %c0_186 = arith.constant 0 : index
    %c0_187 = arith.constant 0 : index
    %209 = vector.load %arg16[%c4, %c0_186, %c0_187] : memref<5x128x64xbf16, #tpu.memory_space<vmem>>, vector<1x128x64xbf16>
    %210 = vector.shape_cast %209 : vector<1x128x64xbf16> to vector<128x64xbf16>
    %cst_188 = arith.constant dense<0.000000e+00> : vector<81x64xf32>
    %211 = tpu.matmul %208, %210, %cst_188 {dimension_numbers = #tpu.dot_dimension_numbers<[1], [0], [0], [1], [0, 0, 1, 1], [], []>} : vector<81x128xbf16>, vector<128x64xbf16>, vector<81x64xf32> -> vector<81x64xf32>
    %212 = arith.addf %204, %211 : vector<81x64xf32>
    %c0_189 = arith.constant 0 : index
    %c0_190 = arith.constant 0 : index
    %213 = vector.load %arg17[%c0_189, %c0_190] : memref<1x64xf32, #tpu.memory_space<vmem>>, vector<1x64xf32>
    %214 = vector.broadcast %213 : vector<1x64xf32> to vector<81x64xf32>
    %215 = arith.addf %212, %214 : vector<81x64xf32>
    %216 = arith.addf %215, %173 : vector<81x64xf32>
    %cst_191 = arith.constant 0.000000e+00 : f32
    %217 = vector.broadcast %cst_191 : f32 to vector<81x64xf32>
    %218 = arith.maximumf %216, %217 : vector<81x64xf32>
    %cst_192 = arith.constant 0.000000e+00 : f32
    %219 = vector.shape_cast %8 : vector<81x1xi1> to vector<81x1xi1>
    %220 = vector.broadcast %219 : vector<81x1xi1> to vector<81x64xi1>
    %221 = vector.broadcast %cst_192 : f32 to vector<81x64xf32>
    %222 = arith.select %220, %218, %221 : vector<81x64xi1>, vector<81x64xf32>
    %cst_193 = arith.constant dense<0.000000e+00> : vector<64xf32>
    %223 = vector.multi_reduction <add>, %222, %cst_193 [0] : vector<81x64xf32> to vector<64xf32>
    %224 = vector.shape_cast %223 : vector<64xf32> to vector<1x64xf32>
    %cst_194 = arith.constant 0.0204081628 : f32
    %225 = vector.broadcast %cst_194 : f32 to vector<1x64xf32>
    %226 = arith.mulf %224, %225 : vector<1x64xf32>
    %c0_195 = arith.constant 0 : index
    %c0_196 = arith.constant 0 : index
    %227 = vector.load %arg18[%c0_195, %c0_196] : memref<64x1xf32, #tpu.memory_space<vmem>>, vector<64x1xf32>
    %cst_197 = arith.constant dense<0.000000e+00> : vector<1x1xf32>
    %228 = tpu.matmul %226, %227, %cst_197 {dimension_numbers = #tpu.dot_dimension_numbers<[1], [0], [0], [1], [0, 0, 1, 1], [], []>} : vector<1x64xf32>, vector<64x1xf32>, vector<1x1xf32> -> vector<1x1xf32>
    %c0_198 = arith.constant 0 : index
    %c0_199 = arith.constant 0 : index
    %229 = vector.load %arg19[%c0_198, %c0_199] : memref<1x1xf32, #tpu.memory_space<vmem>>, vector<1x1xf32>
    %230 = arith.addf %228, %229 : vector<1x1xf32>
    %231 = arith.negf %230 : vector<1x1xf32>
    %232 = math.exp %231 : vector<1x1xf32>
    %cst_200 = arith.constant 1.000000e+00 : f32
    %233 = vector.broadcast %cst_200 : f32 to vector<1x1xf32>
    %234 = arith.addf %233, %232 : vector<1x1xf32>
    %235 = arith.divf %233, %234 : vector<1x1xf32>
    %c0_201 = arith.constant 0 : index
    %c0_202 = arith.constant 0 : index
    %c0_203 = arith.constant 0 : index
    %236 = vector.load %arg20[%c0_201, %c0_202, %c0_203] : memref<1x1x1xf32, #tpu.memory_space<vmem>>, vector<1x1x1xf32>
    %237 = vector.shape_cast %236 : vector<1x1x1xf32> to vector<1x1xf32>
    %238 = vector.shape_cast %235 : vector<1x1xf32> to vector<1x1x1xf32>
    tpu.vector_store %arg20[%c0_201, %c0_202, %c0_203], %238 {strides = array<i32>} : memref<1x1x1xf32, #tpu.memory_space<vmem>>, vector<1x1x1xf32>,
    return
  }
  func.func @transform_0(%arg0: i32) -> (i32, i32, i32) {
    %c0_i32 = arith.constant 0 : i32
    %c0_i32_0 = arith.constant 0 : i32
    %c0_i32_1 = arith.constant 0 : i32
    return %arg0, %c0_i32, %c0_i32_0 : i32, i32, i32
  }
  func.func @transform_1(%arg0: i32) -> (i32, i32) {
    %c0_i32 = arith.constant 0 : i32
    %c0_i32_0 = arith.constant 0 : i32
    %c0_i32_1 = arith.constant 0 : i32
    return %c0_i32, %c0_i32_0 : i32, i32
  }
  func.func @transform_2(%arg0: i32) -> (i32, i32) {
    %c0_i32 = arith.constant 0 : i32
    %c0_i32_0 = arith.constant 0 : i32
    %c0_i32_1 = arith.constant 0 : i32
    return %c0_i32, %c0_i32_0 : i32, i32
  }
  func.func @transform_3(%arg0: i32) -> (i32, i32) {
    %c0_i32 = arith.constant 0 : i32
    %c0_i32_0 = arith.constant 0 : i32
    %c0_i32_1 = arith.constant 0 : i32
    return %c0_i32, %c0_i32_0 : i32, i32
  }
  func.func @transform_4(%arg0: i32) -> (i32, i32) {
    %c0_i32 = arith.constant 0 : i32
    %c0_i32_0 = arith.constant 0 : i32
    %c0_i32_1 = arith.constant 0 : i32
    return %c0_i32, %c0_i32_0 : i32, i32
  }
  func.func @transform_5(%arg0: i32) -> (i32, i32) {
    %c0_i32 = arith.constant 0 : i32
    %c0_i32_0 = arith.constant 0 : i32
    %c0_i32_1 = arith.constant 0 : i32
    return %c0_i32, %c0_i32_0 : i32, i32
  }
  func.func @transform_6(%arg0: i32) -> (i32, i32, i32) {
    %c0_i32 = arith.constant 0 : i32
    %c0_i32_0 = arith.constant 0 : i32
    %c0_i32_1 = arith.constant 0 : i32
    %c0_i32_2 = arith.constant 0 : i32
    return %c0_i32, %c0_i32_0, %c0_i32_1 : i32, i32, i32
  }
  func.func @transform_7(%arg0: i32) -> (i32, i32) {
    %c0_i32 = arith.constant 0 : i32
    %c0_i32_0 = arith.constant 0 : i32
    %c0_i32_1 = arith.constant 0 : i32
    return %c0_i32, %c0_i32_0 : i32, i32
  }
  func.func @transform_8(%arg0: i32) -> (i32, i32, i32) {
    %c0_i32 = arith.constant 0 : i32
    %c0_i32_0 = arith.constant 0 : i32
    %c0_i32_1 = arith.constant 0 : i32
    %c0_i32_2 = arith.constant 0 : i32
    return %c0_i32, %c0_i32_0, %c0_i32_1 : i32, i32, i32
  }
  func.func @transform_9(%arg0: i32) -> (i32, i32) {
    %c0_i32 = arith.constant 0 : i32
    %c0_i32_0 = arith.constant 0 : i32
    %c0_i32_1 = arith.constant 0 : i32
    return %c0_i32, %c0_i32_0 : i32, i32
  }
  func.func @transform_10(%arg0: i32) -> (i32, i32) {
    %c0_i32 = arith.constant 0 : i32
    %c0_i32_0 = arith.constant 0 : i32
    %c0_i32_1 = arith.constant 0 : i32
    return %c0_i32, %c0_i32_0 : i32, i32
  }
  func.func @transform_11(%arg0: i32) -> (i32, i32, i32) {
    %c0_i32 = arith.constant 0 : i32
    %c0_i32_0 = arith.constant 0 : i32
    %c0_i32_1 = arith.constant 0 : i32
    %c0_i32_2 = arith.constant 0 : i32
    return %c0_i32, %c0_i32_0, %c0_i32_1 : i32, i32, i32
  }
  func.func @transform_12(%arg0: i32) -> (i32, i32) {
    %c0_i32 = arith.constant 0 : i32
    %c0_i32_0 = arith.constant 0 : i32
    %c0_i32_1 = arith.constant 0 : i32
    return %c0_i32, %c0_i32_0 : i32, i32
  }
  func.func @transform_13(%arg0: i32) -> (i32, i32) {
    %c0_i32 = arith.constant 0 : i32
    %c0_i32_0 = arith.constant 0 : i32
    %c0_i32_1 = arith.constant 0 : i32
    return %c0_i32, %c0_i32_0 : i32, i32
  }
  func.func @transform_14(%arg0: i32) -> (i32, i32) {
    %c0_i32 = arith.constant 0 : i32
    %c0_i32_0 = arith.constant 0 : i32
    %c0_i32_1 = arith.constant 0 : i32
    return %c0_i32, %c0_i32_0 : i32, i32
  }
  func.func @transform_15(%arg0: i32) -> (i32, i32, i32) {
    %c0_i32 = arith.constant 0 : i32
    %c0_i32_0 = arith.constant 0 : i32
    %c0_i32_1 = arith.constant 0 : i32
    %c0_i32_2 = arith.constant 0 : i32
    return %c0_i32, %c0_i32_0, %c0_i32_1 : i32, i32, i32
  }
  func.func @transform_16(%arg0: i32) -> (i32, i32) {
    %c0_i32 = arith.constant 0 : i32
    %c0_i32_0 = arith.constant 0 : i32
    %c0_i32_1 = arith.constant 0 : i32
    return %c0_i32, %c0_i32_0 : i32, i32
  }
  func.func @transform_17(%arg0: i32) -> (i32, i32) {
    %c0_i32 = arith.constant 0 : i32
    %c0_i32_0 = arith.constant 0 : i32
    %c0_i32_1 = arith.constant 0 : i32
    return %c0_i32, %c0_i32_0 : i32, i32
  }
  func.func @transform_18(%arg0: i32) -> (i32, i32) {
    %c0_i32 = arith.constant 0 : i32
    %c0_i32_0 = arith.constant 0 : i32
    %c0_i32_1 = arith.constant 0 : i32
    return %c0_i32, %c0_i32_0 : i32, i32
  }
  func.func @transform_19(%arg0: i32) -> (i32, i32, i32) {
    %c0_i32 = arith.constant 0 : i32
    %c0_i32_0 = arith.constant 0 : i32
    %c0_i32_1 = arith.constant 0 : i32
    return %arg0, %c0_i32, %c0_i32_0 : i32, i32, i32
  }
}

</mosaic_0001>

<llo_original>
// kernel: resnetlike_forward.1
$region0: #{resnetlike_forward.1}
  #allocation0 [shape = 'u32[]', space=smem, size = 0x4, offset = 0x4, fixed_abs, tag = 'smem constant byte address 0x4 - core index']
  #allocation1 [shape = 'u32[144,128]{1,0:T(1,128)}', space=vmem, size = 0x12000, scoped, tag = 'internal scratch']
  #allocation2 [shape = 'f32[1056,32]{1,0:T(8,128)}', space=vmem, size = 0x84000, scoped, tag = 'scratch operand']
  #allocation3 [shape = 'f32[320,32]{1,0:T(8,128)}', space=vmem, size = 0x28000, scoped, tag = 'scratch operand']
  #allocation4 [shape = 'f32[320,32]{1,0:T(8,128)}', space=vmem, size = 0x28000, scoped, tag = 'scratch operand']
  #allocation5 [shape = 'f32[356,32]{1,0:T(8,128)}', space=vmem, size = 0x2d000, scoped, tag = 'scratch operand']
  #allocation6 [shape = 'f32[113,64]{1,0:T(8,128)}', space=vmem, size = 0xf000, scoped, tag = 'scratch operand']
  #allocation7 [shape = 'f32[1,1]{1,0:T(1,128)S(1)}', space=vmem, size = 0x200, scoped, tag = 'scoped memory for resnetlike_forward.1']
  %s0 = inlined_call_operand.vmem [shape: bf16[2,1024,128], index: 0, kind: input, shape index: {}]
  %s1 = inlined_call_operand.vmem [shape: f32[1024,1], index: 1, kind: input, shape index: {}]
  %s2 = inlined_call_operand.vmem [shape: f32[256,1], index: 2, kind: input, shape index: {}]
  %s3 = inlined_call_operand.vmem [shape: f32[81,1], index: 3, kind: input, shape index: {}]
  %s4 = inlined_call_operand.vmem [shape: bf16[128,32], index: 4, kind: input, shape index: {}]
  %s5 = inlined_call_operand.vmem [shape: f32[1,32], index: 5, kind: input, shape index: {}]
  %s6 = inlined_call_operand.vmem [shape: bf16[3,128,32], index: 6, kind: input, shape index: {}]
  %s7 = inlined_call_operand.vmem [shape: f32[1,32], index: 7, kind: input, shape index: {}]
  %s8 = inlined_call_operand.vmem [shape: bf16[3,128,32], index: 8, kind: input, shape index: {}]
  %s9 = inlined_call_operand.vmem [shape: f32[1,32], index: 9, kind: input, shape index: {}]
  %s10 = inlined_call_operand.vmem [shape: bf16[324,256], index: 10, kind: input, shape index: {}]
  %s11 = inlined_call_operand.vmem [shape: bf16[3,128,64], index: 11, kind: input, shape index: {}]
  %s12 = inlined_call_operand.vmem [shape: f32[1,64], index: 12, kind: input, shape index: {}]
  %s13 = inlined_call_operand.vmem [shape: bf16[32,64], index: 13, kind: input, shape index: {}]
  %s14 = inlined_call_operand.vmem [shape: f32[1,64], index: 14, kind: input, shape index: {}]
  %s15 = inlined_call_operand.vmem [shape: bf16[5,128,64], index: 15, kind: input, shape index: {}]
  %s16 = inlined_call_operand.vmem [shape: f32[1,64], index: 16, kind: input, shape index: {}]
  %s17 = inlined_call_operand.vmem [shape: f32[64,1], index: 17, kind: input, shape index: {}]
  %s18 = inlined_call_operand.<no memory space> [shape: f32[1,1], index: 18, kind: input, shape index: {}]
  %s19 = inlined_call_operand.vmem [shape: f32[2,1,1], index: 19, kind: output, shape index: {}]
  %s20 = sld [smem:[#allocation0]]
  $region109: #{resnetlike_forward.1} parent=0
    _
  %s22 = ssub.s32 1, %s20
  %s23 = scalar_select 0, %s22, %s20
  %v24 = vstv %s18
  %25 = vst [vmem:[#allocation7] sm:$0x1] %v24
  loop: start=0, step=1, limit=4
  $region2: #{resnetlike_forward.1} parent=0 // loop_pre_header
    _
  $region3: #{resnetlike_forward.1} parent=0 // loop_header
    %s27 = sphi 0, %s31
    %p28 = scmp.ge.s32.totalorder %s27, 4
    %s37 = sphi 0, %s39
    %s40 = sphi 0, %s37
    %s41 = sphi 0, %s40
    %s57 = sphi 0, %s41
    %s61 = sphi 0, %s61
    %s63 = sphi 0, %s61
    %s64 = sphi 0, %s63
    %s78 = sphi 0, %s64
    %s82 = sphi 0, %s82
    %s84 = sphi 0, %s82
    %s85 = sphi 0, %s84
    %s99 = sphi 0, %s85
    %s103 = sphi 0, %s103
    %s105 = sphi 0, %s103
    %s106 = sphi 0, %s105
    %s120 = sphi 0, %s106
    %s124 = sphi 0, %s124
    %s126 = sphi 0, %s124
    %s127 = sphi 0, %s126
    %s141 = sphi 0, %s127
    %s145 = sphi 0, %s145
    %s147 = sphi 0, %s145
    %s148 = sphi 0, %s147
    %s162 = sphi 0, %s148
    %s166 = sphi 0, %s166
    %s168 = sphi 0, %s166
    %s169 = sphi 0, %s168
    %s183 = sphi 0, %s169
    %s187 = sphi 0, %s187
    %s189 = sphi 0, %s187
    %s190 = sphi 0, %s189
    %s204 = sphi 0, %s190
    %s208 = sphi 0, %s208
    %s210 = sphi 0, %s208
    %s211 = sphi 0, %s210
    %s225 = sphi 0, %s211
    %s229 = sphi 0, %s229
    %s231 = sphi 0, %s229
    %s232 = sphi 0, %s231
    %s246 = sphi 0, %s232
    %s250 = sphi 0, %s250
    %s252 = sphi 0, %s250
    %s253 = sphi 0, %s252
    %s267 = sphi 0, %s253
    %s271 = sphi 0, %s271
    %s273 = sphi 0, %s271
    %s274 = sphi 0, %s273
    %s288 = sphi 0, %s274
    %s292 = sphi 0, %s292
    %s294 = sphi 0, %s292
    %s295 = sphi 0, %s294
    %s309 = sphi 0, %s295
    %s313 = sphi 0, %s313
    %s315 = sphi 0, %s313
    %s316 = sphi 0, %s315
    %s330 = sphi 0, %s316
    %s334 = sphi 0, %s334
    %s336 = sphi 0, %s334
    %s337 = sphi 0, %s336
    %s351 = sphi 0, %s337
    %s355 = sphi 0, %s355
    %s357 = sphi 0, %s355
    %s358 = sphi 0, %s357
    %s372 = sphi 0, %s358
    %s376 = sphi 0, %s376
    %s378 = sphi 0, %s376
    %s379 = sphi 0, %s378
    %s393 = sphi 0, %s379
    %s397 = sphi 0, %s397
    %s399 = sphi 0, %s397
    %s400 = sphi 0, %s399
    %s414 = sphi 0, %s400
    %s418 = sphi 0, %s418
    %s420 = sphi 0, %s418
    %s421 = sphi 0, %s420
    %s435 = sphi 0, %s421
    %s441 = sphi 0, %s443
    %s444 = sphi 0, %s441
    %s445 = sphi 0, %s444
    %s461 = sphi 0, %s445
  $region4: #{resnetlike_forward.1} parent=0 // loop_header_branch
    %30 = sbr.rel (%p28) target = $region8
  $region5: #{resnetlike_forward.1} parent=0 // loop_body
    %s32 = ssub.s32 %s27, 1
    %s33 = ssub.s32 %s27, 2
    %s34 = sadd.s32 %s27, 1
    %s35 = ssub.s32 %s27, %s34
    %p36 = scmp.eq.s32.totalorder %s35, 0
    %s38 = sadd.s32 %s37, 1
    %s39 = scalar_select %p36, %s37, %s38
    %p42 = pneg %p36
    %p43 = scmp.eq.s32.totalorder %s27, 1
    %p44 = por %p42, %p43
    %p45 = scmp.ne.s32.totalorder %s37, %s40
    %p46 = scmp.eq.s32.totalorder %s27, 0
    %p47 = por %p45, %p46
    %p48 = scmp.ne.s32.totalorder %s37, %s40
    %p49 = scmp.eq.s32.totalorder %s32, 1
    %p50 = por %p48, %p49
    %p51 = scmp.ne.s32.totalorder %s40, %s41
    %p52 = scmp.eq.s32.totalorder %s32, 0
    %p53 = por %p51, %p52
    %p54 = scmp.ne.s32.totalorder %s40, %s41
    %p55 = scmp.eq.s32.totalorder %s33, 1
    %p56 = por %p54, %p55
    %p58 = scmp.ne.s32.totalorder %s41, %s57
    %p59 = scmp.eq.s32.totalorder %s33, 0
    %p60 = por %p58, %p59
    %s62 = sadd.s32 %s61, 1
    %p65 = scmp.eq.s32.totalorder %s27, 1
    %p66 = scmp.ne.s32.totalorder %s61, %s63
    %p67 = scmp.eq.s32.totalorder %s27, 0
    %p68 = por %p66, %p67
    %p69 = scmp.ne.s32.totalorder %s61, %s63
    %p70 = scmp.eq.s32.totalorder %s32, 1
    %p71 = por %p69, %p70
    %p72 = scmp.ne.s32.totalorder %s63, %s64
    %p73 = scmp.eq.s32.totalorder %s32, 0
    %p74 = por %p72, %p73
    %p75 = scmp.ne.s32.totalorder %s63, %s64
    %p76 = scmp.eq.s32.totalorder %s33, 1
    %p77 = por %p75, %p76
    %p79 = scmp.ne.s32.totalorder %s64, %s78
    %p80 = scmp.eq.s32.totalorder %s33, 0
    %p81 = por %p79, %p80
    %s83 = sadd.s32 %s82, 1
    %p86 = scmp.eq.s32.totalorder %s27, 1
    %p87 = scmp.ne.s32.totalorder %s82, %s84
    %p88 = scmp.eq.s32.totalorder %s27, 0
    %p89 = por %p87, %p88
    %p90 = scmp.ne.s32.totalorder %s82, %s84
    %p91 = scmp.eq.s32.totalorder %s32, 1
    %p92 = por %p90, %p91
    %p93 = scmp.ne.s32.totalorder %s84, %s85
    %p94 = scmp.eq.s32.totalorder %s32, 0
    %p95 = por %p93, %p94
    %p96 = scmp.ne.s32.totalorder %s84, %s85
    %p97 = scmp.eq.s32.totalorder %s33, 1
    %p98 = por %p96, %p97
    %p100 = scmp.ne.s32.totalorder %s85, %s99
    %p101 = scmp.eq.s32.totalorder %s33, 0
    %p102 = por %p100, %p101
    %s104 = sadd.s32 %s103, 1
    %p107 = scmp.eq.s32.totalorder %s27, 1
    %p108 = scmp.ne.s32.totalorder %s103, %s105
    %p109 = scmp.eq.s32.totalorder %s27, 0
    %p110 = por %p108, %p109
    %p111 = scmp.ne.s32.totalorder %s103, %s105
    %p112 = scmp.eq.s32.totalorder %s32, 1
    %p113 = por %p111, %p112
    %p114 = scmp.ne.s32.totalorder %s105, %s106
    %p115 = scmp.eq.s32.totalorder %s32, 0
    %p116 = por %p114, %p115
    %p117 = scmp.ne.s32.totalorder %s105, %s106
    %p118 = scmp.eq.s32.totalorder %s33, 1
    %p119 = por %p117, %p118
    %p121 = scmp.ne.s32.totalorder %s106, %s120
    %p122 = scmp.eq.s32.totalorder %s33, 0
    %p123 = por %p121, %p122
    %s125 = sadd.s32 %s124, 1
    %p128 = scmp.eq.s32.totalorder %s27, 1
    %p129 = scmp.ne.s32.totalorder %s124, %s126
    %p130 = scmp.eq.s32.totalorder %s27, 0
    %p131 = por %p129, %p130
    %p132 = scmp.ne.s32.totalorder %s124, %s126
    %p133 = scmp.eq.s32.totalorder %s32, 1
    %p134 = por %p132, %p133
    %p135 = scmp.ne.s32.totalorder %s126, %s127
    %p136 = scmp.eq.s32.totalorder %s32, 0
    %p137 = por %p135, %p136
    %p138 = scmp.ne.s32.totalorder %s126, %s127
    %p139 = scmp.eq.s32.totalorder %s33, 1
    %p140 = por %p138, %p139
    %p142 = scmp.ne.s32.totalorder %s127, %s141
    %p143 = scmp.eq.s32.totalorder %s33, 0
    %p144 = por %p142, %p143
    %s146 = sadd.s32 %s145, 1
    %p149 = scmp.eq.s32.totalorder %s27, 1
    %p150 = scmp.ne.s32.totalorder %s145, %s147
    %p151 = scmp.eq.s32.totalorder %s27, 0
    %p152 = por %p150, %p151
    %p153 = scmp.ne.s32.totalorder %s145, %s147
    %p154 = scmp.eq.s32.totalorder %s32, 1
    %p155 = por %p153, %p154
    %p156 = scmp.ne.s32.totalorder %s147, %s148
    %p157 = scmp.eq.s32.totalorder %s32, 0
    %p158 = por %p156, %p157
    %p159 = scmp.ne.s32.totalorder %s147, %s148
    %p160 = scmp.eq.s32.totalorder %s33, 1
    %p161 = por %p159, %p160
    %p163 = scmp.ne.s32.totalorder %s148, %s162
    %p164 = scmp.eq.s32.totalorder %s33, 0
    %p165 = por %p163, %p164
    %s167 = sadd.s32 %s166, 1
    %p170 = scmp.eq.s32.totalorder %s27, 1
    %p171 = scmp.ne.s32.totalorder %s166, %s168
    %p172 = scmp.eq.s32.totalorder %s27, 0
    %p173 = por %p171, %p172
    %p174 = scmp.ne.s32.totalorder %s166, %s168
    %p175 = scmp.eq.s32.totalorder %s32, 1
    %p176 = por %p174, %p175
    %p177 = scmp.ne.s32.totalorder %s168, %s169
    %p178 = scmp.eq.s32.totalorder %s32, 0
    %p179 = por %p177, %p178
    %p180 = scmp.ne.s32.totalorder %s168, %s169
    %p181 = scmp.eq.s32.totalorder %s33, 1
    %p182 = por %p180, %p181
    %p184 = scmp.ne.s32.totalorder %s169, %s183
    %p185 = scmp.eq.s32.totalorder %s33, 0
    %p186 = por %p184, %p185
    %s188 = sadd.s32 %s187, 1
    %p191 = scmp.eq.s32.totalorder %s27, 1
    %p192 = scmp.ne.s32.totalorder %s187, %s189
    %p193 = scmp.eq.s32.totalorder %s27, 0
    %p194 = por %p192, %p193
    %p195 = scmp.ne.s32.totalorder %s187, %s189
    %p196 = scmp.eq.s32.totalorder %s32, 1
    %p197 = por %p195, %p196
    %p198 = scmp.ne.s32.totalorder %s189, %s190
    %p199 = scmp.eq.s32.totalorder %s32, 0
    %p200 = por %p198, %p199
    %p201 = scmp.ne.s32.totalorder %s189, %s190
    %p202 = scmp.eq.s32.totalorder %s33, 1
    %p203 = por %p201, %p202
    %p205 = scmp.ne.s32.totalorder %s190, %s204
    %p206 = scmp.eq.s32.totalorder %s33, 0
    %p207 = por %p205, %p206
    %s209 = sadd.s32 %s208, 1
    %p212 = scmp.eq.s32.totalorder %s27, 1
    %p213 = scmp.ne.s32.totalorder %s208, %s210
    %p214 = scmp.eq.s32.totalorder %s27, 0
    %p215 = por %p213, %p214
    %p216 = scmp.ne.s32.totalorder %s208, %s210
    %p217 = scmp.eq.s32.totalorder %s32, 1
    %p218 = por %p216, %p217
    %p219 = scmp.ne.s32.totalorder %s210, %s211
    %p220 = scmp.eq.s32.totalorder %s32, 0
    %p221 = por %p219, %p220
    %p222 = scmp.ne.s32.totalorder %s210, %s211
    %p223 = scmp.eq.s32.totalorder %s33, 1
    %p224 = por %p222, %p223
    %p226 = scmp.ne.s32.totalorder %s211, %s225
    %p227 = scmp.eq.s32.totalorder %s33, 0
    %p228 = por %p226, %p227
    %s230 = sadd.s32 %s229, 1
    %p233 = scmp.eq.s32.totalorder %s27, 1
    %p234 = scmp.ne.s32.totalorder %s229, %s231
    %p235 = scmp.eq.s32.totalorder %s27, 0
    %p236 = por %p234, %p235
    %p237 = scmp.ne.s32.totalorder %s229, %s231
    %p238 = scmp.eq.s32.totalorder %s32, 1
    %p239 = por %p237, %p238
    %p240 = scmp.ne.s32.totalorder %s231, %s232
    %p241 = scmp.eq.s32.totalorder %s32, 0
    %p242 = por %p240, %p241
    %p243 = scmp.ne.s32.totalorder %s231, %s232
    %p244 = scmp.eq.s32.totalorder %s33, 1
    %p245 = por %p243, %p244
    %p247 = scmp.ne.s32.totalorder %s232, %s246
    %p248 = scmp.eq.s32.totalorder %s33, 0
    %p249 = por %p247, %p248
    %s251 = sadd.s32 %s250, 1
    %p254 = scmp.eq.s32.totalorder %s27, 1
    %p255 = scmp.ne.s32.totalorder %s250, %s252
    %p256 = scmp.eq.s32.totalorder %s27, 0
    %p257 = por %p255, %p256
    %p258 = scmp.ne.s32.totalorder %s250, %s252
    %p259 = scmp.eq.s32.totalorder %s32, 1
    %p260 = por %p258, %p259
    %p261 = scmp.ne.s32.totalorder %s252, %s253
    %p262 = scmp.eq.s32.totalorder %s32, 0
    %p263 = por %p261, %p262
    %p264 = scmp.ne.s32.totalorder %s252, %s253
    %p265 = scmp.eq.s32.totalorder %s33, 1
    %p266 = por %p264, %p265
    %p268 = scmp.ne.s32.totalorder %s253, %s267
    %p269 = scmp.eq.s32.totalorder %s33, 0
    %p270 = por %p268, %p269
    %s272 = sadd.s32 %s271, 1
    %p275 = scmp.eq.s32.totalorder %s27, 1
    %p276 = scmp.ne.s32.totalorder %s271, %s273
    %p277 = scmp.eq.s32.totalorder %s27, 0
    %p278 = por %p276, %p277
    %p279 = scmp.ne.s32.totalorder %s271, %s273
    %p280 = scmp.eq.s32.totalorder %s32, 1
    %p281 = por %p279, %p280
    %p282 = scmp.ne.s32.totalorder %s273, %s274
    %p283 = scmp.eq.s32.totalorder %s32, 0
    %p284 = por %p282, %p283
    %p285 = scmp.ne.s32.totalorder %s273, %s274
    %p286 = scmp.eq.s32.totalorder %s33, 1
    %p287 = por %p285, %p286
    %p289 = scmp.ne.s32.totalorder %s274, %s288
    %p290 = scmp.eq.s32.totalorder %s33, 0
    %p291 = por %p289, %p290
    %s293 = sadd.s32 %s292, 1
    %p296 = scmp.eq.s32.totalorder %s27, 1
    %p297 = scmp.ne.s32.totalorder %s292, %s294
    %p298 = scmp.eq.s32.totalorder %s27, 0
    %p299 = por %p297, %p298
    %p300 = scmp.ne.s32.totalorder %s292, %s294
    %p301 = scmp.eq.s32.totalorder %s32, 1
    %p302 = por %p300, %p301
    %p303 = scmp.ne.s32.totalorder %s294, %s295
    %p304 = scmp.eq.s32.totalorder %s32, 0
    %p305 = por %p303, %p304
    %p306 = scmp.ne.s32.totalorder %s294, %s295
    %p307 = scmp.eq.s32.totalorder %s33, 1
    %p308 = por %p306, %p307
    %p310 = scmp.ne.s32.totalorder %s295, %s309
    %p311 = scmp.eq.s32.totalorder %s33, 0
    %p312 = por %p310, %p311
    %s314 = sadd.s32 %s313, 1
    %p317 = scmp.eq.s32.totalorder %s27, 1
    %p318 = scmp.ne.s32.totalorder %s313, %s315
    %p319 = scmp.eq.s32.totalorder %s27, 0
    %p320 = por %p318, %p319
    %p321 = scmp.ne.s32.totalorder %s313, %s315
    %p322 = scmp.eq.s32.totalorder %s32, 1
    %p323 = por %p321, %p322
    %p324 = scmp.ne.s32.totalorder %s315, %s316
    %p325 = scmp.eq.s32.totalorder %s32, 0
    %p326 = por %p324, %p325
    %p327 = scmp.ne.s32.totalorder %s315, %s316
    %p328 = scmp.eq.s32.totalorder %s33, 1
    %p329 = por %p327, %p328
    %p331 = scmp.ne.s32.totalorder %s316, %s330
    %p332 = scmp.eq.s32.totalorder %s33, 0
    %p333 = por %p331, %p332
    %s335 = sadd.s32 %s334, 1
    %p338 = scmp.eq.s32.totalorder %s27, 1
    %p339 = scmp.ne.s32.totalorder %s334, %s336
    %p340 = scmp.eq.s32.totalorder %s27, 0
    %p341 = por %p339, %p340
    %p342 = scmp.ne.s32.totalorder %s334, %s336
    %p343 = scmp.eq.s32.totalorder %s32, 1
    %p344 = por %p342, %p343
    %p345 = scmp.ne.s32.totalorder %s336, %s337
    %p346 = scmp.eq.s32.totalorder %s32, 0
    %p347 = por %p345, %p346
    %p348 = scmp.ne.s32.totalorder %s336, %s337
    %p349 = scmp.eq.s32.totalorder %s33, 1
    %p350 = por %p348, %p349
    %p352 = scmp.ne.s32.totalorder %s337, %s351
    %p353 = scmp.eq.s32.totalorder %s33, 0
    %p354 = por %p352, %p353
    %s356 = sadd.s32 %s355, 1
    %p359 = scmp.eq.s32.totalorder %s27, 1
    %p360 = scmp.ne.s32.totalorder %s355, %s357
    %p361 = scmp.eq.s32.totalorder %s27, 0
    %p362 = por %p360, %p361
    %p363 = scmp.ne.s32.totalorder %s355, %s357
    %p364 = scmp.eq.s32.totalorder %s32, 1
    %p365 = por %p363, %p364
    %p366 = scmp.ne.s32.totalorder %s357, %s358
    %p367 = scmp.eq.s32.totalorder %s32, 0
    %p368 = por %p366, %p367
    %p369 = scmp.ne.s32.totalorder %s357, %s358
    %p370 = scmp.eq.s32.totalorder %s33, 1
    %p371 = por %p369, %p370
    %p373 = scmp.ne.s32.totalorder %s358, %s372
    %p374 = scmp.eq.s32.totalorder %s33, 0
    %p375 = por %p373, %p374
    %s377 = sadd.s32 %s376, 1
    %p380 = scmp.eq.s32.totalorder %s27, 1
    %p381 = scmp.ne.s32.totalorder %s376, %s378
    %p382 = scmp.eq.s32.totalorder %s27, 0
    %p383 = por %p381, %p382
    %p384 = scmp.ne.s32.totalorder %s376, %s378
    %p385 = scmp.eq.s32.totalorder %s32, 1
    %p386 = por %p384, %p385
    %p387 = scmp.ne.s32.totalorder %s378, %s379
    %p388 = scmp.eq.s32.totalorder %s32, 0
    %p389 = por %p387, %p388
    %p390 = scmp.ne.s32.totalorder %s378, %s379
    %p391 = scmp.eq.s32.totalorder %s33, 1
    %p392 = por %p390, %p391
    %p394 = scmp.ne.s32.totalorder %s379, %s393
    %p395 = scmp.eq.s32.totalorder %s33, 0
    %p396 = por %p394, %p395
    %s398 = sadd.s32 %s397, 1
    %p401 = scmp.eq.s32.totalorder %s27, 1
    %p402 = scmp.ne.s32.totalorder %s397, %s399
    %p403 = scmp.eq.s32.totalorder %s27, 0
    %p404 = por %p402, %p403
    %p405 = scmp.ne.s32.totalorder %s397, %s399
    %p406 = scmp.eq.s32.totalorder %s32, 1
    %p407 = por %p405, %p406
    %p408 = scmp.ne.s32.totalorder %s399, %s400
    %p409 = scmp.eq.s32.totalorder %s32, 0
    %p410 = por %p408, %p409
    %p411 = scmp.ne.s32.totalorder %s399, %s400
    %p412 = scmp.eq.s32.totalorder %s33, 1
    %p413 = por %p411, %p412
    %p415 = scmp.ne.s32.totalorder %s400, %s414
    %p416 = scmp.eq.s32.totalorder %s33, 0
    %p417 = por %p415, %p416
    %s419 = sadd.s32 %s418, 1
    %p422 = scmp.eq.s32.totalorder %s27, 1
    %p423 = scmp.ne.s32.totalorder %s418, %s420
    %p424 = scmp.eq.s32.totalorder %s27, 0
    %p425 = por %p423, %p424
    %p426 = scmp.ne.s32.totalorder %s418, %s420
    %p427 = scmp.eq.s32.totalorder %s32, 1
    %p428 = por %p426, %p427
    %p429 = scmp.ne.s32.totalorder %s420, %s421
    %p430 = scmp.eq.s32.totalorder %s32, 0
    %p431 = por %p429, %p430
    %p432 = scmp.ne.s32.totalorder %s420, %s421
    %p433 = scmp.eq.s32.totalorder %s33, 1
    %p434 = por %p432, %p433
    %p436 = scmp.ne.s32.totalorder %s421, %s435
    %p437 = scmp.eq.s32.totalorder %s33, 0
    %p438 = por %p436, %p437
    %s439 = ssub.s32 %s27, %s34
    %p440 = scmp.eq.s32.totalorder %s439, 0
    %s442 = sadd.s32 %s441, 1
    %s443 = scalar_select %p440, %s441, %s442
    %p446 = pneg %p440
    %p447 = scmp.eq.s32.totalorder %s27, 1
    %p448 = por %p446, %p447
    %p449 = scmp.ne.s32.totalorder %s441, %s444
    %p450 = scmp.eq.s32.totalorder %s27, 0
    %p451 = por %p449, %p450
    %p452 = scmp.ne.s32.totalorder %s441, %s444
    %p453 = scmp.eq.s32.totalorder %s32, 1
    %p454 = por %p452, %p453
    %p455 = scmp.ne.s32.totalorder %s444, %s445
    %p456 = scmp.eq.s32.totalorder %s32, 0
    %p457 = por %p455, %p456
    %p458 = scmp.ne.s32.totalorder %s444, %s445
    %p459 = scmp.eq.s32.totalorder %s33, 1
    %p460 = por %p458, %p459
    %p462 = scmp.ne.s32.totalorder %s445, %s461
    %p463 = scmp.eq.s32.totalorder %s33, 0
    %p464 = por %p462, %p463
    %p465 = scmp.le.s32.totalorder 1, %s27
    %p466 = scmp.lt.s32.totalorder %s27, 3
    %p467 = pnand %p465, %p466
    %p468 = pneg %p467
    // Predicated region
    $region9: #{resnetlike_forward.1} parent=5 // pred_check
      _
    $region10: #{resnetlike_forward.1} parent=5 // pred_check_branch
      %470 = sbr.rel (%p467) target = $region12
    $region11: #{resnetlike_forward.1} parent=5 // pred_region
      %s471 = ssub.s32 %s27, 1
      // Predicated region
      $region13: #{resnetlike_forward.1} parent=11 // pred_check
        %p472 = pneg %p74
      $region14: #{resnetlike_forward.1} parent=11 // pred_check_branch
        %474 = sbr.rel (%p472) target = $region16
      $region15: #{resnetlike_forward.1} parent=11 // pred_region
        _
      $region16: #{resnetlike_forward.1} parent=11 // pred_fallthru
        _
      // Predicated region
      $region17: #{resnetlike_forward.1} parent=11 // pred_check
        %p475 = pneg %p95
      $region18: #{resnetlike_forward.1} parent=11 // pred_check_branch
        %477 = sbr.rel (%p475) target = $region20
      $region19: #{resnetlike_forward.1} parent=11 // pred_region
        _
      $region20: #{resnetlike_forward.1} parent=11 // pred_fallthru
        _
      // Predicated region
      $region21: #{resnetlike_forward.1} parent=11 // pred_check
        %p478 = pneg %p116
      $region22: #{resnetlike_forward.1} parent=11 // pred_check_branch
        %480 = sbr.rel (%p478) target = $region24
      $region23: #{resnetlike_forward.1} parent=11 // pred_region
        _
      $region24: #{resnetlike_forward.1} parent=11 // pred_fallthru
        _
      // Predicated region
      $region25: #{resnetlike_forward.1} parent=11 // pred_check
        %p481 = pneg %p137
      $region26: #{resnetlike_forward.1} parent=11 // pred_check_branch
        %483 = sbr.rel (%p481) target = $region28
      $region27: #{resnetlike_forward.1} parent=11 // pred_region
        _
      $region28: #{resnetlike_forward.1} parent=11 // pred_fallthru
        _
      // Predicated region
      $region29: #{resnetlike_forward.1} parent=11 // pred_check
        %p484 = pneg %p158
      $region30: #{resnetlike_forward.1} parent=11 // pred_check_branch
        %486 = sbr.rel (%p484) target = $region32
      $region31: #{resnetlike_forward.1} parent=11 // pred_region
        _
      $region32: #{resnetlike_forward.1} parent=11 // pred_fallthru
        _
      // Predicated region
      $region33: #{resnetlike_forward.1} parent=11 // pred_check
        %p487 = pneg %p179
      $region34: #{resnetlike_forward.1} parent=11 // pred_check_branch
        %489 = sbr.rel (%p487) target = $region36
      $region35: #{resnetlike_forward.1} parent=11 // pred_region
        _
      $region36: #{resnetlike_forward.1} parent=11 // pred_fallthru
        _
      // Predicated region
      $region37: #{resnetlike_forward.1} parent=11 // pred_check
        %p490 = pneg %p200
      $region38: #{resnetlike_forward.1} parent=11 // pred_check_branch
        %492 = sbr.rel (%p490) target = $region40
      $region39: #{resnetlike_forward.1} parent=11 // pred_region
        _
      $region40: #{resnetlike_forward.1} parent=11 // pred_fallthru
        _
      // Predicated region
      $region41: #{resnetlike_forward.1} parent=11 // pred_check
        %p493 = pneg %p221
      $region42: #{resnetlike_forward.1} parent=11 // pred_check_branch
        %495 = sbr.rel (%p493) target = $region44
      $region43: #{resnetlike_forward.1} parent=11 // pred_region
        _
      $region44: #{resnetlike_forward.1} parent=11 // pred_fallthru
        _
      // Predicated region
      $region45: #{resnetlike_forward.1} parent=11 // pred_check
        %p496 = pneg %p242
      $region46: #{resnetlike_forward.1} parent=11 // pred_check_branch
        %498 = sbr.rel (%p496) target = $region48
      $region47: #{resnetlike_forward.1} parent=11 // pred_region
        _
      $region48: #{resnetlike_forward.1} parent=11 // pred_fallthru
        _
      // Predicated region
      $region49: #{resnetlike_forward.1} parent=11 // pred_check
        %p499 = pneg %p263
      $region50: #{resnetlike_forward.1} parent=11 // pred_check_branch
        %501 = sbr.rel (%p499) target = $region52
      $region51: #{resnetlike_forward.1} parent=11 // pred_region
        _
      $region52: #{resnetlike_forward.1} parent=11 // pred_fallthru
        _
      // Predicated region
      $region53: #{resnetlike_forward.1} parent=11 // pred_check
        %p502 = pneg %p284
      $region54: #{resnetlike_forward.1} parent=11 // pred_check_branch
        %504 = sbr.rel (%p502) target = $region56
      $region55: #{resnetlike_forward.1} parent=11 // pred_region
        _
      $region56: #{resnetlike_forward.1} parent=11 // pred_fallthru
        _
      // Predicated region
      $region57: #{resnetlike_forward.1} parent=11 // pred_check
        %p505 = pneg %p305
      $region58: #{resnetlike_forward.1} parent=11 // pred_check_branch
        %507 = sbr.rel (%p505) target = $region60
      $region59: #{resnetlike_forward.1} parent=11 // pred_region
        _
      $region60: #{resnetlike_forward.1} parent=11 // pred_fallthru
        _
      // Predicated region
      $region61: #{resnetlike_forward.1} parent=11 // pred_check
        %p508 = pneg %p326
      $region62: #{resnetlike_forward.1} parent=11 // pred_check_branch
        %510 = sbr.rel (%p508) target = $region64
      $region63: #{resnetlike_forward.1} parent=11 // pred_region
        _
      $region64: #{resnetlike_forward.1} parent=11 // pred_fallthru
        _
      // Predicated region
      $region65: #{resnetlike_forward.1} parent=11 // pred_check
        %p511 = pneg %p347
      $region66: #{resnetlike_forward.1} parent=11 // pred_check_branch
        %513 = sbr.rel (%p511) target = $region68
      $region67: #{resnetlike_forward.1} parent=11 // pred_region
        _
      $region68: #{resnetlike_forward.1} parent=11 // pred_fallthru
        _
      // Predicated region
      $region69: #{resnetlike_forward.1} parent=11 // pred_check
        %p514 = pneg %p368
      $region70: #{resnetlike_forward.1} parent=11 // pred_check_branch
        %516 = sbr.rel (%p514) target = $region72
      $region71: #{resnetlike_forward.1} parent=11 // pred_region
        _
      $region72: #{resnetlike_forward.1} parent=11 // pred_fallthru
        _
      // Predicated region
      $region73: #{resnetlike_forward.1} parent=11 // pred_check
        %p517 = pneg %p389
      $region74: #{resnetlike_forward.1} parent=11 // pred_check_branch
        %519 = sbr.rel (%p517) target = $region76
      $region75: #{resnetlike_forward.1} parent=11 // pred_region
        _
      $region76: #{resnetlike_forward.1} parent=11 // pred_fallthru
        _
      // Predicated region
      $region77: #{resnetlike_forward.1} parent=11 // pred_check
        %p520 = pneg %p410
      $region78: #{resnetlike_forward.1} parent=11 // pred_check_branch
        %522 = sbr.rel (%p520) target = $region80
      $region79: #{resnetlike_forward.1} parent=11 // pred_region
        _
      $region80: #{resnetlike_forward.1} parent=11 // pred_fallthru
        _
      // Predicated region
      $region81: #{resnetlike_forward.1} parent=11 // pred_check
        %p523 = pneg %p431
      $region82: #{resnetlike_forward.1} parent=11 // pred_check_branch
        %525 = sbr.rel (%p523) target = $region84
      $region83: #{resnetlike_forward.1} parent=11 // pred_region
        _
      $region84: #{resnetlike_forward.1} parent=11 // pred_fallthru
        _
    $region12: #{resnetlike_forward.1} parent=5 // pred_fallthru
      _
    %p526 = scmp.lt.s32.totalorder %s27, 2
    // Predicated region
    $region85: #{resnetlike_forward.1} parent=5 // pred_check
      %p527 = pneg %p526
    $region86: #{resnetlike_forward.1} parent=5 // pred_check_branch
      %529 = sbr.rel (%p527) target = $region88
    $region87: #{resnetlike_forward.1} parent=5 // pred_region
      // Predicated region
      $region89: #{resnetlike_forward.1} parent=87 // pred_check
        %p530 = pneg %p47
      $region90: #{resnetlike_forward.1} parent=87 // pred_check_branch
        %532 = sbr.rel (%p530) target = $region92
      $region91: #{resnetlike_forward.1} parent=87 // pred_region
        %p533 = scmp.lt.s32.totalorder %s27, 1
        %s534 = scalar_select %p533, %s27, 1
        %s535 = smul.addr %s534, 128
        %s536 = smul.addr %s535, 4
        %s537 = scalar_lea.vmem %s0, %s536
      $region92: #{resnetlike_forward.1} parent=87 // pred_fallthru
        _
    $region88: #{resnetlike_forward.1} parent=5 // pred_fallthru
      _
    %p538 = scmp.le.s32.totalorder 1, %s27
    %p539 = scmp.lt.s32.totalorder %s27, 3
    %p540 = pnand %p538, %p539
    %p541 = pneg %p540
    // Predicated region
    $region93: #{resnetlike_forward.1} parent=5 // pred_check
      _
    $region94: #{resnetlike_forward.1} parent=5 // pred_check_branch
      %543 = sbr.rel (%p540) target = $region96
    $region95: #{resnetlike_forward.1} parent=5 // pred_region
      %s544 = ssub.s32 %s27, 1
      %p545 = scmp.lt.s32.totalorder %s32, 1
      %s546 = scalar_select %p545, %s32, 1
      %s547 = smul.addr %s546, 128
      %s548 = smul.addr %s547, 4
      %s549 = scalar_lea.vmem %s0, %s548
      %p550 = pneg %p53
      %p551 = pneg %p50
      %p552 = pneg %p74
      %p553 = pneg %p71
      %p554 = pneg %p95
      %p555 = pneg %p92
      %p556 = pneg %p116
      %p557 = pneg %p113
      %p558 = pneg %p137
      %p559 = pneg %p134
      %p560 = pneg %p158
      %p561 = pneg %p155
      %p562 = pneg %p179
      %p563 = pneg %p176
      %p564 = pneg %p200
      %p565 = pneg %p197
      %p566 = pneg %p221
      %p567 = pneg %p218
      %p568 = pneg %p242
      %p569 = pneg %p239
      %p570 = pneg %p263
      %p571 = pneg %p260
      %p572 = pneg %p284
      %p573 = pneg %p281
      %p574 = pneg %p305
      %p575 = pneg %p302
      %p576 = pneg %p326
      %p577 = pneg %p323
      %p578 = pneg %p347
      %p579 = pneg %p344
      %p580 = pneg %p368
      %p581 = pneg %p365
      %p582 = pneg %p389
      %p583 = pneg %p386
      %p584 = pneg %p410
      %p585 = pneg %p407
      %p586 = pneg %p431
      %p587 = pneg %p428
      %p588 = pneg %p457
      %p589 = pneg %p454
      %p590 = scmp.lt.s32.totalorder %s32, 1
      %s591 = scalar_select %p590, %s32, 1
      %s592 = scalar_lea.vmem %s19, %s591
      %p593 = scmp.lt.s32.totalorder %s32, 1
      %s594 = scalar_select %p593, %s32, 1
      %s595 = smul.addr %s594, 128
      %s596 = smul.addr %s595, 4
      %s597 = scalar_lea.vmem %s0, %s596
      %p598 = scmp.lt.s32.totalorder %s32, 1
      %s599 = scalar_select %p598, %s32, 1
      %s600 = scalar_lea.vmem %s19, %s599
      %v602 = vld [vmem:[%s1] sm:$0xff]
      %v603 = vld [vmem:[%s1 + $0x8] sm:$0xff]
      %v604 = vld [vmem:[%s1 + $0x10] sm:$0xff]
      %v605 = vld [vmem:[%s1 + $0x18] sm:$0xff]
      %v606 = vld [vmem:[%s1 + $0x20] sm:$0xff]
      %v607 = vld [vmem:[%s1 + $0x28] sm:$0xff]
      %v608 = vld [vmem:[%s1 + $0x30] sm:$0xff]
      %v609 = vld [vmem:[%s1 + $0x38] sm:$0xff]
      %v610 = vld [vmem:[%s1 + $0x40] sm:$0xff]
      %v611 = vld [vmem:[%s1 + $0x48] sm:$0xff]
      %v612 = vld [vmem:[%s1 + $0x50] sm:$0xff]
      %v613 = vld [vmem:[%s1 + $0x58] sm:$0xff]
      %v614 = vld [vmem:[%s1 + $0x60] sm:$0xff]
      %v615 = vld [vmem:[%s1 + $0x68] sm:$0xff]
      %v616 = vld [vmem:[%s1 + $0x70] sm:$0xff]
      %v617 = vld [vmem:[%s1 + $0x78] sm:$0xff]
      %v618 = vld [vmem:[%s1 + $0x80] sm:$0xff]
      %v619 = vld [vmem:[%s1 + $0x88] sm:$0xff]
      %v620 = vld [vmem:[%s1 + $0x90] sm:$0xff]
      %v621 = vld [vmem:[%s1 + $0x98] sm:$0xff]
      %v622 = vld [vmem:[%s1 + $0xa0] sm:$0xff]
      %v623 = vld [vmem:[%s1 + $0xa8] sm:$0xff]
      %v624 = vld [vmem:[%s1 + $0xb0] sm:$0xff]
      %v625 = vld [vmem:[%s1 + $0xb8] sm:$0xff]
      %v626 = vld [vmem:[%s1 + $0xc0] sm:$0xff]
      %v627 = vld [vmem:[%s1 + $0xc8] sm:$0xff]
      %v628 = vld [vmem:[%s1 + $0xd0] sm:$0xff]
      %v629 = vld [vmem:[%s1 + $0xd8] sm:$0xff]
      %v630 = vld [vmem:[%s1 + $0xe0] sm:$0xff]
      %v631 = vld [vmem:[%s1 + $0xe8] sm:$0xff]
      %v632 = vld [vmem:[%s1 + $0xf0] sm:$0xff]
      %v633 = vld [vmem:[%s1 + $0xf8] sm:$0xff]
      %v634 = vld [vmem:[%s1 + $0x100] sm:$0xff]
      %v635 = vld [vmem:[%s1 + $0x108] sm:$0xff]
      %v636 = vld [vmem:[%s1 + $0x110] sm:$0xff]
      %v637 = vld [vmem:[%s1 + $0x118] sm:$0xff]
      %v638 = vld [vmem:[%s1 + $0x120] sm:$0xff]
      %v639 = vld [vmem:[%s1 + $0x128] sm:$0xff]
      %v640 = vld [vmem:[%s1 + $0x130] sm:$0xff]
      %v641 = vld [vmem:[%s1 + $0x138] sm:$0xff]
      %v642 = vld [vmem:[%s1 + $0x140] sm:$0xff]
      %v643 = vld [vmem:[%s1 + $0x148] sm:$0xff]
      %v644 = vld [vmem:[%s1 + $0x150] sm:$0xff]
      %v645 = vld [vmem:[%s1 + $0x158] sm:$0xff]
      %v646 = vld [vmem:[%s1 + $0x160] sm:$0xff]
      %v647 = vld [vmem:[%s1 + $0x168] sm:$0xff]
      %v648 = vld [vmem:[%s1 + $0x170] sm:$0xff]
      %v649 = vld [vmem:[%s1 + $0x178] sm:$0xff]
      %v650 = vld [vmem:[%s1 + $0x180] sm:$0xff]
      %v651 = vld [vmem:[%s1 + $0x188] sm:$0xff]
      %v652 = vld [vmem:[%s1 + $0x190] sm:$0xff]
      %v653 = vld [vmem:[%s1 + $0x198] sm:$0xff]
      %v654 = vld [vmem:[%s1 + $0x1a0] sm:$0xff]
      %v655 = vld [vmem:[%s1 + $0x1a8] sm:$0xff]
      %v656 = vld [vmem:[%s1 + $0x1b0] sm:$0xff]
      %v657 = vld [vmem:[%s1 + $0x1b8] sm:$0xff]
      %v658 = vld [vmem:[%s1 + $0x1c0] sm:$0xff]
      %v659 = vld [vmem:[%s1 + $0x1c8] sm:$0xff]
      %v660 = vld [vmem:[%s1 + $0x1d0] sm:$0xff]
      %v661 = vld [vmem:[%s1 + $0x1d8] sm:$0xff]
      %v662 = vld [vmem:[%s1 + $0x1e0] sm:$0xff]
      %v663 = vld [vmem:[%s1 + $0x1e8] sm:$0xff]
      %v664 = vld [vmem:[%s1 + $0x1f0] sm:$0xff]
      %v665 = vld [vmem:[%s1 + $0x1f8] sm:$0xff]
      %v666 = vld [vmem:[%s1 + $0x200] sm:$0xff]
      %v667 = vld [vmem:[%s1 + $0x208] sm:$0xff]
      %v668 = vld [vmem:[%s1 + $0x210] sm:$0xff]
      %v669 = vld [vmem:[%s1 + $0x218] sm:$0xff]
      %v670 = vld [vmem:[%s1 + $0x220] sm:$0xff]
      %v671 = vld [vmem:[%s1 + $0x228] sm:$0xff]
      %v672 = vld [vmem:[%s1 + $0x230] sm:$0xff]
      %v673 = vld [vmem:[%s1 + $0x238] sm:$0xff]
      %v674 = vld [vmem:[%s1 + $0x240] sm:$0xff]
      %v675 = vld [vmem:[%s1 + $0x248] sm:$0xff]
      %v676 = vld [vmem:[%s1 + $0x250] sm:$0xff]
      %v677 = vld [vmem:[%s1 + $0x258] sm:$0xff]
      %v678 = vld [vmem:[%s1 + $0x260] sm:$0xff]
      %v679 = vld [vmem:[%s1 + $0x268] sm:$0xff]
      %v680 = vld [vmem:[%s1 + $0x270] sm:$0xff]
      %v681 = vld [vmem:[%s1 + $0x278] sm:$0xff]
      %v682 = vld [vmem:[%s1 + $0x280] sm:$0xff]
      %v683 = vld [vmem:[%s1 + $0x288] sm:$0xff]
      %v684 = vld [vmem:[%s1 + $0x290] sm:$0xff]
      %v685 = vld [vmem:[%s1 + $0x298] sm:$0xff]
      %v686 = vld [vmem:[%s1 + $0x2a0] sm:$0xff]
      %v687 = vld [vmem:[%s1 + $0x2a8] sm:$0xff]
      %v688 = vld [vmem:[%s1 + $0x2b0] sm:$0xff]
      %v689 = vld [vmem:[%s1 + $0x2b8] sm:$0xff]
      %v690 = vld [vmem:[%s1 + $0x2c0] sm:$0xff]
      %v691 = vld [vmem:[%s1 + $0x2c8] sm:$0xff]
      %v692 = vld [vmem:[%s1 + $0x2d0] sm:$0xff]
      %v693 = vld [vmem:[%s1 + $0x2d8] sm:$0xff]
      %v694 = vld [vmem:[%s1 + $0x2e0] sm:$0xff]
      %v695 = vld [vmem:[%s1 + $0x2e8] sm:$0xff]
      %v696 = vld [vmem:[%s1 + $0x2f0] sm:$0xff]
      %v697 = vld [vmem:[%s1 + $0x2f8] sm:$0xff]
      %v698 = vld [vmem:[%s1 + $0x300] sm:$0xff]
      %v699 = vld [vmem:[%s1 + $0x308] sm:$0xff]
      %v700 = vld [vmem:[%s1 + $0x310] sm:$0xff]
      %v701 = vld [vmem:[%s1 + $0x318] sm:$0xff]
      %v702 = vld [vmem:[%s1 + $0x320] sm:$0xff]
      %v703 = vld [vmem:[%s1 + $0x328] sm:$0xff]
      %v704 = vld [vmem:[%s1 + $0x330] sm:$0xff]
      %v705 = vld [vmem:[%s1 + $0x338] sm:$0xff]
      %v706 = vld [vmem:[%s1 + $0x340] sm:$0xff]
      %v707 = vld [vmem:[%s1 + $0x348] sm:$0xff]
      %v708 = vld [vmem:[%s1 + $0x350] sm:$0xff]
      %v709 = vld [vmem:[%s1 + $0x358] sm:$0xff]
      %v710 = vld [vmem:[%s1 + $0x360] sm:$0xff]
      %v711 = vld [vmem:[%s1 + $0x368] sm:$0xff]
      %v712 = vld [vmem:[%s1 + $0x370] sm:$0xff]
      %v713 = vld [vmem:[%s1 + $0x378] sm:$0xff]
      %v714 = vld [vmem:[%s1 + $0x380] sm:$0xff]
      %v715 = vld [vmem:[%s1 + $0x388] sm:$0xff]
      %v716 = vld [vmem:[%s1 + $0x390] sm:$0xff]
      %v717 = vld [vmem:[%s1 + $0x398] sm:$0xff]
      %v718 = vld [vmem:[%s1 + $0x3a0] sm:$0xff]
      %v719 = vld [vmem:[%s1 + $0x3a8] sm:$0xff]
      %v720 = vld [vmem:[%s1 + $0x3b0] sm:$0xff]
      %v721 = vld [vmem:[%s1 + $0x3b8] sm:$0xff]
      %v722 = vld [vmem:[%s1 + $0x3c0] sm:$0xff]
      %v723 = vld [vmem:[%s1 + $0x3c8] sm:$0xff]
      %v724 = vld [vmem:[%s1 + $0x3d0] sm:$0xff]
      %v725 = vld [vmem:[%s1 + $0x3d8] sm:$0xff]
      %v726 = vld [vmem:[%s1 + $0x3e0] sm:$0xff]
      %v727 = vld [vmem:[%s1 + $0x3e8] sm:$0xff]
      %v728 = vld [vmem:[%s1 + $0x3f0] sm:$0xff]
      %v729 = vld [vmem:[%s1 + $0x3f8] sm:$0xff]
      %vm730 = vcmp.gt.f32.partialorder %v602, 0.5
      %vm731 = vcmp.gt.f32.partialorder %v603, 0.5
      %vm732 = vcmp.gt.f32.partialorder %v604, 0.5
      %vm733 = vcmp.gt.f32.partialorder %v605, 0.5
      %vm734 = vcmp.gt.f32.partialorder %v606, 0.5
      %vm735 = vcmp.gt.f32.partialorder %v607, 0.5
      %vm736 = vcmp.gt.f32.partialorder %v608, 0.5
      %vm737 = vcmp.gt.f32.partialorder %v609, 0.5
      %vm738 = vcmp.gt.f32.partialorder %v610, 0.5
      %vm739 = vcmp.gt.f32.partialorder %v611, 0.5
      %vm740 = vcmp.gt.f32.partialorder %v612, 0.5
      %vm741 = vcmp.gt.f32.partialorder %v613, 0.5
      %vm742 = vcmp.gt.f32.partialorder %v614, 0.5
      %vm743 = vcmp.gt.f32.partialorder %v615, 0.5
      %vm744 = vcmp.gt.f32.partialorder %v616, 0.5
      %vm745 = vcmp.gt.f32.partialorder %v617, 0.5
      %vm746 = vcmp.gt.f32.partialorder %v618, 0.5
      %vm747 = vcmp.gt.f32.partialorder %v619, 0.5
      %vm748 = vcmp.gt.f32.partialorder %v620, 0.5
      %vm749 = vcmp.gt.f32.partialorder %v621, 0.5
      %vm750 = vcmp.gt.f32.partialorder %v622, 0.5
      %vm751 = vcmp.gt.f32.partialorder %v623, 0.5
      %vm752 = vcmp.gt.f32.partialorder %v624, 0.5
      %vm753 = vcmp.gt.f32.partialorder %v625, 0.5
      %vm754 = vcmp.gt.f32.partialorder %v626, 0.5
      %vm755 = vcmp.gt.f32.partialorder %v627, 0.5
      %vm756 = vcmp.gt.f32.partialorder %v628, 0.5
      %vm757 = vcmp.gt.f32.partialorder %v629, 0.5
      %vm758 = vcmp.gt.f32.partialorder %v630, 0.5
      %vm759 = vcmp.gt.f32.partialorder %v631, 0.5
      %vm760 = vcmp.gt.f32.partialorder %v632, 0.5
      %vm761 = vcmp.gt.f32.partialorder %v633, 0.5
      %vm762 = vcmp.gt.f32.partialorder %v634, 0.5
      %vm763 = vcmp.gt.f32.partialorder %v635, 0.5
      %vm764 = vcmp.gt.f32.partialorder %v636, 0.5
      %vm765 = vcmp.gt.f32.partialorder %v637, 0.5
      %vm766 = vcmp.gt.f32.partialorder %v638, 0.5
      %vm767 = vcmp.gt.f32.partialorder %v639, 0.5
      %vm768 = vcmp.gt.f32.partialorder %v640, 0.5
      %vm769 = vcmp.gt.f32.partialorder %v641, 0.5
      %vm770 = vcmp.gt.f32.partialorder %v642, 0.5
      %vm771 = vcmp.gt.f32.partialorder %v643, 0.5
      %vm772 = vcmp.gt.f32.partialorder %v644, 0.5
      %vm773 = vcmp.gt.f32.partialorder %v645, 0.5
      %vm774 = vcmp.gt.f32.partialorder %v646, 0.5
      %vm775 = vcmp.gt.f32.partialorder %v647, 0.5
      %vm776 = vcmp.gt.f32.partialorder %v648, 0.5
      %vm777 = vcmp.gt.f32.partialorder %v649, 0.5
      %vm778 = vcmp.gt.f32.partialorder %v650, 0.5
      %vm779 = vcmp.gt.f32.partialorder %v651, 0.5
      %vm780 = vcmp.gt.f32.partialorder %v652, 0.5
      %vm781 = vcmp.gt.f32.partialorder %v653, 0.5
      %vm782 = vcmp.gt.f32.partialorder %v654, 0.5
      %vm783 = vcmp.gt.f32.partialorder %v655, 0.5
      %vm784 = vcmp.gt.f32.partialorder %v656, 0.5
      %vm785 = vcmp.gt.f32.partialorder %v657, 0.5
      %vm786 = vcmp.gt.f32.partialorder %v658, 0.5
      %vm787 = vcmp.gt.f32.partialorder %v659, 0.5
      %vm788 = vcmp.gt.f32.partialorder %v660, 0.5
      %vm789 = vcmp.gt.f32.partialorder %v661, 0.5
      %vm790 = vcmp.gt.f32.partialorder %v662, 0.5
      %vm791 = vcmp.gt.f32.partialorder %v663, 0.5
      %vm792 = vcmp.gt.f32.partialorder %v664, 0.5
      %vm793 = vcmp.gt.f32.partialorder %v665, 0.5
      %vm794 = vcmp.gt.f32.partialorder %v666, 0.5
      %vm795 = vcmp.gt.f32.partialorder %v667, 0.5
      %vm796 = vcmp.gt.f32.partialorder %v668, 0.5
      %vm797 = vcmp.gt.f32.partialorder %v669, 0.5
      %vm798 = vcmp.gt.f32.partialorder %v670, 0.5
      %vm799 = vcmp.gt.f32.partialorder %v671, 0.5
      %vm800 = vcmp.gt.f32.partialorder %v672, 0.5
      %vm801 = vcmp.gt.f32.partialorder %v673, 0.5
      %vm802 = vcmp.gt.f32.partialorder %v674, 0.5
      %vm803 = vcmp.gt.f32.partialorder %v675, 0.5
      %vm804 = vcmp.gt.f32.partialorder %v676, 0.5
      %vm805 = vcmp.gt.f32.partialorder %v677, 0.5
      %vm806 = vcmp.gt.f32.partialorder %v678, 0.5
      %vm807 = vcmp.gt.f32.partialorder %v679, 0.5
      %vm808 = vcmp.gt.f32.partialorder %v680, 0.5
      %vm809 = vcmp.gt.f32.partialorder %v681, 0.5
      %vm810 = vcmp.gt.f32.partialorder %v682, 0.5
      %vm811 = vcmp.gt.f32.partialorder %v683, 0.5
      %vm812 = vcmp.gt.f32.partialorder %v684, 0.5
      %vm813 = vcmp.gt.f32.partialorder %v685, 0.5
      %vm814 = vcmp.gt.f32.partialorder %v686, 0.5
      %vm815 = vcmp.gt.f32.partialorder %v687, 0.5
      %vm816 = vcmp.gt.f32.partialorder %v688, 0.5
      %vm817 = vcmp.gt.f32.partialorder %v689, 0.5
      %vm818 = vcmp.gt.f32.partialorder %v690, 0.5
      %vm819 = vcmp.gt.f32.partialorder %v691, 0.5
      %vm820 = vcmp.gt.f32.partialorder %v692, 0.5
      %vm821 = vcmp.gt.f32.partialorder %v693, 0.5
      %vm822 = vcmp.gt.f32.partialorder %v694, 0.5
      %vm823 = vcmp.gt.f32.partialorder %v695, 0.5
      %vm824 = vcmp.gt.f32.partialorder %v696, 0.5
      %vm825 = vcmp.gt.f32.partialorder %v697, 0.5
      %vm826 = vcmp.gt.f32.partialorder %v698, 0.5
      %vm827 = vcmp.gt.f32.partialorder %v699, 0.5
      %vm828 = vcmp.gt.f32.partialorder %v700, 0.5
      %vm829 = vcmp.gt.f32.partialorder %v701, 0.5
      %vm830 = vcmp.gt.f32.partialorder %v702, 0.5
      %vm831 = vcmp.gt.f32.partialorder %v703, 0.5
      %vm832 = vcmp.gt.f32.partialorder %v704, 0.5
      %vm833 = vcmp.gt.f32.partialorder %v705, 0.5
      %vm834 = vcmp.gt.f32.partialorder %v706, 0.5
      %vm835 = vcmp.gt.f32.partialorder %v707, 0.5
      %vm836 = vcmp.gt.f32.partialorder %v708, 0.5
      %vm837 = vcmp.gt.f32.partialorder %v709, 0.5
      %vm838 = vcmp.gt.f32.partialorder %v710, 0.5
      %vm839 = vcmp.gt.f32.partialorder %v711, 0.5
      %vm840 = vcmp.gt.f32.partialorder %v712, 0.5
      %vm841 = vcmp.gt.f32.partialorder %v713, 0.5
      %vm842 = vcmp.gt.f32.partialorder %v714, 0.5
      %vm843 = vcmp.gt.f32.partialorder %v715, 0.5
      %vm844 = vcmp.gt.f32.partialorder %v716, 0.5
      %vm845 = vcmp.gt.f32.partialorder %v717, 0.5
      %vm846 = vcmp.gt.f32.partialorder %v718, 0.5
      %vm847 = vcmp.gt.f32.partialorder %v719, 0.5
      %vm848 = vcmp.gt.f32.partialorder %v720, 0.5
      %vm849 = vcmp.gt.f32.partialorder %v721, 0.5
      %vm850 = vcmp.gt.f32.partialorder %v722, 0.5
      %vm851 = vcmp.gt.f32.partialorder %v723, 0.5
      %vm852 = vcmp.gt.f32.partialorder %v724, 0.5
      %vm853 = vcmp.gt.f32.partialorder %v725, 0.5
      %vm854 = vcmp.gt.f32.partialorder %v726, 0.5
      %vm855 = vcmp.gt.f32.partialorder %v727, 0.5
      %vm856 = vcmp.gt.f32.partialorder %v728, 0.5
      %vm857 = vcmp.gt.f32.partialorder %v729, 0.5
      %v858 = vld [vmem:[%s2] sm:$0xff]
      %v859 = vld [vmem:[%s2 + $0x8] sm:$0xff]
      %v860 = vld [vmem:[%s2 + $0x10] sm:$0xff]
      %v861 = vld [vmem:[%s2 + $0x18] sm:$0xff]
      %v862 = vld [vmem:[%s2 + $0x20] sm:$0xff]
      %v863 = vld [vmem:[%s2 + $0x28] sm:$0xff]
      %v864 = vld [vmem:[%s2 + $0x30] sm:$0xff]
      %v865 = vld [vmem:[%s2 + $0x38] sm:$0xff]
      %v866 = vld [vmem:[%s2 + $0x40] sm:$0xff]
      %v867 = vld [vmem:[%s2 + $0x48] sm:$0xff]
      %v868 = vld [vmem:[%s2 + $0x50] sm:$0xff]
      %v869 = vld [vmem:[%s2 + $0x58] sm:$0xff]
      %v870 = vld [vmem:[%s2 + $0x60] sm:$0xff]
      %v871 = vld [vmem:[%s2 + $0x68] sm:$0xff]
      %v872 = vld [vmem:[%s2 + $0x70] sm:$0xff]
      %v873 = vld [vmem:[%s2 + $0x78] sm:$0xff]
      %v874 = vld [vmem:[%s2 + $0x80] sm:$0xff]
      %v875 = vld [vmem:[%s2 + $0x88] sm:$0xff]
      %v876 = vld [vmem:[%s2 + $0x90] sm:$0xff]
      %v877 = vld [vmem:[%s2 + $0x98] sm:$0xff]
      %v878 = vld [vmem:[%s2 + $0xa0] sm:$0xff]
      %v879 = vld [vmem:[%s2 + $0xa8] sm:$0xff]
      %v880 = vld [vmem:[%s2 + $0xb0] sm:$0xff]
      %v881 = vld [vmem:[%s2 + $0xb8] sm:$0xff]
      %v882 = vld [vmem:[%s2 + $0xc0] sm:$0xff]
      %v883 = vld [vmem:[%s2 + $0xc8] sm:$0xff]
      %v884 = vld [vmem:[%s2 + $0xd0] sm:$0xff]
      %v885 = vld [vmem:[%s2 + $0xd8] sm:$0xff]
      %v886 = vld [vmem:[%s2 + $0xe0] sm:$0xff]
      %v887 = vld [vmem:[%s2 + $0xe8] sm:$0xff]
      %v888 = vld [vmem:[%s2 + $0xf0] sm:$0xff]
      %v889 = vld [vmem:[%s2 + $0xf8] sm:$0xff]
      %vm890 = vcmp.gt.f32.partialorder %v858, 0.5
      %vm891 = vcmp.gt.f32.partialorder %v859, 0.5
      %vm892 = vcmp.gt.f32.partialorder %v860, 0.5
      %vm893 = vcmp.gt.f32.partialorder %v861, 0.5
      %vm894 = vcmp.gt.f32.partialorder %v862, 0.5
      %vm895 = vcmp.gt.f32.partialorder %v863, 0.5
      %vm896 = vcmp.gt.f32.partialorder %v864, 0.5
      %vm897 = vcmp.gt.f32.partialorder %v865, 0.5
      %vm898 = vcmp.gt.f32.partialorder %v866, 0.5
      %vm899 = vcmp.gt.f32.partialorder %v867, 0.5
      %vm900 = vcmp.gt.f32.partialorder %v868, 0.5
      %vm901 = vcmp.gt.f32.partialorder %v869, 0.5
      %vm902 = vcmp.gt.f32.partialorder %v870, 0.5
      %vm903 = vcmp.gt.f32.partialorder %v871, 0.5
      %vm904 = vcmp.gt.f32.partialorder %v872, 0.5
      %vm905 = vcmp.gt.f32.partialorder %v873, 0.5
      %vm906 = vcmp.gt.f32.partialorder %v874, 0.5
      %vm907 = vcmp.gt.f32.partialorder %v875, 0.5
      %vm908 = vcmp.gt.f32.partialorder %v876, 0.5
      %vm909 = vcmp.gt.f32.partialorder %v877, 0.5
      %vm910 = vcmp.gt.f32.partialorder %v878, 0.5
      %vm911 = vcmp.gt.f32.partialorder %v879, 0.5
      %vm912 = vcmp.gt.f32.partialorder %v880, 0.5
      %vm913 = vcmp.gt.f32.partialorder %v881, 0.5
      %vm914 = vcmp.gt.f32.partialorder %v882, 0.5
      %vm915 = vcmp.gt.f32.partialorder %v883, 0.5
      %vm916 = vcmp.gt.f32.partialorder %v884, 0.5
      %vm917 = vcmp.gt.f32.partialorder %v885, 0.5
      %vm918 = vcmp.gt.f32.partialorder %v886, 0.5
      %vm919 = vcmp.gt.f32.partialorder %v887, 0.5
      %vm920 = vcmp.gt.f32.partialorder %v888, 0.5
      %vm921 = vcmp.gt.f32.partialorder %v889, 0.5
      %v922 = vld [vmem:[%s3] sm:$0xff]
      %v923 = vld [vmem:[%s3 + $0x8] sm:$0xff]
      %v924 = vld [vmem:[%s3 + $0x10] sm:$0xff]
      %v925 = vld [vmem:[%s3 + $0x18] sm:$0xff]
      %v926 = vld [vmem:[%s3 + $0x20] sm:$0xff]
      %v927 = vld [vmem:[%s3 + $0x28] sm:$0xff]
      %v928 = vld [vmem:[%s3 + $0x30] sm:$0xff]
      %v929 = vld [vmem:[%s3 + $0x38] sm:$0xff]
      %v930 = vld [vmem:[%s3 + $0x40] sm:$0xff]
      %v931 = vld [vmem:[%s3 + $0x48] sm:$0xff]
      %v932 = vld [vmem:[%s3 + $0x50] sm:$0x1]
      %vm933 = vcmp.gt.f32.partialorder %v922, 0.5
      %vm934 = vcmp.gt.f32.partialorder %v923, 0.5
      %vm935 = vcmp.gt.f32.partialorder %v924, 0.5
      %vm936 = vcmp.gt.f32.partialorder %v925, 0.5
      %vm937 = vcmp.gt.f32.partialorder %v926, 0.5
      %vm938 = vcmp.gt.f32.partialorder %v927, 0.5
      %vm939 = vcmp.gt.f32.partialorder %v928, 0.5
      %vm940 = vcmp.gt.f32.partialorder %v929, 0.5
      %vm941 = vcmp.gt.f32.partialorder %v930, 0.5
      %vm942 = vcmp.gt.f32.partialorder %v931, 0.5
      %vm943 = vcmp.gt.f32.partialorder %v932, 0.5
      %v944 = vld [vmem:[%s597] sm:$0xf]
      %v945 = vld [vmem:[%s597 + $0x4] sm:$0xf]
      %v946 = vld [vmem:[%s597 + $0x8] sm:$0xf]
      %v947 = vld [vmem:[%s597 + $0xc] sm:$0xf]
      %v948 = vld [vmem:[%s597 + $0x10] sm:$0xf]
      %v949 = vld [vmem:[%s597 + $0x14] sm:$0xf]
      %v950 = vld [vmem:[%s597 + $0x18] sm:$0xf]
      %v951 = vld [vmem:[%s597 + $0x1c] sm:$0xf]
      %v952 = vld [vmem:[%s597 + $0x20] sm:$0xf]
      %v953 = vld [vmem:[%s597 + $0x24] sm:$0xf]
      %v954 = vld [vmem:[%s597 + $0x28] sm:$0xf]
      %v955 = vld [vmem:[%s597 + $0x2c] sm:$0xf]
      %v956 = vld [vmem:[%s597 + $0x30] sm:$0xf]
      %v957 = vld [vmem:[%s597 + $0x34] sm:$0xf]
      %v958 = vld [vmem:[%s597 + $0x38] sm:$0xf]
      %v959 = vld [vmem:[%s597 + $0x3c] sm:$0xf]
      %v960 = vld [vmem:[%s597 + $0x40] sm:$0xf]
      %v961 = vld [vmem:[%s597 + $0x44] sm:$0xf]
      %v962 = vld [vmem:[%s597 + $0x48] sm:$0xf]
      %v963 = vld [vmem:[%s597 + $0x4c] sm:$0xf]
      %v964 = vld [vmem:[%s597 + $0x50] sm:$0xf]
      %v965 = vld [vmem:[%s597 + $0x54] sm:$0xf]
      %v966 = vld [vmem:[%s597 + $0x58] sm:$0xf]
      %v967 = vld [vmem:[%s597 + $0x5c] sm:$0xf]
      %v968 = vld [vmem:[%s597 + $0x60] sm:$0xf]
      %v969 = vld [vmem:[%s597 + $0x64] sm:$0xf]
      %v970 = vld [vmem:[%s597 + $0x68] sm:$0xf]
      %v971 = vld [vmem:[%s597 + $0x6c] sm:$0xf]
      %v972 = vld [vmem:[%s597 + $0x70] sm:$0xf]
      %v973 = vld [vmem:[%s597 + $0x74] sm:$0xf]
      %v974 = vld [vmem:[%s597 + $0x78] sm:$0xf]
      %v975 = vld [vmem:[%s597 + $0x7c] sm:$0xf]
      %v976 = vld [vmem:[%s597 + $0x80] sm:$0xf]
      %v977 = vld [vmem:[%s597 + $0x84] sm:$0xf]
      %v978 = vld [vmem:[%s597 + $0x88] sm:$0xf]
      %v979 = vld [vmem:[%s597 + $0x8c] sm:$0xf]
      %v980 = vld [vmem:[%s597 + $0x90] sm:$0xf]
      %v981 = vld [vmem:[%s597 + $0x94] sm:$0xf]
      %v982 = vld [vmem:[%s597 + $0x98] sm:$0xf]
      %v983 = vld [vmem:[%s597 + $0x9c] sm:$0xf]
      %v984 = vld [vmem:[%s597 + $0xa0] sm:$0xf]
      %v985 = vld [vmem:[%s597 + $0xa4] sm:$0xf]
      %v986 = vld [vmem:[%s597 + $0xa8] sm:$0xf]
      %v987 = vld [vmem:[%s597 + $0xac] sm:$0xf]
      %v988 = vld [vmem:[%s597 + $0xb0] sm:$0xf]
      %v989 = vld [vmem:[%s597 + $0xb4] sm:$0xf]
      %v990 = vld [vmem:[%s597 + $0xb8] sm:$0xf]
      %v991 = vld [vmem:[%s597 + $0xbc] sm:$0xf]
      %v992 = vld [vmem:[%s597 + $0xc0] sm:$0xf]
      %v993 = vld [vmem:[%s597 + $0xc4] sm:$0xf]
      %v994 = vld [vmem:[%s597 + $0xc8] sm:$0xf]
      %v995 = vld [vmem:[%s597 + $0xcc] sm:$0xf]
      %v996 = vld [vmem:[%s597 + $0xd0] sm:$0xf]
      %v997 = vld [vmem:[%s597 + $0xd4] sm:$0xf]
      %v998 = vld [vmem:[%s597 + $0xd8] sm:$0xf]
      %v999 = vld [vmem:[%s597 + $0xdc] sm:$0xf]
      %v1000 = vld [vmem:[%s597 + $0xe0] sm:$0xf]
      %v1001 = vld [vmem:[%s597 + $0xe4] sm:$0xf]
      %v1002 = vld [vmem:[%s597 + $0xe8] sm:$0xf]
      %v1003 = vld [vmem:[%s597 + $0xec] sm:$0xf]
      %v1004 = vld [vmem:[%s597 + $0xf0] sm:$0xf]
      %v1005 = vld [vmem:[%s597 + $0xf4] sm:$0xf]
      %v1006 = vld [vmem:[%s597 + $0xf8] sm:$0xf]
      %v1007 = vld [vmem:[%s597 + $0xfc] sm:$0xf]
      %v1008 = vld [vmem:[%s597 + $0x100] sm:$0xf]
      %v1009 = vld [vmem:[%s597 + $0x104] sm:$0xf]
      %v1010 = vld [vmem:[%s597 + $0x108] sm:$0xf]
      %v1011 = vld [vmem:[%s597 + $0x10c] sm:$0xf]
      %v1012 = vld [vmem:[%s597 + $0x110] sm:$0xf]
      %v1013 = vld [vmem:[%s597 + $0x114] sm:$0xf]
      %v1014 = vld [vmem:[%s597 + $0x118] sm:$0xf]
      %v1015 = vld [vmem:[%s597 + $0x11c] sm:$0xf]
      %v1016 = vld [vmem:[%s597 + $0x120] sm:$0xf]
      %v1017 = vld [vmem:[%s597 + $0x124] sm:$0xf]
      %v1018 = vld [vmem:[%s597 + $0x128] sm:$0xf]
      %v1019 = vld [vmem:[%s597 + $0x12c] sm:$0xf]
      %v1020 = vld [vmem:[%s597 + $0x130] sm:$0xf]
      %v1021 = vld [vmem:[%s597 + $0x134] sm:$0xf]
      %v1022 = vld [vmem:[%s597 + $0x138] sm:$0xf]
      %v1023 = vld [vmem:[%s597 + $0x13c] sm:$0xf]
      %v1024 = vld [vmem:[%s597 + $0x140] sm:$0xf]
      %v1025 = vld [vmem:[%s597 + $0x144] sm:$0xf]
      %v1026 = vld [vmem:[%s597 + $0x148] sm:$0xf]
      %v1027 = vld [vmem:[%s597 + $0x14c] sm:$0xf]
      %v1028 = vld [vmem:[%s597 + $0x150] sm:$0xf]
      %v1029 = vld [vmem:[%s597 + $0x154] sm:$0xf]
      %v1030 = vld [vmem:[%s597 + $0x158] sm:$0xf]
      %v1031 = vld [vmem:[%s597 + $0x15c] sm:$0xf]
      %v1032 = vld [vmem:[%s597 + $0x160] sm:$0xf]
      %v1033 = vld [vmem:[%s597 + $0x164] sm:$0xf]
      %v1034 = vld [vmem:[%s597 + $0x168] sm:$0xf]
      %v1035 = vld [vmem:[%s597 + $0x16c] sm:$0xf]
      %v1036 = vld [vmem:[%s597 + $0x170] sm:$0xf]
      %v1037 = vld [vmem:[%s597 + $0x174] sm:$0xf]
      %v1038 = vld [vmem:[%s597 + $0x178] sm:$0xf]
      %v1039 = vld [vmem:[%s597 + $0x17c] sm:$0xf]
      %v1040 = vld [vmem:[%s597 + $0x180] sm:$0xf]
      %v1041 = vld [vmem:[%s597 + $0x184] sm:$0xf]
      %v1042 = vld [vmem:[%s597 + $0x188] sm:$0xf]
      %v1043 = vld [vmem:[%s597 + $0x18c] sm:$0xf]
      %v1044 = vld [vmem:[%s597 + $0x190] sm:$0xf]
      %v1045 = vld [vmem:[%s597 + $0x194] sm:$0xf]
      %v1046 = vld [vmem:[%s597 + $0x198] sm:$0xf]
      %v1047 = vld [vmem:[%s597 + $0x19c] sm:$0xf]
      %v1048 = vld [vmem:[%s597 + $0x1a0] sm:$0xf]
      %v1049 = vld [vmem:[%s597 + $0x1a4] sm:$0xf]
      %v1050 = vld [vmem:[%s597 + $0x1a8] sm:$0xf]
      %v1051 = vld [vmem:[%s597 + $0x1ac] sm:$0xf]
      %v1052 = vld [vmem:[%s597 + $0x1b0] sm:$0xf]
      %v1053 = vld [vmem:[%s597 + $0x1b4] sm:$0xf]
      %v1054 = vld [vmem:[%s597 + $0x1b8] sm:$0xf]
      %v1055 = vld [vmem:[%s597 + $0x1bc] sm:$0xf]
      %v1056 = vld [vmem:[%s597 + $0x1c0] sm:$0xf]
      %v1057 = vld [vmem:[%s597 + $0x1c4] sm:$0xf]
      %v1058 = vld [vmem:[%s597 + $0x1c8] sm:$0xf]
      %v1059 = vld [vmem:[%s597 + $0x1cc] sm:$0xf]
      %v1060 = vld [vmem:[%s597 + $0x1d0] sm:$0xf]
      %v1061 = vld [vmem:[%s597 + $0x1d4] sm:$0xf]
      %v1062 = vld [vmem:[%s597 + $0x1d8] sm:$0xf]
      %v1063 = vld [vmem:[%s597 + $0x1dc] sm:$0xf]
      %v1064 = vld [vmem:[%s597 + $0x1e0] sm:$0xf]
      %v1065 = vld [vmem:[%s597 + $0x1e4] sm:$0xf]
      %v1066 = vld [vmem:[%s597 + $0x1e8] sm:$0xf]
      %v1067 = vld [vmem:[%s597 + $0x1ec] sm:$0xf]
      %v1068 = vld [vmem:[%s597 + $0x1f0] sm:$0xf]
      %v1069 = vld [vmem:[%s597 + $0x1f4] sm:$0xf]
      %v1070 = vld [vmem:[%s597 + $0x1f8] sm:$0xf]
      %v1071 = vld [vmem:[%s597 + $0x1fc] sm:$0xf]
      %v1072 = vld [vmem:[%s4] sm:$0xf]
      %v1073 = vld [vmem:[%s4 + $0x4] sm:$0xf]
      %v1074 = vld [vmem:[%s4 + $0x8] sm:$0xf]
      %v1075 = vld [vmem:[%s4 + $0xc] sm:$0xf]
      %v1076 = vld [vmem:[%s4 + $0x10] sm:$0xf]
      %v1077 = vld [vmem:[%s4 + $0x14] sm:$0xf]
      %v1078 = vld [vmem:[%s4 + $0x18] sm:$0xf]
      %v1079 = vld [vmem:[%s4 + $0x1c] sm:$0xf]
      %v1080 = vld [vmem:[%s4 + $0x20] sm:$0xf]
      %v1081 = vld [vmem:[%s4 + $0x24] sm:$0xf]
      %v1082 = vld [vmem:[%s4 + $0x28] sm:$0xf]
      %v1083 = vld [vmem:[%s4 + $0x2c] sm:$0xf]
      %v1084 = vld [vmem:[%s4 + $0x30] sm:$0xf]
      %v1085 = vld [vmem:[%s4 + $0x34] sm:$0xf]
      %v1086 = vld [vmem:[%s4 + $0x38] sm:$0xf]
      %v1087 = vld [vmem:[%s4 + $0x3c] sm:$0xf]
      %v1088 = vld [vmem:[%s5] sm:$0x1]
      %v1090 = vlaneseq
      %v1091 = vshrl.u32 %v1090, 7
      %v1092 = vsub.s32 0, %v1091
      %v1093 = vrot.slane %v1088, %v1092
      %v1223 = vunpack.c.l.b16 %v944
      %v1224 = vunpack.c.l.b16 %v945
      %v1225 = vunpack.c.l.b16 %v946
      %v1226 = vunpack.c.l.b16 %v947
      %v1227 = vunpack.c.l.b16 %v948
      %v1228 = vunpack.c.l.b16 %v949
      %v1229 = vunpack.c.l.b16 %v950
      %v1230 = vunpack.c.l.b16 %v951
      %v1231 = vunpack.c.l.b16 %v952
      %v1232 = vunpack.c.l.b16 %v953
      %v1233 = vunpack.c.l.b16 %v954
      %v1234 = vunpack.c.l.b16 %v955
      %v1235 = vunpack.c.l.b16 %v956
      %v1236 = vunpack.c.l.b16 %v957
      %v1237 = vunpack.c.l.b16 %v958
      %v1238 = vunpack.c.l.b16 %v959
      %v1239 = vunpack.c.l.b16 %v960
      %v1240 = vunpack.c.l.b16 %v961
      %v1241 = vunpack.c.l.b16 %v962
      %v1242 = vunpack.c.l.b16 %v963
      %v1243 = vunpack.c.l.b16 %v964
      %v1244 = vunpack.c.l.b16 %v965
      %v1245 = vunpack.c.l.b16 %v966
      %v1246 = vunpack.c.l.b16 %v967
      %v1247 = vunpack.c.l.b16 %v968
      %v1248 = vunpack.c.l.b16 %v969
      %v1249 = vunpack.c.l.b16 %v970
      %v1250 = vunpack.c.l.b16 %v971
      %v1251 = vunpack.c.l.b16 %v972
      %v1252 = vunpack.c.l.b16 %v973
      %v1253 = vunpack.c.l.b16 %v974
      %v1254 = vunpack.c.l.b16 %v975
      %v1255 = vunpack.c.l.b16 %v976
      %v1256 = vunpack.c.l.b16 %v977
      %v1257 = vunpack.c.l.b16 %v978
      %v1258 = vunpack.c.l.b16 %v979
      %v1259 = vunpack.c.l.b16 %v980
      %v1260 = vunpack.c.l.b16 %v981
      %v1261 = vunpack.c.l.b16 %v982
      %v1262 = vunpack.c.l.b16 %v983
      %v1263 = vunpack.c.l.b16 %v984
      %v1264 = vunpack.c.l.b16 %v985
      %v1265 = vunpack.c.l.b16 %v986
      %v1266 = vunpack.c.l.b16 %v987
      %v1267 = vunpack.c.l.b16 %v988
      %v1268 = vunpack.c.l.b16 %v989
      %v1269 = vunpack.c.l.b16 %v990
      %v1270 = vunpack.c.l.b16 %v991
      %v1271 = vunpack.c.l.b16 %v992
      %v1272 = vunpack.c.l.b16 %v993
      %v1273 = vunpack.c.l.b16 %v994
      %v1274 = vunpack.c.l.b16 %v995
      %v1275 = vunpack.c.l.b16 %v996
      %v1276 = vunpack.c.l.b16 %v997
      %v1277 = vunpack.c.l.b16 %v998
      %v1278 = vunpack.c.l.b16 %v999
      %v1279 = vunpack.c.l.b16 %v1000
      %v1280 = vunpack.c.l.b16 %v1001
      %v1281 = vunpack.c.l.b16 %v1002
      %v1282 = vunpack.c.l.b16 %v1003
      %v1283 = vunpack.c.l.b16 %v1004
      %v1284 = vunpack.c.l.b16 %v1005
      %v1285 = vunpack.c.l.b16 %v1006
      %v1286 = vunpack.c.l.b16 %v1007
      %v1287 = vunpack.c.l.b16 %v1008
      %v1288 = vunpack.c.l.b16 %v1009
      %v1289 = vunpack.c.l.b16 %v1010
      %v1290 = vunpack.c.l.b16 %v1011
      %v1291 = vunpack.c.l.b16 %v1012
      %v1292 = vunpack.c.l.b16 %v1013
      %v1293 = vunpack.c.l.b16 %v1014
      %v1294 = vunpack.c.l.b16 %v1015
      %v1295 = vunpack.c.l.b16 %v1016
      %v1296 = vunpack.c.l.b16 %v1017
      %v1297 = vunpack.c.l.b16 %v1018
      %v1298 = vunpack.c.l.b16 %v1019
      %v1299 = vunpack.c.l.b16 %v1020
      %v1300 = vunpack.c.l.b16 %v1021
      %v1301 = vunpack.c.l.b16 %v1022
      %v1302 = vunpack.c.l.b16 %v1023
      %v1303 = vunpack.c.l.b16 %v1024
      %v1304 = vunpack.c.l.b16 %v1025
      %v1305 = vunpack.c.l.b16 %v1026
      %v1306 = vunpack.c.l.b16 %v1027
      %v1307 = vunpack.c.l.b16 %v1028
      %v1308 = vunpack.c.l.b16 %v1029
      %v1309 = vunpack.c.l.b16 %v1030
      %v1310 = vunpack.c.l.b16 %v1031
      %v1311 = vunpack.c.l.b16 %v1032
      %v1312 = vunpack.c.l.b16 %v1033
      %v1313 = vunpack.c.l.b16 %v1034
      %v1314 = vunpack.c.l.b16 %v1035
      %v1315 = vunpack.c.l.b16 %v1036
      %v1316 = vunpack.c.l.b16 %v1037
      %v1317 = vunpack.c.l.b16 %v1038
      %v1318 = vunpack.c.l.b16 %v1039
      %v1319 = vunpack.c.l.b16 %v1040
      %v1320 = vunpack.c.l.b16 %v1041
      %v1321 = vunpack.c.l.b16 %v1042
      %v1322 = vunpack.c.l.b16 %v1043
      %v1323 = vunpack.c.l.b16 %v1044
      %v1324 = vunpack.c.l.b16 %v1045
      %v1325 = vunpack.c.l.b16 %v1046
      %v1326 = vunpack.c.l.b16 %v1047
      %v1327 = vunpack.c.l.b16 %v1048
      %v1328 = vunpack.c.l.b16 %v1049
      %v1329 = vunpack.c.l.b16 %v1050
      %v1330 = vunpack.c.l.b16 %v1051
      %v1331 = vunpack.c.l.b16 %v1052
      %v1332 = vunpack.c.l.b16 %v1053
      %v1333 = vunpack.c.l.b16 %v1054
      %v1334 = vunpack.c.l.b16 %v1055
      %v1335 = vunpack.c.l.b16 %v1056
      %v1336 = vunpack.c.l.b16 %v1057
      %v1337 = vunpack.c.l.b16 %v1058
      %v1338 = vunpack.c.l.b16 %v1059
      %v1339 = vunpack.c.l.b16 %v1060
      %v1340 = vunpack.c.l.b16 %v1061
      %v1341 = vunpack.c.l.b16 %v1062
      %v1342 = vunpack.c.l.b16 %v1063
      %v1343 = vunpack.c.l.b16 %v1064
      %v1344 = vunpack.c.l.b16 %v1065
      %v1345 = vunpack.c.l.b16 %v1066
      %v1346 = vunpack.c.l.b16 %v1067
      %v1347 = vunpack.c.l.b16 %v1068
      %v1348 = vunpack.c.l.b16 %v1069
      %v1349 = vunpack.c.l.b16 %v1070
      %v1350 = vunpack.c.l.b16 %v1071
      %v1351 = vpack.c.b16 %v1224, %v1223
      %v1352 = vpack.c.b16 %v1226, %v1225
      %v1353 = vpack.c.b16 %v1228, %v1227
      %v1354 = vpack.c.b16 %v1230, %v1229
      %v1355 = vpack.c.b16 %v1232, %v1231
      %v1356 = vpack.c.b16 %v1234, %v1233
      %v1357 = vpack.c.b16 %v1236, %v1235
      %v1358 = vpack.c.b16 %v1238, %v1237
      %v1359 = vpack.c.b16 %v1240, %v1239
      %v1360 = vpack.c.b16 %v1242, %v1241
      %v1361 = vpack.c.b16 %v1244, %v1243
      %v1362 = vpack.c.b16 %v1246, %v1245
      %v1363 = vpack.c.b16 %v1248, %v1247
      %v1364 = vpack.c.b16 %v1250, %v1249
      %v1365 = vpack.c.b16 %v1252, %v1251
      %v1366 = vpack.c.b16 %v1254, %v1253
      %v1367 = vpack.c.b16 %v1256, %v1255
      %v1368 = vpack.c.b16 %v1258, %v1257
      %v1369 = vpack.c.b16 %v1260, %v1259
      %v1370 = vpack.c.b16 %v1262, %v1261
      %v1371 = vpack.c.b16 %v1264, %v1263
      %v1372 = vpack.c.b16 %v1266, %v1265
      %v1373 = vpack.c.b16 %v1268, %v1267
      %v1374 = vpack.c.b16 %v1270, %v1269
      %v1375 = vpack.c.b16 %v1272, %v1271
      %v1376 = vpack.c.b16 %v1274, %v1273
      %v1377 = vpack.c.b16 %v1276, %v1275
      %v1378 = vpack.c.b16 %v1278, %v1277
      %v1379 = vpack.c.b16 %v1280, %v1279
      %v1380 = vpack.c.b16 %v1282, %v1281
      %v1381 = vpack.c.b16 %v1284, %v1283
      %v1382 = vpack.c.b16 %v1286, %v1285
      %v1383 = vpack.c.b16 %v1288, %v1287
      %v1384 = vpack.c.b16 %v1290, %v1289
      %v1385 = vpack.c.b16 %v1292, %v1291
      %v1386 = vpack.c.b16 %v1294, %v1293
      %v1387 = vpack.c.b16 %v1296, %v1295
      %v1388 = vpack.c.b16 %v1298, %v1297
      %v1389 = vpack.c.b16 %v1300, %v1299
      %v1390 = vpack.c.b16 %v1302, %v1301
      %v1391 = vpack.c.b16 %v1304, %v1303
      %v1392 = vpack.c.b16 %v1306, %v1305
      %v1393 = vpack.c.b16 %v1308, %v1307
      %v1394 = vpack.c.b16 %v1310, %v1309
      %v1395 = vpack.c.b16 %v1312, %v1311
      %v1396 = vpack.c.b16 %v1314, %v1313
      %v1397 = vpack.c.b16 %v1316, %v1315
      %v1398 = vpack.c.b16 %v1318, %v1317
      %v1399 = vpack.c.b16 %v1320, %v1319
      %v1400 = vpack.c.b16 %v1322, %v1321
      %v1401 = vpack.c.b16 %v1324, %v1323
      %v1402 = vpack.c.b16 %v1326, %v1325
      %v1403 = vpack.c.b16 %v1328, %v1327
      %v1404 = vpack.c.b16 %v1330, %v1329
      %v1405 = vpack.c.b16 %v1332, %v1331
      %v1406 = vpack.c.b16 %v1334, %v1333
      %v1407 = vpack.c.b16 %v1336, %v1335
      %v1408 = vpack.c.b16 %v1338, %v1337
      %v1409 = vpack.c.b16 %v1340, %v1339
      %v1410 = vpack.c.b16 %v1342, %v1341
      %v1411 = vpack.c.b16 %v1344, %v1343
      %v1412 = vpack.c.b16 %v1346, %v1345
      %v1413 = vpack.c.b16 %v1348, %v1347
      %v1414 = vpack.c.b16 %v1350, %v1349
      %v1495 = vunpack.c.l.b16 %v1072
      %v1496 = vunpack.c.l.b16 %v1073
      %v1497 = vunpack.c.l.b16 %v1074
      %v1498 = vunpack.c.l.b16 %v1075
      %v1499 = vunpack.c.l.b16 %v1076
      %v1500 = vunpack.c.l.b16 %v1077
      %v1501 = vunpack.c.l.b16 %v1078
      %v1502 = vunpack.c.l.b16 %v1079
      %v1503 = vunpack.c.l.b16 %v1080
      %v1504 = vunpack.c.l.b16 %v1081
      %v1505 = vunpack.c.l.b16 %v1082
      %v1506 = vunpack.c.l.b16 %v1083
      %v1507 = vunpack.c.l.b16 %v1084
      %v1508 = vunpack.c.l.b16 %v1085
      %v1509 = vunpack.c.l.b16 %v1086
      %v1510 = vunpack.c.l.b16 %v1087
      %v1511 = vpack.c.b16 %v1496, %v1495
      %v1512 = vpack.c.b16 %v1498, %v1497
      %v1513 = vpack.c.b16 %v1500, %v1499
      %v1514 = vpack.c.b16 %v1502, %v1501
      %v1515 = vpack.c.b16 %v1504, %v1503
      %v1516 = vpack.c.b16 %v1506, %v1505
      %v1517 = vpack.c.b16 %v1508, %v1507
      %v1518 = vpack.c.b16 %v1510, %v1509
      %1527 = vmatprep.subr.bf16.mxu0 0
      %1528 = vmatpush1.bf16.msra.mxu0 %v1518
      %1529 = vmatprep.subr.bf16.mxu0 0
      %1530 = vmatpush1.bf16.msra.mxu0 %v1517
      %1531 = vmatprep.subr.bf16.mxu0 0
      %1532 = vmatpush1.bf16.msra.mxu0 %v1516
      %1533 = vmatprep.subr.bf16.mxu0 0
      %1534 = vmatpush1.bf16.msra.mxu0 %v1515
      %1535 = vmatprep.subr.bf16.mxu0 0
      %1536 = vmatpush1.bf16.msra.mxu0 %v1514
      %1537 = vmatprep.subr.bf16.mxu0 0
      %1538 = vmatpush1.bf16.msra.mxu0 %v1513
      %1539 = vmatprep.subr.bf16.mxu0 0
      %1540 = vmatpush1.bf16.msra.mxu0 %v1512
      %1541 = vmatprep.subr.bf16.mxu0 0
      %1542 = vmatpush1.bf16.msra.mxu0 %v1511
      %1543 = vmatprep.subr.bf16.mxu0 0
      %1544 = vmatpush2.bf16.msra.mxu0 0
      %1545 = vmatprep.subr.bf16.mxu0 0
      %1546 = vmatpush2.bf16.msra.mxu0 0
      %1547 = vmatprep.subr.bf16.mxu0 0
      %1548 = vmatpush2.bf16.msra.mxu0 0
      %1549 = vmatprep.subr.bf16.mxu0 0
      %1550 = vmatpush2.bf16.msra.mxu0 0
      %1551 = vmatprep.subr.bf16.mxu0 0
      %1552 = vmatpush2.bf16.msra.mxu0 0
      %1553 = vmatprep.subr.bf16.mxu0 0
      %1554 = vmatpush2.bf16.msra.mxu0 0
      %1555 = vmatprep.subr.bf16.mxu0 0
      %1556 = vmatpush2.bf16.msra.mxu0 0
      %1557 = vmatprep.subr.bf16.mxu0 0
      %1558 = vmatpush2.bf16.msra.mxu0 0
      %1559 = vmatprep.mubr.bf16.mxu0 0
      %1560 = vmatmul.mubr.bf16.gmra.mxu0 %v1351
      %v1561 = vpop.f32.mrf.mxu0
      %v1562 = vadd.f32 %v1093, %v1561
      %v1563 = vpop.f32.mrf.mxu0
      %v1564 = vpop.f32.mrf.mxu0
      %v1565 = vadd.f32 %v1093, %v1564
      %v1566 = vpop.f32.mrf.mxu0
      %1567 = vmatprep.mubr.bf16.mxu0 0
      %1568 = vmatmul.mubr.bf16.gmra.mxu0 %v1352
      %v1569 = vpop.f32.mrf.mxu0
      %v1570 = vadd.f32 %v1093, %v1569
      %v1571 = vpop.f32.mrf.mxu0
      %v1572 = vpop.f32.mrf.mxu0
      %v1573 = vadd.f32 %v1093, %v1572
      %v1574 = vpop.f32.mrf.mxu0
      %1575 = vmatprep.mubr.bf16.mxu0 0
      %1576 = vmatmul.mubr.bf16.gmra.mxu0 %v1353
      %v1577 = vpop.f32.mrf.mxu0
      %v1578 = vadd.f32 %v1093, %v1577
      %v1579 = vpop.f32.mrf.mxu0
      %v1580 = vpop.f32.mrf.mxu0
      %v1581 = vadd.f32 %v1093, %v1580
      %v1582 = vpop.f32.mrf.mxu0
      %1583 = vmatprep.mubr.bf16.mxu0 0
      %1584 = vmatmul.mubr.bf16.gmra.mxu0 %v1354
      %v1585 = vpop.f32.mrf.mxu0
      %v1586 = vadd.f32 %v1093, %v1585
      %v1587 = vpop.f32.mrf.mxu0
      %v1588 = vpop.f32.mrf.mxu0
      %v1589 = vadd.f32 %v1093, %v1588
      %v1590 = vpop.f32.mrf.mxu0
      %1591 = vmatprep.mubr.bf16.mxu0 0
      %1592 = vmatmul.mubr.bf16.gmra.mxu0 %v1355
      %v1593 = vpop.f32.mrf.mxu0
      %v1594 = vadd.f32 %v1093, %v1593
      %v1595 = vpop.f32.mrf.mxu0
      %v1596 = vpop.f32.mrf.mxu0
      %v1597 = vadd.f32 %v1093, %v1596
      %v1598 = vpop.f32.mrf.mxu0
      %1599 = vmatprep.mubr.bf16.mxu0 0
      %1600 = vmatmul.mubr.bf16.gmra.mxu0 %v1356
      %v1601 = vpop.f32.mrf.mxu0
      %v1602 = vadd.f32 %v1093, %v1601
      %v1603 = vpop.f32.mrf.mxu0
      %v1604 = vpop.f32.mrf.mxu0
      %v1605 = vadd.f32 %v1093, %v1604
      %v1606 = vpop.f32.mrf.mxu0
      %1607 = vmatprep.mubr.bf16.mxu0 0
      %1608 = vmatmul.mubr.bf16.gmra.mxu0 %v1357
      %v1609 = vpop.f32.mrf.mxu0
      %v1610 = vadd.f32 %v1093, %v1609
      %v1611 = vpop.f32.mrf.mxu0
      %v1612 = vpop.f32.mrf.mxu0
      %v1613 = vadd.f32 %v1093, %v1612
      %v1614 = vpop.f32.mrf.mxu0
      %1615 = vmatprep.mubr.bf16.mxu0 0
      %1616 = vmatmul.mubr.bf16.gmra.mxu0 %v1358
      %v1617 = vpop.f32.mrf.mxu0
      %v1618 = vadd.f32 %v1093, %v1617
      %v1619 = vpop.f32.mrf.mxu0
      %v1620 = vpop.f32.mrf.mxu0
      %v1621 = vadd.f32 %v1093, %v1620
      %v1622 = vpop.f32.mrf.mxu0
      %1623 = vmatprep.mubr.bf16.mxu0 0
      %1624 = vmatmul.mubr.bf16.gmra.mxu0 %v1359
      %v1625 = vpop.f32.mrf.mxu0
      %v1626 = vadd.f32 %v1093, %v1625
      %v1627 = vpop.f32.mrf.mxu0
      %v1628 = vpop.f32.mrf.mxu0
      %v1629 = vadd.f32 %v1093, %v1628
      %v1630 = vpop.f32.mrf.mxu0
      %1631 = vmatprep.mubr.bf16.mxu0 0
      %1632 = vmatmul.mubr.bf16.gmra.mxu0 %v1360
      %v1633 = vpop.f32.mrf.mxu0
      %v1634 = vadd.f32 %v1093, %v1633
      %v1635 = vpop.f32.mrf.mxu0
      %v1636 = vpop.f32.mrf.mxu0
      %v1637 = vadd.f32 %v1093, %v1636
      %v1638 = vpop.f32.mrf.mxu0
      %1639 = vmatprep.mubr.bf16.mxu0 0
      %1640 = vmatmul.mubr.bf16.gmra.mxu0 %v1361
      %v1641 = vpop.f32.mrf.mxu0
      %v1642 = vadd.f32 %v1093, %v1641
      %v1643 = vpop.f32.mrf.mxu0
      %v1644 = vpop.f32.mrf.mxu0
      %v1645 = vadd.f32 %v1093, %v1644
      %v1646 = vpop.f32.mrf.mxu0
      %1647 = vmatprep.mubr.bf16.mxu0 0
      %1648 = vmatmul.mubr.bf16.gmra.mxu0 %v1362
      %v1649 = vpop.f32.mrf.mxu0
      %v1650 = vadd.f32 %v1093, %v1649
      %v1651 = vpop.f32.mrf.mxu0
      %v1652 = vpop.f32.mrf.mxu0
      %v1653 = vadd.f32 %v1093, %v1652
      %v1654 = vpop.f32.mrf.mxu0
      %1655 = vmatprep.mubr.bf16.mxu0 0
      %1656 = vmatmul.mubr.bf16.gmra.mxu0 %v1363
      %v1657 = vpop.f32.mrf.mxu0
      %v1658 = vadd.f32 %v1093, %v1657
      %v1659 = vpop.f32.mrf.mxu0
      %v1660 = vpop.f32.mrf.mxu0
      %v1661 = vadd.f32 %v1093, %v1660
      %v1662 = vpop.f32.mrf.mxu0
      %1663 = vmatprep.mubr.bf16.mxu0 0
      %1664 = vmatmul.mubr.bf16.gmra.mxu0 %v1364
      %v1665 = vpop.f32.mrf.mxu0
      %v1666 = vadd.f32 %v1093, %v1665
      %v1667 = vpop.f32.mrf.mxu0
      %v1668 = vpop.f32.mrf.mxu0
      %v1669 = vadd.f32 %v1093, %v1668
      %v1670 = vpop.f32.mrf.mxu0
      %1671 = vmatprep.mubr.bf16.mxu0 0
      %1672 = vmatmul.mubr.bf16.gmra.mxu0 %v1365
      %v1673 = vpop.f32.mrf.mxu0
      %v1674 = vadd.f32 %v1093, %v1673
      %v1675 = vpop.f32.mrf.mxu0
      %v1676 = vpop.f32.mrf.mxu0
      %v1677 = vadd.f32 %v1093, %v1676
      %v1678 = vpop.f32.mrf.mxu0
      %1679 = vmatprep.mubr.bf16.mxu0 0
      %1680 = vmatmul.mubr.bf16.gmra.mxu0 %v1366
      %v1681 = vpop.f32.mrf.mxu0
      %v1682 = vadd.f32 %v1093, %v1681
      %v1683 = vpop.f32.mrf.mxu0
      %v1684 = vpop.f32.mrf.mxu0
      %v1685 = vadd.f32 %v1093, %v1684
      %v1686 = vpop.f32.mrf.mxu0
      %1687 = vmatprep.mubr.bf16.mxu0 0
      %1688 = vmatmul.mubr.bf16.gmra.mxu0 %v1367
      %v1689 = vpop.f32.mrf.mxu0
      %v1690 = vadd.f32 %v1093, %v1689
      %v1691 = vpop.f32.mrf.mxu0
      %v1692 = vpop.f32.mrf.mxu0
      %v1693 = vadd.f32 %v1093, %v1692
      %v1694 = vpop.f32.mrf.mxu0
      %1695 = vmatprep.mubr.bf16.mxu0 0
      %1696 = vmatmul.mubr.bf16.gmra.mxu0 %v1368
      %v1697 = vpop.f32.mrf.mxu0
      %v1698 = vadd.f32 %v1093, %v1697
      %v1699 = vpop.f32.mrf.mxu0
      %v1700 = vpop.f32.mrf.mxu0
      %v1701 = vadd.f32 %v1093, %v1700
      %v1702 = vpop.f32.mrf.mxu0
      %1703 = vmatprep.mubr.bf16.mxu0 0
      %1704 = vmatmul.mubr.bf16.gmra.mxu0 %v1369
      %v1705 = vpop.f32.mrf.mxu0
      %v1706 = vadd.f32 %v1093, %v1705
      %v1707 = vpop.f32.mrf.mxu0
      %v1708 = vpop.f32.mrf.mxu0
      %v1709 = vadd.f32 %v1093, %v1708
      %v1710 = vpop.f32.mrf.mxu0
      %1711 = vmatprep.mubr.bf16.mxu0 0
      %1712 = vmatmul.mubr.bf16.gmra.mxu0 %v1370
      %v1713 = vpop.f32.mrf.mxu0
      %v1714 = vadd.f32 %v1093, %v1713
      %v1715 = vpop.f32.mrf.mxu0
      %v1716 = vpop.f32.mrf.mxu0
      %v1717 = vadd.f32 %v1093, %v1716
      %v1718 = vpop.f32.mrf.mxu0
      %1719 = vmatprep.mubr.bf16.mxu0 0
      %1720 = vmatmul.mubr.bf16.gmra.mxu0 %v1371
      %v1721 = vpop.f32.mrf.mxu0
      %v1722 = vadd.f32 %v1093, %v1721
      %v1723 = vpop.f32.mrf.mxu0
      %v1724 = vpop.f32.mrf.mxu0
      %v1725 = vadd.f32 %v1093, %v1724
      %v1726 = vpop.f32.mrf.mxu0
      %1727 = vmatprep.mubr.bf16.mxu0 0
      %1728 = vmatmul.mubr.bf16.gmra.mxu0 %v1372
      %v1729 = vpop.f32.mrf.mxu0
      %v1730 = vadd.f32 %v1093, %v1729
      %v1731 = vpop.f32.mrf.mxu0
      %v1732 = vpop.f32.mrf.mxu0
      %v1733 = vadd.f32 %v1093, %v1732
      %v1734 = vpop.f32.mrf.mxu0
      %1735 = vmatprep.mubr.bf16.mxu0 0
      %1736 = vmatmul.mubr.bf16.gmra.mxu0 %v1373
      %v1737 = vpop.f32.mrf.mxu0
      %v1738 = vadd.f32 %v1093, %v1737
      %v1739 = vpop.f32.mrf.mxu0
      %v1740 = vpop.f32.mrf.mxu0
      %v1741 = vadd.f32 %v1093, %v1740
      %v1742 = vpop.f32.mrf.mxu0
      %1743 = vmatprep.mubr.bf16.mxu0 0
      %1744 = vmatmul.mubr.bf16.gmra.mxu0 %v1374
      %v1745 = vpop.f32.mrf.mxu0
      %v1746 = vadd.f32 %v1093, %v1745
      %v1747 = vpop.f32.mrf.mxu0
      %v1748 = vpop.f32.mrf.mxu0
      %v1749 = vadd.f32 %v1093, %v1748
      %v1750 = vpop.f32.mrf.mxu0
      %1751 = vmatprep.mubr.bf16.mxu0 0
      %1752 = vmatmul.mubr.bf16.gmra.mxu0 %v1375
      %v1753 = vpop.f32.mrf.mxu0
      %v1754 = vadd.f32 %v1093, %v1753
      %v1755 = vpop.f32.mrf.mxu0
      %v1756 = vpop.f32.mrf.mxu0
      %v1757 = vadd.f32 %v1093, %v1756
      %v1758 = vpop.f32.mrf.mxu0
      %1759 = vmatprep.mubr.bf16.mxu0 0
      %1760 = vmatmul.mubr.bf16.gmra.mxu0 %v1376
      %v1761 = vpop.f32.mrf.mxu0
      %v1762 = vadd.f32 %v1093, %v1761
      %v1763 = vpop.f32.mrf.mxu0
      %v1764 = vpop.f32.mrf.mxu0
      %v1765 = vadd.f32 %v1093, %v1764
      %v1766 = vpop.f32.mrf.mxu0
      %1767 = vmatprep.mubr.bf16.mxu0 0
      %1768 = vmatmul.mubr.bf16.gmra.mxu0 %v1377
      %v1769 = vpop.f32.mrf.mxu0
      %v1770 = vadd.f32 %v1093, %v1769
      %v1771 = vpop.f32.mrf.mxu0
      %v1772 = vpop.f32.mrf.mxu0
      %v1773 = vadd.f32 %v1093, %v1772
      %v1774 = vpop.f32.mrf.mxu0
      %1775 = vmatprep.mubr.bf16.mxu0 0
      %1776 = vmatmul.mubr.bf16.gmra.mxu0 %v1378
      %v1777 = vpop.f32.mrf.mxu0
      %v1778 = vadd.f32 %v1093, %v1777
      %v1779 = vpop.f32.mrf.mxu0
      %v1780 = vpop.f32.mrf.mxu0
      %v1781 = vadd.f32 %v1093, %v1780
      %v1782 = vpop.f32.mrf.mxu0
      %1783 = vmatprep.mubr.bf16.mxu0 0
      %1784 = vmatmul.mubr.bf16.gmra.mxu0 %v1379
      %v1785 = vpop.f32.mrf.mxu0
      %v1786 = vadd.f32 %v1093, %v1785
      %v1787 = vpop.f32.mrf.mxu0
      %v1788 = vpop.f32.mrf.mxu0
      %v1789 = vadd.f32 %v1093, %v1788
      %v1790 = vpop.f32.mrf.mxu0
      %1791 = vmatprep.mubr.bf16.mxu0 0
      %1792 = vmatmul.mubr.bf16.gmra.mxu0 %v1380
      %v1793 = vpop.f32.mrf.mxu0
      %v1794 = vadd.f32 %v1093, %v1793
      %v1795 = vpop.f32.mrf.mxu0
      %v1796 = vpop.f32.mrf.mxu0
      %v1797 = vadd.f32 %v1093, %v1796
      %v1798 = vpop.f32.mrf.mxu0
      %1799 = vmatprep.mubr.bf16.mxu0 0
      %1800 = vmatmul.mubr.bf16.gmra.mxu0 %v1381
      %v1801 = vpop.f32.mrf.mxu0
      %v1802 = vadd.f32 %v1093, %v1801
      %v1803 = vpop.f32.mrf.mxu0
      %v1804 = vpop.f32.mrf.mxu0
      %v1805 = vadd.f32 %v1093, %v1804
      %v1806 = vpop.f32.mrf.mxu0
      %1807 = vmatprep.mubr.bf16.mxu0 0
      %1808 = vmatmul.mubr.bf16.gmra.mxu0 %v1382
      %v1809 = vpop.f32.mrf.mxu0
      %v1810 = vadd.f32 %v1093, %v1809
      %v1811 = vpop.f32.mrf.mxu0
      %v1812 = vpop.f32.mrf.mxu0
      %v1813 = vadd.f32 %v1093, %v1812
      %v1814 = vpop.f32.mrf.mxu0
      %1815 = vmatprep.mubr.bf16.mxu0 0
      %1816 = vmatmul.mubr.bf16.gmra.mxu0 %v1383
      %v1817 = vpop.f32.mrf.mxu0
      %v1818 = vadd.f32 %v1093, %v1817
      %v1819 = vpop.f32.mrf.mxu0
      %v1820 = vpop.f32.mrf.mxu0
      %v1821 = vadd.f32 %v1093, %v1820
      %v1822 = vpop.f32.mrf.mxu0
      %1823 = vmatprep.mubr.bf16.mxu0 0
      %1824 = vmatmul.mubr.bf16.gmra.mxu0 %v1384
      %v1825 = vpop.f32.mrf.mxu0
      %v1826 = vadd.f32 %v1093, %v1825
      %v1827 = vpop.f32.mrf.mxu0
      %v1828 = vpop.f32.mrf.mxu0
      %v1829 = vadd.f32 %v1093, %v1828
      %v1830 = vpop.f32.mrf.mxu0
      %1831 = vmatprep.mubr.bf16.mxu0 0
      %1832 = vmatmul.mubr.bf16.gmra.mxu0 %v1385
      %v1833 = vpop.f32.mrf.mxu0
      %v1834 = vadd.f32 %v1093, %v1833
      %v1835 = vpop.f32.mrf.mxu0
      %v1836 = vpop.f32.mrf.mxu0
      %v1837 = vadd.f32 %v1093, %v1836
      %v1838 = vpop.f32.mrf.mxu0
      %1839 = vmatprep.mubr.bf16.mxu0 0
      %1840 = vmatmul.mubr.bf16.gmra.mxu0 %v1386
      %v1841 = vpop.f32.mrf.mxu0
      %v1842 = vadd.f32 %v1093, %v1841
      %v1843 = vpop.f32.mrf.mxu0
      %v1844 = vpop.f32.mrf.mxu0
      %v1845 = vadd.f32 %v1093, %v1844
      %v1846 = vpop.f32.mrf.mxu0
      %1847 = vmatprep.mubr.bf16.mxu0 0
      %1848 = vmatmul.mubr.bf16.gmra.mxu0 %v1387
      %v1849 = vpop.f32.mrf.mxu0
      %v1850 = vadd.f32 %v1093, %v1849
      %v1851 = vpop.f32.mrf.mxu0
      %v1852 = vpop.f32.mrf.mxu0
      %v1853 = vadd.f32 %v1093, %v1852
      %v1854 = vpop.f32.mrf.mxu0
      %1855 = vmatprep.mubr.bf16.mxu0 0
      %1856 = vmatmul.mubr.bf16.gmra.mxu0 %v1388
      %v1857 = vpop.f32.mrf.mxu0
      %v1858 = vadd.f32 %v1093, %v1857
      %v1859 = vpop.f32.mrf.mxu0
      %v1860 = vpop.f32.mrf.mxu0
      %v1861 = vadd.f32 %v1093, %v1860
      %v1862 = vpop.f32.mrf.mxu0
      %1863 = vmatprep.mubr.bf16.mxu0 0
      %1864 = vmatmul.mubr.bf16.gmra.mxu0 %v1389
      %v1865 = vpop.f32.mrf.mxu0
      %v1866 = vadd.f32 %v1093, %v1865
      %v1867 = vpop.f32.mrf.mxu0
      %v1868 = vpop.f32.mrf.mxu0
      %v1869 = vadd.f32 %v1093, %v1868
      %v1870 = vpop.f32.mrf.mxu0
      %1871 = vmatprep.mubr.bf16.mxu0 0
      %1872 = vmatmul.mubr.bf16.gmra.mxu0 %v1390
      %v1873 = vpop.f32.mrf.mxu0
      %v1874 = vadd.f32 %v1093, %v1873
      %v1875 = vpop.f32.mrf.mxu0
      %v1876 = vpop.f32.mrf.mxu0
      %v1877 = vadd.f32 %v1093, %v1876
      %v1878 = vpop.f32.mrf.mxu0
      %1879 = vmatprep.mubr.bf16.mxu0 0
      %1880 = vmatmul.mubr.bf16.gmra.mxu0 %v1391
      %v1881 = vpop.f32.mrf.mxu0
      %v1882 = vadd.f32 %v1093, %v1881
      %v1883 = vpop.f32.mrf.mxu0
      %v1884 = vpop.f32.mrf.mxu0
      %v1885 = vadd.f32 %v1093, %v1884
      %v1886 = vpop.f32.mrf.mxu0
      %1887 = vmatprep.mubr.bf16.mxu0 0
      %1888 = vmatmul.mubr.bf16.gmra.mxu0 %v1392
      %v1889 = vpop.f32.mrf.mxu0
      %v1890 = vadd.f32 %v1093, %v1889
      %v1891 = vpop.f32.mrf.mxu0
      %v1892 = vpop.f32.mrf.mxu0
      %v1893 = vadd.f32 %v1093, %v1892
      %v1894 = vpop.f32.mrf.mxu0
      %1895 = vmatprep.mubr.bf16.mxu0 0
      %1896 = vmatmul.mubr.bf16.gmra.mxu0 %v1393
      %v1897 = vpop.f32.mrf.mxu0
      %v1898 = vadd.f32 %v1093, %v1897
      %v1899 = vpop.f32.mrf.mxu0
      %v1900 = vpop.f32.mrf.mxu0
      %v1901 = vadd.f32 %v1093, %v1900
      %v1902 = vpop.f32.mrf.mxu0
      %1903 = vmatprep.mubr.bf16.mxu0 0
      %1904 = vmatmul.mubr.bf16.gmra.mxu0 %v1394
      %v1905 = vpop.f32.mrf.mxu0
      %v1906 = vadd.f32 %v1093, %v1905
      %v1907 = vpop.f32.mrf.mxu0
      %v1908 = vpop.f32.mrf.mxu0
      %v1909 = vadd.f32 %v1093, %v1908
      %v1910 = vpop.f32.mrf.mxu0
      %1911 = vmatprep.mubr.bf16.mxu0 0
      %1912 = vmatmul.mubr.bf16.gmra.mxu0 %v1395
      %v1913 = vpop.f32.mrf.mxu0
      %v1914 = vadd.f32 %v1093, %v1913
      %v1915 = vpop.f32.mrf.mxu0
      %v1916 = vpop.f32.mrf.mxu0
      %v1917 = vadd.f32 %v1093, %v1916
      %v1918 = vpop.f32.mrf.mxu0
      %1919 = vmatprep.mubr.bf16.mxu0 0
      %1920 = vmatmul.mubr.bf16.gmra.mxu0 %v1396
      %v1921 = vpop.f32.mrf.mxu0
      %v1922 = vadd.f32 %v1093, %v1921
      %v1923 = vpop.f32.mrf.mxu0
      %v1924 = vpop.f32.mrf.mxu0
      %v1925 = vadd.f32 %v1093, %v1924
      %v1926 = vpop.f32.mrf.mxu0
      %1927 = vmatprep.mubr.bf16.mxu0 0
      %1928 = vmatmul.mubr.bf16.gmra.mxu0 %v1397
      %v1929 = vpop.f32.mrf.mxu0
      %v1930 = vadd.f32 %v1093, %v1929
      %v1931 = vpop.f32.mrf.mxu0
      %v1932 = vpop.f32.mrf.mxu0
      %v1933 = vadd.f32 %v1093, %v1932
      %v1934 = vpop.f32.mrf.mxu0
      %1935 = vmatprep.mubr.bf16.mxu0 0
      %1936 = vmatmul.mubr.bf16.gmra.mxu0 %v1398
      %v1937 = vpop.f32.mrf.mxu0
      %v1938 = vadd.f32 %v1093, %v1937
      %v1939 = vpop.f32.mrf.mxu0
      %v1940 = vpop.f32.mrf.mxu0
      %v1941 = vadd.f32 %v1093, %v1940
      %v1942 = vpop.f32.mrf.mxu0
      %1943 = vmatprep.mubr.bf16.mxu0 0
      %1944 = vmatmul.mubr.bf16.gmra.mxu0 %v1399
      %v1945 = vpop.f32.mrf.mxu0
      %v1946 = vadd.f32 %v1093, %v1945
      %v1947 = vpop.f32.mrf.mxu0
      %v1948 = vpop.f32.mrf.mxu0
      %v1949 = vadd.f32 %v1093, %v1948
      %v1950 = vpop.f32.mrf.mxu0
      %1951 = vmatprep.mubr.bf16.mxu0 0
      %1952 = vmatmul.mubr.bf16.gmra.mxu0 %v1400
      %v1953 = vpop.f32.mrf.mxu0
      %v1954 = vadd.f32 %v1093, %v1953
      %v1955 = vpop.f32.mrf.mxu0
      %v1956 = vpop.f32.mrf.mxu0
      %v1957 = vadd.f32 %v1093, %v1956
      %v1958 = vpop.f32.mrf.mxu0
      %1959 = vmatprep.mubr.bf16.mxu0 0
      %1960 = vmatmul.mubr.bf16.gmra.mxu0 %v1401
      %v1961 = vpop.f32.mrf.mxu0
      %v1962 = vadd.f32 %v1093, %v1961
      %v1963 = vpop.f32.mrf.mxu0
      %v1964 = vpop.f32.mrf.mxu0
      %v1965 = vadd.f32 %v1093, %v1964
      %v1966 = vpop.f32.mrf.mxu0
      %1967 = vmatprep.mubr.bf16.mxu0 0
      %1968 = vmatmul.mubr.bf16.gmra.mxu0 %v1402
      %v1969 = vpop.f32.mrf.mxu0
      %v1970 = vadd.f32 %v1093, %v1969
      %v1971 = vpop.f32.mrf.mxu0
      %v1972 = vpop.f32.mrf.mxu0
      %v1973 = vadd.f32 %v1093, %v1972
      %v1974 = vpop.f32.mrf.mxu0
      %1975 = vmatprep.mubr.bf16.mxu0 0
      %1976 = vmatmul.mubr.bf16.gmra.mxu0 %v1403
      %v1977 = vpop.f32.mrf.mxu0
      %v1978 = vadd.f32 %v1093, %v1977
      %v1979 = vpop.f32.mrf.mxu0
      %v1980 = vpop.f32.mrf.mxu0
      %v1981 = vadd.f32 %v1093, %v1980
      %v1982 = vpop.f32.mrf.mxu0
      %1983 = vmatprep.mubr.bf16.mxu0 0
      %1984 = vmatmul.mubr.bf16.gmra.mxu0 %v1404
      %v1985 = vpop.f32.mrf.mxu0
      %v1986 = vadd.f32 %v1093, %v1985
      %v1987 = vpop.f32.mrf.mxu0
      %v1988 = vpop.f32.mrf.mxu0
      %v1989 = vadd.f32 %v1093, %v1988
      %v1990 = vpop.f32.mrf.mxu0
      %1991 = vmatprep.mubr.bf16.mxu0 0
      %1992 = vmatmul.mubr.bf16.gmra.mxu0 %v1405
      %v1993 = vpop.f32.mrf.mxu0
      %v1994 = vadd.f32 %v1093, %v1993
      %v1995 = vpop.f32.mrf.mxu0
      %v1996 = vpop.f32.mrf.mxu0
      %v1997 = vadd.f32 %v1093, %v1996
      %v1998 = vpop.f32.mrf.mxu0
      %1999 = vmatprep.mubr.bf16.mxu0 0
      %2000 = vmatmul.mubr.bf16.gmra.mxu0 %v1406
      %v2001 = vpop.f32.mrf.mxu0
      %v2002 = vadd.f32 %v1093, %v2001
      %v2003 = vpop.f32.mrf.mxu0
      %v2004 = vpop.f32.mrf.mxu0
      %v2005 = vadd.f32 %v1093, %v2004
      %v2006 = vpop.f32.mrf.mxu0
      %2007 = vmatprep.mubr.bf16.mxu0 0
      %2008 = vmatmul.mubr.bf16.gmra.mxu0 %v1407
      %v2009 = vpop.f32.mrf.mxu0
      %v2010 = vadd.f32 %v1093, %v2009
      %v2011 = vpop.f32.mrf.mxu0
      %v2012 = vpop.f32.mrf.mxu0
      %v2013 = vadd.f32 %v1093, %v2012
      %v2014 = vpop.f32.mrf.mxu0
      %2015 = vmatprep.mubr.bf16.mxu0 0
      %2016 = vmatmul.mubr.bf16.gmra.mxu0 %v1408
      %v2017 = vpop.f32.mrf.mxu0
      %v2018 = vadd.f32 %v1093, %v2017
      %v2019 = vpop.f32.mrf.mxu0
      %v2020 = vpop.f32.mrf.mxu0
      %v2021 = vadd.f32 %v1093, %v2020
      %v2022 = vpop.f32.mrf.mxu0
      %2023 = vmatprep.mubr.bf16.mxu0 0
      %2024 = vmatmul.mubr.bf16.gmra.mxu0 %v1409
      %v2025 = vpop.f32.mrf.mxu0
      %v2026 = vadd.f32 %v1093, %v2025
      %v2027 = vpop.f32.mrf.mxu0
      %v2028 = vpop.f32.mrf.mxu0
      %v2029 = vadd.f32 %v1093, %v2028
      %v2030 = vpop.f32.mrf.mxu0
      %2031 = vmatprep.mubr.bf16.mxu0 0
      %2032 = vmatmul.mubr.bf16.gmra.mxu0 %v1410
      %v2033 = vpop.f32.mrf.mxu0
      %v2034 = vadd.f32 %v1093, %v2033
      %v2035 = vpop.f32.mrf.mxu0
      %v2036 = vpop.f32.mrf.mxu0
      %v2037 = vadd.f32 %v1093, %v2036
      %v2038 = vpop.f32.mrf.mxu0
      %2039 = vmatprep.mubr.bf16.mxu0 0
      %2040 = vmatmul.mubr.bf16.gmra.mxu0 %v1411
      %v2041 = vpop.f32.mrf.mxu0
      %v2042 = vadd.f32 %v1093, %v2041
      %v2043 = vpop.f32.mrf.mxu0
      %v2044 = vpop.f32.mrf.mxu0
      %v2045 = vadd.f32 %v1093, %v2044
      %v2046 = vpop.f32.mrf.mxu0
      %2047 = vmatprep.mubr.bf16.mxu0 0
      %2048 = vmatmul.mubr.bf16.gmra.mxu0 %v1412
      %v2049 = vpop.f32.mrf.mxu0
      %v2050 = vadd.f32 %v1093, %v2049
      %v2051 = vpop.f32.mrf.mxu0
      %v2052 = vpop.f32.mrf.mxu0
      %v2053 = vadd.f32 %v1093, %v2052
      %v2054 = vpop.f32.mrf.mxu0
      %2055 = vmatprep.mubr.bf16.mxu0 0
      %2056 = vmatmul.mubr.bf16.gmra.mxu0 %v1413
      %v2057 = vpop.f32.mrf.mxu0
      %v2058 = vadd.f32 %v1093, %v2057
      %v2059 = vpop.f32.mrf.mxu0
      %v2060 = vpop.f32.mrf.mxu0
      %v2061 = vadd.f32 %v1093, %v2060
      %v2062 = vpop.f32.mrf.mxu0
      %2063 = vmatprep.mubr.bf16.mxu0 0
      %2064 = vmatmul.mubr.bf16.gmra.mxu0 %v1414
      %v2065 = vpop.f32.mrf.mxu0
      %v2066 = vadd.f32 %v1093, %v2065
      %v2067 = vpop.f32.mrf.mxu0
      %v2068 = vpop.f32.mrf.mxu0
      %v2069 = vadd.f32 %v1093, %v2068
      %v2070 = vpop.f32.mrf.mxu0
      %2071 = vdwg.mxu0
      %v2072 = vmax.f32 %v1562, 0.0
      %v2073 = vmax.f32 %v1565, 0.0
      %v2074 = vmax.f32 %v1570, 0.0
      %v2075 = vmax.f32 %v1573, 0.0
      %v2076 = vmax.f32 %v1578, 0.0
      %v2077 = vmax.f32 %v1581, 0.0
      %v2078 = vmax.f32 %v1586, 0.0
      %v2079 = vmax.f32 %v1589, 0.0
      %v2080 = vmax.f32 %v1594, 0.0
      %v2081 = vmax.f32 %v1597, 0.0
      %v2082 = vmax.f32 %v1602, 0.0
      %v2083 = vmax.f32 %v1605, 0.0
      %v2084 = vmax.f32 %v1610, 0.0
      %v2085 = vmax.f32 %v1613, 0.0
      %v2086 = vmax.f32 %v1618, 0.0
      %v2087 = vmax.f32 %v1621, 0.0
      %v2088 = vmax.f32 %v1626, 0.0
      %v2089 = vmax.f32 %v1629, 0.0
      %v2090 = vmax.f32 %v1634, 0.0
      %v2091 = vmax.f32 %v1637, 0.0
      %v2092 = vmax.f32 %v1642, 0.0
      %v2093 = vmax.f32 %v1645, 0.0
      %v2094 = vmax.f32 %v1650, 0.0
      %v2095 = vmax.f32 %v1653, 0.0
      %v2096 = vmax.f32 %v1658, 0.0
      %v2097 = vmax.f32 %v1661, 0.0
      %v2098 = vmax.f32 %v1666, 0.0
      %v2099 = vmax.f32 %v1669, 0.0
      %v2100 = vmax.f32 %v1674, 0.0
      %v2101 = vmax.f32 %v1677, 0.0
      %v2102 = vmax.f32 %v1682, 0.0
      %v2103 = vmax.f32 %v1685, 0.0
      %v2104 = vmax.f32 %v1690, 0.0
      %v2105 = vmax.f32 %v1693, 0.0
      %v2106 = vmax.f32 %v1698, 0.0
      %v2107 = vmax.f32 %v1701, 0.0
      %v2108 = vmax.f32 %v1706, 0.0
      %v2109 = vmax.f32 %v1709, 0.0
      %v2110 = vmax.f32 %v1714, 0.0
      %v2111 = vmax.f32 %v1717, 0.0
      %v2112 = vmax.f32 %v1722, 0.0
      %v2113 = vmax.f32 %v1725, 0.0
      %v2114 = vmax.f32 %v1730, 0.0
      %v2115 = vmax.f32 %v1733, 0.0
      %v2116 = vmax.f32 %v1738, 0.0
      %v2117 = vmax.f32 %v1741, 0.0
      %v2118 = vmax.f32 %v1746, 0.0
      %v2119 = vmax.f32 %v1749, 0.0
      %v2120 = vmax.f32 %v1754, 0.0
      %v2121 = vmax.f32 %v1757, 0.0
      %v2122 = vmax.f32 %v1762, 0.0
      %v2123 = vmax.f32 %v1765, 0.0
      %v2124 = vmax.f32 %v1770, 0.0
      %v2125 = vmax.f32 %v1773, 0.0
      %v2126 = vmax.f32 %v1778, 0.0
      %v2127 = vmax.f32 %v1781, 0.0
      %v2128 = vmax.f32 %v1786, 0.0
      %v2129 = vmax.f32 %v1789, 0.0
      %v2130 = vmax.f32 %v1794, 0.0
      %v2131 = vmax.f32 %v1797, 0.0
      %v2132 = vmax.f32 %v1802, 0.0
      %v2133 = vmax.f32 %v1805, 0.0
      %v2134 = vmax.f32 %v1810, 0.0
      %v2135 = vmax.f32 %v1813, 0.0
      %v2136 = vmax.f32 %v1818, 0.0
      %v2137 = vmax.f32 %v1821, 0.0
      %v2138 = vmax.f32 %v1826, 0.0
      %v2139 = vmax.f32 %v1829, 0.0
      %v2140 = vmax.f32 %v1834, 0.0
      %v2141 = vmax.f32 %v1837, 0.0
      %v2142 = vmax.f32 %v1842, 0.0
      %v2143 = vmax.f32 %v1845, 0.0
      %v2144 = vmax.f32 %v1850, 0.0
      %v2145 = vmax.f32 %v1853, 0.0
      %v2146 = vmax.f32 %v1858, 0.0
      %v2147 = vmax.f32 %v1861, 0.0
      %v2148 = vmax.f32 %v1866, 0.0
      %v2149 = vmax.f32 %v1869, 0.0
      %v2150 = vmax.f32 %v1874, 0.0
      %v2151 = vmax.f32 %v1877, 0.0
      %v2152 = vmax.f32 %v1882, 0.0
      %v2153 = vmax.f32 %v1885, 0.0
      %v2154 = vmax.f32 %v1890, 0.0
      %v2155 = vmax.f32 %v1893, 0.0
      %v2156 = vmax.f32 %v1898, 0.0
      %v2157 = vmax.f32 %v1901, 0.0
      %v2158 = vmax.f32 %v1906, 0.0
      %v2159 = vmax.f32 %v1909, 0.0
      %v2160 = vmax.f32 %v1914, 0.0
      %v2161 = vmax.f32 %v1917, 0.0
      %v2162 = vmax.f32 %v1922, 0.0
      %v2163 = vmax.f32 %v1925, 0.0
      %v2164 = vmax.f32 %v1930, 0.0
      %v2165 = vmax.f32 %v1933, 0.0
      %v2166 = vmax.f32 %v1938, 0.0
      %v2167 = vmax.f32 %v1941, 0.0
      %v2168 = vmax.f32 %v1946, 0.0
      %v2169 = vmax.f32 %v1949, 0.0
      %v2170 = vmax.f32 %v1954, 0.0
      %v2171 = vmax.f32 %v1957, 0.0
      %v2172 = vmax.f32 %v1962, 0.0
      %v2173 = vmax.f32 %v1965, 0.0
      %v2174 = vmax.f32 %v1970, 0.0
      %v2175 = vmax.f32 %v1973, 0.0
      %v2176 = vmax.f32 %v1978, 0.0
      %v2177 = vmax.f32 %v1981, 0.0
      %v2178 = vmax.f32 %v1986, 0.0
      %v2179 = vmax.f32 %v1989, 0.0
      %v2180 = vmax.f32 %v1994, 0.0
      %v2181 = vmax.f32 %v1997, 0.0
      %v2182 = vmax.f32 %v2002, 0.0
      %v2183 = vmax.f32 %v2005, 0.0
      %v2184 = vmax.f32 %v2010, 0.0
      %v2185 = vmax.f32 %v2013, 0.0
      %v2186 = vmax.f32 %v2018, 0.0
      %v2187 = vmax.f32 %v2021, 0.0
      %v2188 = vmax.f32 %v2026, 0.0
      %v2189 = vmax.f32 %v2029, 0.0
      %v2190 = vmax.f32 %v2034, 0.0
      %v2191 = vmax.f32 %v2037, 0.0
      %v2192 = vmax.f32 %v2042, 0.0
      %v2193 = vmax.f32 %v2045, 0.0
      %v2194 = vmax.f32 %v2050, 0.0
      %v2195 = vmax.f32 %v2053, 0.0
      %v2196 = vmax.f32 %v2058, 0.0
      %v2197 = vmax.f32 %v2061, 0.0
      %v2198 = vmax.f32 %v2066, 0.0
      %v2199 = vmax.f32 %v2069, 0.0
      %v2200 = vsel %vm730, 1, 0
      %v2201 = vsel %vm731, 1, 0
      %v2202 = vsel %vm732, 1, 0
      %v2203 = vsel %vm733, 1, 0
      %v2204 = vsel %vm734, 1, 0
      %v2205 = vsel %vm735, 1, 0
      %v2206 = vsel %vm736, 1, 0
      %v2207 = vsel %vm737, 1, 0
      %v2208 = vsel %vm738, 1, 0
      %v2209 = vsel %vm739, 1, 0
      %v2210 = vsel %vm740, 1, 0
      %v2211 = vsel %vm741, 1, 0
      %v2212 = vsel %vm742, 1, 0
      %v2213 = vsel %vm743, 1, 0
      %v2214 = vsel %vm744, 1, 0
      %v2215 = vsel %vm745, 1, 0
      %v2216 = vsel %vm746, 1, 0
      %v2217 = vsel %vm747, 1, 0
      %v2218 = vsel %vm748, 1, 0
      %v2219 = vsel %vm749, 1, 0
      %v2220 = vsel %vm750, 1, 0
      %v2221 = vsel %vm751, 1, 0
      %v2222 = vsel %vm752, 1, 0
      %v2223 = vsel %vm753, 1, 0
      %v2224 = vsel %vm754, 1, 0
      %v2225 = vsel %vm755, 1, 0
      %v2226 = vsel %vm756, 1, 0
      %v2227 = vsel %vm757, 1, 0
      %v2228 = vsel %vm758, 1, 0
      %v2229 = vsel %vm759, 1, 0
      %v2230 = vsel %vm760, 1, 0
      %v2231 = vsel %vm761, 1, 0
      %v2232 = vsel %vm762, 1, 0
      %v2233 = vsel %vm763, 1, 0
      %v2234 = vsel %vm764, 1, 0
      %v2235 = vsel %vm765, 1, 0
      %v2236 = vsel %vm766, 1, 0
      %v2237 = vsel %vm767, 1, 0
      %v2238 = vsel %vm768, 1, 0
      %v2239 = vsel %vm769, 1, 0
      %v2240 = vsel %vm770, 1, 0
      %v2241 = vsel %vm771, 1, 0
      %v2242 = vsel %vm772, 1, 0
      %v2243 = vsel %vm773, 1, 0
      %v2244 = vsel %vm774, 1, 0
      %v2245 = vsel %vm775, 1, 0
      %v2246 = vsel %vm776, 1, 0
      %v2247 = vsel %vm777, 1, 0
      %v2248 = vsel %vm778, 1, 0
      %v2249 = vsel %vm779, 1, 0
      %v2250 = vsel %vm780, 1, 0
      %v2251 = vsel %vm781, 1, 0
      %v2252 = vsel %vm782, 1, 0
      %v2253 = vsel %vm783, 1, 0
      %v2254 = vsel %vm784, 1, 0
      %v2255 = vsel %vm785, 1, 0
      %v2256 = vsel %vm786, 1, 0
      %v2257 = vsel %vm787, 1, 0
      %v2258 = vsel %vm788, 1, 0
      %v2259 = vsel %vm789, 1, 0
      %v2260 = vsel %vm790, 1, 0
      %v2261 = vsel %vm791, 1, 0
      %v2262 = vsel %vm792, 1, 0
      %v2263 = vsel %vm793, 1, 0
      %v2264 = vsel %vm794, 1, 0
      %v2265 = vsel %vm795, 1, 0
      %v2266 = vsel %vm796, 1, 0
      %v2267 = vsel %vm797, 1, 0
      %v2268 = vsel %vm798, 1, 0
      %v2269 = vsel %vm799, 1, 0
      %v2270 = vsel %vm800, 1, 0
      %v2271 = vsel %vm801, 1, 0
      %v2272 = vsel %vm802, 1, 0
      %v2273 = vsel %vm803, 1, 0
      %v2274 = vsel %vm804, 1, 0
      %v2275 = vsel %vm805, 1, 0
      %v2276 = vsel %vm806, 1, 0
      %v2277 = vsel %vm807, 1, 0
      %v2278 = vsel %vm808, 1, 0
      %v2279 = vsel %vm809, 1, 0
      %v2280 = vsel %vm810, 1, 0
      %v2281 = vsel %vm811, 1, 0
      %v2282 = vsel %vm812, 1, 0
      %v2283 = vsel %vm813, 1, 0
      %v2284 = vsel %vm814, 1, 0
      %v2285 = vsel %vm815, 1, 0
      %v2286 = vsel %vm816, 1, 0
      %v2287 = vsel %vm817, 1, 0
      %v2288 = vsel %vm818, 1, 0
      %v2289 = vsel %vm819, 1, 0
      %v2290 = vsel %vm820, 1, 0
      %v2291 = vsel %vm821, 1, 0
      %v2292 = vsel %vm822, 1, 0
      %v2293 = vsel %vm823, 1, 0
      %v2294 = vsel %vm824, 1, 0
      %v2295 = vsel %vm825, 1, 0
      %v2296 = vsel %vm826, 1, 0
      %v2297 = vsel %vm827, 1, 0
      %v2298 = vsel %vm828, 1, 0
      %v2299 = vsel %vm829, 1, 0
      %v2300 = vsel %vm830, 1, 0
      %v2301 = vsel %vm831, 1, 0
      %v2302 = vsel %vm832, 1, 0
      %v2303 = vsel %vm833, 1, 0
      %v2304 = vsel %vm834, 1, 0
      %v2305 = vsel %vm835, 1, 0
      %v2306 = vsel %vm836, 1, 0
      %v2307 = vsel %vm837, 1, 0
      %v2308 = vsel %vm838, 1, 0
      %v2309 = vsel %vm839, 1, 0
      %v2310 = vsel %vm840, 1, 0
      %v2311 = vsel %vm841, 1, 0
      %v2312 = vsel %vm842, 1, 0
      %v2313 = vsel %vm843, 1, 0
      %v2314 = vsel %vm844, 1, 0
      %v2315 = vsel %vm845, 1, 0
      %v2316 = vsel %vm846, 1, 0
      %v2317 = vsel %vm847, 1, 0
      %v2318 = vsel %vm848, 1, 0
      %v2319 = vsel %vm849, 1, 0
      %v2320 = vsel %vm850, 1, 0
      %v2321 = vsel %vm851, 1, 0
      %v2322 = vsel %vm852, 1, 0
      %v2323 = vsel %vm853, 1, 0
      %v2324 = vsel %vm854, 1, 0
      %v2325 = vsel %vm855, 1, 0
      %v2326 = vsel %vm856, 1, 0
      %v2327 = vsel %vm857, 1, 0
      %2328 = vset.pattern.permute.xlu0 0
      %2329 = vperm.xlu0 %2328, %v2200
      %v2330 = vpop.permute.xlu0 %2329
      %2331 = vset.pattern.permute.xlu0 0
      %2332 = vperm.xlu0 %2331, %v2201
      %v2333 = vpop.permute.xlu0 %2332
      %2334 = vset.pattern.permute.xlu0 0
      %2335 = vperm.xlu0 %2334, %v2202
      %v2336 = vpop.permute.xlu0 %2335
      %2337 = vset.pattern.permute.xlu0 0
      %2338 = vperm.xlu0 %2337, %v2203
      %v2339 = vpop.permute.xlu0 %2338
      %2340 = vset.pattern.permute.xlu0 0
      %2341 = vperm.xlu0 %2340, %v2204
      %v2342 = vpop.permute.xlu0 %2341
      %2343 = vset.pattern.permute.xlu0 0
      %2344 = vperm.xlu0 %2343, %v2205
      %v2345 = vpop.permute.xlu0 %2344
      %2346 = vset.pattern.permute.xlu0 0
      %2347 = vperm.xlu0 %2346, %v2206
      %v2348 = vpop.permute.xlu0 %2347
      %2349 = vset.pattern.permute.xlu0 0
      %2350 = vperm.xlu0 %2349, %v2207
      %v2351 = vpop.permute.xlu0 %2350
      %2352 = vset.pattern.permute.xlu0 0
      %2353 = vperm.xlu0 %2352, %v2208
      %v2354 = vpop.permute.xlu0 %2353
      %2355 = vset.pattern.permute.xlu0 0
      %2356 = vperm.xlu0 %2355, %v2209
      %v2357 = vpop.permute.xlu0 %2356
      %2358 = vset.pattern.permute.xlu0 0
      %2359 = vperm.xlu0 %2358, %v2210
      %v2360 = vpop.permute.xlu0 %2359
      %2361 = vset.pattern.permute.xlu0 0
      %2362 = vperm.xlu0 %2361, %v2211
      %v2363 = vpop.permute.xlu0 %2362
      %2364 = vset.pattern.permute.xlu0 0
      %2365 = vperm.xlu0 %2364, %v2212
      %v2366 = vpop.permute.xlu0 %2365
      %2367 = vset.pattern.permute.xlu0 0
      %2368 = vperm.xlu0 %2367, %v2213
      %v2369 = vpop.permute.xlu0 %2368
      %2370 = vset.pattern.permute.xlu0 0
      %2371 = vperm.xlu0 %2370, %v2214
      %v2372 = vpop.permute.xlu0 %2371
      %2373 = vset.pattern.permute.xlu0 0
      %2374 = vperm.xlu0 %2373, %v2215
      %v2375 = vpop.permute.xlu0 %2374
      %2376 = vset.pattern.permute.xlu0 0
      %2377 = vperm.xlu0 %2376, %v2216
      %v2378 = vpop.permute.xlu0 %2377
      %2379 = vset.pattern.permute.xlu0 0
      %2380 = vperm.xlu0 %2379, %v2217
      %v2381 = vpop.permute.xlu0 %2380
      %2382 = vset.pattern.permute.xlu0 0
      %2383 = vperm.xlu0 %2382, %v2218
      %v2384 = vpop.permute.xlu0 %2383
      %2385 = vset.pattern.permute.xlu0 0
      %2386 = vperm.xlu0 %2385, %v2219
      %v2387 = vpop.permute.xlu0 %2386
      %2388 = vset.pattern.permute.xlu0 0
      %2389 = vperm.xlu0 %2388, %v2220
      %v2390 = vpop.permute.xlu0 %2389
      %2391 = vset.pattern.permute.xlu0 0
      %2392 = vperm.xlu0 %2391, %v2221
      %v2393 = vpop.permute.xlu0 %2392
      %2394 = vset.pattern.permute.xlu0 0
      %2395 = vperm.xlu0 %2394, %v2222
      %v2396 = vpop.permute.xlu0 %2395
      %2397 = vset.pattern.permute.xlu0 0
      %2398 = vperm.xlu0 %2397, %v2223
      %v2399 = vpop.permute.xlu0 %2398
      %2400 = vset.pattern.permute.xlu0 0
      %2401 = vperm.xlu0 %2400, %v2224
      %v2402 = vpop.permute.xlu0 %2401
      %2403 = vset.pattern.permute.xlu0 0
      %2404 = vperm.xlu0 %2403, %v2225
      %v2405 = vpop.permute.xlu0 %2404
      %2406 = vset.pattern.permute.xlu0 0
      %2407 = vperm.xlu0 %2406, %v2226
      %v2408 = vpop.permute.xlu0 %2407
      %2409 = vset.pattern.permute.xlu0 0
      %2410 = vperm.xlu0 %2409, %v2227
      %v2411 = vpop.permute.xlu0 %2410
      %2412 = vset.pattern.permute.xlu0 0
      %2413 = vperm.xlu0 %2412, %v2228
      %v2414 = vpop.permute.xlu0 %2413
      %2415 = vset.pattern.permute.xlu0 0
      %2416 = vperm.xlu0 %2415, %v2229
      %v2417 = vpop.permute.xlu0 %2416
      %2418 = vset.pattern.permute.xlu0 0
      %2419 = vperm.xlu0 %2418, %v2230
      %v2420 = vpop.permute.xlu0 %2419
      %2421 = vset.pattern.permute.xlu0 0
      %2422 = vperm.xlu0 %2421, %v2231
      %v2423 = vpop.permute.xlu0 %2422
      %2424 = vset.pattern.permute.xlu0 0
      %2425 = vperm.xlu0 %2424, %v2232
      %v2426 = vpop.permute.xlu0 %2425
      %2427 = vset.pattern.permute.xlu0 0
      %2428 = vperm.xlu0 %2427, %v2233
      %v2429 = vpop.permute.xlu0 %2428
      %2430 = vset.pattern.permute.xlu0 0
      %2431 = vperm.xlu0 %2430, %v2234
      %v2432 = vpop.permute.xlu0 %2431
      %2433 = vset.pattern.permute.xlu0 0
      %2434 = vperm.xlu0 %2433, %v2235
      %v2435 = vpop.permute.xlu0 %2434
      %2436 = vset.pattern.permute.xlu0 0
      %2437 = vperm.xlu0 %2436, %v2236
      %v2438 = vpop.permute.xlu0 %2437
      %2439 = vset.pattern.permute.xlu0 0
      %2440 = vperm.xlu0 %2439, %v2237
      %v2441 = vpop.permute.xlu0 %2440
      %2442 = vset.pattern.permute.xlu0 0
      %2443 = vperm.xlu0 %2442, %v2238
      %v2444 = vpop.permute.xlu0 %2443
      %2445 = vset.pattern.permute.xlu0 0
      %2446 = vperm.xlu0 %2445, %v2239
      %v2447 = vpop.permute.xlu0 %2446
      %2448 = vset.pattern.permute.xlu0 0
      %2449 = vperm.xlu0 %2448, %v2240
      %v2450 = vpop.permute.xlu0 %2449
      %2451 = vset.pattern.permute.xlu0 0
      %2452 = vperm.xlu0 %2451, %v2241
      %v2453 = vpop.permute.xlu0 %2452
      %2454 = vset.pattern.permute.xlu0 0
      %2455 = vperm.xlu0 %2454, %v2242
      %v2456 = vpop.permute.xlu0 %2455
      %2457 = vset.pattern.permute.xlu0 0
      %2458 = vperm.xlu0 %2457, %v2243
      %v2459 = vpop.permute.xlu0 %2458
      %2460 = vset.pattern.permute.xlu0 0
      %2461 = vperm.xlu0 %2460, %v2244
      %v2462 = vpop.permute.xlu0 %2461
      %2463 = vset.pattern.permute.xlu0 0
      %2464 = vperm.xlu0 %2463, %v2245
      %v2465 = vpop.permute.xlu0 %2464
      %2466 = vset.pattern.permute.xlu0 0
      %2467 = vperm.xlu0 %2466, %v2246
      %v2468 = vpop.permute.xlu0 %2467
      %2469 = vset.pattern.permute.xlu0 0
      %2470 = vperm.xlu0 %2469, %v2247
      %v2471 = vpop.permute.xlu0 %2470
      %2472 = vset.pattern.permute.xlu0 0
      %2473 = vperm.xlu0 %2472, %v2248
      %v2474 = vpop.permute.xlu0 %2473
      %2475 = vset.pattern.permute.xlu0 0
      %2476 = vperm.xlu0 %2475, %v2249
      %v2477 = vpop.permute.xlu0 %2476
      %2478 = vset.pattern.permute.xlu0 0
      %2479 = vperm.xlu0 %2478, %v2250
      %v2480 = vpop.permute.xlu0 %2479
      %2481 = vset.pattern.permute.xlu0 0
      %2482 = vperm.xlu0 %2481, %v2251
      %v2483 = vpop.permute.xlu0 %2482
      %2484 = vset.pattern.permute.xlu0 0
      %2485 = vperm.xlu0 %2484, %v2252
      %v2486 = vpop.permute.xlu0 %2485
      %2487 = vset.pattern.permute.xlu0 0
      %2488 = vperm.xlu0 %2487, %v2253
      %v2489 = vpop.permute.xlu0 %2488
      %2490 = vset.pattern.permute.xlu0 0
      %2491 = vperm.xlu0 %2490, %v2254
      %v2492 = vpop.permute.xlu0 %2491
      %2493 = vset.pattern.permute.xlu0 0
      %2494 = vperm.xlu0 %2493, %v2255
      %v2495 = vpop.permute.xlu0 %2494
      %2496 = vset.pattern.permute.xlu0 0
      %2497 = vperm.xlu0 %2496, %v2256
      %v2498 = vpop.permute.xlu0 %2497
      %2499 = vset.pattern.permute.xlu0 0
      %2500 = vperm.xlu0 %2499, %v2257
      %v2501 = vpop.permute.xlu0 %2500
      %2502 = vset.pattern.permute.xlu0 0
      %2503 = vperm.xlu0 %2502, %v2258
      %v2504 = vpop.permute.xlu0 %2503
      %2505 = vset.pattern.permute.xlu0 0
      %2506 = vperm.xlu0 %2505, %v2259
      %v2507 = vpop.permute.xlu0 %2506
      %2508 = vset.pattern.permute.xlu0 0
      %2509 = vperm.xlu0 %2508, %v2260
      %v2510 = vpop.permute.xlu0 %2509
      %2511 = vset.pattern.permute.xlu0 0
      %2512 = vperm.xlu0 %2511, %v2261
      %v2513 = vpop.permute.xlu0 %2512
      %2514 = vset.pattern.permute.xlu0 0
      %2515 = vperm.xlu0 %2514, %v2262
      %v2516 = vpop.permute.xlu0 %2515
      %2517 = vset.pattern.permute.xlu0 0
      %2518 = vperm.xlu0 %2517, %v2263
      %v2519 = vpop.permute.xlu0 %2518
      %2520 = vset.pattern.permute.xlu0 0
      %2521 = vperm.xlu0 %2520, %v2264
      %v2522 = vpop.permute.xlu0 %2521
      %2523 = vset.pattern.permute.xlu0 0
      %2524 = vperm.xlu0 %2523, %v2265
      %v2525 = vpop.permute.xlu0 %2524
      %2526 = vset.pattern.permute.xlu0 0
      %2527 = vperm.xlu0 %2526, %v2266
      %v2528 = vpop.permute.xlu0 %2527
      %2529 = vset.pattern.permute.xlu0 0
      %2530 = vperm.xlu0 %2529, %v2267
      %v2531 = vpop.permute.xlu0 %2530
      %2532 = vset.pattern.permute.xlu0 0
      %2533 = vperm.xlu0 %2532, %v2268
      %v2534 = vpop.permute.xlu0 %2533
      %2535 = vset.pattern.permute.xlu0 0
      %2536 = vperm.xlu0 %2535, %v2269
      %v2537 = vpop.permute.xlu0 %2536
      %2538 = vset.pattern.permute.xlu0 0
      %2539 = vperm.xlu0 %2538, %v2270
      %v2540 = vpop.permute.xlu0 %2539
      %2541 = vset.pattern.permute.xlu0 0
      %2542 = vperm.xlu0 %2541, %v2271
      %v2543 = vpop.permute.xlu0 %2542
      %2544 = vset.pattern.permute.xlu0 0
      %2545 = vperm.xlu0 %2544, %v2272
      %v2546 = vpop.permute.xlu0 %2545
      %2547 = vset.pattern.permute.xlu0 0
      %2548 = vperm.xlu0 %2547, %v2273
      %v2549 = vpop.permute.xlu0 %2548
      %2550 = vset.pattern.permute.xlu0 0
      %2551 = vperm.xlu0 %2550, %v2274
      %v2552 = vpop.permute.xlu0 %2551
      %2553 = vset.pattern.permute.xlu0 0
      %2554 = vperm.xlu0 %2553, %v2275
      %v2555 = vpop.permute.xlu0 %2554
      %2556 = vset.pattern.permute.xlu0 0
      %2557 = vperm.xlu0 %2556, %v2276
      %v2558 = vpop.permute.xlu0 %2557
      %2559 = vset.pattern.permute.xlu0 0
      %2560 = vperm.xlu0 %2559, %v2277
      %v2561 = vpop.permute.xlu0 %2560
      %2562 = vset.pattern.permute.xlu0 0
      %2563 = vperm.xlu0 %2562, %v2278
      %v2564 = vpop.permute.xlu0 %2563
      %2565 = vset.pattern.permute.xlu0 0
      %2566 = vperm.xlu0 %2565, %v2279
      %v2567 = vpop.permute.xlu0 %2566
      %2568 = vset.pattern.permute.xlu0 0
      %2569 = vperm.xlu0 %2568, %v2280
      %v2570 = vpop.permute.xlu0 %2569
      %2571 = vset.pattern.permute.xlu0 0
      %2572 = vperm.xlu0 %2571, %v2281
      %v2573 = vpop.permute.xlu0 %2572
      %2574 = vset.pattern.permute.xlu0 0
      %2575 = vperm.xlu0 %2574, %v2282
      %v2576 = vpop.permute.xlu0 %2575
      %2577 = vset.pattern.permute.xlu0 0
      %2578 = vperm.xlu0 %2577, %v2283
      %v2579 = vpop.permute.xlu0 %2578
      %2580 = vset.pattern.permute.xlu0 0
      %2581 = vperm.xlu0 %2580, %v2284
      %v2582 = vpop.permute.xlu0 %2581
      %2583 = vset.pattern.permute.xlu0 0
      %2584 = vperm.xlu0 %2583, %v2285
      %v2585 = vpop.permute.xlu0 %2584
      %2586 = vset.pattern.permute.xlu0 0
      %2587 = vperm.xlu0 %2586, %v2286
      %v2588 = vpop.permute.xlu0 %2587
      %2589 = vset.pattern.permute.xlu0 0
      %2590 = vperm.xlu0 %2589, %v2287
      %v2591 = vpop.permute.xlu0 %2590
      %2592 = vset.pattern.permute.xlu0 0
      %2593 = vperm.xlu0 %2592, %v2288
      %v2594 = vpop.permute.xlu0 %2593
      %2595 = vset.pattern.permute.xlu0 0
      %2596 = vperm.xlu0 %2595, %v2289
      %v2597 = vpop.permute.xlu0 %2596
      %2598 = vset.pattern.permute.xlu0 0
      %2599 = vperm.xlu0 %2598, %v2290
      %v2600 = vpop.permute.xlu0 %2599
      %2601 = vset.pattern.permute.xlu0 0
      %2602 = vperm.xlu0 %2601, %v2291
      %v2603 = vpop.permute.xlu0 %2602
      %2604 = vset.pattern.permute.xlu0 0
      %2605 = vperm.xlu0 %2604, %v2292
      %v2606 = vpop.permute.xlu0 %2605
      %2607 = vset.pattern.permute.xlu0 0
      %2608 = vperm.xlu0 %2607, %v2293
      %v2609 = vpop.permute.xlu0 %2608
      %2610 = vset.pattern.permute.xlu0 0
      %2611 = vperm.xlu0 %2610, %v2294
      %v2612 = vpop.permute.xlu0 %2611
      %2613 = vset.pattern.permute.xlu0 0
      %2614 = vperm.xlu0 %2613, %v2295
      %v2615 = vpop.permute.xlu0 %2614
      %2616 = vset.pattern.permute.xlu0 0
      %2617 = vperm.xlu0 %2616, %v2296
      %v2618 = vpop.permute.xlu0 %2617
      %2619 = vset.pattern.permute.xlu0 0
      %2620 = vperm.xlu0 %2619, %v2297
      %v2621 = vpop.permute.xlu0 %2620
      %2622 = vset.pattern.permute.xlu0 0
      %2623 = vperm.xlu0 %2622, %v2298
      %v2624 = vpop.permute.xlu0 %2623
      %2625 = vset.pattern.permute.xlu0 0
      %2626 = vperm.xlu0 %2625, %v2299
      %v2627 = vpop.permute.xlu0 %2626
      %2628 = vset.pattern.permute.xlu0 0
      %2629 = vperm.xlu0 %2628, %v2300
      %v2630 = vpop.permute.xlu0 %2629
      %2631 = vset.pattern.permute.xlu0 0
      %2632 = vperm.xlu0 %2631, %v2301
      %v2633 = vpop.permute.xlu0 %2632
      %2634 = vset.pattern.permute.xlu0 0
      %2635 = vperm.xlu0 %2634, %v2302
      %v2636 = vpop.permute.xlu0 %2635
      %2637 = vset.pattern.permute.xlu0 0
      %2638 = vperm.xlu0 %2637, %v2303
      %v2639 = vpop.permute.xlu0 %2638
      %2640 = vset.pattern.permute.xlu0 0
      %2641 = vperm.xlu0 %2640, %v2304
      %v2642 = vpop.permute.xlu0 %2641
      %2643 = vset.pattern.permute.xlu0 0
      %2644 = vperm.xlu0 %2643, %v2305
      %v2645 = vpop.permute.xlu0 %2644
      %2646 = vset.pattern.permute.xlu0 0
      %2647 = vperm.xlu0 %2646, %v2306
      %v2648 = vpop.permute.xlu0 %2647
      %2649 = vset.pattern.permute.xlu0 0
      %2650 = vperm.xlu0 %2649, %v2307
      %v2651 = vpop.permute.xlu0 %2650
      %2652 = vset.pattern.permute.xlu0 0
      %2653 = vperm.xlu0 %2652, %v2308
      %v2654 = vpop.permute.xlu0 %2653
      %2655 = vset.pattern.permute.xlu0 0
      %2656 = vperm.xlu0 %2655, %v2309
      %v2657 = vpop.permute.xlu0 %2656
      %2658 = vset.pattern.permute.xlu0 0
      %2659 = vperm.xlu0 %2658, %v2310
      %v2660 = vpop.permute.xlu0 %2659
      %2661 = vset.pattern.permute.xlu0 0
      %2662 = vperm.xlu0 %2661, %v2311
      %v2663 = vpop.permute.xlu0 %2662
      %2664 = vset.pattern.permute.xlu0 0
      %2665 = vperm.xlu0 %2664, %v2312
      %v2666 = vpop.permute.xlu0 %2665
      %2667 = vset.pattern.permute.xlu0 0
      %2668 = vperm.xlu0 %2667, %v2313
      %v2669 = vpop.permute.xlu0 %2668
      %2670 = vset.pattern.permute.xlu0 0
      %2671 = vperm.xlu0 %2670, %v2314
      %v2672 = vpop.permute.xlu0 %2671
      %2673 = vset.pattern.permute.xlu0 0
      %2674 = vperm.xlu0 %2673, %v2315
      %v2675 = vpop.permute.xlu0 %2674
      %2676 = vset.pattern.permute.xlu0 0
      %2677 = vperm.xlu0 %2676, %v2316
      %v2678 = vpop.permute.xlu0 %2677
      %2679 = vset.pattern.permute.xlu0 0
      %2680 = vperm.xlu0 %2679, %v2317
      %v2681 = vpop.permute.xlu0 %2680
      %2682 = vset.pattern.permute.xlu0 0
      %2683 = vperm.xlu0 %2682, %v2318
      %v2684 = vpop.permute.xlu0 %2683
      %2685 = vset.pattern.permute.xlu0 0
      %2686 = vperm.xlu0 %2685, %v2319
      %v2687 = vpop.permute.xlu0 %2686
      %2688 = vset.pattern.permute.xlu0 0
      %2689 = vperm.xlu0 %2688, %v2320
      %v2690 = vpop.permute.xlu0 %2689
      %2691 = vset.pattern.permute.xlu0 0
      %2692 = vperm.xlu0 %2691, %v2321
      %v2693 = vpop.permute.xlu0 %2692
      %2694 = vset.pattern.permute.xlu0 0
      %2695 = vperm.xlu0 %2694, %v2322
      %v2696 = vpop.permute.xlu0 %2695
      %2697 = vset.pattern.permute.xlu0 0
      %2698 = vperm.xlu0 %2697, %v2323
      %v2699 = vpop.permute.xlu0 %2698
      %2700 = vset.pattern.permute.xlu0 0
      %2701 = vperm.xlu0 %2700, %v2324
      %v2702 = vpop.permute.xlu0 %2701
      %2703 = vset.pattern.permute.xlu0 0
      %2704 = vperm.xlu0 %2703, %v2325
      %v2705 = vpop.permute.xlu0 %2704
      %2706 = vset.pattern.permute.xlu0 0
      %2707 = vperm.xlu0 %2706, %v2326
      %v2708 = vpop.permute.xlu0 %2707
      %2709 = vset.pattern.permute.xlu0 0
      %2710 = vperm.xlu0 %2709, %v2327
      %v2711 = vpop.permute.xlu0 %2710
      %vm2712 = vcmp.eq.s32.totalorder %v2330, 1
      %vm2713 = vcmp.eq.s32.totalorder %v2333, 1
      %vm2714 = vcmp.eq.s32.totalorder %v2336, 1
      %vm2715 = vcmp.eq.s32.totalorder %v2339, 1
      %vm2716 = vcmp.eq.s32.totalorder %v2342, 1
      %vm2717 = vcmp.eq.s32.totalorder %v2345, 1
      %vm2718 = vcmp.eq.s32.totalorder %v2348, 1
      %vm2719 = vcmp.eq.s32.totalorder %v2351, 1
      %vm2720 = vcmp.eq.s32.totalorder %v2354, 1
      %vm2721 = vcmp.eq.s32.totalorder %v2357, 1
      %vm2722 = vcmp.eq.s32.totalorder %v2360, 1
      %vm2723 = vcmp.eq.s32.totalorder %v2363, 1
      %vm2724 = vcmp.eq.s32.totalorder %v2366, 1
      %vm2725 = vcmp.eq.s32.totalorder %v2369, 1
      %vm2726 = vcmp.eq.s32.totalorder %v2372, 1
      %vm2727 = vcmp.eq.s32.totalorder %v2375, 1
      %vm2728 = vcmp.eq.s32.totalorder %v2378, 1
      %vm2729 = vcmp.eq.s32.totalorder %v2381, 1
      %vm2730 = vcmp.eq.s32.totalorder %v2384, 1
      %vm2731 = vcmp.eq.s32.totalorder %v2387, 1
      %vm2732 = vcmp.eq.s32.totalorder %v2390, 1
      %vm2733 = vcmp.eq.s32.totalorder %v2393, 1
      %vm2734 = vcmp.eq.s32.totalorder %v2396, 1
      %vm2735 = vcmp.eq.s32.totalorder %v2399, 1
      %vm2736 = vcmp.eq.s32.totalorder %v2402, 1
      %vm2737 = vcmp.eq.s32.totalorder %v2405, 1
      %vm2738 = vcmp.eq.s32.totalorder %v2408, 1
      %vm2739 = vcmp.eq.s32.totalorder %v2411, 1
      %vm2740 = vcmp.eq.s32.totalorder %v2414, 1
      %vm2741 = vcmp.eq.s32.totalorder %v2417, 1
      %vm2742 = vcmp.eq.s32.totalorder %v2420, 1
      %vm2743 = vcmp.eq.s32.totalorder %v2423, 1
      %vm2744 = vcmp.eq.s32.totalorder %v2426, 1
      %vm2745 = vcmp.eq.s32.totalorder %v2429, 1
      %vm2746 = vcmp.eq.s32.totalorder %v2432, 1
      %vm2747 = vcmp.eq.s32.totalorder %v2435, 1
      %vm2748 = vcmp.eq.s32.totalorder %v2438, 1
      %vm2749 = vcmp.eq.s32.totalorder %v2441, 1
      %vm2750 = vcmp.eq.s32.totalorder %v2444, 1
      %vm2751 = vcmp.eq.s32.totalorder %v2447, 1
      %vm2752 = vcmp.eq.s32.totalorder %v2450, 1
      %vm2753 = vcmp.eq.s32.totalorder %v2453, 1
      %vm2754 = vcmp.eq.s32.totalorder %v2456, 1
      %vm2755 = vcmp.eq.s32.totalorder %v2459, 1
      %vm2756 = vcmp.eq.s32.totalorder %v2462, 1
      %vm2757 = vcmp.eq.s32.totalorder %v2465, 1
      %vm2758 = vcmp.eq.s32.totalorder %v2468, 1
      %vm2759 = vcmp.eq.s32.totalorder %v2471, 1
      %vm2760 = vcmp.eq.s32.totalorder %v2474, 1
      %vm2761 = vcmp.eq.s32.totalorder %v2477, 1
      %vm2762 = vcmp.eq.s32.totalorder %v2480, 1
      %vm2763 = vcmp.eq.s32.totalorder %v2483, 1
      %vm2764 = vcmp.eq.s32.totalorder %v2486, 1
      %vm2765 = vcmp.eq.s32.totalorder %v2489, 1
      %vm2766 = vcmp.eq.s32.totalorder %v2492, 1
      %vm2767 = vcmp.eq.s32.totalorder %v2495, 1
      %vm2768 = vcmp.eq.s32.totalorder %v2498, 1
      %vm2769 = vcmp.eq.s32.totalorder %v2501, 1
      %vm2770 = vcmp.eq.s32.totalorder %v2504, 1
      %vm2771 = vcmp.eq.s32.totalorder %v2507, 1
      %vm2772 = vcmp.eq.s32.totalorder %v2510, 1
      %vm2773 = vcmp.eq.s32.totalorder %v2513, 1
      %vm2774 = vcmp.eq.s32.totalorder %v2516, 1
      %vm2775 = vcmp.eq.s32.totalorder %v2519, 1
      %vm2776 = vcmp.eq.s32.totalorder %v2522, 1
      %vm2777 = vcmp.eq.s32.totalorder %v2525, 1
      %vm2778 = vcmp.eq.s32.totalorder %v2528, 1
      %vm2779 = vcmp.eq.s32.totalorder %v2531, 1
      %vm2780 = vcmp.eq.s32.totalorder %v2534, 1
      %vm2781 = vcmp.eq.s32.totalorder %v2537, 1
      %vm2782 = vcmp.eq.s32.totalorder %v2540, 1
      %vm2783 = vcmp.eq.s32.totalorder %v2543, 1
      %vm2784 = vcmp.eq.s32.totalorder %v2546, 1
      %vm2785 = vcmp.eq.s32.totalorder %v2549, 1
      %vm2786 = vcmp.eq.s32.totalorder %v2552, 1
      %vm2787 = vcmp.eq.s32.totalorder %v2555, 1
      %vm2788 = vcmp.eq.s32.totalorder %v2558, 1
      %vm2789 = vcmp.eq.s32.totalorder %v2561, 1
      %vm2790 = vcmp.eq.s32.totalorder %v2564, 1
      %vm2791 = vcmp.eq.s32.totalorder %v2567, 1
      %vm2792 = vcmp.eq.s32.totalorder %v2570, 1
      %vm2793 = vcmp.eq.s32.totalorder %v2573, 1
      %vm2794 = vcmp.eq.s32.totalorder %v2576, 1
      %vm2795 = vcmp.eq.s32.totalorder %v2579, 1
      %vm2796 = vcmp.eq.s32.totalorder %v2582, 1
      %vm2797 = vcmp.eq.s32.totalorder %v2585, 1
      %vm2798 = vcmp.eq.s32.totalorder %v2588, 1
      %vm2799 = vcmp.eq.s32.totalorder %v2591, 1
      %vm2800 = vcmp.eq.s32.totalorder %v2594, 1
      %vm2801 = vcmp.eq.s32.totalorder %v2597, 1
      %vm2802 = vcmp.eq.s32.totalorder %v2600, 1
      %vm2803 = vcmp.eq.s32.totalorder %v2603, 1
      %vm2804 = vcmp.eq.s32.totalorder %v2606, 1
      %vm2805 = vcmp.eq.s32.totalorder %v2609, 1
      %vm2806 = vcmp.eq.s32.totalorder %v2612, 1
      %vm2807 = vcmp.eq.s32.totalorder %v2615, 1
      %vm2808 = vcmp.eq.s32.totalorder %v2618, 1
      %vm2809 = vcmp.eq.s32.totalorder %v2621, 1
      %vm2810 = vcmp.eq.s32.totalorder %v2624, 1
      %vm2811 = vcmp.eq.s32.totalorder %v2627, 1
      %vm2812 = vcmp.eq.s32.totalorder %v2630, 1
      %vm2813 = vcmp.eq.s32.totalorder %v2633, 1
      %vm2814 = vcmp.eq.s32.totalorder %v2636, 1
      %vm2815 = vcmp.eq.s32.totalorder %v2639, 1
      %vm2816 = vcmp.eq.s32.totalorder %v2642, 1
      %vm2817 = vcmp.eq.s32.totalorder %v2645, 1
      %vm2818 = vcmp.eq.s32.totalorder %v2648, 1
      %vm2819 = vcmp.eq.s32.totalorder %v2651, 1
      %vm2820 = vcmp.eq.s32.totalorder %v2654, 1
      %vm2821 = vcmp.eq.s32.totalorder %v2657, 1
      %vm2822 = vcmp.eq.s32.totalorder %v2660, 1
      %vm2823 = vcmp.eq.s32.totalorder %v2663, 1
      %vm2824 = vcmp.eq.s32.totalorder %v2666, 1
      %vm2825 = vcmp.eq.s32.totalorder %v2669, 1
      %vm2826 = vcmp.eq.s32.totalorder %v2672, 1
      %vm2827 = vcmp.eq.s32.totalorder %v2675, 1
      %vm2828 = vcmp.eq.s32.totalorder %v2678, 1
      %vm2829 = vcmp.eq.s32.totalorder %v2681, 1
      %vm2830 = vcmp.eq.s32.totalorder %v2684, 1
      %vm2831 = vcmp.eq.s32.totalorder %v2687, 1
      %vm2832 = vcmp.eq.s32.totalorder %v2690, 1
      %vm2833 = vcmp.eq.s32.totalorder %v2693, 1
      %vm2834 = vcmp.eq.s32.totalorder %v2696, 1
      %vm2835 = vcmp.eq.s32.totalorder %v2699, 1
      %vm2836 = vcmp.eq.s32.totalorder %v2702, 1
      %vm2837 = vcmp.eq.s32.totalorder %v2705, 1
      %vm2838 = vcmp.eq.s32.totalorder %v2708, 1
      %vm2839 = vcmp.eq.s32.totalorder %v2711, 1
      %v2840 = vsel %vm2712, %v2072, 0.0
      %v2841 = vsel %vm2713, %v2073, 0.0
      %v2842 = vsel %vm2714, %v2074, 0.0
      %v2843 = vsel %vm2715, %v2075, 0.0
      %v2844 = vsel %vm2716, %v2076, 0.0
      %v2845 = vsel %vm2717, %v2077, 0.0
      %v2846 = vsel %vm2718, %v2078, 0.0
      %v2847 = vsel %vm2719, %v2079, 0.0
      %v2848 = vsel %vm2720, %v2080, 0.0
      %v2849 = vsel %vm2721, %v2081, 0.0
      %v2850 = vsel %vm2722, %v2082, 0.0
      %v2851 = vsel %vm2723, %v2083, 0.0
      %v2852 = vsel %vm2724, %v2084, 0.0
      %v2853 = vsel %vm2725, %v2085, 0.0
      %v2854 = vsel %vm2726, %v2086, 0.0
      %v2855 = vsel %vm2727, %v2087, 0.0
      %v2856 = vsel %vm2728, %v2088, 0.0
      %v2857 = vsel %vm2729, %v2089, 0.0
      %v2858 = vsel %vm2730, %v2090, 0.0
      %v2859 = vsel %vm2731, %v2091, 0.0
      %v2860 = vsel %vm2732, %v2092, 0.0
      %v2861 = vsel %vm2733, %v2093, 0.0
      %v2862 = vsel %vm2734, %v2094, 0.0
      %v2863 = vsel %vm2735, %v2095, 0.0
      %v2864 = vsel %vm2736, %v2096, 0.0
      %v2865 = vsel %vm2737, %v2097, 0.0
      %v2866 = vsel %vm2738, %v2098, 0.0
      %v2867 = vsel %vm2739, %v2099, 0.0
      %v2868 = vsel %vm2740, %v2100, 0.0
      %v2869 = vsel %vm2741, %v2101, 0.0
      %v2870 = vsel %vm2742, %v2102, 0.0
      %v2871 = vsel %vm2743, %v2103, 0.0
      %v2872 = vsel %vm2744, %v2104, 0.0
      %v2873 = vsel %vm2745, %v2105, 0.0
      %v2874 = vsel %vm2746, %v2106, 0.0
      %v2875 = vsel %vm2747, %v2107, 0.0
      %v2876 = vsel %vm2748, %v2108, 0.0
      %v2877 = vsel %vm2749, %v2109, 0.0
      %v2878 = vsel %vm2750, %v2110, 0.0
      %v2879 = vsel %vm2751, %v2111, 0.0
      %v2880 = vsel %vm2752, %v2112, 0.0
      %v2881 = vsel %vm2753, %v2113, 0.0
      %v2882 = vsel %vm2754, %v2114, 0.0
      %v2883 = vsel %vm2755, %v2115, 0.0
      %v2884 = vsel %vm2756, %v2116, 0.0
      %v2885 = vsel %vm2757, %v2117, 0.0
      %v2886 = vsel %vm2758, %v2118, 0.0
      %v2887 = vsel %vm2759, %v2119, 0.0
      %v2888 = vsel %vm2760, %v2120, 0.0
      %v2889 = vsel %vm2761, %v2121, 0.0
      %v2890 = vsel %vm2762, %v2122, 0.0
      %v2891 = vsel %vm2763, %v2123, 0.0
      %v2892 = vsel %vm2764, %v2124, 0.0
      %v2893 = vsel %vm2765, %v2125, 0.0
      %v2894 = vsel %vm2766, %v2126, 0.0
      %v2895 = vsel %vm2767, %v2127, 0.0
      %v2896 = vsel %vm2768, %v2128, 0.0
      %v2897 = vsel %vm2769, %v2129, 0.0
      %v2898 = vsel %vm2770, %v2130, 0.0
      %v2899 = vsel %vm2771, %v2131, 0.0
      %v2900 = vsel %vm2772, %v2132, 0.0
      %v2901 = vsel %vm2773, %v2133, 0.0
      %v2902 = vsel %vm2774, %v2134, 0.0
      %v2903 = vsel %vm2775, %v2135, 0.0
      %v2904 = vsel %vm2776, %v2136, 0.0
      %v2905 = vsel %vm2777, %v2137, 0.0
      %v2906 = vsel %vm2778, %v2138, 0.0
      %v2907 = vsel %vm2779, %v2139, 0.0
      %v2908 = vsel %vm2780, %v2140, 0.0
      %v2909 = vsel %vm2781, %v2141, 0.0
      %v2910 = vsel %vm2782, %v2142, 0.0
      %v2911 = vsel %vm2783, %v2143, 0.0
      %v2912 = vsel %vm2784, %v2144, 0.0
      %v2913 = vsel %vm2785, %v2145, 0.0
      %v2914 = vsel %vm2786, %v2146, 0.0
      %v2915 = vsel %vm2787, %v2147, 0.0
      %v2916 = vsel %vm2788, %v2148, 0.0
      %v2917 = vsel %vm2789, %v2149, 0.0
      %v2918 = vsel %vm2790, %v2150, 0.0
      %v2919 = vsel %vm2791, %v2151, 0.0
      %v2920 = vsel %vm2792, %v2152, 0.0
      %v2921 = vsel %vm2793, %v2153, 0.0
      %v2922 = vsel %vm2794, %v2154, 0.0
      %v2923 = vsel %vm2795, %v2155, 0.0
      %v2924 = vsel %vm2796, %v2156, 0.0
      %v2925 = vsel %vm2797, %v2157, 0.0
      %v2926 = vsel %vm2798, %v2158, 0.0
      %v2927 = vsel %vm2799, %v2159, 0.0
      %v2928 = vsel %vm2800, %v2160, 0.0
      %v2929 = vsel %vm2801, %v2161, 0.0
      %v2930 = vsel %vm2802, %v2162, 0.0
      %v2931 = vsel %vm2803, %v2163, 0.0
      %v2932 = vsel %vm2804, %v2164, 0.0
      %v2933 = vsel %vm2805, %v2165, 0.0
      %v2934 = vsel %vm2806, %v2166, 0.0
      %v2935 = vsel %vm2807, %v2167, 0.0
      %v2936 = vsel %vm2808, %v2168, 0.0
      %v2937 = vsel %vm2809, %v2169, 0.0
      %v2938 = vsel %vm2810, %v2170, 0.0
      %v2939 = vsel %vm2811, %v2171, 0.0
      %v2940 = vsel %vm2812, %v2172, 0.0
      %v2941 = vsel %vm2813, %v2173, 0.0
      %v2942 = vsel %vm2814, %v2174, 0.0
      %v2943 = vsel %vm2815, %v2175, 0.0
      %v2944 = vsel %vm2816, %v2176, 0.0
      %v2945 = vsel %vm2817, %v2177, 0.0
      %v2946 = vsel %vm2818, %v2178, 0.0
      %v2947 = vsel %vm2819, %v2179, 0.0
      %v2948 = vsel %vm2820, %v2180, 0.0
      %v2949 = vsel %vm2821, %v2181, 0.0
      %v2950 = vsel %vm2822, %v2182, 0.0
      %v2951 = vsel %vm2823, %v2183, 0.0
      %v2952 = vsel %vm2824, %v2184, 0.0
      %v2953 = vsel %vm2825, %v2185, 0.0
      %v2954 = vsel %vm2826, %v2186, 0.0
      %v2955 = vsel %vm2827, %v2187, 0.0
      %v2956 = vsel %vm2828, %v2188, 0.0
      %v2957 = vsel %vm2829, %v2189, 0.0
      %v2958 = vsel %vm2830, %v2190, 0.0
      %v2959 = vsel %vm2831, %v2191, 0.0
      %v2960 = vsel %vm2832, %v2192, 0.0
      %v2961 = vsel %vm2833, %v2193, 0.0
      %v2962 = vsel %vm2834, %v2194, 0.0
      %v2963 = vsel %vm2835, %v2195, 0.0
      %v2964 = vsel %vm2836, %v2196, 0.0
      %v2965 = vsel %vm2837, %v2197, 0.0
      %v2966 = vsel %vm2838, %v2198, 0.0
      %v2967 = vsel %vm2839, %v2199, 0.0
      %vm2968 = vcmask 261120
      %2969 = vst.msk [vmem:[#allocation2 + $0x20] sm:$0xff] %vm2968, %v2840
      %2970 = vst.msk [vmem:[#allocation2 + $0x28] sm:$0xff] %vm2968, %v2841
      %2971 = vst.msk [vmem:[#allocation2 + $0x30] sm:$0xff] %vm2968, %v2842
      %2972 = vst.msk [vmem:[#allocation2 + $0x38] sm:$0xff] %vm2968, %v2843
      %2973 = vst.msk [vmem:[#allocation2 + $0x40] sm:$0xff] %vm2968, %v2844
      %2974 = vst.msk [vmem:[#allocation2 + $0x48] sm:$0xff] %vm2968, %v2845
      %2975 = vst.msk [vmem:[#allocation2 + $0x50] sm:$0xff] %vm2968, %v2846
      %2976 = vst.msk [vmem:[#allocation2 + $0x58] sm:$0xff] %vm2968, %v2847
      %2977 = vst.msk [vmem:[#allocation2 + $0x60] sm:$0xff] %vm2968, %v2848
      %2978 = vst.msk [vmem:[#allocation2 + $0x68] sm:$0xff] %vm2968, %v2849
      %2979 = vst.msk [vmem:[#allocation2 + $0x70] sm:$0xff] %vm2968, %v2850
      %2980 = vst.msk [vmem:[#allocation2 + $0x78] sm:$0xff] %vm2968, %v2851
      %2981 = vst.msk [vmem:[#allocation2 + $0x80] sm:$0xff] %vm2968, %v2852
      %2982 = vst.msk [vmem:[#allocation2 + $0x88] sm:$0xff] %vm2968, %v2853
      %2983 = vst.msk [vmem:[#allocation2 + $0x90] sm:$0xff] %vm2968, %v2854
      %2984 = vst.msk [vmem:[#allocation2 + $0x98] sm:$0xff] %vm2968, %v2855
      %2985 = vst.msk [vmem:[#allocation2 + $0xa0] sm:$0xff] %vm2968, %v2856
      %2986 = vst.msk [vmem:[#allocation2 + $0xa8] sm:$0xff] %vm2968, %v2857
      %2987 = vst.msk [vmem:[#allocation2 + $0xb0] sm:$0xff] %vm2968, %v2858
      %2988 = vst.msk [vmem:[#allocation2 + $0xb8] sm:$0xff] %vm2968, %v2859
      %2989 = vst.msk [vmem:[#allocation2 + $0xc0] sm:$0xff] %vm2968, %v2860
      %2990 = vst.msk [vmem:[#allocation2 + $0xc8] sm:$0xff] %vm2968, %v2861
      %2991 = vst.msk [vmem:[#allocation2 + $0xd0] sm:$0xff] %vm2968, %v2862
      %2992 = vst.msk [vmem:[#allocation2 + $0xd8] sm:$0xff] %vm2968, %v2863
      %2993 = vst.msk [vmem:[#allocation2 + $0xe0] sm:$0xff] %vm2968, %v2864
      %2994 = vst.msk [vmem:[#allocation2 + $0xe8] sm:$0xff] %vm2968, %v2865
      %2995 = vst.msk [vmem:[#allocation2 + $0xf0] sm:$0xff] %vm2968, %v2866
      %2996 = vst.msk [vmem:[#allocation2 + $0xf8] sm:$0xff] %vm2968, %v2867
      %2997 = vst.msk [vmem:[#allocation2 + $0x100] sm:$0xff] %vm2968, %v2868
      %2998 = vst.msk [vmem:[#allocation2 + $0x108] sm:$0xff] %vm2968, %v2869
      %2999 = vst.msk [vmem:[#allocation2 + $0x110] sm:$0xff] %vm2968, %v2870
      %3000 = vst.msk [vmem:[#allocation2 + $0x118] sm:$0xff] %vm2968, %v2871
      %3001 = vst.msk [vmem:[#allocation2 + $0x120] sm:$0xff] %vm2968, %v2872
      %3002 = vst.msk [vmem:[#allocation2 + $0x128] sm:$0xff] %vm2968, %v2873
      %3003 = vst.msk [vmem:[#allocation2 + $0x130] sm:$0xff] %vm2968, %v2874
      %3004 = vst.msk [vmem:[#allocation2 + $0x138] sm:$0xff] %vm2968, %v2875
      %3005 = vst.msk [vmem:[#allocation2 + $0x140] sm:$0xff] %vm2968, %v2876
      %3006 = vst.msk [vmem:[#allocation2 + $0x148] sm:$0xff] %vm2968, %v2877
      %3007 = vst.msk [vmem:[#allocation2 + $0x150] sm:$0xff] %vm2968, %v2878
      %3008 = vst.msk [vmem:[#allocation2 + $0x158] sm:$0xff] %vm2968, %v2879
      %3009 = vst.msk [vmem:[#allocation2 + $0x160] sm:$0xff] %vm2968, %v2880
      %3010 = vst.msk [vmem:[#allocation2 + $0x168] sm:$0xff] %vm2968, %v2881
      %3011 = vst.msk [vmem:[#allocation2 + $0x170] sm:$0xff] %vm2968, %v2882
      %3012 = vst.msk [vmem:[#allocation2 + $0x178] sm:$0xff] %vm2968, %v2883
      %3013 = vst.msk [vmem:[#allocation2 + $0x180] sm:$0xff] %vm2968, %v2884
      %3014 = vst.msk [vmem:[#allocation2 + $0x188] sm:$0xff] %vm2968, %v2885
      %3015 = vst.msk [vmem:[#allocation2 + $0x190] sm:$0xff] %vm2968, %v2886
      %3016 = vst.msk [vmem:[#allocation2 + $0x198] sm:$0xff] %vm2968, %v2887
      %3017 = vst.msk [vmem:[#allocation2 + $0x1a0] sm:$0xff] %vm2968, %v2888
      %3018 = vst.msk [vmem:[#allocation2 + $0x1a8] sm:$0xff] %vm2968, %v2889
      %3019 = vst.msk [vmem:[#allocation2 + $0x1b0] sm:$0xff] %vm2968, %v2890
      %3020 = vst.msk [vmem:[#allocation2 + $0x1b8] sm:$0xff] %vm2968, %v2891
      %3021 = vst.msk [vmem:[#allocation2 + $0x1c0] sm:$0xff] %vm2968, %v2892
      %3022 = vst.msk [vmem:[#allocation2 + $0x1c8] sm:$0xff] %vm2968, %v2893
      %3023 = vst.msk [vmem:[#allocation2 + $0x1d0] sm:$0xff] %vm2968, %v2894
      %3024 = vst.msk [vmem:[#allocation2 + $0x1d8] sm:$0xff] %vm2968, %v2895
      %3025 = vst.msk [vmem:[#allocation2 + $0x1e0] sm:$0xff] %vm2968, %v2896
      %3026 = vst.msk [vmem:[#allocation2 + $0x1e8] sm:$0xff] %vm2968, %v2897
      %3027 = vst.msk [vmem:[#allocation2 + $0x1f0] sm:$0xff] %vm2968, %v2898
      %3028 = vst.msk [vmem:[#allocation2 + $0x1f8] sm:$0xff] %vm2968, %v2899
      %3029 = vst.msk [vmem:[#allocation2 + $0x200] sm:$0xff] %vm2968, %v2900
      %3030 = vst.msk [vmem:[#allocation2 + $0x208] sm:$0xff] %vm2968, %v2901
      %3031 = vst.msk [vmem:[#allocation2 + $0x210] sm:$0xff] %vm2968, %v2902
      %3032 = vst.msk [vmem:[#allocation2 + $0x218] sm:$0xff] %vm2968, %v2903
      %3033 = vst.msk [vmem:[#allocation2 + $0x220] sm:$0xff] %vm2968, %v2904
      %3034 = vst.msk [vmem:[#allocation2 + $0x228] sm:$0xff] %vm2968, %v2905
      %3035 = vst.msk [vmem:[#allocation2 + $0x230] sm:$0xff] %vm2968, %v2906
      %3036 = vst.msk [vmem:[#allocation2 + $0x238] sm:$0xff] %vm2968, %v2907
      %3037 = vst.msk [vmem:[#allocation2 + $0x240] sm:$0xff] %vm2968, %v2908
      %3038 = vst.msk [vmem:[#allocation2 + $0x248] sm:$0xff] %vm2968, %v2909
      %3039 = vst.msk [vmem:[#allocation2 + $0x250] sm:$0xff] %vm2968, %v2910
      %3040 = vst.msk [vmem:[#allocation2 + $0x258] sm:$0xff] %vm2968, %v2911
      %3041 = vst.msk [vmem:[#allocation2 + $0x260] sm:$0xff] %vm2968, %v2912
      %3042 = vst.msk [vmem:[#allocation2 + $0x268] sm:$0xff] %vm2968, %v2913
      %3043 = vst.msk [vmem:[#allocation2 + $0x270] sm:$0xff] %vm2968, %v2914
      %3044 = vst.msk [vmem:[#allocation2 + $0x278] sm:$0xff] %vm2968, %v2915
      %3045 = vst.msk [vmem:[#allocation2 + $0x280] sm:$0xff] %vm2968, %v2916
      %3046 = vst.msk [vmem:[#allocation2 + $0x288] sm:$0xff] %vm2968, %v2917
      %3047 = vst.msk [vmem:[#allocation2 + $0x290] sm:$0xff] %vm2968, %v2918
      %3048 = vst.msk [vmem:[#allocation2 + $0x298] sm:$0xff] %vm2968, %v2919
      %3049 = vst.msk [vmem:[#allocation2 + $0x2a0] sm:$0xff] %vm2968, %v2920
      %3050 = vst.msk [vmem:[#allocation2 + $0x2a8] sm:$0xff] %vm2968, %v2921
      %3051 = vst.msk [vmem:[#allocation2 + $0x2b0] sm:$0xff] %vm2968, %v2922
      %3052 = vst.msk [vmem:[#allocation2 + $0x2b8] sm:$0xff] %vm2968, %v2923
      %3053 = vst.msk [vmem:[#allocation2 + $0x2c0] sm:$0xff] %vm2968, %v2924
      %3054 = vst.msk [vmem:[#allocation2 + $0x2c8] sm:$0xff] %vm2968, %v2925
      %3055 = vst.msk [vmem:[#allocation2 + $0x2d0] sm:$0xff] %vm2968, %v2926
      %3056 = vst.msk [vmem:[#allocation2 + $0x2d8] sm:$0xff] %vm2968, %v2927
      %3057 = vst.msk [vmem:[#allocation2 + $0x2e0] sm:$0xff] %vm2968, %v2928
      %3058 = vst.msk [vmem:[#allocation2 + $0x2e8] sm:$0xff] %vm2968, %v2929
      %3059 = vst.msk [vmem:[#allocation2 + $0x2f0] sm:$0xff] %vm2968, %v2930
      %3060 = vst.msk [vmem:[#allocation2 + $0x2f8] sm:$0xff] %vm2968, %v2931
      %3061 = vst.msk [vmem:[#allocation2 + $0x300] sm:$0xff] %vm2968, %v2932
      %3062 = vst.msk [vmem:[#allocation2 + $0x308] sm:$0xff] %vm2968, %v2933
      %3063 = vst.msk [vmem:[#allocation2 + $0x310] sm:$0xff] %vm2968, %v2934
      %3064 = vst.msk [vmem:[#allocation2 + $0x318] sm:$0xff] %vm2968, %v2935
      %3065 = vst.msk [vmem:[#allocation2 + $0x320] sm:$0xff] %vm2968, %v2936
      %3066 = vst.msk [vmem:[#allocation2 + $0x328] sm:$0xff] %vm2968, %v2937
      %3067 = vst.msk [vmem:[#allocation2 + $0x330] sm:$0xff] %vm2968, %v2938
      %3068 = vst.msk [vmem:[#allocation2 + $0x338] sm:$0xff] %vm2968, %v2939
      %3069 = vst.msk [vmem:[#allocation2 + $0x340] sm:$0xff] %vm2968, %v2940
      %3070 = vst.msk [vmem:[#allocation2 + $0x348] sm:$0xff] %vm2968, %v2941
      %3071 = vst.msk [vmem:[#allocation2 + $0x350] sm:$0xff] %vm2968, %v2942
      %3072 = vst.msk [vmem:[#allocation2 + $0x358] sm:$0xff] %vm2968, %v2943
      %3073 = vst.msk [vmem:[#allocation2 + $0x360] sm:$0xff] %vm2968, %v2944
      %3074 = vst.msk [vmem:[#allocation2 + $0x368] sm:$0xff] %vm2968, %v2945
      %3075 = vst.msk [vmem:[#allocation2 + $0x370] sm:$0xff] %vm2968, %v2946
      %3076 = vst.msk [vmem:[#allocation2 + $0x378] sm:$0xff] %vm2968, %v2947
      %3077 = vst.msk [vmem:[#allocation2 + $0x380] sm:$0xff] %vm2968, %v2948
      %3078 = vst.msk [vmem:[#allocation2 + $0x388] sm:$0xff] %vm2968, %v2949
      %3079 = vst.msk [vmem:[#allocation2 + $0x390] sm:$0xff] %vm2968, %v2950
      %3080 = vst.msk [vmem:[#allocation2 + $0x398] sm:$0xff] %vm2968, %v2951
      %3081 = vst.msk [vmem:[#allocation2 + $0x3a0] sm:$0xff] %vm2968, %v2952
      %3082 = vst.msk [vmem:[#allocation2 + $0x3a8] sm:$0xff] %vm2968, %v2953
      %3083 = vst.msk [vmem:[#allocation2 + $0x3b0] sm:$0xff] %vm2968, %v2954
      %3084 = vst.msk [vmem:[#allocation2 + $0x3b8] sm:$0xff] %vm2968, %v2955
      %3085 = vst.msk [vmem:[#allocation2 + $0x3c0] sm:$0xff] %vm2968, %v2956
      %3086 = vst.msk [vmem:[#allocation2 + $0x3c8] sm:$0xff] %vm2968, %v2957
      %3087 = vst.msk [vmem:[#allocation2 + $0x3d0] sm:$0xff] %vm2968, %v2958
      %3088 = vst.msk [vmem:[#allocation2 + $0x3d8] sm:$0xff] %vm2968, %v2959
      %3089 = vst.msk [vmem:[#allocation2 + $0x3e0] sm:$0xff] %vm2968, %v2960
      %3090 = vst.msk [vmem:[#allocation2 + $0x3e8] sm:$0xff] %vm2968, %v2961
      %3091 = vst.msk [vmem:[#allocation2 + $0x3f0] sm:$0xff] %vm2968, %v2962
      %3092 = vst.msk [vmem:[#allocation2 + $0x3f8] sm:$0xff] %vm2968, %v2963
      %3093 = vst.msk [vmem:[#allocation2 + $0x400] sm:$0xff] %vm2968, %v2964
      %3094 = vst.msk [vmem:[#allocation2 + $0x408] sm:$0xff] %vm2968, %v2965
      %3095 = vst.msk [vmem:[#allocation2 + $0x410] sm:$0xff] %vm2968, %v2966
      %3096 = vst.msk [vmem:[#allocation2 + $0x418] sm:$0xff] %vm2968, %v2967
      %v3097 = vld [vmem:[#allocation2 + $0xf] sm:$0xff]
      %v3098 = vld [vmem:[#allocation2 + $0x17] sm:$0xff]
      %v3099 = vld [vmem:[#allocation2 + $0x1f] sm:$0xff]
      %v3100 = vld [vmem:[#allocation2 + $0x27] sm:$0xff]
      %v3101 = vld [vmem:[#allocation2 + $0x2f] sm:$0xff]
      %v3102 = vld [vmem:[#allocation2 + $0x37] sm:$0xff]
      %v3103 = vld [vmem:[#allocation2 + $0x3f] sm:$0xff]
      %v3104 = vld [vmem:[#allocation2 + $0x47] sm:$0xff]
      %v3105 = vld [vmem:[#allocation2 + $0x4f] sm:$0xff]
      %v3106 = vld [vmem:[#allocation2 + $0x57] sm:$0xff]
      %v3107 = vld [vmem:[#allocation2 + $0x5f] sm:$0xff]
      %v3108 = vld [vmem:[#allocation2 + $0x67] sm:$0xff]
      %v3109 = vld [vmem:[#allocation2 + $0x6f] sm:$0xff]
      %v3110 = vld [vmem:[#allocation2 + $0x77] sm:$0xff]
      %v3111 = vld [vmem:[#allocation2 + $0x7f] sm:$0xff]
      %v3112 = vld [vmem:[#allocation2 + $0x87] sm:$0xff]
      %v3113 = vld [vmem:[#allocation2 + $0x8f] sm:$0xff]
      %v3114 = vld [vmem:[#allocation2 + $0x97] sm:$0xff]
      %v3115 = vld [vmem:[#allocation2 + $0x9f] sm:$0xff]
      %v3116 = vld [vmem:[#allocation2 + $0xa7] sm:$0xff]
      %v3117 = vld [vmem:[#allocation2 + $0xaf] sm:$0xff]
      %v3118 = vld [vmem:[#allocation2 + $0xb7] sm:$0xff]
      %v3119 = vld [vmem:[#allocation2 + $0xbf] sm:$0xff]
      %v3120 = vld [vmem:[#allocation2 + $0xc7] sm:$0xff]
      %v3121 = vld [vmem:[#allocation2 + $0xcf] sm:$0xff]
      %v3122 = vld [vmem:[#allocation2 + $0xd7] sm:$0xff]
      %v3123 = vld [vmem:[#allocation2 + $0xdf] sm:$0xff]
      %v3124 = vld [vmem:[#allocation2 + $0xe7] sm:$0xff]
      %v3125 = vld [vmem:[#allocation2 + $0xef] sm:$0xff]
      %v3126 = vld [vmem:[#allocation2 + $0xf7] sm:$0xff]
      %v3127 = vld [vmem:[#allocation2 + $0xff] sm:$0xff]
      %v3128 = vld [vmem:[#allocation2 + $0x107] sm:$0xff]
      %v3129 = vld [vmem:[#allocation2 + $0x10f] sm:$0xff]
      %v3130 = vld [vmem:[#allocation2 + $0x117] sm:$0xff]
      %v3131 = vld [vmem:[#allocation2 + $0x11f] sm:$0xff]
      %v3132 = vld [vmem:[#allocation2 + $0x127] sm:$0xff]
      %v3133 = vld [vmem:[#allocation2 + $0x12f] sm:$0xff]
      %v3134 = vld [vmem:[#allocation2 + $0x137] sm:$0xff]
      %v3135 = vld [vmem:[#allocation2 + $0x13f] sm:$0xff]
      %v3136 = vld [vmem:[#allocation2 + $0x147] sm:$0xff]
      %v3137 = vld [vmem:[#allocation2 + $0x14f] sm:$0xff]
      %v3138 = vld [vmem:[#allocation2 + $0x157] sm:$0xff]
      %v3139 = vld [vmem:[#allocation2 + $0x15f] sm:$0xff]
      %v3140 = vld [vmem:[#allocation2 + $0x167] sm:$0xff]
      %v3141 = vld [vmem:[#allocation2 + $0x16f] sm:$0xff]
      %v3142 = vld [vmem:[#allocation2 + $0x177] sm:$0xff]
      %v3143 = vld [vmem:[#allocation2 + $0x17f] sm:$0xff]
      %v3144 = vld [vmem:[#allocation2 + $0x187] sm:$0xff]
      %v3145 = vld [vmem:[#allocation2 + $0x18f] sm:$0xff]
      %v3146 = vld [vmem:[#allocation2 + $0x197] sm:$0xff]
      %v3147 = vld [vmem:[#allocation2 + $0x19f] sm:$0xff]
      %v3148 = vld [vmem:[#allocation2 + $0x1a7] sm:$0xff]
      %v3149 = vld [vmem:[#allocation2 + $0x1af] sm:$0xff]
      %v3150 = vld [vmem:[#allocation2 + $0x1b7] sm:$0xff]
      %v3151 = vld [vmem:[#allocation2 + $0x1bf] sm:$0xff]
      %v3152 = vld [vmem:[#allocation2 + $0x1c7] sm:$0xff]
      %v3153 = vld [vmem:[#allocation2 + $0x1cf] sm:$0xff]
      %v3154 = vld [vmem:[#allocation2 + $0x1d7] sm:$0xff]
      %v3155 = vld [vmem:[#allocation2 + $0x1df] sm:$0xff]
      %v3156 = vld [vmem:[#allocation2 + $0x1e7] sm:$0xff]
      %v3157 = vld [vmem:[#allocation2 + $0x1ef] sm:$0xff]
      %v3158 = vld [vmem:[#allocation2 + $0x1f7] sm:$0xff]
      %v3159 = vld [vmem:[#allocation2 + $0x1ff] sm:$0xff]
      %v3160 = vld [vmem:[#allocation2 + $0x207] sm:$0xff]
      %v3161 = vmax.f32 %v3097, %v3129
      %v3162 = vmax.f32 %v3098, %v3130
      %v3163 = vmax.f32 %v3099, %v3131
      %v3164 = vmax.f32 %v3100, %v3132
      %v3165 = vmax.f32 %v3101, %v3133
      %v3166 = vmax.f32 %v3102, %v3134
      %v3167 = vmax.f32 %v3103, %v3135
      %v3168 = vmax.f32 %v3104, %v3136
      %v3169 = vmax.f32 %v3105, %v3137
      %v3170 = vmax.f32 %v3106, %v3138
      %v3171 = vmax.f32 %v3107, %v3139
      %v3172 = vmax.f32 %v3108, %v3140
      %v3173 = vmax.f32 %v3109, %v3141
      %v3174 = vmax.f32 %v3110, %v3142
      %v3175 = vmax.f32 %v3111, %v3143
      %v3176 = vmax.f32 %v3112, %v3144
      %v3177 = vmax.f32 %v3113, %v3145
      %v3178 = vmax.f32 %v3114, %v3146
      %v3179 = vmax.f32 %v3115, %v3147
      %v3180 = vmax.f32 %v3116, %v3148
      %v3181 = vmax.f32 %v3117, %v3149
      %v3182 = vmax.f32 %v3118, %v3150
      %v3183 = vmax.f32 %v3119, %v3151
      %v3184 = vmax.f32 %v3120, %v3152
      %v3185 = vmax.f32 %v3121, %v3153
      %v3186 = vmax.f32 %v3122, %v3154
      %v3187 = vmax.f32 %v3123, %v3155
      %v3188 = vmax.f32 %v3124, %v3156
      %v3189 = vmax.f32 %v3125, %v3157
      %v3190 = vmax.f32 %v3126, %v3158
      %v3191 = vmax.f32 %v3127, %v3159
      %v3192 = vmax.f32 %v3128, %v3160
      %v3193 = vld [vmem:[#allocation2 + $0x10] sm:$0xff]
      %v3194 = vld [vmem:[#allocation2 + $0x18] sm:$0xff]
      %v3195 = vld [vmem:[#allocation2 + $0x20] sm:$0xff]
      %v3196 = vld [vmem:[#allocation2 + $0x28] sm:$0xff]
      %v3197 = vld [vmem:[#allocation2 + $0x30] sm:$0xff]
      %v3198 = vld [vmem:[#allocation2 + $0x38] sm:$0xff]
      %v3199 = vld [vmem:[#allocation2 + $0x40] sm:$0xff]
      %v3200 = vld [vmem:[#allocation2 + $0x48] sm:$0xff]
      %v3201 = vld [vmem:[#allocation2 + $0x50] sm:$0xff]
      %v3202 = vld [vmem:[#allocation2 + $0x58] sm:$0xff]
      %v3203 = vld [vmem:[#allocation2 + $0x60] sm:$0xff]
      %v3204 = vld [vmem:[#allocation2 + $0x68] sm:$0xff]
      %v3205 = vld [vmem:[#allocation2 + $0x70] sm:$0xff]
      %v3206 = vld [vmem:[#allocation2 + $0x78] sm:$0xff]
      %v3207 = vld [vmem:[#allocation2 + $0x80] sm:$0xff]
      %v3208 = vld [vmem:[#allocation2 + $0x88] sm:$0xff]
      %v3209 = vld [vmem:[#allocation2 + $0x90] sm:$0xff]
      %v3210 = vld [vmem:[#allocation2 + $0x98] sm:$0xff]
      %v3211 = vld [vmem:[#allocation2 + $0xa0] sm:$0xff]
      %v3212 = vld [vmem:[#allocation2 + $0xa8] sm:$0xff]
      %v3213 = vld [vmem:[#allocation2 + $0xb0] sm:$0xff]
      %v3214 = vld [vmem:[#allocation2 + $0xb8] sm:$0xff]
      %v3215 = vld [vmem:[#allocation2 + $0xc0] sm:$0xff]
      %v3216 = vld [vmem:[#allocation2 + $0xc8] sm:$0xff]
      %v3217 = vld [vmem:[#allocation2 + $0xd0] sm:$0xff]
      %v3218 = vld [vmem:[#allocation2 + $0xd8] sm:$0xff]
      %v3219 = vld [vmem:[#allocation2 + $0xe0] sm:$0xff]
      %v3220 = vld [vmem:[#allocation2 + $0xe8] sm:$0xff]
      %v3221 = vld [vmem:[#allocation2 + $0xf0] sm:$0xff]
      %v3222 = vld [vmem:[#allocation2 + $0xf8] sm:$0xff]
      %v3223 = vld [vmem:[#allocation2 + $0x100] sm:$0xff]
      %v3224 = vld [vmem:[#allocation2 + $0x108] sm:$0xff]
      %v3225 = vmax.f32 %v3161, %v3193
      %v3226 = vmax.f32 %v3162, %v3194
      %v3227 = vmax.f32 %v3163, %v3195
      %v3228 = vmax.f32 %v3164, %v3196
      %v3229 = vmax.f32 %v3165, %v3197
      %v3230 = vmax.f32 %v3166, %v3198
      %v3231 = vmax.f32 %v3167, %v3199
      %v3232 = vmax.f32 %v3168, %v3200
      %v3233 = vmax.f32 %v3169, %v3201
      %v3234 = vmax.f32 %v3170, %v3202
      %v3235 = vmax.f32 %v3171, %v3203
      %v3236 = vmax.f32 %v3172, %v3204
      %v3237 = vmax.f32 %v3173, %v3205
      %v3238 = vmax.f32 %v3174, %v3206
      %v3239 = vmax.f32 %v3175, %v3207
      %v3240 = vmax.f32 %v3176, %v3208
      %v3241 = vmax.f32 %v3177, %v3209
      %v3242 = vmax.f32 %v3178, %v3210
      %v3243 = vmax.f32 %v3179, %v3211
      %v3244 = vmax.f32 %v3180, %v3212
      %v3245 = vmax.f32 %v3181, %v3213
      %v3246 = vmax.f32 %v3182, %v3214
      %v3247 = vmax.f32 %v3183, %v3215
      %v3248 = vmax.f32 %v3184, %v3216
      %v3249 = vmax.f32 %v3185, %v3217
      %v3250 = vmax.f32 %v3186, %v3218
      %v3251 = vmax.f32 %v3187, %v3219
      %v3252 = vmax.f32 %v3188, %v3220
      %v3253 = vmax.f32 %v3189, %v3221
      %v3254 = vmax.f32 %v3190, %v3222
      %v3255 = vmax.f32 %v3191, %v3223
      %v3256 = vmax.f32 %v3192, %v3224
      %v3257 = vld [vmem:[#allocation2 + $0x20f] sm:$0xff]
      %v3258 = vld [vmem:[#allocation2 + $0x217] sm:$0xff]
      %v3259 = vld [vmem:[#allocation2 + $0x21f] sm:$0xff]
      %v3260 = vld [vmem:[#allocation2 + $0x227] sm:$0xff]
      %v3261 = vld [vmem:[#allocation2 + $0x22f] sm:$0xff]
      %v3262 = vld [vmem:[#allocation2 + $0x237] sm:$0xff]
      %v3263 = vld [vmem:[#allocation2 + $0x23f] sm:$0xff]
      %v3264 = vld [vmem:[#allocation2 + $0x247] sm:$0xff]
      %v3265 = vld [vmem:[#allocation2 + $0x24f] sm:$0xff]
      %v3266 = vld [vmem:[#allocation2 + $0x257] sm:$0xff]
      %v3267 = vld [vmem:[#allocation2 + $0x25f] sm:$0xff]
      %v3268 = vld [vmem:[#allocation2 + $0x267] sm:$0xff]
      %v3269 = vld [vmem:[#allocation2 + $0x26f] sm:$0xff]
      %v3270 = vld [vmem:[#allocation2 + $0x277] sm:$0xff]
      %v3271 = vld [vmem:[#allocation2 + $0x27f] sm:$0xff]
      %v3272 = vld [vmem:[#allocation2 + $0x287] sm:$0xff]
      %v3273 = vld [vmem:[#allocation2 + $0x28f] sm:$0xff]
      %v3274 = vld [vmem:[#allocation2 + $0x297] sm:$0xff]
      %v3275 = vld [vmem:[#allocation2 + $0x29f] sm:$0xff]
      %v3276 = vld [vmem:[#allocation2 + $0x2a7] sm:$0xff]
      %v3277 = vld [vmem:[#allocation2 + $0x2af] sm:$0xff]
      %v3278 = vld [vmem:[#allocation2 + $0x2b7] sm:$0xff]
      %v3279 = vld [vmem:[#allocation2 + $0x2bf] sm:$0xff]
      %v3280 = vld [vmem:[#allocation2 + $0x2c7] sm:$0xff]
      %v3281 = vld [vmem:[#allocation2 + $0x2cf] sm:$0xff]
      %v3282 = vld [vmem:[#allocation2 + $0x2d7] sm:$0xff]
      %v3283 = vld [vmem:[#allocation2 + $0x2df] sm:$0xff]
      %v3284 = vld [vmem:[#allocation2 + $0x2e7] sm:$0xff]
      %v3285 = vld [vmem:[#allocation2 + $0x2ef] sm:$0xff]
      %v3286 = vld [vmem:[#allocation2 + $0x2f7] sm:$0xff]
      %v3287 = vld [vmem:[#allocation2 + $0x2ff] sm:$0xff]
      %v3288 = vld [vmem:[#allocation2 + $0x307] sm:$0xff]
      %v3289 = vmax.f32 %v3225, %v3257
      %v3290 = vmax.f32 %v3226, %v3258
      %v3291 = vmax.f32 %v3227, %v3259
      %v3292 = vmax.f32 %v3228, %v3260
      %v3293 = vmax.f32 %v3229, %v3261
      %v3294 = vmax.f32 %v3230, %v3262
      %v3295 = vmax.f32 %v3231, %v3263
      %v3296 = vmax.f32 %v3232, %v3264
      %v3297 = vmax.f32 %v3233, %v3265
      %v3298 = vmax.f32 %v3234, %v3266
      %v3299 = vmax.f32 %v3235, %v3267
      %v3300 = vmax.f32 %v3236, %v3268
      %v3301 = vmax.f32 %v3237, %v3269
      %v3302 = vmax.f32 %v3238, %v3270
      %v3303 = vmax.f32 %v3239, %v3271
      %v3304 = vmax.f32 %v3240, %v3272
      %v3305 = vmax.f32 %v3241, %v3273
      %v3306 = vmax.f32 %v3242, %v3274
      %v3307 = vmax.f32 %v3243, %v3275
      %v3308 = vmax.f32 %v3244, %v3276
      %v3309 = vmax.f32 %v3245, %v3277
      %v3310 = vmax.f32 %v3246, %v3278
      %v3311 = vmax.f32 %v3247, %v3279
      %v3312 = vmax.f32 %v3248, %v3280
      %v3313 = vmax.f32 %v3249, %v3281
      %v3314 = vmax.f32 %v3250, %v3282
      %v3315 = vmax.f32 %v3251, %v3283
      %v3316 = vmax.f32 %v3252, %v3284
      %v3317 = vmax.f32 %v3253, %v3285
      %v3318 = vmax.f32 %v3254, %v3286
      %v3319 = vmax.f32 %v3255, %v3287
      %v3320 = vmax.f32 %v3256, %v3288
      %v3321 = vld [vmem:[#allocation2 + $0x30f] sm:$0xff]
      %v3322 = vld [vmem:[#allocation2 + $0x317] sm:$0xff]
      %v3323 = vld [vmem:[#allocation2 + $0x31f] sm:$0xff]
      %v3324 = vld [vmem:[#allocation2 + $0x327] sm:$0xff]
      %v3325 = vld [vmem:[#allocation2 + $0x32f] sm:$0xff]
      %v3326 = vld [vmem:[#allocation2 + $0x337] sm:$0xff]
      %v3327 = vld [vmem:[#allocation2 + $0x33f] sm:$0xff]
      %v3328 = vld [vmem:[#allocation2 + $0x347] sm:$0xff]
      %v3329 = vld [vmem:[#allocation2 + $0x34f] sm:$0xff]
      %v3330 = vld [vmem:[#allocation2 + $0x357] sm:$0xff]
      %v3331 = vld [vmem:[#allocation2 + $0x35f] sm:$0xff]
      %v3332 = vld [vmem:[#allocation2 + $0x367] sm:$0xff]
      %v3333 = vld [vmem:[#allocation2 + $0x36f] sm:$0xff]
      %v3334 = vld [vmem:[#allocation2 + $0x377] sm:$0xff]
      %v3335 = vld [vmem:[#allocation2 + $0x37f] sm:$0xff]
      %v3336 = vld [vmem:[#allocation2 + $0x387] sm:$0xff]
      %v3337 = vld [vmem:[#allocation2 + $0x38f] sm:$0xff]
      %v3338 = vld [vmem:[#allocation2 + $0x397] sm:$0xff]
      %v3339 = vld [vmem:[#allocation2 + $0x39f] sm:$0xff]
      %v3340 = vld [vmem:[#allocation2 + $0x3a7] sm:$0xff]
      %v3341 = vld [vmem:[#allocation2 + $0x3af] sm:$0xff]
      %v3342 = vld [vmem:[#allocation2 + $0x3b7] sm:$0xff]
      %v3343 = vld [vmem:[#allocation2 + $0x3bf] sm:$0xff]
      %v3344 = vld [vmem:[#allocation2 + $0x3c7] sm:$0xff]
      %v3345 = vld [vmem:[#allocation2 + $0x3cf] sm:$0xff]
      %v3346 = vld [vmem:[#allocation2 + $0x3d7] sm:$0xff]
      %v3347 = vld [vmem:[#allocation2 + $0x3df] sm:$0xff]
      %v3348 = vld [vmem:[#allocation2 + $0x3e7] sm:$0xff]
      %v3349 = vld [vmem:[#allocation2 + $0x3ef] sm:$0xff]
      %v3350 = vld [vmem:[#allocation2 + $0x3f7] sm:$0xff]
      %v3351 = vld [vmem:[#allocation2 + $0x3ff] sm:$0xff]
      %v3352 = vld [vmem:[#allocation2 + $0x407] sm:$0xff]
      %v3353 = vmax.f32 %v3289, %v3321
      %v3354 = vmax.f32 %v3290, %v3322
      %v3355 = vmax.f32 %v3291, %v3323
      %v3356 = vmax.f32 %v3292, %v3324
      %v3357 = vmax.f32 %v3293, %v3325
      %v3358 = vmax.f32 %v3294, %v3326
      %v3359 = vmax.f32 %v3295, %v3327
      %v3360 = vmax.f32 %v3296, %v3328
      %v3361 = vmax.f32 %v3297, %v3329
      %v3362 = vmax.f32 %v3298, %v3330
      %v3363 = vmax.f32 %v3299, %v3331
      %v3364 = vmax.f32 %v3300, %v3332
      %v3365 = vmax.f32 %v3301, %v3333
      %v3366 = vmax.f32 %v3302, %v3334
      %v3367 = vmax.f32 %v3303, %v3335
      %v3368 = vmax.f32 %v3304, %v3336
      %v3369 = vmax.f32 %v3305, %v3337
      %v3370 = vmax.f32 %v3306, %v3338
      %v3371 = vmax.f32 %v3307, %v3339
      %v3372 = vmax.f32 %v3308, %v3340
      %v3373 = vmax.f32 %v3309, %v3341
      %v3374 = vmax.f32 %v3310, %v3342
      %v3375 = vmax.f32 %v3311, %v3343
      %v3376 = vmax.f32 %v3312, %v3344
      %v3377 = vmax.f32 %v3313, %v3345
      %v3378 = vmax.f32 %v3314, %v3346
      %v3379 = vmax.f32 %v3315, %v3347
      %v3380 = vmax.f32 %v3316, %v3348
      %v3381 = vmax.f32 %v3317, %v3349
      %v3382 = vmax.f32 %v3318, %v3350
      %v3383 = vmax.f32 %v3319, %v3351
      %v3384 = vmax.f32 %v3320, %v3352
      %v3385 = vld [vmem:[#allocation2 + $0x210] sm:$0xff]
      %v3386 = vld [vmem:[#allocation2 + $0x218] sm:$0xff]
      %v3387 = vld [vmem:[#allocation2 + $0x220] sm:$0xff]
      %v3388 = vld [vmem:[#allocation2 + $0x228] sm:$0xff]
      %v3389 = vld [vmem:[#allocation2 + $0x230] sm:$0xff]
      %v3390 = vld [vmem:[#allocation2 + $0x238] sm:$0xff]
      %v3391 = vld [vmem:[#allocation2 + $0x240] sm:$0xff]
      %v3392 = vld [vmem:[#allocation2 + $0x248] sm:$0xff]
      %v3393 = vld [vmem:[#allocation2 + $0x250] sm:$0xff]
      %v3394 = vld [vmem:[#allocation2 + $0x258] sm:$0xff]
      %v3395 = vld [vmem:[#allocation2 + $0x260] sm:$0xff]
      %v3396 = vld [vmem:[#allocation2 + $0x268] sm:$0xff]
      %v3397 = vld [vmem:[#allocation2 + $0x270] sm:$0xff]
      %v3398 = vld [vmem:[#allocation2 + $0x278] sm:$0xff]
      %v3399 = vld [vmem:[#allocation2 + $0x280] sm:$0xff]
      %v3400 = vld [vmem:[#allocation2 + $0x288] sm:$0xff]
      %v3401 = vld [vmem:[#allocation2 + $0x290] sm:$0xff]
      %v3402 = vld [vmem:[#allocation2 + $0x298] sm:$0xff]
      %v3403 = vld [vmem:[#allocation2 + $0x2a0] sm:$0xff]
      %v3404 = vld [vmem:[#allocation2 + $0x2a8] sm:$0xff]
      %v3405 = vld [vmem:[#allocation2 + $0x2b0] sm:$0xff]
      %v3406 = vld [vmem:[#allocation2 + $0x2b8] sm:$0xff]
      %v3407 = vld [vmem:[#allocation2 + $0x2c0] sm:$0xff]
      %v3408 = vld [vmem:[#allocation2 + $0x2c8] sm:$0xff]
      %v3409 = vld [vmem:[#allocation2 + $0x2d0] sm:$0xff]
      %v3410 = vld [vmem:[#allocation2 + $0x2d8] sm:$0xff]
      %v3411 = vld [vmem:[#allocation2 + $0x2e0] sm:$0xff]
      %v3412 = vld [vmem:[#allocation2 + $0x2e8] sm:$0xff]
      %v3413 = vld [vmem:[#allocation2 + $0x2f0] sm:$0xff]
      %v3414 = vld [vmem:[#allocation2 + $0x2f8] sm:$0xff]
      %v3415 = vld [vmem:[#allocation2 + $0x300] sm:$0xff]
      %v3416 = vld [vmem:[#allocation2 + $0x308] sm:$0xff]
      %v3417 = vmax.f32 %v3353, %v3385
      %v3418 = vmax.f32 %v3354, %v3386
      %v3419 = vmax.f32 %v3355, %v3387
      %v3420 = vmax.f32 %v3356, %v3388
      %v3421 = vmax.f32 %v3357, %v3389
      %v3422 = vmax.f32 %v3358, %v3390
      %v3423 = vmax.f32 %v3359, %v3391
      %v3424 = vmax.f32 %v3360, %v3392
      %v3425 = vmax.f32 %v3361, %v3393
      %v3426 = vmax.f32 %v3362, %v3394
      %v3427 = vmax.f32 %v3363, %v3395
      %v3428 = vmax.f32 %v3364, %v3396
      %v3429 = vmax.f32 %v3365, %v3397
      %v3430 = vmax.f32 %v3366, %v3398
      %v3431 = vmax.f32 %v3367, %v3399
      %v3432 = vmax.f32 %v3368, %v3400
      %v3433 = vmax.f32 %v3369, %v3401
      %v3434 = vmax.f32 %v3370, %v3402
      %v3435 = vmax.f32 %v3371, %v3403
      %v3436 = vmax.f32 %v3372, %v3404
      %v3437 = vmax.f32 %v3373, %v3405
      %v3438 = vmax.f32 %v3374, %v3406
      %v3439 = vmax.f32 %v3375, %v3407
      %v3440 = vmax.f32 %v3376, %v3408
      %v3441 = vmax.f32 %v3377, %v3409
      %v3442 = vmax.f32 %v3378, %v3410
      %v3443 = vmax.f32 %v3379, %v3411
      %v3444 = vmax.f32 %v3380, %v3412
      %v3445 = vmax.f32 %v3381, %v3413
      %v3446 = vmax.f32 %v3382, %v3414
      %v3447 = vmax.f32 %v3383, %v3415
      %v3448 = vmax.f32 %v3384, %v3416
      %v3449 = vmax.f32 %v3417, %v3099
      %v3450 = vmax.f32 %v3418, %v3100
      %v3451 = vmax.f32 %v3419, %v3101
      %v3452 = vmax.f32 %v3420, %v3102
      %v3453 = vmax.f32 %v3421, %v3103
      %v3454 = vmax.f32 %v3422, %v3104
      %v3455 = vmax.f32 %v3423, %v3105
      %v3456 = vmax.f32 %v3424, %v3106
      %v3457 = vmax.f32 %v3425, %v3107
      %v3458 = vmax.f32 %v3426, %v3108
      %v3459 = vmax.f32 %v3427, %v3109
      %v3460 = vmax.f32 %v3428, %v3110
      %v3461 = vmax.f32 %v3429, %v3111
      %v3462 = vmax.f32 %v3430, %v3112
      %v3463 = vmax.f32 %v3431, %v3113
      %v3464 = vmax.f32 %v3432, %v3114
      %v3465 = vmax.f32 %v3433, %v3115
      %v3466 = vmax.f32 %v3434, %v3116
      %v3467 = vmax.f32 %v3435, %v3117
      %v3468 = vmax.f32 %v3436, %v3118
      %v3469 = vmax.f32 %v3437, %v3119
      %v3470 = vmax.f32 %v3438, %v3120
      %v3471 = vmax.f32 %v3439, %v3121
      %v3472 = vmax.f32 %v3440, %v3122
      %v3473 = vmax.f32 %v3441, %v3123
      %v3474 = vmax.f32 %v3442, %v3124
      %v3475 = vmax.f32 %v3443, %v3125
      %v3476 = vmax.f32 %v3444, %v3126
      %v3477 = vmax.f32 %v3445, %v3127
      %v3478 = vmax.f32 %v3446, %v3128
      %v3479 = vmax.f32 %v3447, %v3129
      %v3480 = vmax.f32 %v3448, %v3130
      %v3481 = vmax.f32 %v3449, %v3131
      %v3482 = vmax.f32 %v3450, %v3132
      %v3483 = vmax.f32 %v3451, %v3133
      %v3484 = vmax.f32 %v3452, %v3134
      %v3485 = vmax.f32 %v3453, %v3135
      %v3486 = vmax.f32 %v3454, %v3136
      %v3487 = vmax.f32 %v3455, %v3137
      %v3488 = vmax.f32 %v3456, %v3138
      %v3489 = vmax.f32 %v3457, %v3139
      %v3490 = vmax.f32 %v3458, %v3140
      %v3491 = vmax.f32 %v3459, %v3141
      %v3492 = vmax.f32 %v3460, %v3142
      %v3493 = vmax.f32 %v3461, %v3143
      %v3494 = vmax.f32 %v3462, %v3144
      %v3495 = vmax.f32 %v3463, %v3145
      %v3496 = vmax.f32 %v3464, %v3146
      %v3497 = vmax.f32 %v3465, %v3147
      %v3498 = vmax.f32 %v3466, %v3148
      %v3499 = vmax.f32 %v3467, %v3149
      %v3500 = vmax.f32 %v3468, %v3150
      %v3501 = vmax.f32 %v3469, %v3151
      %v3502 = vmax.f32 %v3470, %v3152
      %v3503 = vmax.f32 %v3471, %v3153
      %v3504 = vmax.f32 %v3472, %v3154
      %v3505 = vmax.f32 %v3473, %v3155
      %v3506 = vmax.f32 %v3474, %v3156
      %v3507 = vmax.f32 %v3475, %v3157
      %v3508 = vmax.f32 %v3476, %v3158
      %v3509 = vmax.f32 %v3477, %v3159
      %v3510 = vmax.f32 %v3478, %v3160
      %v3511 = vmax.f32 %v3479, %v3257
      %v3512 = vmax.f32 %v3480, %v3258
      %v3513 = vld [vmem:[#allocation2 + $0x110] sm:$0xff]
      %v3514 = vld [vmem:[#allocation2 + $0x118] sm:$0xff]
      %v3515 = vmax.f32 %v3481, %v3195
      %v3516 = vmax.f32 %v3482, %v3196
      %v3517 = vmax.f32 %v3483, %v3197
      %v3518 = vmax.f32 %v3484, %v3198
      %v3519 = vmax.f32 %v3485, %v3199
      %v3520 = vmax.f32 %v3486, %v3200
      %v3521 = vmax.f32 %v3487, %v3201
      %v3522 = vmax.f32 %v3488, %v3202
      %v3523 = vmax.f32 %v3489, %v3203
      %v3524 = vmax.f32 %v3490, %v3204
      %v3525 = vmax.f32 %v3491, %v3205
      %v3526 = vmax.f32 %v3492, %v3206
      %v3527 = vmax.f32 %v3493, %v3207
      %v3528 = vmax.f32 %v3494, %v3208
      %v3529 = vmax.f32 %v3495, %v3209
      %v3530 = vmax.f32 %v3496, %v3210
      %v3531 = vmax.f32 %v3497, %v3211
      %v3532 = vmax.f32 %v3498, %v3212
      %v3533 = vmax.f32 %v3499, %v3213
      %v3534 = vmax.f32 %v3500, %v3214
      %v3535 = vmax.f32 %v3501, %v3215
      %v3536 = vmax.f32 %v3502, %v3216
      %v3537 = vmax.f32 %v3503, %v3217
      %v3538 = vmax.f32 %v3504, %v3218
      %v3539 = vmax.f32 %v3505, %v3219
      %v3540 = vmax.f32 %v3506, %v3220
      %v3541 = vmax.f32 %v3507, %v3221
      %v3542 = vmax.f32 %v3508, %v3222
      %v3543 = vmax.f32 %v3509, %v3223
      %v3544 = vmax.f32 %v3510, %v3224
      %v3545 = vmax.f32 %v3511, %v3513
      %v3546 = vmax.f32 %v3512, %v3514
      %v3547 = vsel %vm890, 1, 0
      %v3548 = vsel %vm891, 1, 0
      %v3549 = vsel %vm892, 1, 0
      %v3550 = vsel %vm893, 1, 0
      %v3551 = vsel %vm894, 1, 0
      %v3552 = vsel %vm895, 1, 0
      %v3553 = vsel %vm896, 1, 0
      %v3554 = vsel %vm897, 1, 0
      %v3555 = vsel %vm898, 1, 0
      %v3556 = vsel %vm899, 1, 0
      %v3557 = vsel %vm900, 1, 0
      %v3558 = vsel %vm901, 1, 0
      %v3559 = vsel %vm902, 1, 0
      %v3560 = vsel %vm903, 1, 0
      %v3561 = vsel %vm904, 1, 0
      %v3562 = vsel %vm905, 1, 0
      %v3563 = vsel %vm906, 1, 0
      %v3564 = vsel %vm907, 1, 0
      %v3565 = vsel %vm908, 1, 0
      %v3566 = vsel %vm909, 1, 0
      %v3567 = vsel %vm910, 1, 0
      %v3568 = vsel %vm911, 1, 0
      %v3569 = vsel %vm912, 1, 0
      %v3570 = vsel %vm913, 1, 0
      %v3571 = vsel %vm914, 1, 0
      %v3572 = vsel %vm915, 1, 0
      %v3573 = vsel %vm916, 1, 0
      %v3574 = vsel %vm917, 1, 0
      %v3575 = vsel %vm918, 1, 0
      %v3576 = vsel %vm919, 1, 0
      %v3577 = vsel %vm920, 1, 0
      %v3578 = vsel %vm921, 1, 0
      %3579 = vset.pattern.permute.xlu0 0
      %3580 = vperm.xlu0 %3579, %v3547
      %v3581 = vpop.permute.xlu0 %3580
      %3582 = vset.pattern.permute.xlu0 0
      %3583 = vperm.xlu0 %3582, %v3548
      %v3584 = vpop.permute.xlu0 %3583
      %3585 = vset.pattern.permute.xlu0 0
      %3586 = vperm.xlu0 %3585, %v3549
      %v3587 = vpop.permute.xlu0 %3586
      %3588 = vset.pattern.permute.xlu0 0
      %3589 = vperm.xlu0 %3588, %v3550
      %v3590 = vpop.permute.xlu0 %3589
      %3591 = vset.pattern.permute.xlu0 0
      %3592 = vperm.xlu0 %3591, %v3551
      %v3593 = vpop.permute.xlu0 %3592
      %3594 = vset.pattern.permute.xlu0 0
      %3595 = vperm.xlu0 %3594, %v3552
      %v3596 = vpop.permute.xlu0 %3595
      %3597 = vset.pattern.permute.xlu0 0
      %3598 = vperm.xlu0 %3597, %v3553
      %v3599 = vpop.permute.xlu0 %3598
      %3600 = vset.pattern.permute.xlu0 0
      %3601 = vperm.xlu0 %3600, %v3554
      %v3602 = vpop.permute.xlu0 %3601
      %3603 = vset.pattern.permute.xlu0 0
      %3604 = vperm.xlu0 %3603, %v3555
      %v3605 = vpop.permute.xlu0 %3604
      %3606 = vset.pattern.permute.xlu0 0
      %3607 = vperm.xlu0 %3606, %v3556
      %v3608 = vpop.permute.xlu0 %3607
      %3609 = vset.pattern.permute.xlu0 0
      %3610 = vperm.xlu0 %3609, %v3557
      %v3611 = vpop.permute.xlu0 %3610
      %3612 = vset.pattern.permute.xlu0 0
      %3613 = vperm.xlu0 %3612, %v3558
      %v3614 = vpop.permute.xlu0 %3613
      %3615 = vset.pattern.permute.xlu0 0
      %3616 = vperm.xlu0 %3615, %v3559
      %v3617 = vpop.permute.xlu0 %3616
      %3618 = vset.pattern.permute.xlu0 0
      %3619 = vperm.xlu0 %3618, %v3560
      %v3620 = vpop.permute.xlu0 %3619
      %3621 = vset.pattern.permute.xlu0 0
      %3622 = vperm.xlu0 %3621, %v3561
      %v3623 = vpop.permute.xlu0 %3622
      %3624 = vset.pattern.permute.xlu0 0
      %3625 = vperm.xlu0 %3624, %v3562
      %v3626 = vpop.permute.xlu0 %3625
      %3627 = vset.pattern.permute.xlu0 0
      %3628 = vperm.xlu0 %3627, %v3563
      %v3629 = vpop.permute.xlu0 %3628
      %3630 = vset.pattern.permute.xlu0 0
      %3631 = vperm.xlu0 %3630, %v3564
      %v3632 = vpop.permute.xlu0 %3631
      %3633 = vset.pattern.permute.xlu0 0
      %3634 = vperm.xlu0 %3633, %v3565
      %v3635 = vpop.permute.xlu0 %3634
      %3636 = vset.pattern.permute.xlu0 0
      %3637 = vperm.xlu0 %3636, %v3566
      %v3638 = vpop.permute.xlu0 %3637
      %3639 = vset.pattern.permute.xlu0 0
      %3640 = vperm.xlu0 %3639, %v3567
      %v3641 = vpop.permute.xlu0 %3640
      %3642 = vset.pattern.permute.xlu0 0
      %3643 = vperm.xlu0 %3642, %v3568
      %v3644 = vpop.permute.xlu0 %3643
      %3645 = vset.pattern.permute.xlu0 0
      %3646 = vperm.xlu0 %3645, %v3569
      %v3647 = vpop.permute.xlu0 %3646
      %3648 = vset.pattern.permute.xlu0 0
      %3649 = vperm.xlu0 %3648, %v3570
      %v3650 = vpop.permute.xlu0 %3649
      %3651 = vset.pattern.permute.xlu0 0
      %3652 = vperm.xlu0 %3651, %v3571
      %v3653 = vpop.permute.xlu0 %3652
      %3654 = vset.pattern.permute.xlu0 0
      %3655 = vperm.xlu0 %3654, %v3572
      %v3656 = vpop.permute.xlu0 %3655
      %3657 = vset.pattern.permute.xlu0 0
      %3658 = vperm.xlu0 %3657, %v3573
      %v3659 = vpop.permute.xlu0 %3658
      %3660 = vset.pattern.permute.xlu0 0
      %3661 = vperm.xlu0 %3660, %v3574
      %v3662 = vpop.permute.xlu0 %3661
      %3663 = vset.pattern.permute.xlu0 0
      %3664 = vperm.xlu0 %3663, %v3575
      %v3665 = vpop.permute.xlu0 %3664
      %3666 = vset.pattern.permute.xlu0 0
      %3667 = vperm.xlu0 %3666, %v3576
      %v3668 = vpop.permute.xlu0 %3667
      %3669 = vset.pattern.permute.xlu0 0
      %3670 = vperm.xlu0 %3669, %v3577
      %v3671 = vpop.permute.xlu0 %3670
      %3672 = vset.pattern.permute.xlu0 0
      %3673 = vperm.xlu0 %3672, %v3578
      %v3674 = vpop.permute.xlu0 %3673
      %vm3675 = vcmp.eq.s32.totalorder %v3581, 1
      %vm3676 = vcmp.eq.s32.totalorder %v3584, 1
      %vm3677 = vcmp.eq.s32.totalorder %v3587, 1
      %vm3678 = vcmp.eq.s32.totalorder %v3590, 1
      %vm3679 = vcmp.eq.s32.totalorder %v3593, 1
      %vm3680 = vcmp.eq.s32.totalorder %v3596, 1
      %vm3681 = vcmp.eq.s32.totalorder %v3599, 1
      %vm3682 = vcmp.eq.s32.totalorder %v3602, 1
      %vm3683 = vcmp.eq.s32.totalorder %v3605, 1
      %vm3684 = vcmp.eq.s32.totalorder %v3608, 1
      %vm3685 = vcmp.eq.s32.totalorder %v3611, 1
      %vm3686 = vcmp.eq.s32.totalorder %v3614, 1
      %vm3687 = vcmp.eq.s32.totalorder %v3617, 1
      %vm3688 = vcmp.eq.s32.totalorder %v3620, 1
      %vm3689 = vcmp.eq.s32.totalorder %v3623, 1
      %vm3690 = vcmp.eq.s32.totalorder %v3626, 1
      %vm3691 = vcmp.eq.s32.totalorder %v3629, 1
      %vm3692 = vcmp.eq.s32.totalorder %v3632, 1
      %vm3693 = vcmp.eq.s32.totalorder %v3635, 1
      %vm3694 = vcmp.eq.s32.totalorder %v3638, 1
      %vm3695 = vcmp.eq.s32.totalorder %v3641, 1
      %vm3696 = vcmp.eq.s32.totalorder %v3644, 1
      %vm3697 = vcmp.eq.s32.totalorder %v3647, 1
      %vm3698 = vcmp.eq.s32.totalorder %v3650, 1
      %vm3699 = vcmp.eq.s32.totalorder %v3653, 1
      %vm3700 = vcmp.eq.s32.totalorder %v3656, 1
      %vm3701 = vcmp.eq.s32.totalorder %v3659, 1
      %vm3702 = vcmp.eq.s32.totalorder %v3662, 1
      %vm3703 = vcmp.eq.s32.totalorder %v3665, 1
      %vm3704 = vcmp.eq.s32.totalorder %v3668, 1
      %vm3705 = vcmp.eq.s32.totalorder %v3671, 1
      %vm3706 = vcmp.eq.s32.totalorder %v3674, 1
      %v3707 = vsel %vm3675, %v3515, 0.0
      %v3708 = vsel %vm3676, %v3516, 0.0
      %v3709 = vsel %vm3677, %v3517, 0.0
      %v3710 = vsel %vm3678, %v3518, 0.0
      %v3711 = vsel %vm3679, %v3519, 0.0
      %v3712 = vsel %vm3680, %v3520, 0.0
      %v3713 = vsel %vm3681, %v3521, 0.0
      %v3714 = vsel %vm3682, %v3522, 0.0
      %v3715 = vsel %vm3683, %v3523, 0.0
      %v3716 = vsel %vm3684, %v3524, 0.0
      %v3717 = vsel %vm3685, %v3525, 0.0
      %v3718 = vsel %vm3686, %v3526, 0.0
      %v3719 = vsel %vm3687, %v3527, 0.0
      %v3720 = vsel %vm3688, %v3528, 0.0
      %v3721 = vsel %vm3689, %v3529, 0.0
      %v3722 = vsel %vm3690, %v3530, 0.0
      %v3723 = vsel %vm3691, %v3531, 0.0
      %v3724 = vsel %vm3692, %v3532, 0.0
      %v3725 = vsel %vm3693, %v3533, 0.0
      %v3726 = vsel %vm3694, %v3534, 0.0
      %v3727 = vsel %vm3695, %v3535, 0.0
      %v3728 = vsel %vm3696, %v3536, 0.0
      %v3729 = vsel %vm3697, %v3537, 0.0
      %v3730 = vsel %vm3698, %v3538, 0.0
      %v3731 = vsel %vm3699, %v3539, 0.0
      %v3732 = vsel %vm3700, %v3540, 0.0
      %v3733 = vsel %vm3701, %v3541, 0.0
      %v3734 = vsel %vm3702, %v3542, 0.0
      %v3735 = vsel %vm3703, %v3543, 0.0
      %v3736 = vsel %vm3704, %v3544, 0.0
      %v3737 = vsel %vm3705, %v3545, 0.0
      %v3738 = vsel %vm3706, %v3546, 0.0
      %3739 = vst.msk [vmem:[#allocation3 + $0x20] sm:$0xff] %vm2968, %v3707
      %3740 = vst.msk [vmem:[#allocation3 + $0x28] sm:$0xff] %vm2968, %v3708
      %3741 = vst.msk [vmem:[#allocation3 + $0x30] sm:$0xff] %vm2968, %v3709
      %3742 = vst.msk [vmem:[#allocation3 + $0x38] sm:$0xff] %vm2968, %v3710
      %3743 = vst.msk [vmem:[#allocation3 + $0x40] sm:$0xff] %vm2968, %v3711
      %3744 = vst.msk [vmem:[#allocation3 + $0x48] sm:$0xff] %vm2968, %v3712
      %3745 = vst.msk [vmem:[#allocation3 + $0x50] sm:$0xff] %vm2968, %v3713
      %3746 = vst.msk [vmem:[#allocation3 + $0x58] sm:$0xff] %vm2968, %v3714
      %3747 = vst.msk [vmem:[#allocation3 + $0x60] sm:$0xff] %vm2968, %v3715
      %3748 = vst.msk [vmem:[#allocation3 + $0x68] sm:$0xff] %vm2968, %v3716
      %3749 = vst.msk [vmem:[#allocation3 + $0x70] sm:$0xff] %vm2968, %v3717
      %3750 = vst.msk [vmem:[#allocation3 + $0x78] sm:$0xff] %vm2968, %v3718
      %3751 = vst.msk [vmem:[#allocation3 + $0x80] sm:$0xff] %vm2968, %v3719
      %3752 = vst.msk [vmem:[#allocation3 + $0x88] sm:$0xff] %vm2968, %v3720
      %3753 = vst.msk [vmem:[#allocation3 + $0x90] sm:$0xff] %vm2968, %v3721
      %3754 = vst.msk [vmem:[#allocation3 + $0x98] sm:$0xff] %vm2968, %v3722
      %3755 = vst.msk [vmem:[#allocation3 + $0xa0] sm:$0xff] %vm2968, %v3723
      %3756 = vst.msk [vmem:[#allocation3 + $0xa8] sm:$0xff] %vm2968, %v3724
      %3757 = vst.msk [vmem:[#allocation3 + $0xb0] sm:$0xff] %vm2968, %v3725
      %3758 = vst.msk [vmem:[#allocation3 + $0xb8] sm:$0xff] %vm2968, %v3726
      %3759 = vst.msk [vmem:[#allocation3 + $0xc0] sm:$0xff] %vm2968, %v3727
      %3760 = vst.msk [vmem:[#allocation3 + $0xc8] sm:$0xff] %vm2968, %v3728
      %3761 = vst.msk [vmem:[#allocation3 + $0xd0] sm:$0xff] %vm2968, %v3729
      %3762 = vst.msk [vmem:[#allocation3 + $0xd8] sm:$0xff] %vm2968, %v3730
      %3763 = vst.msk [vmem:[#allocation3 + $0xe0] sm:$0xff] %vm2968, %v3731
      %3764 = vst.msk [vmem:[#allocation3 + $0xe8] sm:$0xff] %vm2968, %v3732
      %3765 = vst.msk [vmem:[#allocation3 + $0xf0] sm:$0xff] %vm2968, %v3733
      %3766 = vst.msk [vmem:[#allocation3 + $0xf8] sm:$0xff] %vm2968, %v3734
      %3767 = vst.msk [vmem:[#allocation3 + $0x100] sm:$0xff] %vm2968, %v3735
      %3768 = vst.msk [vmem:[#allocation3 + $0x108] sm:$0xff] %vm2968, %v3736
      %3769 = vst.msk [vmem:[#allocation3 + $0x110] sm:$0xff] %vm2968, %v3737
      %3770 = vst.msk [vmem:[#allocation3 + $0x118] sm:$0xff] %vm2968, %v3738
      %v3771 = vld [vmem:[#allocation3 + $0xf] sm:$0xff]
      %v3772 = vld [vmem:[#allocation3 + $0x17] sm:$0xff]
      %v3773 = vld [vmem:[#allocation3 + $0x1f] sm:$0xff]
      %v3774 = vld [vmem:[#allocation3 + $0x27] sm:$0xff]
      %v3775 = vld [vmem:[#allocation3 + $0x2f] sm:$0xff]
      %v3776 = vld [vmem:[#allocation3 + $0x37] sm:$0xff]
      %v3777 = vld [vmem:[#allocation3 + $0x3f] sm:$0xff]
      %v3778 = vld [vmem:[#allocation3 + $0x47] sm:$0xff]
      %v3779 = vld [vmem:[#allocation3 + $0x4f] sm:$0xff]
      %v3780 = vld [vmem:[#allocation3 + $0x57] sm:$0xff]
      %v3781 = vld [vmem:[#allocation3 + $0x5f] sm:$0xff]
      %v3782 = vld [vmem:[#allocation3 + $0x67] sm:$0xff]
      %v3783 = vld [vmem:[#allocation3 + $0x6f] sm:$0xff]
      %v3784 = vld [vmem:[#allocation3 + $0x77] sm:$0xff]
      %v3785 = vld [vmem:[#allocation3 + $0x7f] sm:$0xff]
      %v3786 = vld [vmem:[#allocation3 + $0x87] sm:$0xff]
      %v3787 = vld [vmem:[#allocation3 + $0x8f] sm:$0xff]
      %v3788 = vld [vmem:[#allocation3 + $0x97] sm:$0xff]
      %v3789 = vld [vmem:[#allocation3 + $0x9f] sm:$0xff]
      %v3790 = vld [vmem:[#allocation3 + $0xa7] sm:$0xff]
      %v3791 = vld [vmem:[#allocation3 + $0xaf] sm:$0xff]
      %v3792 = vld [vmem:[#allocation3 + $0xb7] sm:$0xff]
      %v3793 = vld [vmem:[#allocation3 + $0xbf] sm:$0xff]
      %v3794 = vld [vmem:[#allocation3 + $0xc7] sm:$0xff]
      %v3795 = vld [vmem:[#allocation3 + $0xcf] sm:$0xff]
      %v3796 = vld [vmem:[#allocation3 + $0xd7] sm:$0xff]
      %v3797 = vld [vmem:[#allocation3 + $0xdf] sm:$0xff]
      %v3798 = vld [vmem:[#allocation3 + $0xe7] sm:$0xff]
      %v3799 = vld [vmem:[#allocation3 + $0xef] sm:$0xff]
      %v3800 = vld [vmem:[#allocation3 + $0xf7] sm:$0xff]
      %v3801 = vld [vmem:[#allocation3 + $0xff] sm:$0xff]
      %v3802 = vld [vmem:[#allocation3 + $0x107] sm:$0xff]
      %v3803 = vld [vmem:[#allocation3 + $0x10] sm:$0xff]
      %v3804 = vld [vmem:[#allocation3 + $0x18] sm:$0xff]
      %v3805 = vld [vmem:[#allocation3 + $0x20] sm:$0xff]
      %v3806 = vld [vmem:[#allocation3 + $0x28] sm:$0xff]
      %v3807 = vld [vmem:[#allocation3 + $0x30] sm:$0xff]
      %v3808 = vld [vmem:[#allocation3 + $0x38] sm:$0xff]
      %v3809 = vld [vmem:[#allocation3 + $0x40] sm:$0xff]
      %v3810 = vld [vmem:[#allocation3 + $0x48] sm:$0xff]
      %v3811 = vld [vmem:[#allocation3 + $0x50] sm:$0xff]
      %v3812 = vld [vmem:[#allocation3 + $0x58] sm:$0xff]
      %v3813 = vld [vmem:[#allocation3 + $0x60] sm:$0xff]
      %v3814 = vld [vmem:[#allocation3 + $0x68] sm:$0xff]
      %v3815 = vld [vmem:[#allocation3 + $0x70] sm:$0xff]
      %v3816 = vld [vmem:[#allocation3 + $0x78] sm:$0xff]
      %v3817 = vld [vmem:[#allocation3 + $0x80] sm:$0xff]
      %v3818 = vld [vmem:[#allocation3 + $0x88] sm:$0xff]
      %v3819 = vld [vmem:[#allocation3 + $0x90] sm:$0xff]
      %v3820 = vld [vmem:[#allocation3 + $0x98] sm:$0xff]
      %v3821 = vld [vmem:[#allocation3 + $0xa0] sm:$0xff]
      %v3822 = vld [vmem:[#allocation3 + $0xa8] sm:$0xff]
      %v3823 = vld [vmem:[#allocation3 + $0xb0] sm:$0xff]
      %v3824 = vld [vmem:[#allocation3 + $0xb8] sm:$0xff]
      %v3825 = vld [vmem:[#allocation3 + $0xc0] sm:$0xff]
      %v3826 = vld [vmem:[#allocation3 + $0xc8] sm:$0xff]
      %v3827 = vld [vmem:[#allocation3 + $0xd0] sm:$0xff]
      %v3828 = vld [vmem:[#allocation3 + $0xd8] sm:$0xff]
      %v3829 = vld [vmem:[#allocation3 + $0xe0] sm:$0xff]
      %v3830 = vld [vmem:[#allocation3 + $0xe8] sm:$0xff]
      %v3831 = vld [vmem:[#allocation3 + $0xf0] sm:$0xff]
      %v3832 = vld [vmem:[#allocation3 + $0xf8] sm:$0xff]
      %v3833 = vld [vmem:[#allocation3 + $0x100] sm:$0xff]
      %v3834 = vld [vmem:[#allocation3 + $0x108] sm:$0xff]
      %v3835 = vld [vmem:[#allocation3 + $0x11] sm:$0xff]
      %v3836 = vld [vmem:[#allocation3 + $0x19] sm:$0xff]
      %v3837 = vld [vmem:[#allocation3 + $0x21] sm:$0xff]
      %v3838 = vld [vmem:[#allocation3 + $0x29] sm:$0xff]
      %v3839 = vld [vmem:[#allocation3 + $0x31] sm:$0xff]
      %v3840 = vld [vmem:[#allocation3 + $0x39] sm:$0xff]
      %v3841 = vld [vmem:[#allocation3 + $0x41] sm:$0xff]
      %v3842 = vld [vmem:[#allocation3 + $0x49] sm:$0xff]
      %v3843 = vld [vmem:[#allocation3 + $0x51] sm:$0xff]
      %v3844 = vld [vmem:[#allocation3 + $0x59] sm:$0xff]
      %v3845 = vld [vmem:[#allocation3 + $0x61] sm:$0xff]
      %v3846 = vld [vmem:[#allocation3 + $0x69] sm:$0xff]
      %v3847 = vld [vmem:[#allocation3 + $0x71] sm:$0xff]
      %v3848 = vld [vmem:[#allocation3 + $0x79] sm:$0xff]
      %v3849 = vld [vmem:[#allocation3 + $0x81] sm:$0xff]
      %v3850 = vld [vmem:[#allocation3 + $0x89] sm:$0xff]
      %v3851 = vld [vmem:[#allocation3 + $0x91] sm:$0xff]
      %v3852 = vld [vmem:[#allocation3 + $0x99] sm:$0xff]
      %v3853 = vld [vmem:[#allocation3 + $0xa1] sm:$0xff]
      %v3854 = vld [vmem:[#allocation3 + $0xa9] sm:$0xff]
      %v3855 = vld [vmem:[#allocation3 + $0xb1] sm:$0xff]
      %v3856 = vld [vmem:[#allocation3 + $0xb9] sm:$0xff]
      %v3857 = vld [vmem:[#allocation3 + $0xc1] sm:$0xff]
      %v3858 = vld [vmem:[#allocation3 + $0xc9] sm:$0xff]
      %v3859 = vld [vmem:[#allocation3 + $0xd1] sm:$0xff]
      %v3860 = vld [vmem:[#allocation3 + $0xd9] sm:$0xff]
      %v3861 = vld [vmem:[#allocation3 + $0xe1] sm:$0xff]
      %v3862 = vld [vmem:[#allocation3 + $0xe9] sm:$0xff]
      %v3863 = vld [vmem:[#allocation3 + $0xf1] sm:$0xff]
      %v3864 = vld [vmem:[#allocation3 + $0xf9] sm:$0xff]
      %v3865 = vld [vmem:[#allocation3 + $0x101] sm:$0xff]
      %v3866 = vld [vmem:[#allocation3 + $0x109] sm:$0xff]
      %v3867 = vld [vmem:[#allocation3 + $0x10f] sm:$0xff]
      %v3868 = vld [vmem:[#allocation3 + $0x117] sm:$0xff]
      %3901 = vrot.lane.b32.xlu0 %v3803, 32
      %v3902 = vpop.permute.xlu0 %3901
      %3903 = vrot.lane.b32.xlu0 %v3804, 32
      %v3904 = vpop.permute.xlu0 %3903
      %3905 = vrot.lane.b32.xlu0 %v3805, 32
      %v3906 = vpop.permute.xlu0 %3905
      %3907 = vrot.lane.b32.xlu0 %v3806, 32
      %v3908 = vpop.permute.xlu0 %3907
      %3909 = vrot.lane.b32.xlu0 %v3807, 32
      %v3910 = vpop.permute.xlu0 %3909
      %3911 = vrot.lane.b32.xlu0 %v3808, 32
      %v3912 = vpop.permute.xlu0 %3911
      %3913 = vrot.lane.b32.xlu0 %v3809, 32
      %v3914 = vpop.permute.xlu0 %3913
      %3915 = vrot.lane.b32.xlu0 %v3810, 32
      %v3916 = vpop.permute.xlu0 %3915
      %3917 = vrot.lane.b32.xlu0 %v3811, 32
      %v3918 = vpop.permute.xlu0 %3917
      %3919 = vrot.lane.b32.xlu0 %v3812, 32
      %v3920 = vpop.permute.xlu0 %3919
      %3921 = vrot.lane.b32.xlu0 %v3813, 32
      %v3922 = vpop.permute.xlu0 %3921
      %3923 = vrot.lane.b32.xlu0 %v3814, 32
      %v3924 = vpop.permute.xlu0 %3923
      %3925 = vrot.lane.b32.xlu0 %v3815, 32
      %v3926 = vpop.permute.xlu0 %3925
      %3927 = vrot.lane.b32.xlu0 %v3816, 32
      %v3928 = vpop.permute.xlu0 %3927
      %3929 = vrot.lane.b32.xlu0 %v3817, 32
      %v3930 = vpop.permute.xlu0 %3929
      %3931 = vrot.lane.b32.xlu0 %v3818, 32
      %v3932 = vpop.permute.xlu0 %3931
      %3933 = vrot.lane.b32.xlu0 %v3819, 32
      %v3934 = vpop.permute.xlu0 %3933
      %3935 = vrot.lane.b32.xlu0 %v3820, 32
      %v3936 = vpop.permute.xlu0 %3935
      %3937 = vrot.lane.b32.xlu0 %v3821, 32
      %v3938 = vpop.permute.xlu0 %3937
      %3939 = vrot.lane.b32.xlu0 %v3822, 32
      %v3940 = vpop.permute.xlu0 %3939
      %3941 = vrot.lane.b32.xlu0 %v3823, 32
      %v3942 = vpop.permute.xlu0 %3941
      %3943 = vrot.lane.b32.xlu0 %v3824, 32
      %v3944 = vpop.permute.xlu0 %3943
      %3945 = vrot.lane.b32.xlu0 %v3825, 32
      %v3946 = vpop.permute.xlu0 %3945
      %3947 = vrot.lane.b32.xlu0 %v3826, 32
      %v3948 = vpop.permute.xlu0 %3947
      %3949 = vrot.lane.b32.xlu0 %v3827, 32
      %v3950 = vpop.permute.xlu0 %3949
      %3951 = vrot.lane.b32.xlu0 %v3828, 32
      %v3952 = vpop.permute.xlu0 %3951
      %3953 = vrot.lane.b32.xlu0 %v3829, 32
      %v3954 = vpop.permute.xlu0 %3953
      %3955 = vrot.lane.b32.xlu0 %v3830, 32
      %v3956 = vpop.permute.xlu0 %3955
      %3957 = vrot.lane.b32.xlu0 %v3831, 32
      %v3958 = vpop.permute.xlu0 %3957
      %3959 = vrot.lane.b32.xlu0 %v3832, 32
      %v3960 = vpop.permute.xlu0 %3959
      %3961 = vrot.lane.b32.xlu0 %v3833, 32
      %v3962 = vpop.permute.xlu0 %3961
      %3963 = vrot.lane.b32.xlu0 %v3834, 32
      %v3964 = vpop.permute.xlu0 %3963
      %4029 = vrot.lane.b32.xlu0 %v3835, 64
      %v4030 = vpop.permute.xlu0 %4029
      %4031 = vrot.lane.b32.xlu0 %v3836, 64
      %v4032 = vpop.permute.xlu0 %4031
      %4033 = vrot.lane.b32.xlu0 %v3837, 64
      %v4034 = vpop.permute.xlu0 %4033
      %4035 = vrot.lane.b32.xlu0 %v3838, 64
      %v4036 = vpop.permute.xlu0 %4035
      %4037 = vrot.lane.b32.xlu0 %v3839, 64
      %v4038 = vpop.permute.xlu0 %4037
      %4039 = vrot.lane.b32.xlu0 %v3840, 64
      %v4040 = vpop.permute.xlu0 %4039
      %4041 = vrot.lane.b32.xlu0 %v3841, 64
      %v4042 = vpop.permute.xlu0 %4041
      %4043 = vrot.lane.b32.xlu0 %v3842, 64
      %v4044 = vpop.permute.xlu0 %4043
      %4045 = vrot.lane.b32.xlu0 %v3843, 64
      %v4046 = vpop.permute.xlu0 %4045
      %4047 = vrot.lane.b32.xlu0 %v3844, 64
      %v4048 = vpop.permute.xlu0 %4047
      %4049 = vrot.lane.b32.xlu0 %v3845, 64
      %v4050 = vpop.permute.xlu0 %4049
      %4051 = vrot.lane.b32.xlu0 %v3846, 64
      %v4052 = vpop.permute.xlu0 %4051
      %4053 = vrot.lane.b32.xlu0 %v3847, 64
      %v4054 = vpop.permute.xlu0 %4053
      %4055 = vrot.lane.b32.xlu0 %v3848, 64
      %v4056 = vpop.permute.xlu0 %4055
      %4057 = vrot.lane.b32.xlu0 %v3849, 64
      %v4058 = vpop.permute.xlu0 %4057
      %4059 = vrot.lane.b32.xlu0 %v3850, 64
      %v4060 = vpop.permute.xlu0 %4059
      %4061 = vrot.lane.b32.xlu0 %v3851, 64
      %v4062 = vpop.permute.xlu0 %4061
      %4063 = vrot.lane.b32.xlu0 %v3852, 64
      %v4064 = vpop.permute.xlu0 %4063
      %4065 = vrot.lane.b32.xlu0 %v3853, 64
      %v4066 = vpop.permute.xlu0 %4065
      %4067 = vrot.lane.b32.xlu0 %v3854, 64
      %v4068 = vpop.permute.xlu0 %4067
      %4069 = vrot.lane.b32.xlu0 %v3855, 64
      %v4070 = vpop.permute.xlu0 %4069
      %4071 = vrot.lane.b32.xlu0 %v3856, 64
      %v4072 = vpop.permute.xlu0 %4071
      %4073 = vrot.lane.b32.xlu0 %v3857, 64
      %v4074 = vpop.permute.xlu0 %4073
      %4075 = vrot.lane.b32.xlu0 %v3858, 64
      %v4076 = vpop.permute.xlu0 %4075
      %4077 = vrot.lane.b32.xlu0 %v3859, 64
      %v4078 = vpop.permute.xlu0 %4077
      %4079 = vrot.lane.b32.xlu0 %v3860, 64
      %v4080 = vpop.permute.xlu0 %4079
      %4081 = vrot.lane.b32.xlu0 %v3861, 64
      %v4082 = vpop.permute.xlu0 %4081
      %4083 = vrot.lane.b32.xlu0 %v3862, 64
      %v4084 = vpop.permute.xlu0 %4083
      %4085 = vrot.lane.b32.xlu0 %v3863, 64
      %v4086 = vpop.permute.xlu0 %4085
      %4087 = vrot.lane.b32.xlu0 %v3864, 64
      %v4088 = vpop.permute.xlu0 %4087
      %4089 = vrot.lane.b32.xlu0 %v3865, 64
      %v4090 = vpop.permute.xlu0 %4089
      %4091 = vrot.lane.b32.xlu0 %v3866, 64
      %v4092 = vpop.permute.xlu0 %4091
      %4157 = vrot.lane.b32.xlu0 %v3773, 96
      %v4158 = vpop.permute.xlu0 %4157
      %4159 = vrot.lane.b32.xlu0 %v3774, 96
      %v4160 = vpop.permute.xlu0 %4159
      %4161 = vrot.lane.b32.xlu0 %v3775, 96
      %v4162 = vpop.permute.xlu0 %4161
      %4163 = vrot.lane.b32.xlu0 %v3776, 96
      %v4164 = vpop.permute.xlu0 %4163
      %4165 = vrot.lane.b32.xlu0 %v3777, 96
      %v4166 = vpop.permute.xlu0 %4165
      %4167 = vrot.lane.b32.xlu0 %v3778, 96
      %v4168 = vpop.permute.xlu0 %4167
      %4169 = vrot.lane.b32.xlu0 %v3779, 96
      %v4170 = vpop.permute.xlu0 %4169
      %4171 = vrot.lane.b32.xlu0 %v3780, 96
      %v4172 = vpop.permute.xlu0 %4171
      %4173 = vrot.lane.b32.xlu0 %v3781, 96
      %v4174 = vpop.permute.xlu0 %4173
      %4175 = vrot.lane.b32.xlu0 %v3782, 96
      %v4176 = vpop.permute.xlu0 %4175
      %4177 = vrot.lane.b32.xlu0 %v3783, 96
      %v4178 = vpop.permute.xlu0 %4177
      %4179 = vrot.lane.b32.xlu0 %v3784, 96
      %v4180 = vpop.permute.xlu0 %4179
      %4181 = vrot.lane.b32.xlu0 %v3785, 96
      %v4182 = vpop.permute.xlu0 %4181
      %4183 = vrot.lane.b32.xlu0 %v3786, 96
      %v4184 = vpop.permute.xlu0 %4183
      %4185 = vrot.lane.b32.xlu0 %v3787, 96
      %v4186 = vpop.permute.xlu0 %4185
      %4187 = vrot.lane.b32.xlu0 %v3788, 96
      %v4188 = vpop.permute.xlu0 %4187
      %4189 = vrot.lane.b32.xlu0 %v3789, 96
      %v4190 = vpop.permute.xlu0 %4189
      %4191 = vrot.lane.b32.xlu0 %v3790, 96
      %v4192 = vpop.permute.xlu0 %4191
      %4193 = vrot.lane.b32.xlu0 %v3791, 96
      %v4194 = vpop.permute.xlu0 %4193
      %4195 = vrot.lane.b32.xlu0 %v3792, 96
      %v4196 = vpop.permute.xlu0 %4195
      %4197 = vrot.lane.b32.xlu0 %v3793, 96
      %v4198 = vpop.permute.xlu0 %4197
      %4199 = vrot.lane.b32.xlu0 %v3794, 96
      %v4200 = vpop.permute.xlu0 %4199
      %4201 = vrot.lane.b32.xlu0 %v3795, 96
      %v4202 = vpop.permute.xlu0 %4201
      %4203 = vrot.lane.b32.xlu0 %v3796, 96
      %v4204 = vpop.permute.xlu0 %4203
      %4205 = vrot.lane.b32.xlu0 %v3797, 96
      %v4206 = vpop.permute.xlu0 %4205
      %4207 = vrot.lane.b32.xlu0 %v3798, 96
      %v4208 = vpop.permute.xlu0 %4207
      %4209 = vrot.lane.b32.xlu0 %v3799, 96
      %v4210 = vpop.permute.xlu0 %4209
      %4211 = vrot.lane.b32.xlu0 %v3800, 96
      %v4212 = vpop.permute.xlu0 %4211
      %4213 = vrot.lane.b32.xlu0 %v3801, 96
      %v4214 = vpop.permute.xlu0 %4213
      %4215 = vrot.lane.b32.xlu0 %v3802, 96
      %v4216 = vpop.permute.xlu0 %4215
      %4217 = vrot.lane.b32.xlu0 %v3867, 96
      %v4218 = vpop.permute.xlu0 %4217
      %4219 = vrot.lane.b32.xlu0 %v3868, 96
      %v4220 = vpop.permute.xlu0 %4219
      %v4253 = vsel %vm2968, %v3771, %v3902
      %v4254 = vsel %vm2968, %v3772, %v3904
      %v4255 = vsel %vm2968, %v3773, %v3906
      %v4256 = vsel %vm2968, %v3774, %v3908
      %v4257 = vsel %vm2968, %v3775, %v3910
      %v4258 = vsel %vm2968, %v3776, %v3912
      %v4259 = vsel %vm2968, %v3777, %v3914
      %v4260 = vsel %vm2968, %v3778, %v3916
      %v4261 = vsel %vm2968, %v3779, %v3918
      %v4262 = vsel %vm2968, %v3780, %v3920
      %v4263 = vsel %vm2968, %v3781, %v3922
      %v4264 = vsel %vm2968, %v3782, %v3924
      %v4265 = vsel %vm2968, %v3783, %v3926
      %v4266 = vsel %vm2968, %v3784, %v3928
      %v4267 = vsel %vm2968, %v3785, %v3930
      %v4268 = vsel %vm2968, %v3786, %v3932
      %v4269 = vsel %vm2968, %v3787, %v3934
      %v4270 = vsel %vm2968, %v3788, %v3936
      %v4271 = vsel %vm2968, %v3789, %v3938
      %v4272 = vsel %vm2968, %v3790, %v3940
      %v4273 = vsel %vm2968, %v3791, %v3942
      %v4274 = vsel %vm2968, %v3792, %v3944
      %v4275 = vsel %vm2968, %v3793, %v3946
      %v4276 = vsel %vm2968, %v3794, %v3948
      %v4277 = vsel %vm2968, %v3795, %v3950
      %v4278 = vsel %vm2968, %v3796, %v3952
      %v4279 = vsel %vm2968, %v3797, %v3954
      %v4280 = vsel %vm2968, %v3798, %v3956
      %v4281 = vsel %vm2968, %v3799, %v3958
      %v4282 = vsel %vm2968, %v3800, %v3960
      %v4283 = vsel %vm2968, %v3801, %v3962
      %v4284 = vsel %vm2968, %v3802, %v3964
      %vm4285 = vcmask 523264
      %v4286 = vsel %vm4285, %v4253, %v4030
      %v4287 = vsel %vm4285, %v4254, %v4032
      %v4288 = vsel %vm4285, %v4255, %v4034
      %v4289 = vsel %vm4285, %v4256, %v4036
      %v4290 = vsel %vm4285, %v4257, %v4038
      %v4291 = vsel %vm4285, %v4258, %v4040
      %v4292 = vsel %vm4285, %v4259, %v4042
      %v4293 = vsel %vm4285, %v4260, %v4044
      %v4294 = vsel %vm4285, %v4261, %v4046
      %v4295 = vsel %vm4285, %v4262, %v4048
      %v4296 = vsel %vm4285, %v4263, %v4050
      %v4297 = vsel %vm4285, %v4264, %v4052
      %v4298 = vsel %vm4285, %v4265, %v4054
      %v4299 = vsel %vm4285, %v4266, %v4056
      %v4300 = vsel %vm4285, %v4267, %v4058
      %v4301 = vsel %vm4285, %v4268, %v4060
      %v4302 = vsel %vm4285, %v4269, %v4062
      %v4303 = vsel %vm4285, %v4270, %v4064
      %v4304 = vsel %vm4285, %v4271, %v4066
      %v4305 = vsel %vm4285, %v4272, %v4068
      %v4306 = vsel %vm4285, %v4273, %v4070
      %v4307 = vsel %vm4285, %v4274, %v4072
      %v4308 = vsel %vm4285, %v4275, %v4074
      %v4309 = vsel %vm4285, %v4276, %v4076
      %v4310 = vsel %vm4285, %v4277, %v4078
      %v4311 = vsel %vm4285, %v4278, %v4080
      %v4312 = vsel %vm4285, %v4279, %v4082
      %v4313 = vsel %vm4285, %v4280, %v4084
      %v4314 = vsel %vm4285, %v4281, %v4086
      %v4315 = vsel %vm4285, %v4282, %v4088
      %v4316 = vsel %vm4285, %v4283, %v4090
      %v4317 = vsel %vm4285, %v4284, %v4092
      %vm4318 = vcmask 785408
      %v4319 = vsel %vm4318, %v4286, %v4158
      %v4320 = vsel %vm4318, %v4287, %v4160
      %v4321 = vsel %vm4318, %v4288, %v4162
      %v4322 = vsel %vm4318, %v4289, %v4164
      %v4323 = vsel %vm4318, %v4290, %v4166
      %v4324 = vsel %vm4318, %v4291, %v4168
      %v4325 = vsel %vm4318, %v4292, %v4170
      %v4326 = vsel %vm4318, %v4293, %v4172
      %v4327 = vsel %vm4318, %v4294, %v4174
      %v4328 = vsel %vm4318, %v4295, %v4176
      %v4329 = vsel %vm4318, %v4296, %v4178
      %v4330 = vsel %vm4318, %v4297, %v4180
      %v4331 = vsel %vm4318, %v4298, %v4182
      %v4332 = vsel %vm4318, %v4299, %v4184
      %v4333 = vsel %vm4318, %v4300, %v4186
      %v4334 = vsel %vm4318, %v4301, %v4188
      %v4335 = vsel %vm4318, %v4302, %v4190
      %v4336 = vsel %vm4318, %v4303, %v4192
      %v4337 = vsel %vm4318, %v4304, %v4194
      %v4338 = vsel %vm4318, %v4305, %v4196
      %v4339 = vsel %vm4318, %v4306, %v4198
      %v4340 = vsel %vm4318, %v4307, %v4200
      %v4341 = vsel %vm4318, %v4308, %v4202
      %v4342 = vsel %vm4318, %v4309, %v4204
      %v4343 = vsel %vm4318, %v4310, %v4206
      %v4344 = vsel %vm4318, %v4311, %v4208
      %v4345 = vsel %vm4318, %v4312, %v4210
      %v4346 = vsel %vm4318, %v4313, %v4212
      %v4347 = vsel %vm4318, %v4314, %v4214
      %v4348 = vsel %vm4318, %v4315, %v4216
      %v4349 = vsel %vm4318, %v4316, %v4218
      %v4350 = vsel %vm4318, %v4317, %v4220
      %v4351 = vpack.c.bf16 %v4320, %v4319
      %v4352 = vpack.c.bf16 %v4322, %v4321
      %v4353 = vpack.c.bf16 %v4324, %v4323
      %v4354 = vpack.c.bf16 %v4326, %v4325
      %v4355 = vpack.c.bf16 %v4328, %v4327
      %v4356 = vpack.c.bf16 %v4330, %v4329
      %v4357 = vpack.c.bf16 %v4332, %v4331
      %v4358 = vpack.c.bf16 %v4334, %v4333
      %v4359 = vpack.c.bf16 %v4336, %v4335
      %v4360 = vpack.c.bf16 %v4338, %v4337
      %v4361 = vpack.c.bf16 %v4340, %v4339
      %v4362 = vpack.c.bf16 %v4342, %v4341
      %v4363 = vpack.c.bf16 %v4344, %v4343
      %v4364 = vpack.c.bf16 %v4346, %v4345
      %v4365 = vpack.c.bf16 %v4348, %v4347
      %v4366 = vpack.c.bf16 %v4350, %v4349
      %v4367 = vld [vmem:[%s6] sm:$0xf]
      %v4368 = vld [vmem:[%s6 + $0x4] sm:$0xf]
      %v4369 = vld [vmem:[%s6 + $0x8] sm:$0xf]
      %v4370 = vld [vmem:[%s6 + $0xc] sm:$0xf]
      %v4371 = vld [vmem:[%s6 + $0x10] sm:$0xf]
      %v4372 = vld [vmem:[%s6 + $0x14] sm:$0xf]
      %v4373 = vld [vmem:[%s6 + $0x18] sm:$0xf]
      %v4374 = vld [vmem:[%s6 + $0x1c] sm:$0xf]
      %v4375 = vld [vmem:[%s6 + $0x20] sm:$0xf]
      %v4376 = vld [vmem:[%s6 + $0x24] sm:$0xf]
      %v4377 = vld [vmem:[%s6 + $0x28] sm:$0xf]
      %v4378 = vld [vmem:[%s6 + $0x2c] sm:$0xf]
      %v4379 = vld [vmem:[%s6 + $0x30] sm:$0xf]
      %v4380 = vld [vmem:[%s6 + $0x34] sm:$0xf]
      %v4381 = vld [vmem:[%s6 + $0x38] sm:$0xf]
      %v4382 = vld [vmem:[%s6 + $0x3c] sm:$0xf]
      %v4383 = vld [vmem:[#allocation3 + $0x110] sm:$0xff]
      %v4384 = vld [vmem:[#allocation3 + $0x118] sm:$0xff]
      %v4385 = vld [vmem:[#allocation3 + $0x111] sm:$0xff]
      %v4386 = vld [vmem:[#allocation3 + $0x119] sm:$0xff]
      %v4387 = vld [vmem:[#allocation3 + $0x11f] sm:$0xff]
      %v4388 = vld [vmem:[#allocation3 + $0x127] sm:$0xff]
      %v4389 = vld [vmem:[#allocation3 + $0x120] sm:$0xff]
      %v4390 = vld [vmem:[#allocation3 + $0x128] sm:$0xff]
      %4393 = vrot.lane.b32.xlu0 %v3837, 32
      %v4394 = vpop.permute.xlu0 %4393
      %4395 = vrot.lane.b32.xlu0 %v3838, 32
      %v4396 = vpop.permute.xlu0 %4395
      %4397 = vrot.lane.b32.xlu0 %v3839, 32
      %v4398 = vpop.permute.xlu0 %4397
      %4399 = vrot.lane.b32.xlu0 %v3840, 32
      %v4400 = vpop.permute.xlu0 %4399
      %4401 = vrot.lane.b32.xlu0 %v3841, 32
      %v4402 = vpop.permute.xlu0 %4401
      %4403 = vrot.lane.b32.xlu0 %v3842, 32
      %v4404 = vpop.permute.xlu0 %4403
      %4405 = vrot.lane.b32.xlu0 %v3843, 32
      %v4406 = vpop.permute.xlu0 %4405
      %4407 = vrot.lane.b32.xlu0 %v3844, 32
      %v4408 = vpop.permute.xlu0 %4407
      %4409 = vrot.lane.b32.xlu0 %v3845, 32
      %v4410 = vpop.permute.xlu0 %4409
      %4411 = vrot.lane.b32.xlu0 %v3846, 32
      %v4412 = vpop.permute.xlu0 %4411
      %4413 = vrot.lane.b32.xlu0 %v3847, 32
      %v4414 = vpop.permute.xlu0 %4413
      %4415 = vrot.lane.b32.xlu0 %v3848, 32
      %v4416 = vpop.permute.xlu0 %4415
      %4417 = vrot.lane.b32.xlu0 %v3849, 32
      %v4418 = vpop.permute.xlu0 %4417
      %4419 = vrot.lane.b32.xlu0 %v3850, 32
      %v4420 = vpop.permute.xlu0 %4419
      %4421 = vrot.lane.b32.xlu0 %v3851, 32
      %v4422 = vpop.permute.xlu0 %4421
      %4423 = vrot.lane.b32.xlu0 %v3852, 32
      %v4424 = vpop.permute.xlu0 %4423
      %4425 = vrot.lane.b32.xlu0 %v3853, 32
      %v4426 = vpop.permute.xlu0 %4425
      %4427 = vrot.lane.b32.xlu0 %v3854, 32
      %v4428 = vpop.permute.xlu0 %4427
      %4429 = vrot.lane.b32.xlu0 %v3855, 32
      %v4430 = vpop.permute.xlu0 %4429
      %4431 = vrot.lane.b32.xlu0 %v3856, 32
      %v4432 = vpop.permute.xlu0 %4431
      %4433 = vrot.lane.b32.xlu0 %v3857, 32
      %v4434 = vpop.permute.xlu0 %4433
      %4435 = vrot.lane.b32.xlu0 %v3858, 32
      %v4436 = vpop.permute.xlu0 %4435
      %4437 = vrot.lane.b32.xlu0 %v3859, 32
      %v4438 = vpop.permute.xlu0 %4437
      %4439 = vrot.lane.b32.xlu0 %v3860, 32
      %v4440 = vpop.permute.xlu0 %4439
      %4441 = vrot.lane.b32.xlu0 %v3861, 32
      %v4442 = vpop.permute.xlu0 %4441
      %4443 = vrot.lane.b32.xlu0 %v3862, 32
      %v4444 = vpop.permute.xlu0 %4443
      %4445 = vrot.lane.b32.xlu0 %v3863, 32
      %v4446 = vpop.permute.xlu0 %4445
      %4447 = vrot.lane.b32.xlu0 %v3864, 32
      %v4448 = vpop.permute.xlu0 %4447
      %4449 = vrot.lane.b32.xlu0 %v3865, 32
      %v4450 = vpop.permute.xlu0 %4449
      %4451 = vrot.lane.b32.xlu0 %v3866, 32
      %v4452 = vpop.permute.xlu0 %4451
      %4453 = vrot.lane.b32.xlu0 %v4385, 32
      %v4454 = vpop.permute.xlu0 %4453
      %4455 = vrot.lane.b32.xlu0 %v4386, 32
      %v4456 = vpop.permute.xlu0 %4455
      %4491 = vrot.lane.b32.xlu0 %v3775, 64
      %v4492 = vpop.permute.xlu0 %4491
      %4493 = vrot.lane.b32.xlu0 %v3776, 64
      %v4494 = vpop.permute.xlu0 %4493
      %4495 = vrot.lane.b32.xlu0 %v3777, 64
      %v4496 = vpop.permute.xlu0 %4495
      %4497 = vrot.lane.b32.xlu0 %v3778, 64
      %v4498 = vpop.permute.xlu0 %4497
      %4499 = vrot.lane.b32.xlu0 %v3779, 64
      %v4500 = vpop.permute.xlu0 %4499
      %4501 = vrot.lane.b32.xlu0 %v3780, 64
      %v4502 = vpop.permute.xlu0 %4501
      %4503 = vrot.lane.b32.xlu0 %v3781, 64
      %v4504 = vpop.permute.xlu0 %4503
      %4505 = vrot.lane.b32.xlu0 %v3782, 64
      %v4506 = vpop.permute.xlu0 %4505
      %4507 = vrot.lane.b32.xlu0 %v3783, 64
      %v4508 = vpop.permute.xlu0 %4507
      %4509 = vrot.lane.b32.xlu0 %v3784, 64
      %v4510 = vpop.permute.xlu0 %4509
      %4511 = vrot.lane.b32.xlu0 %v3785, 64
      %v4512 = vpop.permute.xlu0 %4511
      %4513 = vrot.lane.b32.xlu0 %v3786, 64
      %v4514 = vpop.permute.xlu0 %4513
      %4515 = vrot.lane.b32.xlu0 %v3787, 64
      %v4516 = vpop.permute.xlu0 %4515
      %4517 = vrot.lane.b32.xlu0 %v3788, 64
      %v4518 = vpop.permute.xlu0 %4517
      %4519 = vrot.lane.b32.xlu0 %v3789, 64
      %v4520 = vpop.permute.xlu0 %4519
      %4521 = vrot.lane.b32.xlu0 %v3790, 64
      %v4522 = vpop.permute.xlu0 %4521
      %4523 = vrot.lane.b32.xlu0 %v3791, 64
      %v4524 = vpop.permute.xlu0 %4523
      %4525 = vrot.lane.b32.xlu0 %v3792, 64
      %v4526 = vpop.permute.xlu0 %4525
      %4527 = vrot.lane.b32.xlu0 %v3793, 64
      %v4528 = vpop.permute.xlu0 %4527
      %4529 = vrot.lane.b32.xlu0 %v3794, 64
      %v4530 = vpop.permute.xlu0 %4529
      %4531 = vrot.lane.b32.xlu0 %v3795, 64
      %v4532 = vpop.permute.xlu0 %4531
      %4533 = vrot.lane.b32.xlu0 %v3796, 64
      %v4534 = vpop.permute.xlu0 %4533
      %4535 = vrot.lane.b32.xlu0 %v3797, 64
      %v4536 = vpop.permute.xlu0 %4535
      %4537 = vrot.lane.b32.xlu0 %v3798, 64
      %v4538 = vpop.permute.xlu0 %4537
      %4539 = vrot.lane.b32.xlu0 %v3799, 64
      %v4540 = vpop.permute.xlu0 %4539
      %4541 = vrot.lane.b32.xlu0 %v3800, 64
      %v4542 = vpop.permute.xlu0 %4541
      %4543 = vrot.lane.b32.xlu0 %v3801, 64
      %v4544 = vpop.permute.xlu0 %4543
      %4545 = vrot.lane.b32.xlu0 %v3802, 64
      %v4546 = vpop.permute.xlu0 %4545
      %4547 = vrot.lane.b32.xlu0 %v3867, 64
      %v4548 = vpop.permute.xlu0 %4547
      %4549 = vrot.lane.b32.xlu0 %v3868, 64
      %v4550 = vpop.permute.xlu0 %4549
      %4551 = vrot.lane.b32.xlu0 %v4387, 64
      %v4552 = vpop.permute.xlu0 %4551
      %4553 = vrot.lane.b32.xlu0 %v4388, 64
      %v4554 = vpop.permute.xlu0 %4553
      %4591 = vrot.lane.b32.xlu0 %v3807, 96
      %v4592 = vpop.permute.xlu0 %4591
      %4593 = vrot.lane.b32.xlu0 %v3808, 96
      %v4594 = vpop.permute.xlu0 %4593
      %4595 = vrot.lane.b32.xlu0 %v3809, 96
      %v4596 = vpop.permute.xlu0 %4595
      %4597 = vrot.lane.b32.xlu0 %v3810, 96
      %v4598 = vpop.permute.xlu0 %4597
      %4599 = vrot.lane.b32.xlu0 %v3811, 96
      %v4600 = vpop.permute.xlu0 %4599
      %4601 = vrot.lane.b32.xlu0 %v3812, 96
      %v4602 = vpop.permute.xlu0 %4601
      %4603 = vrot.lane.b32.xlu0 %v3813, 96
      %v4604 = vpop.permute.xlu0 %4603
      %4605 = vrot.lane.b32.xlu0 %v3814, 96
      %v4606 = vpop.permute.xlu0 %4605
      %4607 = vrot.lane.b32.xlu0 %v3815, 96
      %v4608 = vpop.permute.xlu0 %4607
      %4609 = vrot.lane.b32.xlu0 %v3816, 96
      %v4610 = vpop.permute.xlu0 %4609
      %4611 = vrot.lane.b32.xlu0 %v3817, 96
      %v4612 = vpop.permute.xlu0 %4611
      %4613 = vrot.lane.b32.xlu0 %v3818, 96
      %v4614 = vpop.permute.xlu0 %4613
      %4615 = vrot.lane.b32.xlu0 %v3819, 96
      %v4616 = vpop.permute.xlu0 %4615
      %4617 = vrot.lane.b32.xlu0 %v3820, 96
      %v4618 = vpop.permute.xlu0 %4617
      %4619 = vrot.lane.b32.xlu0 %v3821, 96
      %v4620 = vpop.permute.xlu0 %4619
      %4621 = vrot.lane.b32.xlu0 %v3822, 96
      %v4622 = vpop.permute.xlu0 %4621
      %4623 = vrot.lane.b32.xlu0 %v3823, 96
      %v4624 = vpop.permute.xlu0 %4623
      %4625 = vrot.lane.b32.xlu0 %v3824, 96
      %v4626 = vpop.permute.xlu0 %4625
      %4627 = vrot.lane.b32.xlu0 %v3825, 96
      %v4628 = vpop.permute.xlu0 %4627
      %4629 = vrot.lane.b32.xlu0 %v3826, 96
      %v4630 = vpop.permute.xlu0 %4629
      %4631 = vrot.lane.b32.xlu0 %v3827, 96
      %v4632 = vpop.permute.xlu0 %4631
      %4633 = vrot.lane.b32.xlu0 %v3828, 96
      %v4634 = vpop.permute.xlu0 %4633
      %4635 = vrot.lane.b32.xlu0 %v3829, 96
      %v4636 = vpop.permute.xlu0 %4635
      %4637 = vrot.lane.b32.xlu0 %v3830, 96
      %v4638 = vpop.permute.xlu0 %4637
      %4639 = vrot.lane.b32.xlu0 %v3831, 96
      %v4640 = vpop.permute.xlu0 %4639
      %4641 = vrot.lane.b32.xlu0 %v3832, 96
      %v4642 = vpop.permute.xlu0 %4641
      %4643 = vrot.lane.b32.xlu0 %v3833, 96
      %v4644 = vpop.permute.xlu0 %4643
      %4645 = vrot.lane.b32.xlu0 %v3834, 96
      %v4646 = vpop.permute.xlu0 %4645
      %4647 = vrot.lane.b32.xlu0 %v4383, 96
      %v4648 = vpop.permute.xlu0 %4647
      %4649 = vrot.lane.b32.xlu0 %v4384, 96
      %v4650 = vpop.permute.xlu0 %4649
      %4651 = vrot.lane.b32.xlu0 %v4389, 96
      %v4652 = vpop.permute.xlu0 %4651
      %4653 = vrot.lane.b32.xlu0 %v4390, 96
      %v4654 = vpop.permute.xlu0 %4653
      %v4687 = vsel %vm2968, %v3805, %v4394
      %v4688 = vsel %vm2968, %v3806, %v4396
      %v4689 = vsel %vm2968, %v3807, %v4398
      %v4690 = vsel %vm2968, %v3808, %v4400
      %v4691 = vsel %vm2968, %v3809, %v4402
      %v4692 = vsel %vm2968, %v3810, %v4404
      %v4693 = vsel %vm2968, %v3811, %v4406
      %v4694 = vsel %vm2968, %v3812, %v4408
      %v4695 = vsel %vm2968, %v3813, %v4410
      %v4696 = vsel %vm2968, %v3814, %v4412
      %v4697 = vsel %vm2968, %v3815, %v4414
      %v4698 = vsel %vm2968, %v3816, %v4416
      %v4699 = vsel %vm2968, %v3817, %v4418
      %v4700 = vsel %vm2968, %v3818, %v4420
      %v4701 = vsel %vm2968, %v3819, %v4422
      %v4702 = vsel %vm2968, %v3820, %v4424
      %v4703 = vsel %vm2968, %v3821, %v4426
      %v4704 = vsel %vm2968, %v3822, %v4428
      %v4705 = vsel %vm2968, %v3823, %v4430
      %v4706 = vsel %vm2968, %v3824, %v4432
      %v4707 = vsel %vm2968, %v3825, %v4434
      %v4708 = vsel %vm2968, %v3826, %v4436
      %v4709 = vsel %vm2968, %v3827, %v4438
      %v4710 = vsel %vm2968, %v3828, %v4440
      %v4711 = vsel %vm2968, %v3829, %v4442
      %v4712 = vsel %vm2968, %v3830, %v4444
      %v4713 = vsel %vm2968, %v3831, %v4446
      %v4714 = vsel %vm2968, %v3832, %v4448
      %v4715 = vsel %vm2968, %v3833, %v4450
      %v4716 = vsel %vm2968, %v3834, %v4452
      %v4717 = vsel %vm2968, %v4383, %v4454
      %v4718 = vsel %vm2968, %v4384, %v4456
      %v4719 = vsel %vm4285, %v4687, %v4492
      %v4720 = vsel %vm4285, %v4688, %v4494
      %v4721 = vsel %vm4285, %v4689, %v4496
      %v4722 = vsel %vm4285, %v4690, %v4498
      %v4723 = vsel %vm4285, %v4691, %v4500
      %v4724 = vsel %vm4285, %v4692, %v4502
      %v4725 = vsel %vm4285, %v4693, %v4504
      %v4726 = vsel %vm4285, %v4694, %v4506
      %v4727 = vsel %vm4285, %v4695, %v4508
      %v4728 = vsel %vm4285, %v4696, %v4510
      %v4729 = vsel %vm4285, %v4697, %v4512
      %v4730 = vsel %vm4285, %v4698, %v4514
      %v4731 = vsel %vm4285, %v4699, %v4516
      %v4732 = vsel %vm4285, %v4700, %v4518
      %v4733 = vsel %vm4285, %v4701, %v4520
      %v4734 = vsel %vm4285, %v4702, %v4522
      %v4735 = vsel %vm4285, %v4703, %v4524
      %v4736 = vsel %vm4285, %v4704, %v4526
      %v4737 = vsel %vm4285, %v4705, %v4528
      %v4738 = vsel %vm4285, %v4706, %v4530
      %v4739 = vsel %vm4285, %v4707, %v4532
      %v4740 = vsel %vm4285, %v4708, %v4534
      %v4741 = vsel %vm4285, %v4709, %v4536
      %v4742 = vsel %vm4285, %v4710, %v4538
      %v4743 = vsel %vm4285, %v4711, %v4540
      %v4744 = vsel %vm4285, %v4712, %v4542
      %v4745 = vsel %vm4285, %v4713, %v4544
      %v4746 = vsel %vm4285, %v4714, %v4546
      %v4747 = vsel %vm4285, %v4715, %v4548
      %v4748 = vsel %vm4285, %v4716, %v4550
      %v4749 = vsel %vm4285, %v4717, %v4552
      %v4750 = vsel %vm4285, %v4718, %v4554
      %v4751 = vsel %vm4318, %v4719, %v4592
      %v4752 = vsel %vm4318, %v4720, %v4594
      %v4753 = vsel %vm4318, %v4721, %v4596
      %v4754 = vsel %vm4318, %v4722, %v4598
      %v4755 = vsel %vm4318, %v4723, %v4600
      %v4756 = vsel %vm4318, %v4724, %v4602
      %v4757 = vsel %vm4318, %v4725, %v4604
      %v4758 = vsel %vm4318, %v4726, %v4606
      %v4759 = vsel %vm4318, %v4727, %v4608
      %v4760 = vsel %vm4318, %v4728, %v4610
      %v4761 = vsel %vm4318, %v4729, %v4612
      %v4762 = vsel %vm4318, %v4730, %v4614
      %v4763 = vsel %vm4318, %v4731, %v4616
      %v4764 = vsel %vm4318, %v4732, %v4618
      %v4765 = vsel %vm4318, %v4733, %v4620
      %v4766 = vsel %vm4318, %v4734, %v4622
      %v4767 = vsel %vm4318, %v4735, %v4624
      %v4768 = vsel %vm4318, %v4736, %v4626
      %v4769 = vsel %vm4318, %v4737, %v4628
      %v4770 = vsel %vm4318, %v4738, %v4630
      %v4771 = vsel %vm4318, %v4739, %v4632
      %v4772 = vsel %vm4318, %v4740, %v4634
      %v4773 = vsel %vm4318, %v4741, %v4636
      %v4774 = vsel %vm4318, %v4742, %v4638
      %v4775 = vsel %vm4318, %v4743, %v4640
      %v4776 = vsel %vm4318, %v4744, %v4642
      %v4777 = vsel %vm4318, %v4745, %v4644
      %v4778 = vsel %vm4318, %v4746, %v4646
      %v4779 = vsel %vm4318, %v4747, %v4648
      %v4780 = vsel %vm4318, %v4748, %v4650
      %v4781 = vsel %vm4318, %v4749, %v4652
      %v4782 = vsel %vm4318, %v4750, %v4654
      %v4783 = vpack.c.bf16 %v4752, %v4751
      %v4784 = vpack.c.bf16 %v4754, %v4753
      %v4785 = vpack.c.bf16 %v4756, %v4755
      %v4786 = vpack.c.bf16 %v4758, %v4757
      %v4787 = vpack.c.bf16 %v4760, %v4759
      %v4788 = vpack.c.bf16 %v4762, %v4761
      %v4789 = vpack.c.bf16 %v4764, %v4763
      %v4790 = vpack.c.bf16 %v4766, %v4765
      %v4791 = vpack.c.bf16 %v4768, %v4767
      %v4792 = vpack.c.bf16 %v4770, %v4769
      %v4793 = vpack.c.bf16 %v4772, %v4771
      %v4794 = vpack.c.bf16 %v4774, %v4773
      %v4795 = vpack.c.bf16 %v4776, %v4775
      %v4796 = vpack.c.bf16 %v4778, %v4777
      %v4797 = vpack.c.bf16 %v4780, %v4779
      %v4798 = vpack.c.bf16 %v4782, %v4781
      %s4799 = scalar_lea.vmem %s6, 64
      %v4800 = vld [vmem:[%s4799] sm:$0xf]
      %v4801 = vld [vmem:[%s4799 + $0x4] sm:$0xf]
      %v4802 = vld [vmem:[%s4799 + $0x8] sm:$0xf]
      %v4803 = vld [vmem:[%s4799 + $0xc] sm:$0xf]
      %v4804 = vld [vmem:[%s4799 + $0x10] sm:$0xf]
      %v4805 = vld [vmem:[%s4799 + $0x14] sm:$0xf]
      %v4806 = vld [vmem:[%s4799 + $0x18] sm:$0xf]
      %v4807 = vld [vmem:[%s4799 + $0x1c] sm:$0xf]
      %v4808 = vld [vmem:[%s4799 + $0x20] sm:$0xf]
      %v4809 = vld [vmem:[%s4799 + $0x24] sm:$0xf]
      %v4810 = vld [vmem:[%s4799 + $0x28] sm:$0xf]
      %v4811 = vld [vmem:[%s4799 + $0x2c] sm:$0xf]
      %v4812 = vld [vmem:[%s4799 + $0x30] sm:$0xf]
      %v4813 = vld [vmem:[%s4799 + $0x34] sm:$0xf]
      %v4814 = vld [vmem:[%s4799 + $0x38] sm:$0xf]
      %v4815 = vld [vmem:[%s4799 + $0x3c] sm:$0xf]
      %v4832 = vunpack.c.l.b16 %v4800
      %v4833 = vunpack.c.l.b16 %v4801
      %v4834 = vunpack.c.l.b16 %v4802
      %v4835 = vunpack.c.l.b16 %v4803
      %v4836 = vunpack.c.l.b16 %v4804
      %v4837 = vunpack.c.l.b16 %v4805
      %v4838 = vunpack.c.l.b16 %v4806
      %v4839 = vunpack.c.l.b16 %v4807
      %v4840 = vunpack.c.l.b16 %v4808
      %v4841 = vunpack.c.l.b16 %v4809
      %v4842 = vunpack.c.l.b16 %v4810
      %v4843 = vunpack.c.l.b16 %v4811
      %v4844 = vunpack.c.l.b16 %v4812
      %v4845 = vunpack.c.l.b16 %v4813
      %v4846 = vunpack.c.l.b16 %v4814
      %v4847 = vunpack.c.l.b16 %v4815
      %v4848 = vpack.c.b16 %v4833, %v4832
      %v4849 = vpack.c.b16 %v4835, %v4834
      %v4850 = vpack.c.b16 %v4837, %v4836
      %v4851 = vpack.c.b16 %v4839, %v4838
      %v4852 = vpack.c.b16 %v4841, %v4840
      %v4853 = vpack.c.b16 %v4843, %v4842
      %v4854 = vpack.c.b16 %v4845, %v4844
      %v4855 = vpack.c.b16 %v4847, %v4846
      %4864 = vmatprep.subr.bf16.mxu0 0
      %4865 = vmatpush1.bf16.msra.mxu0 %v4855
      %4866 = vmatprep.subr.bf16.mxu0 0
      %4867 = vmatpush1.bf16.msra.mxu0 %v4854
      %4868 = vmatprep.subr.bf16.mxu0 0
      %4869 = vmatpush1.bf16.msra.mxu0 %v4853
      %4870 = vmatprep.subr.bf16.mxu0 0
      %4871 = vmatpush1.bf16.msra.mxu0 %v4852
      %4872 = vmatprep.subr.bf16.mxu0 0
      %4873 = vmatpush1.bf16.msra.mxu0 %v4851
      %4874 = vmatprep.subr.bf16.mxu0 0
      %4875 = vmatpush1.bf16.msra.mxu0 %v4850
      %4876 = vmatprep.subr.bf16.mxu0 0
      %4877 = vmatpush1.bf16.msra.mxu0 %v4849
      %4878 = vmatprep.subr.bf16.mxu0 0
      %4879 = vmatpush1.bf16.msra.mxu0 %v4848
      %4880 = vmatprep.subr.bf16.mxu0 0
      %4881 = vmatpush2.bf16.msra.mxu0 0
      %4882 = vmatprep.subr.bf16.mxu0 0
      %4883 = vmatpush2.bf16.msra.mxu0 0
      %4884 = vmatprep.subr.bf16.mxu0 0
      %4885 = vmatpush2.bf16.msra.mxu0 0
      %4886 = vmatprep.subr.bf16.mxu0 0
      %4887 = vmatpush2.bf16.msra.mxu0 0
      %4888 = vmatprep.subr.bf16.mxu0 0
      %4889 = vmatpush2.bf16.msra.mxu0 0
      %4890 = vmatprep.subr.bf16.mxu0 0
      %4891 = vmatpush2.bf16.msra.mxu0 0
      %4892 = vmatprep.subr.bf16.mxu0 0
      %4893 = vmatpush2.bf16.msra.mxu0 0
      %4894 = vmatprep.subr.bf16.mxu0 0
      %4895 = vmatpush2.bf16.msra.mxu0 0
      %4896 = vmatprep.mubr.bf16.mxu0 0
      %4897 = vmatmul.mubr.bf16.gmra.mxu0 %v4783
      %v4898 = vpop.f32.mrf.mxu0
      %v4899 = vadd.f32 0.0, %v4898
      %v4900 = vpop.f32.mrf.mxu0
      %v4901 = vpop.f32.mrf.mxu0
      %v4902 = vadd.f32 0.0, %v4901
      %v4903 = vpop.f32.mrf.mxu0
      %4904 = vmatprep.mubr.bf16.mxu0 0
      %4905 = vmatmul.mubr.bf16.gmra.mxu0 %v4784
      %v4906 = vpop.f32.mrf.mxu0
      %v4907 = vadd.f32 0.0, %v4906
      %v4908 = vpop.f32.mrf.mxu0
      %v4909 = vpop.f32.mrf.mxu0
      %v4910 = vadd.f32 0.0, %v4909
      %v4911 = vpop.f32.mrf.mxu0
      %4912 = vmatprep.mubr.bf16.mxu0 0
      %4913 = vmatmul.mubr.bf16.gmra.mxu0 %v4785
      %v4914 = vpop.f32.mrf.mxu0
      %v4915 = vadd.f32 0.0, %v4914
      %v4916 = vpop.f32.mrf.mxu0
      %v4917 = vpop.f32.mrf.mxu0
      %v4918 = vadd.f32 0.0, %v4917
      %v4919 = vpop.f32.mrf.mxu0
      %4920 = vmatprep.mubr.bf16.mxu0 0
      %4921 = vmatmul.mubr.bf16.gmra.mxu0 %v4786
      %v4922 = vpop.f32.mrf.mxu0
      %v4923 = vadd.f32 0.0, %v4922
      %v4924 = vpop.f32.mrf.mxu0
      %v4925 = vpop.f32.mrf.mxu0
      %v4926 = vadd.f32 0.0, %v4925
      %v4927 = vpop.f32.mrf.mxu0
      %4928 = vmatprep.mubr.bf16.mxu0 0
      %4929 = vmatmul.mubr.bf16.gmra.mxu0 %v4787
      %v4930 = vpop.f32.mrf.mxu0
      %v4931 = vadd.f32 0.0, %v4930
      %v4932 = vpop.f32.mrf.mxu0
      %v4933 = vpop.f32.mrf.mxu0
      %v4934 = vadd.f32 0.0, %v4933
      %v4935 = vpop.f32.mrf.mxu0
      %4936 = vmatprep.mubr.bf16.mxu0 0
      %4937 = vmatmul.mubr.bf16.gmra.mxu0 %v4788
      %v4938 = vpop.f32.mrf.mxu0
      %v4939 = vadd.f32 0.0, %v4938
      %v4940 = vpop.f32.mrf.mxu0
      %v4941 = vpop.f32.mrf.mxu0
      %v4942 = vadd.f32 0.0, %v4941
      %v4943 = vpop.f32.mrf.mxu0
      %4944 = vmatprep.mubr.bf16.mxu0 0
      %4945 = vmatmul.mubr.bf16.gmra.mxu0 %v4789
      %v4946 = vpop.f32.mrf.mxu0
      %v4947 = vadd.f32 0.0, %v4946
      %v4948 = vpop.f32.mrf.mxu0
      %v4949 = vpop.f32.mrf.mxu0
      %v4950 = vadd.f32 0.0, %v4949
      %v4951 = vpop.f32.mrf.mxu0
      %4952 = vmatprep.mubr.bf16.mxu0 0
      %4953 = vmatmul.mubr.bf16.gmra.mxu0 %v4790
      %v4954 = vpop.f32.mrf.mxu0
      %v4955 = vadd.f32 0.0, %v4954
      %v4956 = vpop.f32.mrf.mxu0
      %v4957 = vpop.f32.mrf.mxu0
      %v4958 = vadd.f32 0.0, %v4957
      %v4959 = vpop.f32.mrf.mxu0
      %4960 = vmatprep.mubr.bf16.mxu0 0
      %4961 = vmatmul.mubr.bf16.gmra.mxu0 %v4791
      %v4962 = vpop.f32.mrf.mxu0
      %v4963 = vadd.f32 0.0, %v4962
      %v4964 = vpop.f32.mrf.mxu0
      %v4965 = vpop.f32.mrf.mxu0
      %v4966 = vadd.f32 0.0, %v4965
      %v4967 = vpop.f32.mrf.mxu0
      %4968 = vmatprep.mubr.bf16.mxu0 0
      %4969 = vmatmul.mubr.bf16.gmra.mxu0 %v4792
      %v4970 = vpop.f32.mrf.mxu0
      %v4971 = vadd.f32 0.0, %v4970
      %v4972 = vpop.f32.mrf.mxu0
      %v4973 = vpop.f32.mrf.mxu0
      %v4974 = vadd.f32 0.0, %v4973
      %v4975 = vpop.f32.mrf.mxu0
      %4976 = vmatprep.mubr.bf16.mxu0 0
      %4977 = vmatmul.mubr.bf16.gmra.mxu0 %v4793
      %v4978 = vpop.f32.mrf.mxu0
      %v4979 = vadd.f32 0.0, %v4978
      %v4980 = vpop.f32.mrf.mxu0
      %v4981 = vpop.f32.mrf.mxu0
      %v4982 = vadd.f32 0.0, %v4981
      %v4983 = vpop.f32.mrf.mxu0
      %4984 = vmatprep.mubr.bf16.mxu0 0
      %4985 = vmatmul.mubr.bf16.gmra.mxu0 %v4794
      %v4986 = vpop.f32.mrf.mxu0
      %v4987 = vadd.f32 0.0, %v4986
      %v4988 = vpop.f32.mrf.mxu0
      %v4989 = vpop.f32.mrf.mxu0
      %v4990 = vadd.f32 0.0, %v4989
      %v4991 = vpop.f32.mrf.mxu0
      %4992 = vmatprep.mubr.bf16.mxu0 0
      %4993 = vmatmul.mubr.bf16.gmra.mxu0 %v4795
      %v4994 = vpop.f32.mrf.mxu0
      %v4995 = vadd.f32 0.0, %v4994
      %v4996 = vpop.f32.mrf.mxu0
      %v4997 = vpop.f32.mrf.mxu0
      %v4998 = vadd.f32 0.0, %v4997
      %v4999 = vpop.f32.mrf.mxu0
      %5000 = vmatprep.mubr.bf16.mxu0 0
      %5001 = vmatmul.mubr.bf16.gmra.mxu0 %v4796
      %v5002 = vpop.f32.mrf.mxu0
      %v5003 = vadd.f32 0.0, %v5002
      %v5004 = vpop.f32.mrf.mxu0
      %v5005 = vpop.f32.mrf.mxu0
      %v5006 = vadd.f32 0.0, %v5005
      %v5007 = vpop.f32.mrf.mxu0
      %5008 = vmatprep.mubr.bf16.mxu0 0
      %5009 = vmatmul.mubr.bf16.gmra.mxu0 %v4797
      %v5010 = vpop.f32.mrf.mxu0
      %v5011 = vadd.f32 0.0, %v5010
      %v5012 = vpop.f32.mrf.mxu0
      %v5013 = vpop.f32.mrf.mxu0
      %v5014 = vadd.f32 0.0, %v5013
      %v5015 = vpop.f32.mrf.mxu0
      %5016 = vmatprep.mubr.bf16.mxu0 0
      %5017 = vmatmul.mubr.bf16.gmra.mxu0 %v4798
      %v5018 = vpop.f32.mrf.mxu0
      %v5019 = vadd.f32 0.0, %v5018
      %v5020 = vpop.f32.mrf.mxu0
      %v5021 = vpop.f32.mrf.mxu0
      %v5022 = vadd.f32 0.0, %v5021
      %v5023 = vpop.f32.mrf.mxu0
      %5024 = vdwg.mxu0
      %v5041 = vunpack.c.l.b16 %v4367
      %v5042 = vunpack.c.l.b16 %v4368
      %v5043 = vunpack.c.l.b16 %v4369
      %v5044 = vunpack.c.l.b16 %v4370
      %v5045 = vunpack.c.l.b16 %v4371
      %v5046 = vunpack.c.l.b16 %v4372
      %v5047 = vunpack.c.l.b16 %v4373
      %v5048 = vunpack.c.l.b16 %v4374
      %v5049 = vunpack.c.l.b16 %v4375
      %v5050 = vunpack.c.l.b16 %v4376
      %v5051 = vunpack.c.l.b16 %v4377
      %v5052 = vunpack.c.l.b16 %v4378
      %v5053 = vunpack.c.l.b16 %v4379
      %v5054 = vunpack.c.l.b16 %v4380
      %v5055 = vunpack.c.l.b16 %v4381
      %v5056 = vunpack.c.l.b16 %v4382
      %v5057 = vpack.c.b16 %v5042, %v5041
      %v5058 = vpack.c.b16 %v5044, %v5043
      %v5059 = vpack.c.b16 %v5046, %v5045
      %v5060 = vpack.c.b16 %v5048, %v5047
      %v5061 = vpack.c.b16 %v5050, %v5049
      %v5062 = vpack.c.b16 %v5052, %v5051
      %v5063 = vpack.c.b16 %v5054, %v5053
      %v5064 = vpack.c.b16 %v5056, %v5055
      %5073 = vmatprep.subr.bf16.mxu0 0
      %5074 = vmatpush1.bf16.msra.mxu0 %v5064
      %5075 = vmatprep.subr.bf16.mxu0 0
      %5076 = vmatpush1.bf16.msra.mxu0 %v5063
      %5077 = vmatprep.subr.bf16.mxu0 0
      %5078 = vmatpush1.bf16.msra.mxu0 %v5062
      %5079 = vmatprep.subr.bf16.mxu0 0
      %5080 = vmatpush1.bf16.msra.mxu0 %v5061
      %5081 = vmatprep.subr.bf16.mxu0 0
      %5082 = vmatpush1.bf16.msra.mxu0 %v5060
      %5083 = vmatprep.subr.bf16.mxu0 0
      %5084 = vmatpush1.bf16.msra.mxu0 %v5059
      %5085 = vmatprep.subr.bf16.mxu0 0
      %5086 = vmatpush1.bf16.msra.mxu0 %v5058
      %5087 = vmatprep.subr.bf16.mxu0 0
      %5088 = vmatpush1.bf16.msra.mxu0 %v5057
      %5089 = vmatprep.subr.bf16.mxu0 0
      %5090 = vmatpush2.bf16.msra.mxu0 0
      %5091 = vmatprep.subr.bf16.mxu0 0
      %5092 = vmatpush2.bf16.msra.mxu0 0
      %5093 = vmatprep.subr.bf16.mxu0 0
      %5094 = vmatpush2.bf16.msra.mxu0 0
      %5095 = vmatprep.subr.bf16.mxu0 0
      %5096 = vmatpush2.bf16.msra.mxu0 0
      %5097 = vmatprep.subr.bf16.mxu0 0
      %5098 = vmatpush2.bf16.msra.mxu0 0
      %5099 = vmatprep.subr.bf16.mxu0 0
      %5100 = vmatpush2.bf16.msra.mxu0 0
      %5101 = vmatprep.subr.bf16.mxu0 0
      %5102 = vmatpush2.bf16.msra.mxu0 0
      %5103 = vmatprep.subr.bf16.mxu0 0
      %5104 = vmatpush2.bf16.msra.mxu0 0
      %5105 = vmatprep.mubr.bf16.mxu0 0
      %5106 = vmatmul.mubr.bf16.gmra.mxu0 %v4351
      %v5107 = vpop.f32.mrf.mxu0
      %v5108 = vadd.f32 %v4899, %v5107
      %v5109 = vpop.f32.mrf.mxu0
      %v5110 = vpop.f32.mrf.mxu0
      %v5111 = vadd.f32 %v4902, %v5110
      %v5112 = vpop.f32.mrf.mxu0
      %5113 = vmatprep.mubr.bf16.mxu0 0
      %5114 = vmatmul.mubr.bf16.gmra.mxu0 %v4352
      %v5115 = vpop.f32.mrf.mxu0
      %v5116 = vadd.f32 %v4907, %v5115
      %v5117 = vpop.f32.mrf.mxu0
      %v5118 = vpop.f32.mrf.mxu0
      %v5119 = vadd.f32 %v4910, %v5118
      %v5120 = vpop.f32.mrf.mxu0
      %5121 = vmatprep.mubr.bf16.mxu0 0
      %5122 = vmatmul.mubr.bf16.gmra.mxu0 %v4353
      %v5123 = vpop.f32.mrf.mxu0
      %v5124 = vadd.f32 %v4915, %v5123
      %v5125 = vpop.f32.mrf.mxu0
      %v5126 = vpop.f32.mrf.mxu0
      %v5127 = vadd.f32 %v4918, %v5126
      %v5128 = vpop.f32.mrf.mxu0
      %5129 = vmatprep.mubr.bf16.mxu0 0
      %5130 = vmatmul.mubr.bf16.gmra.mxu0 %v4354
      %v5131 = vpop.f32.mrf.mxu0
      %v5132 = vadd.f32 %v4923, %v5131
      %v5133 = vpop.f32.mrf.mxu0
      %v5134 = vpop.f32.mrf.mxu0
      %v5135 = vadd.f32 %v4926, %v5134
      %v5136 = vpop.f32.mrf.mxu0
      %5137 = vmatprep.mubr.bf16.mxu0 0
      %5138 = vmatmul.mubr.bf16.gmra.mxu0 %v4355
      %v5139 = vpop.f32.mrf.mxu0
      %v5140 = vadd.f32 %v4931, %v5139
      %v5141 = vpop.f32.mrf.mxu0
      %v5142 = vpop.f32.mrf.mxu0
      %v5143 = vadd.f32 %v4934, %v5142
      %v5144 = vpop.f32.mrf.mxu0
      %5145 = vmatprep.mubr.bf16.mxu0 0
      %5146 = vmatmul.mubr.bf16.gmra.mxu0 %v4356
      %v5147 = vpop.f32.mrf.mxu0
      %v5148 = vadd.f32 %v4939, %v5147
      %v5149 = vpop.f32.mrf.mxu0
      %v5150 = vpop.f32.mrf.mxu0
      %v5151 = vadd.f32 %v4942, %v5150
      %v5152 = vpop.f32.mrf.mxu0
      %5153 = vmatprep.mubr.bf16.mxu0 0
      %5154 = vmatmul.mubr.bf16.gmra.mxu0 %v4357
      %v5155 = vpop.f32.mrf.mxu0
      %v5156 = vadd.f32 %v4947, %v5155
      %v5157 = vpop.f32.mrf.mxu0
      %v5158 = vpop.f32.mrf.mxu0
      %v5159 = vadd.f32 %v4950, %v5158
      %v5160 = vpop.f32.mrf.mxu0
      %5161 = vmatprep.mubr.bf16.mxu0 0
      %5162 = vmatmul.mubr.bf16.gmra.mxu0 %v4358
      %v5163 = vpop.f32.mrf.mxu0
      %v5164 = vadd.f32 %v4955, %v5163
      %v5165 = vpop.f32.mrf.mxu0
      %v5166 = vpop.f32.mrf.mxu0
      %v5167 = vadd.f32 %v4958, %v5166
      %v5168 = vpop.f32.mrf.mxu0
      %5169 = vmatprep.mubr.bf16.mxu0 0
      %5170 = vmatmul.mubr.bf16.gmra.mxu0 %v4359
      %v5171 = vpop.f32.mrf.mxu0
      %v5172 = vadd.f32 %v4963, %v5171
      %v5173 = vpop.f32.mrf.mxu0
      %v5174 = vpop.f32.mrf.mxu0
      %v5175 = vadd.f32 %v4966, %v5174
      %v5176 = vpop.f32.mrf.mxu0
      %5177 = vmatprep.mubr.bf16.mxu0 0
      %5178 = vmatmul.mubr.bf16.gmra.mxu0 %v4360
      %v5179 = vpop.f32.mrf.mxu0
      %v5180 = vadd.f32 %v4971, %v5179
      %v5181 = vpop.f32.mrf.mxu0
      %v5182 = vpop.f32.mrf.mxu0
      %v5183 = vadd.f32 %v4974, %v5182
      %v5184 = vpop.f32.mrf.mxu0
      %5185 = vmatprep.mubr.bf16.mxu0 0
      %5186 = vmatmul.mubr.bf16.gmra.mxu0 %v4361
      %v5187 = vpop.f32.mrf.mxu0
      %v5188 = vadd.f32 %v4979, %v5187
      %v5189 = vpop.f32.mrf.mxu0
      %v5190 = vpop.f32.mrf.mxu0
      %v5191 = vadd.f32 %v4982, %v5190
      %v5192 = vpop.f32.mrf.mxu0
      %5193 = vmatprep.mubr.bf16.mxu0 0
      %5194 = vmatmul.mubr.bf16.gmra.mxu0 %v4362
      %v5195 = vpop.f32.mrf.mxu0
      %v5196 = vadd.f32 %v4987, %v5195
      %v5197 = vpop.f32.mrf.mxu0
      %v5198 = vpop.f32.mrf.mxu0
      %v5199 = vadd.f32 %v4990, %v5198
      %v5200 = vpop.f32.mrf.mxu0
      %5201 = vmatprep.mubr.bf16.mxu0 0
      %5202 = vmatmul.mubr.bf16.gmra.mxu0 %v4363
      %v5203 = vpop.f32.mrf.mxu0
      %v5204 = vadd.f32 %v4995, %v5203
      %v5205 = vpop.f32.mrf.mxu0
      %v5206 = vpop.f32.mrf.mxu0
      %v5207 = vadd.f32 %v4998, %v5206
      %v5208 = vpop.f32.mrf.mxu0
      %5209 = vmatprep.mubr.bf16.mxu0 0
      %5210 = vmatmul.mubr.bf16.gmra.mxu0 %v4364
      %v5211 = vpop.f32.mrf.mxu0
      %v5212 = vadd.f32 %v5003, %v5211
      %v5213 = vpop.f32.mrf.mxu0
      %v5214 = vpop.f32.mrf.mxu0
      %v5215 = vadd.f32 %v5006, %v5214
      %v5216 = vpop.f32.mrf.mxu0
      %5217 = vmatprep.mubr.bf16.mxu0 0
      %5218 = vmatmul.mubr.bf16.gmra.mxu0 %v4365
      %v5219 = vpop.f32.mrf.mxu0
      %v5220 = vadd.f32 %v5011, %v5219
      %v5221 = vpop.f32.mrf.mxu0
      %v5222 = vpop.f32.mrf.mxu0
      %v5223 = vadd.f32 %v5014, %v5222
      %v5224 = vpop.f32.mrf.mxu0
      %5225 = vmatprep.mubr.bf16.mxu0 0
      %5226 = vmatmul.mubr.bf16.gmra.mxu0 %v4366
      %v5227 = vpop.f32.mrf.mxu0
      %v5228 = vadd.f32 %v5019, %v5227
      %v5229 = vpop.f32.mrf.mxu0
      %v5230 = vpop.f32.mrf.mxu0
      %v5231 = vadd.f32 %v5022, %v5230
      %v5232 = vpop.f32.mrf.mxu0
      %5233 = vdwg.mxu0
      %v5234 = vld [vmem:[#allocation3 + $0x31] sm:$0xff]
      %v5235 = vld [vmem:[#allocation3 + $0x39] sm:$0xff]
      %v5236 = vld [vmem:[#allocation3 + $0x41] sm:$0xff]
      %v5237 = vld [vmem:[#allocation3 + $0x49] sm:$0xff]
      %v5238 = vld [vmem:[#allocation3 + $0x51] sm:$0xff]
      %v5239 = vld [vmem:[#allocation3 + $0x59] sm:$0xff]
      %v5240 = vld [vmem:[#allocation3 + $0x61] sm:$0xff]
      %v5241 = vld [vmem:[#allocation3 + $0x69] sm:$0xff]
      %v5242 = vld [vmem:[#allocation3 + $0x71] sm:$0xff]
      %v5243 = vld [vmem:[#allocation3 + $0x79] sm:$0xff]
      %v5244 = vld [vmem:[#allocation3 + $0x81] sm:$0xff]
      %v5245 = vld [vmem:[#allocation3 + $0x89] sm:$0xff]
      %v5246 = vld [vmem:[#allocation3 + $0x91] sm:$0xff]
      %v5247 = vld [vmem:[#allocation3 + $0x99] sm:$0xff]
      %v5248 = vld [vmem:[#allocation3 + $0xa1] sm:$0xff]
      %v5249 = vld [vmem:[#allocation3 + $0xa9] sm:$0xff]
      %v5250 = vld [vmem:[#allocation3 + $0xb1] sm:$0xff]
      %v5251 = vld [vmem:[#allocation3 + $0xb9] sm:$0xff]
      %v5252 = vld [vmem:[#allocation3 + $0xc1] sm:$0xff]
      %v5253 = vld [vmem:[#allocation3 + $0xc9] sm:$0xff]
      %v5254 = vld [vmem:[#allocation3 + $0xd1] sm:$0xff]
      %v5255 = vld [vmem:[#allocation3 + $0xd9] sm:$0xff]
      %v5256 = vld [vmem:[#allocation3 + $0xe1] sm:$0xff]
      %v5257 = vld [vmem:[#allocation3 + $0xe9] sm:$0xff]
      %v5258 = vld [vmem:[#allocation3 + $0xf1] sm:$0xff]
      %v5259 = vld [vmem:[#allocation3 + $0xf9] sm:$0xff]
      %v5260 = vld [vmem:[#allocation3 + $0x101] sm:$0xff]
      %v5261 = vld [vmem:[#allocation3 + $0x109] sm:$0xff]
      %v5262 = vld [vmem:[#allocation3 + $0x111] sm:$0xff]
      %v5263 = vld [vmem:[#allocation3 + $0x119] sm:$0xff]
      %v5264 = vld [vmem:[#allocation3 + $0x121] sm:$0xff]
      %v5265 = vld [vmem:[#allocation3 + $0x129] sm:$0xff]
      %5298 = vrot.lane.b32.xlu0 %v5234, 32
      %v5299 = vpop.permute.xlu0 %5298
      %5300 = vrot.lane.b32.xlu0 %v5235, 32
      %v5301 = vpop.permute.xlu0 %5300
      %5302 = vrot.lane.b32.xlu0 %v5236, 32
      %v5303 = vpop.permute.xlu0 %5302
      %5304 = vrot.lane.b32.xlu0 %v5237, 32
      %v5305 = vpop.permute.xlu0 %5304
      %5306 = vrot.lane.b32.xlu0 %v5238, 32
      %v5307 = vpop.permute.xlu0 %5306
      %5308 = vrot.lane.b32.xlu0 %v5239, 32
      %v5309 = vpop.permute.xlu0 %5308
      %5310 = vrot.lane.b32.xlu0 %v5240, 32
      %v5311 = vpop.permute.xlu0 %5310
      %5312 = vrot.lane.b32.xlu0 %v5241, 32
      %v5313 = vpop.permute.xlu0 %5312
      %5314 = vrot.lane.b32.xlu0 %v5242, 32
      %v5315 = vpop.permute.xlu0 %5314
      %5316 = vrot.lane.b32.xlu0 %v5243, 32
      %v5317 = vpop.permute.xlu0 %5316
      %5318 = vrot.lane.b32.xlu0 %v5244, 32
      %v5319 = vpop.permute.xlu0 %5318
      %5320 = vrot.lane.b32.xlu0 %v5245, 32
      %v5321 = vpop.permute.xlu0 %5320
      %5322 = vrot.lane.b32.xlu0 %v5246, 32
      %v5323 = vpop.permute.xlu0 %5322
      %5324 = vrot.lane.b32.xlu0 %v5247, 32
      %v5325 = vpop.permute.xlu0 %5324
      %5326 = vrot.lane.b32.xlu0 %v5248, 32
      %v5327 = vpop.permute.xlu0 %5326
      %5328 = vrot.lane.b32.xlu0 %v5249, 32
      %v5329 = vpop.permute.xlu0 %5328
      %5330 = vrot.lane.b32.xlu0 %v5250, 32
      %v5331 = vpop.permute.xlu0 %5330
      %5332 = vrot.lane.b32.xlu0 %v5251, 32
      %v5333 = vpop.permute.xlu0 %5332
      %5334 = vrot.lane.b32.xlu0 %v5252, 32
      %v5335 = vpop.permute.xlu0 %5334
      %5336 = vrot.lane.b32.xlu0 %v5253, 32
      %v5337 = vpop.permute.xlu0 %5336
      %5338 = vrot.lane.b32.xlu0 %v5254, 32
      %v5339 = vpop.permute.xlu0 %5338
      %5340 = vrot.lane.b32.xlu0 %v5255, 32
      %v5341 = vpop.permute.xlu0 %5340
      %5342 = vrot.lane.b32.xlu0 %v5256, 32
      %v5343 = vpop.permute.xlu0 %5342
      %5344 = vrot.lane.b32.xlu0 %v5257, 32
      %v5345 = vpop.permute.xlu0 %5344
      %5346 = vrot.lane.b32.xlu0 %v5258, 32
      %v5347 = vpop.permute.xlu0 %5346
      %5348 = vrot.lane.b32.xlu0 %v5259, 32
      %v5349 = vpop.permute.xlu0 %5348
      %5350 = vrot.lane.b32.xlu0 %v5260, 32
      %v5351 = vpop.permute.xlu0 %5350
      %5352 = vrot.lane.b32.xlu0 %v5261, 32
      %v5353 = vpop.permute.xlu0 %5352
      %5354 = vrot.lane.b32.xlu0 %v5262, 32
      %v5355 = vpop.permute.xlu0 %5354
      %5356 = vrot.lane.b32.xlu0 %v5263, 32
      %v5357 = vpop.permute.xlu0 %5356
      %5358 = vrot.lane.b32.xlu0 %v5264, 32
      %v5359 = vpop.permute.xlu0 %5358
      %5360 = vrot.lane.b32.xlu0 %v5265, 32
      %v5361 = vpop.permute.xlu0 %5360
      %5394 = vrot.lane.b32.xlu0 %v5234, 64
      %v5395 = vpop.permute.xlu0 %5394
      %5396 = vrot.lane.b32.xlu0 %v5235, 64
      %v5397 = vpop.permute.xlu0 %5396
      %5398 = vrot.lane.b32.xlu0 %v5236, 64
      %v5399 = vpop.permute.xlu0 %5398
      %5400 = vrot.lane.b32.xlu0 %v5237, 64
      %v5401 = vpop.permute.xlu0 %5400
      %5402 = vrot.lane.b32.xlu0 %v5238, 64
      %v5403 = vpop.permute.xlu0 %5402
      %5404 = vrot.lane.b32.xlu0 %v5239, 64
      %v5405 = vpop.permute.xlu0 %5404
      %5406 = vrot.lane.b32.xlu0 %v5240, 64
      %v5407 = vpop.permute.xlu0 %5406
      %5408 = vrot.lane.b32.xlu0 %v5241, 64
      %v5409 = vpop.permute.xlu0 %5408
      %5410 = vrot.lane.b32.xlu0 %v5242, 64
      %v5411 = vpop.permute.xlu0 %5410
      %5412 = vrot.lane.b32.xlu0 %v5243, 64
      %v5413 = vpop.permute.xlu0 %5412
      %5414 = vrot.lane.b32.xlu0 %v5244, 64
      %v5415 = vpop.permute.xlu0 %5414
      %5416 = vrot.lane.b32.xlu0 %v5245, 64
      %v5417 = vpop.permute.xlu0 %5416
      %5418 = vrot.lane.b32.xlu0 %v5246, 64
      %v5419 = vpop.permute.xlu0 %5418
      %5420 = vrot.lane.b32.xlu0 %v5247, 64
      %v5421 = vpop.permute.xlu0 %5420
      %5422 = vrot.lane.b32.xlu0 %v5248, 64
      %v5423 = vpop.permute.xlu0 %5422
      %5424 = vrot.lane.b32.xlu0 %v5249, 64
      %v5425 = vpop.permute.xlu0 %5424
      %5426 = vrot.lane.b32.xlu0 %v5250, 64
      %v5427 = vpop.permute.xlu0 %5426
      %5428 = vrot.lane.b32.xlu0 %v5251, 64
      %v5429 = vpop.permute.xlu0 %5428
      %5430 = vrot.lane.b32.xlu0 %v5252, 64
      %v5431 = vpop.permute.xlu0 %5430
      %5432 = vrot.lane.b32.xlu0 %v5253, 64
      %v5433 = vpop.permute.xlu0 %5432
      %5434 = vrot.lane.b32.xlu0 %v5254, 64
      %v5435 = vpop.permute.xlu0 %5434
      %5436 = vrot.lane.b32.xlu0 %v5255, 64
      %v5437 = vpop.permute.xlu0 %5436
      %5438 = vrot.lane.b32.xlu0 %v5256, 64
      %v5439 = vpop.permute.xlu0 %5438
      %5440 = vrot.lane.b32.xlu0 %v5257, 64
      %v5441 = vpop.permute.xlu0 %5440
      %5442 = vrot.lane.b32.xlu0 %v5258, 64
      %v5443 = vpop.permute.xlu0 %5442
      %5444 = vrot.lane.b32.xlu0 %v5259, 64
      %v5445 = vpop.permute.xlu0 %5444
      %5446 = vrot.lane.b32.xlu0 %v5260, 64
      %v5447 = vpop.permute.xlu0 %5446
      %5448 = vrot.lane.b32.xlu0 %v5261, 64
      %v5449 = vpop.permute.xlu0 %5448
      %5450 = vrot.lane.b32.xlu0 %v5262, 64
      %v5451 = vpop.permute.xlu0 %5450
      %5452 = vrot.lane.b32.xlu0 %v5263, 64
      %v5453 = vpop.permute.xlu0 %5452
      %5454 = vrot.lane.b32.xlu0 %v5264, 64
      %v5455 = vpop.permute.xlu0 %5454
      %5456 = vrot.lane.b32.xlu0 %v5265, 64
      %v5457 = vpop.permute.xlu0 %5456
      %5490 = vrot.lane.b32.xlu0 %v5234, 96
      %v5491 = vpop.permute.xlu0 %5490
      %5492 = vrot.lane.b32.xlu0 %v5235, 96
      %v5493 = vpop.permute.xlu0 %5492
      %5494 = vrot.lane.b32.xlu0 %v5236, 96
      %v5495 = vpop.permute.xlu0 %5494
      %5496 = vrot.lane.b32.xlu0 %v5237, 96
      %v5497 = vpop.permute.xlu0 %5496
      %5498 = vrot.lane.b32.xlu0 %v5238, 96
      %v5499 = vpop.permute.xlu0 %5498
      %5500 = vrot.lane.b32.xlu0 %v5239, 96
      %v5501 = vpop.permute.xlu0 %5500
      %5502 = vrot.lane.b32.xlu0 %v5240, 96
      %v5503 = vpop.permute.xlu0 %5502
      %5504 = vrot.lane.b32.xlu0 %v5241, 96
      %v5505 = vpop.permute.xlu0 %5504
      %5506 = vrot.lane.b32.xlu0 %v5242, 96
      %v5507 = vpop.permute.xlu0 %5506
      %5508 = vrot.lane.b32.xlu0 %v5243, 96
      %v5509 = vpop.permute.xlu0 %5508
      %5510 = vrot.lane.b32.xlu0 %v5244, 96
      %v5511 = vpop.permute.xlu0 %5510
      %5512 = vrot.lane.b32.xlu0 %v5245, 96
      %v5513 = vpop.permute.xlu0 %5512
      %5514 = vrot.lane.b32.xlu0 %v5246, 96
      %v5515 = vpop.permute.xlu0 %5514
      %5516 = vrot.lane.b32.xlu0 %v5247, 96
      %v5517 = vpop.permute.xlu0 %5516
      %5518 = vrot.lane.b32.xlu0 %v5248, 96
      %v5519 = vpop.permute.xlu0 %5518
      %5520 = vrot.lane.b32.xlu0 %v5249, 96
      %v5521 = vpop.permute.xlu0 %5520
      %5522 = vrot.lane.b32.xlu0 %v5250, 96
      %v5523 = vpop.permute.xlu0 %5522
      %5524 = vrot.lane.b32.xlu0 %v5251, 96
      %v5525 = vpop.permute.xlu0 %5524
      %5526 = vrot.lane.b32.xlu0 %v5252, 96
      %v5527 = vpop.permute.xlu0 %5526
      %5528 = vrot.lane.b32.xlu0 %v5253, 96
      %v5529 = vpop.permute.xlu0 %5528
      %5530 = vrot.lane.b32.xlu0 %v5254, 96
      %v5531 = vpop.permute.xlu0 %5530
      %5532 = vrot.lane.b32.xlu0 %v5255, 96
      %v5533 = vpop.permute.xlu0 %5532
      %5534 = vrot.lane.b32.xlu0 %v5256, 96
      %v5535 = vpop.permute.xlu0 %5534
      %5536 = vrot.lane.b32.xlu0 %v5257, 96
      %v5537 = vpop.permute.xlu0 %5536
      %5538 = vrot.lane.b32.xlu0 %v5258, 96
      %v5539 = vpop.permute.xlu0 %5538
      %5540 = vrot.lane.b32.xlu0 %v5259, 96
      %v5541 = vpop.permute.xlu0 %5540
      %5542 = vrot.lane.b32.xlu0 %v5260, 96
      %v5543 = vpop.permute.xlu0 %5542
      %5544 = vrot.lane.b32.xlu0 %v5261, 96
      %v5545 = vpop.permute.xlu0 %5544
      %5546 = vrot.lane.b32.xlu0 %v5262, 96
      %v5547 = vpop.permute.xlu0 %5546
      %5548 = vrot.lane.b32.xlu0 %v5263, 96
      %v5549 = vpop.permute.xlu0 %5548
      %5550 = vrot.lane.b32.xlu0 %v5264, 96
      %v5551 = vpop.permute.xlu0 %5550
      %5552 = vrot.lane.b32.xlu0 %v5265, 96
      %v5553 = vpop.permute.xlu0 %5552
      %v5586 = vsel %vm2968, %v5234, %v5299
      %v5587 = vsel %vm2968, %v5235, %v5301
      %v5588 = vsel %vm2968, %v5236, %v5303
      %v5589 = vsel %vm2968, %v5237, %v5305
      %v5590 = vsel %vm2968, %v5238, %v5307
      %v5591 = vsel %vm2968, %v5239, %v5309
      %v5592 = vsel %vm2968, %v5240, %v5311
      %v5593 = vsel %vm2968, %v5241, %v5313
      %v5594 = vsel %vm2968, %v5242, %v5315
      %v5595 = vsel %vm2968, %v5243, %v5317
      %v5596 = vsel %vm2968, %v5244, %v5319
      %v5597 = vsel %vm2968, %v5245, %v5321
      %v5598 = vsel %vm2968, %v5246, %v5323
      %v5599 = vsel %vm2968, %v5247, %v5325
      %v5600 = vsel %vm2968, %v5248, %v5327
      %v5601 = vsel %vm2968, %v5249, %v5329
      %v5602 = vsel %vm2968, %v5250, %v5331
      %v5603 = vsel %vm2968, %v5251, %v5333
      %v5604 = vsel %vm2968, %v5252, %v5335
      %v5605 = vsel %vm2968, %v5253, %v5337
      %v5606 = vsel %vm2968, %v5254, %v5339
      %v5607 = vsel %vm2968, %v5255, %v5341
      %v5608 = vsel %vm2968, %v5256, %v5343
      %v5609 = vsel %vm2968, %v5257, %v5345
      %v5610 = vsel %vm2968, %v5258, %v5347
      %v5611 = vsel %vm2968, %v5259, %v5349
      %v5612 = vsel %vm2968, %v5260, %v5351
      %v5613 = vsel %vm2968, %v5261, %v5353
      %v5614 = vsel %vm2968, %v5262, %v5355
      %v5615 = vsel %vm2968, %v5263, %v5357
      %v5616 = vsel %vm2968, %v5264, %v5359
      %v5617 = vsel %vm2968, %v5265, %v5361
      %v5618 = vsel %vm4285, %v5586, %v5395
      %v5619 = vsel %vm4285, %v5587, %v5397
      %v5620 = vsel %vm4285, %v5588, %v5399
      %v5621 = vsel %vm4285, %v5589, %v5401
      %v5622 = vsel %vm4285, %v5590, %v5403
      %v5623 = vsel %vm4285, %v5591, %v5405
      %v5624 = vsel %vm4285, %v5592, %v5407
      %v5625 = vsel %vm4285, %v5593, %v5409
      %v5626 = vsel %vm4285, %v5594, %v5411
      %v5627 = vsel %vm4285, %v5595, %v5413
      %v5628 = vsel %vm4285, %v5596, %v5415
      %v5629 = vsel %vm4285, %v5597, %v5417
      %v5630 = vsel %vm4285, %v5598, %v5419
      %v5631 = vsel %vm4285, %v5599, %v5421
      %v5632 = vsel %vm4285, %v5600, %v5423
      %v5633 = vsel %vm4285, %v5601, %v5425
      %v5634 = vsel %vm4285, %v5602, %v5427
      %v5635 = vsel %vm4285, %v5603, %v5429
      %v5636 = vsel %vm4285, %v5604, %v5431
      %v5637 = vsel %vm4285, %v5605, %v5433
      %v5638 = vsel %vm4285, %v5606, %v5435
      %v5639 = vsel %vm4285, %v5607, %v5437
      %v5640 = vsel %vm4285, %v5608, %v5439
      %v5641 = vsel %vm4285, %v5609, %v5441
      %v5642 = vsel %vm4285, %v5610, %v5443
      %v5643 = vsel %vm4285, %v5611, %v5445
      %v5644 = vsel %vm4285, %v5612, %v5447
      %v5645 = vsel %vm4285, %v5613, %v5449
      %v5646 = vsel %vm4285, %v5614, %v5451
      %v5647 = vsel %vm4285, %v5615, %v5453
      %v5648 = vsel %vm4285, %v5616, %v5455
      %v5649 = vsel %vm4285, %v5617, %v5457
      %v5650 = vsel %vm4318, %v5618, %v5491
      %v5651 = vsel %vm4318, %v5619, %v5493
      %v5652 = vsel %vm4318, %v5620, %v5495
      %v5653 = vsel %vm4318, %v5621, %v5497
      %v5654 = vsel %vm4318, %v5622, %v5499
      %v5655 = vsel %vm4318, %v5623, %v5501
      %v5656 = vsel %vm4318, %v5624, %v5503
      %v5657 = vsel %vm4318, %v5625, %v5505
      %v5658 = vsel %vm4318, %v5626, %v5507
      %v5659 = vsel %vm4318, %v5627, %v5509
      %v5660 = vsel %vm4318, %v5628, %v5511
      %v5661 = vsel %vm4318, %v5629, %v5513
      %v5662 = vsel %vm4318, %v5630, %v5515
      %v5663 = vsel %vm4318, %v5631, %v5517
      %v5664 = vsel %vm4318, %v5632, %v5519
      %v5665 = vsel %vm4318, %v5633, %v5521
      %v5666 = vsel %vm4318, %v5634, %v5523
      %v5667 = vsel %vm4318, %v5635, %v5525
      %v5668 = vsel %vm4318, %v5636, %v5527
      %v5669 = vsel %vm4318, %v5637, %v5529
      %v5670 = vsel %vm4318, %v5638, %v5531
      %v5671 = vsel %vm4318, %v5639, %v5533
      %v5672 = vsel %vm4318, %v5640, %v5535
      %v5673 = vsel %vm4318, %v5641, %v5537
      %v5674 = vsel %vm4318, %v5642, %v5539
      %v5675 = vsel %vm4318, %v5643, %v5541
      %v5676 = vsel %vm4318, %v5644, %v5543
      %v5677 = vsel %vm4318, %v5645, %v5545
      %v5678 = vsel %vm4318, %v5646, %v5547
      %v5679 = vsel %vm4318, %v5647, %v5549
      %v5680 = vsel %vm4318, %v5648, %v5551
      %v5681 = vsel %vm4318, %v5649, %v5553
      %v5682 = vpack.c.bf16 %v5651, %v5650
      %v5683 = vpack.c.bf16 %v5653, %v5652
      %v5684 = vpack.c.bf16 %v5655, %v5654
      %v5685 = vpack.c.bf16 %v5657, %v5656
      %v5686 = vpack.c.bf16 %v5659, %v5658
      %v5687 = vpack.c.bf16 %v5661, %v5660
      %v5688 = vpack.c.bf16 %v5663, %v5662
      %v5689 = vpack.c.bf16 %v5665, %v5664
      %v5690 = vpack.c.bf16 %v5667, %v5666
      %v5691 = vpack.c.bf16 %v5669, %v5668
      %v5692 = vpack.c.bf16 %v5671, %v5670
      %v5693 = vpack.c.bf16 %v5673, %v5672
      %v5694 = vpack.c.bf16 %v5675, %v5674
      %v5695 = vpack.c.bf16 %v5677, %v5676
      %v5696 = vpack.c.bf16 %v5679, %v5678
      %v5697 = vpack.c.bf16 %v5681, %v5680
      %s5698 = scalar_lea.vmem %s6, 128
      %v5699 = vld [vmem:[%s5698] sm:$0xf]
      %v5700 = vld [vmem:[%s5698 + $0x4] sm:$0xf]
      %v5701 = vld [vmem:[%s5698 + $0x8] sm:$0xf]
      %v5702 = vld [vmem:[%s5698 + $0xc] sm:$0xf]
      %v5703 = vld [vmem:[%s5698 + $0x10] sm:$0xf]
      %v5704 = vld [vmem:[%s5698 + $0x14] sm:$0xf]
      %v5705 = vld [vmem:[%s5698 + $0x18] sm:$0xf]
      %v5706 = vld [vmem:[%s5698 + $0x1c] sm:$0xf]
      %v5707 = vld [vmem:[%s5698 + $0x20] sm:$0xf]
      %v5708 = vld [vmem:[%s5698 + $0x24] sm:$0xf]
      %v5709 = vld [vmem:[%s5698 + $0x28] sm:$0xf]
      %v5710 = vld [vmem:[%s5698 + $0x2c] sm:$0xf]
      %v5711 = vld [vmem:[%s5698 + $0x30] sm:$0xf]
      %v5712 = vld [vmem:[%s5698 + $0x34] sm:$0xf]
      %v5713 = vld [vmem:[%s5698 + $0x38] sm:$0xf]
      %v5714 = vld [vmem:[%s5698 + $0x3c] sm:$0xf]
      %v5731 = vunpack.c.l.b16 %v5699
      %v5732 = vunpack.c.l.b16 %v5700
      %v5733 = vunpack.c.l.b16 %v5701
      %v5734 = vunpack.c.l.b16 %v5702
      %v5735 = vunpack.c.l.b16 %v5703
      %v5736 = vunpack.c.l.b16 %v5704
      %v5737 = vunpack.c.l.b16 %v5705
      %v5738 = vunpack.c.l.b16 %v5706
      %v5739 = vunpack.c.l.b16 %v5707
      %v5740 = vunpack.c.l.b16 %v5708
      %v5741 = vunpack.c.l.b16 %v5709
      %v5742 = vunpack.c.l.b16 %v5710
      %v5743 = vunpack.c.l.b16 %v5711
      %v5744 = vunpack.c.l.b16 %v5712
      %v5745 = vunpack.c.l.b16 %v5713
      %v5746 = vunpack.c.l.b16 %v5714
      %v5747 = vpack.c.b16 %v5732, %v5731
      %v5748 = vpack.c.b16 %v5734, %v5733
      %v5749 = vpack.c.b16 %v5736, %v5735
      %v5750 = vpack.c.b16 %v5738, %v5737
      %v5751 = vpack.c.b16 %v5740, %v5739
      %v5752 = vpack.c.b16 %v5742, %v5741
      %v5753 = vpack.c.b16 %v5744, %v5743
      %v5754 = vpack.c.b16 %v5746, %v5745
      %5763 = vmatprep.subr.bf16.mxu0 0
      %5764 = vmatpush1.bf16.msra.mxu0 %v5754
      %5765 = vmatprep.subr.bf16.mxu0 0
      %5766 = vmatpush1.bf16.msra.mxu0 %v5753
      %5767 = vmatprep.subr.bf16.mxu0 0
      %5768 = vmatpush1.bf16.msra.mxu0 %v5752
      %5769 = vmatprep.subr.bf16.mxu0 0
      %5770 = vmatpush1.bf16.msra.mxu0 %v5751
      %5771 = vmatprep.subr.bf16.mxu0 0
      %5772 = vmatpush1.bf16.msra.mxu0 %v5750
      %5773 = vmatprep.subr.bf16.mxu0 0
      %5774 = vmatpush1.bf16.msra.mxu0 %v5749
      %5775 = vmatprep.subr.bf16.mxu0 0
      %5776 = vmatpush1.bf16.msra.mxu0 %v5748
      %5777 = vmatprep.subr.bf16.mxu0 0
      %5778 = vmatpush1.bf16.msra.mxu0 %v5747
      %5779 = vmatprep.subr.bf16.mxu0 0
      %5780 = vmatpush2.bf16.msra.mxu0 0
      %5781 = vmatprep.subr.bf16.mxu0 0
      %5782 = vmatpush2.bf16.msra.mxu0 0
      %5783 = vmatprep.subr.bf16.mxu0 0
      %5784 = vmatpush2.bf16.msra.mxu0 0
      %5785 = vmatprep.subr.bf16.mxu0 0
      %5786 = vmatpush2.bf16.msra.mxu0 0
      %5787 = vmatprep.subr.bf16.mxu0 0
      %5788 = vmatpush2.bf16.msra.mxu0 0
      %5789 = vmatprep.subr.bf16.mxu0 0
      %5790 = vmatpush2.bf16.msra.mxu0 0
      %5791 = vmatprep.subr.bf16.mxu0 0
      %5792 = vmatpush2.bf16.msra.mxu0 0
      %5793 = vmatprep.subr.bf16.mxu0 0
      %5794 = vmatpush2.bf16.msra.mxu0 0
      %5795 = vmatprep.mubr.bf16.mxu0 0
      %5796 = vmatmul.mubr.bf16.gmra.mxu0 %v5682
      %v5797 = vpop.f32.mrf.mxu0
      %v5798 = vadd.f32 0.0, %v5797
      %v5799 = vpop.f32.mrf.mxu0
      %v5800 = vpop.f32.mrf.mxu0
      %v5801 = vadd.f32 0.0, %v5800
      %v5802 = vpop.f32.mrf.mxu0
      %5803 = vmatprep.mubr.bf16.mxu0 0
      %5804 = vmatmul.mubr.bf16.gmra.mxu0 %v5683
      %v5805 = vpop.f32.mrf.mxu0
      %v5806 = vadd.f32 0.0, %v5805
      %v5807 = vpop.f32.mrf.mxu0
      %v5808 = vpop.f32.mrf.mxu0
      %v5809 = vadd.f32 0.0, %v5808
      %v5810 = vpop.f32.mrf.mxu0
      %5811 = vmatprep.mubr.bf16.mxu0 0
      %5812 = vmatmul.mubr.bf16.gmra.mxu0 %v5684
      %v5813 = vpop.f32.mrf.mxu0
      %v5814 = vadd.f32 0.0, %v5813
      %v5815 = vpop.f32.mrf.mxu0
      %v5816 = vpop.f32.mrf.mxu0
      %v5817 = vadd.f32 0.0, %v5816
      %v5818 = vpop.f32.mrf.mxu0
      %5819 = vmatprep.mubr.bf16.mxu0 0
      %5820 = vmatmul.mubr.bf16.gmra.mxu0 %v5685
      %v5821 = vpop.f32.mrf.mxu0
      %v5822 = vadd.f32 0.0, %v5821
      %v5823 = vpop.f32.mrf.mxu0
      %v5824 = vpop.f32.mrf.mxu0
      %v5825 = vadd.f32 0.0, %v5824
      %v5826 = vpop.f32.mrf.mxu0
      %5827 = vmatprep.mubr.bf16.mxu0 0
      %5828 = vmatmul.mubr.bf16.gmra.mxu0 %v5686
      %v5829 = vpop.f32.mrf.mxu0
      %v5830 = vadd.f32 0.0, %v5829
      %v5831 = vpop.f32.mrf.mxu0
      %v5832 = vpop.f32.mrf.mxu0
      %v5833 = vadd.f32 0.0, %v5832
      %v5834 = vpop.f32.mrf.mxu0
      %5835 = vmatprep.mubr.bf16.mxu0 0
      %5836 = vmatmul.mubr.bf16.gmra.mxu0 %v5687
      %v5837 = vpop.f32.mrf.mxu0
      %v5838 = vadd.f32 0.0, %v5837
      %v5839 = vpop.f32.mrf.mxu0
      %v5840 = vpop.f32.mrf.mxu0
      %v5841 = vadd.f32 0.0, %v5840
      %v5842 = vpop.f32.mrf.mxu0
      %5843 = vmatprep.mubr.bf16.mxu0 0
      %5844 = vmatmul.mubr.bf16.gmra.mxu0 %v5688
      %v5845 = vpop.f32.mrf.mxu0
      %v5846 = vadd.f32 0.0, %v5845
      %v5847 = vpop.f32.mrf.mxu0
      %v5848 = vpop.f32.mrf.mxu0
      %v5849 = vadd.f32 0.0, %v5848
      %v5850 = vpop.f32.mrf.mxu0
      %5851 = vmatprep.mubr.bf16.mxu0 0
      %5852 = vmatmul.mubr.bf16.gmra.mxu0 %v5689
      %v5853 = vpop.f32.mrf.mxu0
      %v5854 = vadd.f32 0.0, %v5853
      %v5855 = vpop.f32.mrf.mxu0
      %v5856 = vpop.f32.mrf.mxu0
      %v5857 = vadd.f32 0.0, %v5856
      %v5858 = vpop.f32.mrf.mxu0
      %5859 = vmatprep.mubr.bf16.mxu0 0
      %5860 = vmatmul.mubr.bf16.gmra.mxu0 %v5690
      %v5861 = vpop.f32.mrf.mxu0
      %v5862 = vadd.f32 0.0, %v5861
      %v5863 = vpop.f32.mrf.mxu0
      %v5864 = vpop.f32.mrf.mxu0
      %v5865 = vadd.f32 0.0, %v5864
      %v5866 = vpop.f32.mrf.mxu0
      %5867 = vmatprep.mubr.bf16.mxu0 0
      %5868 = vmatmul.mubr.bf16.gmra.mxu0 %v5691
      %v5869 = vpop.f32.mrf.mxu0
      %v5870 = vadd.f32 0.0, %v5869
      %v5871 = vpop.f32.mrf.mxu0
      %v5872 = vpop.f32.mrf.mxu0
      %v5873 = vadd.f32 0.0, %v5872
      %v5874 = vpop.f32.mrf.mxu0
      %5875 = vmatprep.mubr.bf16.mxu0 0
      %5876 = vmatmul.mubr.bf16.gmra.mxu0 %v5692
      %v5877 = vpop.f32.mrf.mxu0
      %v5878 = vadd.f32 0.0, %v5877
      %v5879 = vpop.f32.mrf.mxu0
      %v5880 = vpop.f32.mrf.mxu0
      %v5881 = vadd.f32 0.0, %v5880
      %v5882 = vpop.f32.mrf.mxu0
      %5883 = vmatprep.mubr.bf16.mxu0 0
      %5884 = vmatmul.mubr.bf16.gmra.mxu0 %v5693
      %v5885 = vpop.f32.mrf.mxu0
      %v5886 = vadd.f32 0.0, %v5885
      %v5887 = vpop.f32.mrf.mxu0
      %v5888 = vpop.f32.mrf.mxu0
      %v5889 = vadd.f32 0.0, %v5888
      %v5890 = vpop.f32.mrf.mxu0
      %5891 = vmatprep.mubr.bf16.mxu0 0
      %5892 = vmatmul.mubr.bf16.gmra.mxu0 %v5694
      %v5893 = vpop.f32.mrf.mxu0
      %v5894 = vadd.f32 0.0, %v5893
      %v5895 = vpop.f32.mrf.mxu0
      %v5896 = vpop.f32.mrf.mxu0
      %v5897 = vadd.f32 0.0, %v5896
      %v5898 = vpop.f32.mrf.mxu0
      %5899 = vmatprep.mubr.bf16.mxu0 0
      %5900 = vmatmul.mubr.bf16.gmra.mxu0 %v5695
      %v5901 = vpop.f32.mrf.mxu0
      %v5902 = vadd.f32 0.0, %v5901
      %v5903 = vpop.f32.mrf.mxu0
      %v5904 = vpop.f32.mrf.mxu0
      %v5905 = vadd.f32 0.0, %v5904
      %v5906 = vpop.f32.mrf.mxu0
      %5907 = vmatprep.mubr.bf16.mxu0 0
      %5908 = vmatmul.mubr.bf16.gmra.mxu0 %v5696
      %v5909 = vpop.f32.mrf.mxu0
      %v5910 = vadd.f32 0.0, %v5909
      %v5911 = vpop.f32.mrf.mxu0
      %v5912 = vpop.f32.mrf.mxu0
      %v5913 = vadd.f32 0.0, %v5912
      %v5914 = vpop.f32.mrf.mxu0
      %5915 = vmatprep.mubr.bf16.mxu0 0
      %5916 = vmatmul.mubr.bf16.gmra.mxu0 %v5697
      %v5917 = vpop.f32.mrf.mxu0
      %v5918 = vadd.f32 0.0, %v5917
      %v5919 = vpop.f32.mrf.mxu0
      %v5920 = vpop.f32.mrf.mxu0
      %v5921 = vadd.f32 0.0, %v5920
      %v5922 = vpop.f32.mrf.mxu0
      %5923 = vdwg.mxu0
      %v5924 = vadd.f32 %v5108, %v5798
      %v5925 = vadd.f32 %v5111, %v5801
      %v5926 = vadd.f32 %v5116, %v5806
      %v5927 = vadd.f32 %v5119, %v5809
      %v5928 = vadd.f32 %v5124, %v5814
      %v5929 = vadd.f32 %v5127, %v5817
      %v5930 = vadd.f32 %v5132, %v5822
      %v5931 = vadd.f32 %v5135, %v5825
      %v5932 = vadd.f32 %v5140, %v5830
      %v5933 = vadd.f32 %v5143, %v5833
      %v5934 = vadd.f32 %v5148, %v5838
      %v5935 = vadd.f32 %v5151, %v5841
      %v5936 = vadd.f32 %v5156, %v5846
      %v5937 = vadd.f32 %v5159, %v5849
      %v5938 = vadd.f32 %v5164, %v5854
      %v5939 = vadd.f32 %v5167, %v5857
      %v5940 = vadd.f32 %v5172, %v5862
      %v5941 = vadd.f32 %v5175, %v5865
      %v5942 = vadd.f32 %v5180, %v5870
      %v5943 = vadd.f32 %v5183, %v5873
      %v5944 = vadd.f32 %v5188, %v5878
      %v5945 = vadd.f32 %v5191, %v5881
      %v5946 = vadd.f32 %v5196, %v5886
      %v5947 = vadd.f32 %v5199, %v5889
      %v5948 = vadd.f32 %v5204, %v5894
      %v5949 = vadd.f32 %v5207, %v5897
      %v5950 = vadd.f32 %v5212, %v5902
      %v5951 = vadd.f32 %v5215, %v5905
      %v5952 = vadd.f32 %v5220, %v5910
      %v5953 = vadd.f32 %v5223, %v5913
      %v5954 = vadd.f32 %v5228, %v5918
      %v5955 = vadd.f32 %v5231, %v5921
      %v5956 = vld [vmem:[%s7] sm:$0x1]
      %v5958 = vlaneseq
      %v5959 = vshrl.u32 %v5958, 7
      %v5960 = vsub.s32 0, %v5959
      %v5961 = vrot.slane %v5956, %v5960
      %v5963 = vadd.f32 %v5924, %v5961
      %v5964 = vadd.f32 %v5925, %v5961
      %v5965 = vadd.f32 %v5926, %v5961
      %v5966 = vadd.f32 %v5927, %v5961
      %v5967 = vadd.f32 %v5928, %v5961
      %v5968 = vadd.f32 %v5929, %v5961
      %v5969 = vadd.f32 %v5930, %v5961
      %v5970 = vadd.f32 %v5931, %v5961
      %v5971 = vadd.f32 %v5932, %v5961
      %v5972 = vadd.f32 %v5933, %v5961
      %v5973 = vadd.f32 %v5934, %v5961
      %v5974 = vadd.f32 %v5935, %v5961
      %v5975 = vadd.f32 %v5936, %v5961
      %v5976 = vadd.f32 %v5937, %v5961
      %v5977 = vadd.f32 %v5938, %v5961
      %v5978 = vadd.f32 %v5939, %v5961
      %v5979 = vadd.f32 %v5940, %v5961
      %v5980 = vadd.f32 %v5941, %v5961
      %v5981 = vadd.f32 %v5942, %v5961
      %v5982 = vadd.f32 %v5943, %v5961
      %v5983 = vadd.f32 %v5944, %v5961
      %v5984 = vadd.f32 %v5945, %v5961
      %v5985 = vadd.f32 %v5946, %v5961
      %v5986 = vadd.f32 %v5947, %v5961
      %v5987 = vadd.f32 %v5948, %v5961
      %v5988 = vadd.f32 %v5949, %v5961
      %v5989 = vadd.f32 %v5950, %v5961
      %v5990 = vadd.f32 %v5951, %v5961
      %v5991 = vadd.f32 %v5952, %v5961
      %v5992 = vadd.f32 %v5953, %v5961
      %v5993 = vadd.f32 %v5954, %v5961
      %v5994 = vadd.f32 %v5955, %v5961
      %v5995 = vmax.f32 %v5963, 0.0
      %v5996 = vmax.f32 %v5964, 0.0
      %v5997 = vmax.f32 %v5965, 0.0
      %v5998 = vmax.f32 %v5966, 0.0
      %v5999 = vmax.f32 %v5967, 0.0
      %v6000 = vmax.f32 %v5968, 0.0
      %v6001 = vmax.f32 %v5969, 0.0
      %v6002 = vmax.f32 %v5970, 0.0
      %v6003 = vmax.f32 %v5971, 0.0
      %v6004 = vmax.f32 %v5972, 0.0
      %v6005 = vmax.f32 %v5973, 0.0
      %v6006 = vmax.f32 %v5974, 0.0
      %v6007 = vmax.f32 %v5975, 0.0
      %v6008 = vmax.f32 %v5976, 0.0
      %v6009 = vmax.f32 %v5977, 0.0
      %v6010 = vmax.f32 %v5978, 0.0
      %v6011 = vmax.f32 %v5979, 0.0
      %v6012 = vmax.f32 %v5980, 0.0
      %v6013 = vmax.f32 %v5981, 0.0
      %v6014 = vmax.f32 %v5982, 0.0
      %v6015 = vmax.f32 %v5983, 0.0
      %v6016 = vmax.f32 %v5984, 0.0
      %v6017 = vmax.f32 %v5985, 0.0
      %v6018 = vmax.f32 %v5986, 0.0
      %v6019 = vmax.f32 %v5987, 0.0
      %v6020 = vmax.f32 %v5988, 0.0
      %v6021 = vmax.f32 %v5989, 0.0
      %v6022 = vmax.f32 %v5990, 0.0
      %v6023 = vmax.f32 %v5991, 0.0
      %v6024 = vmax.f32 %v5992, 0.0
      %v6025 = vmax.f32 %v5993, 0.0
      %v6026 = vmax.f32 %v5994, 0.0
      %v6027 = vsel %vm3675, %v5995, 0.0
      %v6028 = vsel %vm3676, %v5996, 0.0
      %v6029 = vsel %vm3677, %v5997, 0.0
      %v6030 = vsel %vm3678, %v5998, 0.0
      %v6031 = vsel %vm3679, %v5999, 0.0
      %v6032 = vsel %vm3680, %v6000, 0.0
      %v6033 = vsel %vm3681, %v6001, 0.0
      %v6034 = vsel %vm3682, %v6002, 0.0
      %v6035 = vsel %vm3683, %v6003, 0.0
      %v6036 = vsel %vm3684, %v6004, 0.0
      %v6037 = vsel %vm3685, %v6005, 0.0
      %v6038 = vsel %vm3686, %v6006, 0.0
      %v6039 = vsel %vm3687, %v6007, 0.0
      %v6040 = vsel %vm3688, %v6008, 0.0
      %v6041 = vsel %vm3689, %v6009, 0.0
      %v6042 = vsel %vm3690, %v6010, 0.0
      %v6043 = vsel %vm3691, %v6011, 0.0
      %v6044 = vsel %vm3692, %v6012, 0.0
      %v6045 = vsel %vm3693, %v6013, 0.0
      %v6046 = vsel %vm3694, %v6014, 0.0
      %v6047 = vsel %vm3695, %v6015, 0.0
      %v6048 = vsel %vm3696, %v6016, 0.0
      %v6049 = vsel %vm3697, %v6017, 0.0
      %v6050 = vsel %vm3698, %v6018, 0.0
      %v6051 = vsel %vm3699, %v6019, 0.0
      %v6052 = vsel %vm3700, %v6020, 0.0
      %v6053 = vsel %vm3701, %v6021, 0.0
      %v6054 = vsel %vm3702, %v6022, 0.0
      %v6055 = vsel %vm3703, %v6023, 0.0
      %v6056 = vsel %vm3704, %v6024, 0.0
      %v6057 = vsel %vm3705, %v6025, 0.0
      %v6058 = vsel %vm3706, %v6026, 0.0
      %6059 = vst.msk [vmem:[#allocation4 + $0x20] sm:$0xff] %vm2968, %v6027
      %6060 = vst.msk [vmem:[#allocation4 + $0x28] sm:$0xff] %vm2968, %v6028
      %6061 = vst.msk [vmem:[#allocation4 + $0x30] sm:$0xff] %vm2968, %v6029
      %6062 = vst.msk [vmem:[#allocation4 + $0x38] sm:$0xff] %vm2968, %v6030
      %6063 = vst.msk [vmem:[#allocation4 + $0x40] sm:$0xff] %vm2968, %v6031
      %6064 = vst.msk [vmem:[#allocation4 + $0x48] sm:$0xff] %vm2968, %v6032
      %6065 = vst.msk [vmem:[#allocation4 + $0x50] sm:$0xff] %vm2968, %v6033
      %6066 = vst.msk [vmem:[#allocation4 + $0x58] sm:$0xff] %vm2968, %v6034
      %6067 = vst.msk [vmem:[#allocation4 + $0x60] sm:$0xff] %vm2968, %v6035
      %6068 = vst.msk [vmem:[#allocation4 + $0x68] sm:$0xff] %vm2968, %v6036
      %6069 = vst.msk [vmem:[#allocation4 + $0x70] sm:$0xff] %vm2968, %v6037
      %6070 = vst.msk [vmem:[#allocation4 + $0x78] sm:$0xff] %vm2968, %v6038
      %6071 = vst.msk [vmem:[#allocation4 + $0x80] sm:$0xff] %vm2968, %v6039
      %6072 = vst.msk [vmem:[#allocation4 + $0x88] sm:$0xff] %vm2968, %v6040
      %6073 = vst.msk [vmem:[#allocation4 + $0x90] sm:$0xff] %vm2968, %v6041
      %6074 = vst.msk [vmem:[#allocation4 + $0x98] sm:$0xff] %vm2968, %v6042
      %6075 = vst.msk [vmem:[#allocation4 + $0xa0] sm:$0xff] %vm2968, %v6043
      %6076 = vst.msk [vmem:[#allocation4 + $0xa8] sm:$0xff] %vm2968, %v6044
      %6077 = vst.msk [vmem:[#allocation4 + $0xb0] sm:$0xff] %vm2968, %v6045
      %6078 = vst.msk [vmem:[#allocation4 + $0xb8] sm:$0xff] %vm2968, %v6046
      %6079 = vst.msk [vmem:[#allocation4 + $0xc0] sm:$0xff] %vm2968, %v6047
      %6080 = vst.msk [vmem:[#allocation4 + $0xc8] sm:$0xff] %vm2968, %v6048
      %6081 = vst.msk [vmem:[#allocation4 + $0xd0] sm:$0xff] %vm2968, %v6049
      %6082 = vst.msk [vmem:[#allocation4 + $0xd8] sm:$0xff] %vm2968, %v6050
      %6083 = vst.msk [vmem:[#allocation4 + $0xe0] sm:$0xff] %vm2968, %v6051
      %6084 = vst.msk [vmem:[#allocation4 + $0xe8] sm:$0xff] %vm2968, %v6052
      %6085 = vst.msk [vmem:[#allocation4 + $0xf0] sm:$0xff] %vm2968, %v6053
      %6086 = vst.msk [vmem:[#allocation4 + $0xf8] sm:$0xff] %vm2968, %v6054
      %6087 = vst.msk [vmem:[#allocation4 + $0x100] sm:$0xff] %vm2968, %v6055
      %6088 = vst.msk [vmem:[#allocation4 + $0x108] sm:$0xff] %vm2968, %v6056
      %6089 = vst.msk [vmem:[#allocation4 + $0x110] sm:$0xff] %vm2968, %v6057
      %6090 = vst.msk [vmem:[#allocation4 + $0x118] sm:$0xff] %vm2968, %v6058
      %v6091 = vld [vmem:[#allocation4 + $0xf] sm:$0xff]
      %v6092 = vld [vmem:[#allocation4 + $0x17] sm:$0xff]
      %v6093 = vld [vmem:[#allocation4 + $0x1f] sm:$0xff]
      %v6094 = vld [vmem:[#allocation4 + $0x27] sm:$0xff]
      %v6095 = vld [vmem:[#allocation4 + $0x2f] sm:$0xff]
      %v6096 = vld [vmem:[#allocation4 + $0x37] sm:$0xff]
      %v6097 = vld [vmem:[#allocation4 + $0x3f] sm:$0xff]
      %v6098 = vld [vmem:[#allocation4 + $0x47] sm:$0xff]
      %v6099 = vld [vmem:[#allocation4 + $0x4f] sm:$0xff]
      %v6100 = vld [vmem:[#allocation4 + $0x57] sm:$0xff]
      %v6101 = vld [vmem:[#allocation4 + $0x5f] sm:$0xff]
      %v6102 = vld [vmem:[#allocation4 + $0x67] sm:$0xff]
      %v6103 = vld [vmem:[#allocation4 + $0x6f] sm:$0xff]
      %v6104 = vld [vmem:[#allocation4 + $0x77] sm:$0xff]
      %v6105 = vld [vmem:[#allocation4 + $0x7f] sm:$0xff]
      %v6106 = vld [vmem:[#allocation4 + $0x87] sm:$0xff]
      %v6107 = vld [vmem:[#allocation4 + $0x8f] sm:$0xff]
      %v6108 = vld [vmem:[#allocation4 + $0x97] sm:$0xff]
      %v6109 = vld [vmem:[#allocation4 + $0x9f] sm:$0xff]
      %v6110 = vld [vmem:[#allocation4 + $0xa7] sm:$0xff]
      %v6111 = vld [vmem:[#allocation4 + $0xaf] sm:$0xff]
      %v6112 = vld [vmem:[#allocation4 + $0xb7] sm:$0xff]
      %v6113 = vld [vmem:[#allocation4 + $0xbf] sm:$0xff]
      %v6114 = vld [vmem:[#allocation4 + $0xc7] sm:$0xff]
      %v6115 = vld [vmem:[#allocation4 + $0xcf] sm:$0xff]
      %v6116 = vld [vmem:[#allocation4 + $0xd7] sm:$0xff]
      %v6117 = vld [vmem:[#allocation4 + $0xdf] sm:$0xff]
      %v6118 = vld [vmem:[#allocation4 + $0xe7] sm:$0xff]
      %v6119 = vld [vmem:[#allocation4 + $0xef] sm:$0xff]
      %v6120 = vld [vmem:[#allocation4 + $0xf7] sm:$0xff]
      %v6121 = vld [vmem:[#allocation4 + $0xff] sm:$0xff]
      %v6122 = vld [vmem:[#allocation4 + $0x107] sm:$0xff]
      %v6123 = vld [vmem:[#allocation4 + $0x10] sm:$0xff]
      %v6124 = vld [vmem:[#allocation4 + $0x18] sm:$0xff]
      %v6125 = vld [vmem:[#allocation4 + $0x20] sm:$0xff]
      %v6126 = vld [vmem:[#allocation4 + $0x28] sm:$0xff]
      %v6127 = vld [vmem:[#allocation4 + $0x30] sm:$0xff]
      %v6128 = vld [vmem:[#allocation4 + $0x38] sm:$0xff]
      %v6129 = vld [vmem:[#allocation4 + $0x40] sm:$0xff]
      %v6130 = vld [vmem:[#allocation4 + $0x48] sm:$0xff]
      %v6131 = vld [vmem:[#allocation4 + $0x50] sm:$0xff]
      %v6132 = vld [vmem:[#allocation4 + $0x58] sm:$0xff]
      %v6133 = vld [vmem:[#allocation4 + $0x60] sm:$0xff]
      %v6134 = vld [vmem:[#allocation4 + $0x68] sm:$0xff]
      %v6135 = vld [vmem:[#allocation4 + $0x70] sm:$0xff]
      %v6136 = vld [vmem:[#allocation4 + $0x78] sm:$0xff]
      %v6137 = vld [vmem:[#allocation4 + $0x80] sm:$0xff]
      %v6138 = vld [vmem:[#allocation4 + $0x88] sm:$0xff]
      %v6139 = vld [vmem:[#allocation4 + $0x90] sm:$0xff]
      %v6140 = vld [vmem:[#allocation4 + $0x98] sm:$0xff]
      %v6141 = vld [vmem:[#allocation4 + $0xa0] sm:$0xff]
      %v6142 = vld [vmem:[#allocation4 + $0xa8] sm:$0xff]
      %v6143 = vld [vmem:[#allocation4 + $0xb0] sm:$0xff]
      %v6144 = vld [vmem:[#allocation4 + $0xb8] sm:$0xff]
      %v6145 = vld [vmem:[#allocation4 + $0xc0] sm:$0xff]
      %v6146 = vld [vmem:[#allocation4 + $0xc8] sm:$0xff]
      %v6147 = vld [vmem:[#allocation4 + $0xd0] sm:$0xff]
      %v6148 = vld [vmem:[#allocation4 + $0xd8] sm:$0xff]
      %v6149 = vld [vmem:[#allocation4 + $0xe0] sm:$0xff]
      %v6150 = vld [vmem:[#allocation4 + $0xe8] sm:$0xff]
      %v6151 = vld [vmem:[#allocation4 + $0xf0] sm:$0xff]
      %v6152 = vld [vmem:[#allocation4 + $0xf8] sm:$0xff]
      %v6153 = vld [vmem:[#allocation4 + $0x100] sm:$0xff]
      %v6154 = vld [vmem:[#allocation4 + $0x108] sm:$0xff]
      %v6155 = vld [vmem:[#allocation4 + $0x11] sm:$0xff]
      %v6156 = vld [vmem:[#allocation4 + $0x19] sm:$0xff]
      %v6157 = vld [vmem:[#allocation4 + $0x21] sm:$0xff]
      %v6158 = vld [vmem:[#allocation4 + $0x29] sm:$0xff]
      %v6159 = vld [vmem:[#allocation4 + $0x31] sm:$0xff]
      %v6160 = vld [vmem:[#allocation4 + $0x39] sm:$0xff]
      %v6161 = vld [vmem:[#allocation4 + $0x41] sm:$0xff]
      %v6162 = vld [vmem:[#allocation4 + $0x49] sm:$0xff]
      %v6163 = vld [vmem:[#allocation4 + $0x51] sm:$0xff]
      %v6164 = vld [vmem:[#allocation4 + $0x59] sm:$0xff]
      %v6165 = vld [vmem:[#allocation4 + $0x61] sm:$0xff]
      %v6166 = vld [vmem:[#allocation4 + $0x69] sm:$0xff]
      %v6167 = vld [vmem:[#allocation4 + $0x71] sm:$0xff]
      %v6168 = vld [vmem:[#allocation4 + $0x79] sm:$0xff]
      %v6169 = vld [vmem:[#allocation4 + $0x81] sm:$0xff]
      %v6170 = vld [vmem:[#allocation4 + $0x89] sm:$0xff]
      %v6171 = vld [vmem:[#allocation4 + $0x91] sm:$0xff]
      %v6172 = vld [vmem:[#allocation4 + $0x99] sm:$0xff]
      %v6173 = vld [vmem:[#allocation4 + $0xa1] sm:$0xff]
      %v6174 = vld [vmem:[#allocation4 + $0xa9] sm:$0xff]
      %v6175 = vld [vmem:[#allocation4 + $0xb1] sm:$0xff]
      %v6176 = vld [vmem:[#allocation4 + $0xb9] sm:$0xff]
      %v6177 = vld [vmem:[#allocation4 + $0xc1] sm:$0xff]
      %v6178 = vld [vmem:[#allocation4 + $0xc9] sm:$0xff]
      %v6179 = vld [vmem:[#allocation4 + $0xd1] sm:$0xff]
      %v6180 = vld [vmem:[#allocation4 + $0xd9] sm:$0xff]
      %v6181 = vld [vmem:[#allocation4 + $0xe1] sm:$0xff]
      %v6182 = vld [vmem:[#allocation4 + $0xe9] sm:$0xff]
      %v6183 = vld [vmem:[#allocation4 + $0xf1] sm:$0xff]
      %v6184 = vld [vmem:[#allocation4 + $0xf9] sm:$0xff]
      %v6185 = vld [vmem:[#allocation4 + $0x101] sm:$0xff]
      %v6186 = vld [vmem:[#allocation4 + $0x109] sm:$0xff]
      %v6187 = vld [vmem:[#allocation4 + $0x10f] sm:$0xff]
      %v6188 = vld [vmem:[#allocation4 + $0x117] sm:$0xff]
      %6221 = vrot.lane.b32.xlu0 %v6123, 32
      %v6222 = vpop.permute.xlu0 %6221
      %6223 = vrot.lane.b32.xlu0 %v6124, 32
      %v6224 = vpop.permute.xlu0 %6223
      %6225 = vrot.lane.b32.xlu0 %v6125, 32
      %v6226 = vpop.permute.xlu0 %6225
      %6227 = vrot.lane.b32.xlu0 %v6126, 32
      %v6228 = vpop.permute.xlu0 %6227
      %6229 = vrot.lane.b32.xlu0 %v6127, 32
      %v6230 = vpop.permute.xlu0 %6229
      %6231 = vrot.lane.b32.xlu0 %v6128, 32
      %v6232 = vpop.permute.xlu0 %6231
      %6233 = vrot.lane.b32.xlu0 %v6129, 32
      %v6234 = vpop.permute.xlu0 %6233
      %6235 = vrot.lane.b32.xlu0 %v6130, 32
      %v6236 = vpop.permute.xlu0 %6235
      %6237 = vrot.lane.b32.xlu0 %v6131, 32
      %v6238 = vpop.permute.xlu0 %6237
      %6239 = vrot.lane.b32.xlu0 %v6132, 32
      %v6240 = vpop.permute.xlu0 %6239
      %6241 = vrot.lane.b32.xlu0 %v6133, 32
      %v6242 = vpop.permute.xlu0 %6241
      %6243 = vrot.lane.b32.xlu0 %v6134, 32
      %v6244 = vpop.permute.xlu0 %6243
      %6245 = vrot.lane.b32.xlu0 %v6135, 32
      %v6246 = vpop.permute.xlu0 %6245
      %6247 = vrot.lane.b32.xlu0 %v6136, 32
      %v6248 = vpop.permute.xlu0 %6247
      %6249 = vrot.lane.b32.xlu0 %v6137, 32
      %v6250 = vpop.permute.xlu0 %6249
      %6251 = vrot.lane.b32.xlu0 %v6138, 32
      %v6252 = vpop.permute.xlu0 %6251
      %6253 = vrot.lane.b32.xlu0 %v6139, 32
      %v6254 = vpop.permute.xlu0 %6253
      %6255 = vrot.lane.b32.xlu0 %v6140, 32
      %v6256 = vpop.permute.xlu0 %6255
      %6257 = vrot.lane.b32.xlu0 %v6141, 32
      %v6258 = vpop.permute.xlu0 %6257
      %6259 = vrot.lane.b32.xlu0 %v6142, 32
      %v6260 = vpop.permute.xlu0 %6259
      %6261 = vrot.lane.b32.xlu0 %v6143, 32
      %v6262 = vpop.permute.xlu0 %6261
      %6263 = vrot.lane.b32.xlu0 %v6144, 32
      %v6264 = vpop.permute.xlu0 %6263
      %6265 = vrot.lane.b32.xlu0 %v6145, 32
      %v6266 = vpop.permute.xlu0 %6265
      %6267 = vrot.lane.b32.xlu0 %v6146, 32
      %v6268 = vpop.permute.xlu0 %6267
      %6269 = vrot.lane.b32.xlu0 %v6147, 32
      %v6270 = vpop.permute.xlu0 %6269
      %6271 = vrot.lane.b32.xlu0 %v6148, 32
      %v6272 = vpop.permute.xlu0 %6271
      %6273 = vrot.lane.b32.xlu0 %v6149, 32
      %v6274 = vpop.permute.xlu0 %6273
      %6275 = vrot.lane.b32.xlu0 %v6150, 32
      %v6276 = vpop.permute.xlu0 %6275
      %6277 = vrot.lane.b32.xlu0 %v6151, 32
      %v6278 = vpop.permute.xlu0 %6277
      %6279 = vrot.lane.b32.xlu0 %v6152, 32
      %v6280 = vpop.permute.xlu0 %6279
      %6281 = vrot.lane.b32.xlu0 %v6153, 32
      %v6282 = vpop.permute.xlu0 %6281
      %6283 = vrot.lane.b32.xlu0 %v6154, 32
      %v6284 = vpop.permute.xlu0 %6283
      %6349 = vrot.lane.b32.xlu0 %v6155, 64
      %v6350 = vpop.permute.xlu0 %6349
      %6351 = vrot.lane.b32.xlu0 %v6156, 64
      %v6352 = vpop.permute.xlu0 %6351
      %6353 = vrot.lane.b32.xlu0 %v6157, 64
      %v6354 = vpop.permute.xlu0 %6353
      %6355 = vrot.lane.b32.xlu0 %v6158, 64
      %v6356 = vpop.permute.xlu0 %6355
      %6357 = vrot.lane.b32.xlu0 %v6159, 64
      %v6358 = vpop.permute.xlu0 %6357
      %6359 = vrot.lane.b32.xlu0 %v6160, 64
      %v6360 = vpop.permute.xlu0 %6359
      %6361 = vrot.lane.b32.xlu0 %v6161, 64
      %v6362 = vpop.permute.xlu0 %6361
      %6363 = vrot.lane.b32.xlu0 %v6162, 64
      %v6364 = vpop.permute.xlu0 %6363
      %6365 = vrot.lane.b32.xlu0 %v6163, 64
      %v6366 = vpop.permute.xlu0 %6365
      %6367 = vrot.lane.b32.xlu0 %v6164, 64
      %v6368 = vpop.permute.xlu0 %6367
      %6369 = vrot.lane.b32.xlu0 %v6165, 64
      %v6370 = vpop.permute.xlu0 %6369
      %6371 = vrot.lane.b32.xlu0 %v6166, 64
      %v6372 = vpop.permute.xlu0 %6371
      %6373 = vrot.lane.b32.xlu0 %v6167, 64
      %v6374 = vpop.permute.xlu0 %6373
      %6375 = vrot.lane.b32.xlu0 %v6168, 64
      %v6376 = vpop.permute.xlu0 %6375
      %6377 = vrot.lane.b32.xlu0 %v6169, 64
      %v6378 = vpop.permute.xlu0 %6377
      %6379 = vrot.lane.b32.xlu0 %v6170, 64
      %v6380 = vpop.permute.xlu0 %6379
      %6381 = vrot.lane.b32.xlu0 %v6171, 64
      %v6382 = vpop.permute.xlu0 %6381
      %6383 = vrot.lane.b32.xlu0 %v6172, 64
      %v6384 = vpop.permute.xlu0 %6383
      %6385 = vrot.lane.b32.xlu0 %v6173, 64
      %v6386 = vpop.permute.xlu0 %6385
      %6387 = vrot.lane.b32.xlu0 %v6174, 64
      %v6388 = vpop.permute.xlu0 %6387
      %6389 = vrot.lane.b32.xlu0 %v6175, 64
      %v6390 = vpop.permute.xlu0 %6389
      %6391 = vrot.lane.b32.xlu0 %v6176, 64
      %v6392 = vpop.permute.xlu0 %6391
      %6393 = vrot.lane.b32.xlu0 %v6177, 64
      %v6394 = vpop.permute.xlu0 %6393
      %6395 = vrot.lane.b32.xlu0 %v6178, 64
      %v6396 = vpop.permute.xlu0 %6395
      %6397 = vrot.lane.b32.xlu0 %v6179, 64
      %v6398 = vpop.permute.xlu0 %6397
      %6399 = vrot.lane.b32.xlu0 %v6180, 64
      %v6400 = vpop.permute.xlu0 %6399
      %6401 = vrot.lane.b32.xlu0 %v6181, 64
      %v6402 = vpop.permute.xlu0 %6401
      %6403 = vrot.lane.b32.xlu0 %v6182, 64
      %v6404 = vpop.permute.xlu0 %6403
      %6405 = vrot.lane.b32.xlu0 %v6183, 64
      %v6406 = vpop.permute.xlu0 %6405
      %6407 = vrot.lane.b32.xlu0 %v6184, 64
      %v6408 = vpop.permute.xlu0 %6407
      %6409 = vrot.lane.b32.xlu0 %v6185, 64
      %v6410 = vpop.permute.xlu0 %6409
      %6411 = vrot.lane.b32.xlu0 %v6186, 64
      %v6412 = vpop.permute.xlu0 %6411
      %6477 = vrot.lane.b32.xlu0 %v6093, 96
      %v6478 = vpop.permute.xlu0 %6477
      %6479 = vrot.lane.b32.xlu0 %v6094, 96
      %v6480 = vpop.permute.xlu0 %6479
      %6481 = vrot.lane.b32.xlu0 %v6095, 96
      %v6482 = vpop.permute.xlu0 %6481
      %6483 = vrot.lane.b32.xlu0 %v6096, 96
      %v6484 = vpop.permute.xlu0 %6483
      %6485 = vrot.lane.b32.xlu0 %v6097, 96
      %v6486 = vpop.permute.xlu0 %6485
      %6487 = vrot.lane.b32.xlu0 %v6098, 96
      %v6488 = vpop.permute.xlu0 %6487
      %6489 = vrot.lane.b32.xlu0 %v6099, 96
      %v6490 = vpop.permute.xlu0 %6489
      %6491 = vrot.lane.b32.xlu0 %v6100, 96
      %v6492 = vpop.permute.xlu0 %6491
      %6493 = vrot.lane.b32.xlu0 %v6101, 96
      %v6494 = vpop.permute.xlu0 %6493
      %6495 = vrot.lane.b32.xlu0 %v6102, 96
      %v6496 = vpop.permute.xlu0 %6495
      %6497 = vrot.lane.b32.xlu0 %v6103, 96
      %v6498 = vpop.permute.xlu0 %6497
      %6499 = vrot.lane.b32.xlu0 %v6104, 96
      %v6500 = vpop.permute.xlu0 %6499
      %6501 = vrot.lane.b32.xlu0 %v6105, 96
      %v6502 = vpop.permute.xlu0 %6501
      %6503 = vrot.lane.b32.xlu0 %v6106, 96
      %v6504 = vpop.permute.xlu0 %6503
      %6505 = vrot.lane.b32.xlu0 %v6107, 96
      %v6506 = vpop.permute.xlu0 %6505
      %6507 = vrot.lane.b32.xlu0 %v6108, 96
      %v6508 = vpop.permute.xlu0 %6507
      %6509 = vrot.lane.b32.xlu0 %v6109, 96
      %v6510 = vpop.permute.xlu0 %6509
      %6511 = vrot.lane.b32.xlu0 %v6110, 96
      %v6512 = vpop.permute.xlu0 %6511
      %6513 = vrot.lane.b32.xlu0 %v6111, 96
      %v6514 = vpop.permute.xlu0 %6513
      %6515 = vrot.lane.b32.xlu0 %v6112, 96
      %v6516 = vpop.permute.xlu0 %6515
      %6517 = vrot.lane.b32.xlu0 %v6113, 96
      %v6518 = vpop.permute.xlu0 %6517
      %6519 = vrot.lane.b32.xlu0 %v6114, 96
      %v6520 = vpop.permute.xlu0 %6519
      %6521 = vrot.lane.b32.xlu0 %v6115, 96
      %v6522 = vpop.permute.xlu0 %6521
      %6523 = vrot.lane.b32.xlu0 %v6116, 96
      %v6524 = vpop.permute.xlu0 %6523
      %6525 = vrot.lane.b32.xlu0 %v6117, 96
      %v6526 = vpop.permute.xlu0 %6525
      %6527 = vrot.lane.b32.xlu0 %v6118, 96
      %v6528 = vpop.permute.xlu0 %6527
      %6529 = vrot.lane.b32.xlu0 %v6119, 96
      %v6530 = vpop.permute.xlu0 %6529
      %6531 = vrot.lane.b32.xlu0 %v6120, 96
      %v6532 = vpop.permute.xlu0 %6531
      %6533 = vrot.lane.b32.xlu0 %v6121, 96
      %v6534 = vpop.permute.xlu0 %6533
      %6535 = vrot.lane.b32.xlu0 %v6122, 96
      %v6536 = vpop.permute.xlu0 %6535
      %6537 = vrot.lane.b32.xlu0 %v6187, 96
      %v6538 = vpop.permute.xlu0 %6537
      %6539 = vrot.lane.b32.xlu0 %v6188, 96
      %v6540 = vpop.permute.xlu0 %6539
      %v6573 = vsel %vm2968, %v6091, %v6222
      %v6574 = vsel %vm2968, %v6092, %v6224
      %v6575 = vsel %vm2968, %v6093, %v6226
      %v6576 = vsel %vm2968, %v6094, %v6228
      %v6577 = vsel %vm2968, %v6095, %v6230
      %v6578 = vsel %vm2968, %v6096, %v6232
      %v6579 = vsel %vm2968, %v6097, %v6234
      %v6580 = vsel %vm2968, %v6098, %v6236
      %v6581 = vsel %vm2968, %v6099, %v6238
      %v6582 = vsel %vm2968, %v6100, %v6240
      %v6583 = vsel %vm2968, %v6101, %v6242
      %v6584 = vsel %vm2968, %v6102, %v6244
      %v6585 = vsel %vm2968, %v6103, %v6246
      %v6586 = vsel %vm2968, %v6104, %v6248
      %v6587 = vsel %vm2968, %v6105, %v6250
      %v6588 = vsel %vm2968, %v6106, %v6252
      %v6589 = vsel %vm2968, %v6107, %v6254
      %v6590 = vsel %vm2968, %v6108, %v6256
      %v6591 = vsel %vm2968, %v6109, %v6258
      %v6592 = vsel %vm2968, %v6110, %v6260
      %v6593 = vsel %vm2968, %v6111, %v6262
      %v6594 = vsel %vm2968, %v6112, %v6264
      %v6595 = vsel %vm2968, %v6113, %v6266
      %v6596 = vsel %vm2968, %v6114, %v6268
      %v6597 = vsel %vm2968, %v6115, %v6270
      %v6598 = vsel %vm2968, %v6116, %v6272
      %v6599 = vsel %vm2968, %v6117, %v6274
      %v6600 = vsel %vm2968, %v6118, %v6276
      %v6601 = vsel %vm2968, %v6119, %v6278
      %v6602 = vsel %vm2968, %v6120, %v6280
      %v6603 = vsel %vm2968, %v6121, %v6282
      %v6604 = vsel %vm2968, %v6122, %v6284
      %v6605 = vsel %vm4285, %v6573, %v6350
      %v6606 = vsel %vm4285, %v6574, %v6352
      %v6607 = vsel %vm4285, %v6575, %v6354
      %v6608 = vsel %vm4285, %v6576, %v6356
      %v6609 = vsel %vm4285, %v6577, %v6358
      %v6610 = vsel %vm4285, %v6578, %v6360
      %v6611 = vsel %vm4285, %v6579, %v6362
      %v6612 = vsel %vm4285, %v6580, %v6364
      %v6613 = vsel %vm4285, %v6581, %v6366
      %v6614 = vsel %vm4285, %v6582, %v6368
      %v6615 = vsel %vm4285, %v6583, %v6370
      %v6616 = vsel %vm4285, %v6584, %v6372
      %v6617 = vsel %vm4285, %v6585, %v6374
      %v6618 = vsel %vm4285, %v6586, %v6376
      %v6619 = vsel %vm4285, %v6587, %v6378
      %v6620 = vsel %vm4285, %v6588, %v6380
      %v6621 = vsel %vm4285, %v6589, %v6382
      %v6622 = vsel %vm4285, %v6590, %v6384
      %v6623 = vsel %vm4285, %v6591, %v6386
      %v6624 = vsel %vm4285, %v6592, %v6388
      %v6625 = vsel %vm4285, %v6593, %v6390
      %v6626 = vsel %vm4285, %v6594, %v6392
      %v6627 = vsel %vm4285, %v6595, %v6394
      %v6628 = vsel %vm4285, %v6596, %v6396
      %v6629 = vsel %vm4285, %v6597, %v6398
      %v6630 = vsel %vm4285, %v6598, %v6400
      %v6631 = vsel %vm4285, %v6599, %v6402
      %v6632 = vsel %vm4285, %v6600, %v6404
      %v6633 = vsel %vm4285, %v6601, %v6406
      %v6634 = vsel %vm4285, %v6602, %v6408
      %v6635 = vsel %vm4285, %v6603, %v6410
      %v6636 = vsel %vm4285, %v6604, %v6412
      %v6637 = vsel %vm4318, %v6605, %v6478
      %v6638 = vsel %vm4318, %v6606, %v6480
      %v6639 = vsel %vm4318, %v6607, %v6482
      %v6640 = vsel %vm4318, %v6608, %v6484
      %v6641 = vsel %vm4318, %v6609, %v6486
      %v6642 = vsel %vm4318, %v6610, %v6488
      %v6643 = vsel %vm4318, %v6611, %v6490
      %v6644 = vsel %vm4318, %v6612, %v6492
      %v6645 = vsel %vm4318, %v6613, %v6494
      %v6646 = vsel %vm4318, %v6614, %v6496
      %v6647 = vsel %vm4318, %v6615, %v6498
      %v6648 = vsel %vm4318, %v6616, %v6500
      %v6649 = vsel %vm4318, %v6617, %v6502
      %v6650 = vsel %vm4318, %v6618, %v6504
      %v6651 = vsel %vm4318, %v6619, %v6506
      %v6652 = vsel %vm4318, %v6620, %v6508
      %v6653 = vsel %vm4318, %v6621, %v6510
      %v6654 = vsel %vm4318, %v6622, %v6512
      %v6655 = vsel %vm4318, %v6623, %v6514
      %v6656 = vsel %vm4318, %v6624, %v6516
      %v6657 = vsel %vm4318, %v6625, %v6518
      %v6658 = vsel %vm4318, %v6626, %v6520
      %v6659 = vsel %vm4318, %v6627, %v6522
      %v6660 = vsel %vm4318, %v6628, %v6524
      %v6661 = vsel %vm4318, %v6629, %v6526
      %v6662 = vsel %vm4318, %v6630, %v6528
      %v6663 = vsel %vm4318, %v6631, %v6530
      %v6664 = vsel %vm4318, %v6632, %v6532
      %v6665 = vsel %vm4318, %v6633, %v6534
      %v6666 = vsel %vm4318, %v6634, %v6536
      %v6667 = vsel %vm4318, %v6635, %v6538
      %v6668 = vsel %vm4318, %v6636, %v6540
      %v6669 = vpack.c.bf16 %v6638, %v6637
      %v6670 = vpack.c.bf16 %v6640, %v6639
      %v6671 = vpack.c.bf16 %v6642, %v6641
      %v6672 = vpack.c.bf16 %v6644, %v6643
      %v6673 = vpack.c.bf16 %v6646, %v6645
      %v6674 = vpack.c.bf16 %v6648, %v6647
      %v6675 = vpack.c.bf16 %v6650, %v6649
      %v6676 = vpack.c.bf16 %v6652, %v6651
      %v6677 = vpack.c.bf16 %v6654, %v6653
      %v6678 = vpack.c.bf16 %v6656, %v6655
      %v6679 = vpack.c.bf16 %v6658, %v6657
      %v6680 = vpack.c.bf16 %v6660, %v6659
      %v6681 = vpack.c.bf16 %v6662, %v6661
      %v6682 = vpack.c.bf16 %v6664, %v6663
      %v6683 = vpack.c.bf16 %v6666, %v6665
      %v6684 = vpack.c.bf16 %v6668, %v6667
      %v6685 = vld [vmem:[%s8] sm:$0xf]
      %v6686 = vld [vmem:[%s8 + $0x4] sm:$0xf]
      %v6687 = vld [vmem:[%s8 + $0x8] sm:$0xf]
      %v6688 = vld [vmem:[%s8 + $0xc] sm:$0xf]
      %v6689 = vld [vmem:[%s8 + $0x10] sm:$0xf]
      %v6690 = vld [vmem:[%s8 + $0x14] sm:$0xf]
      %v6691 = vld [vmem:[%s8 + $0x18] sm:$0xf]
      %v6692 = vld [vmem:[%s8 + $0x1c] sm:$0xf]
      %v6693 = vld [vmem:[%s8 + $0x20] sm:$0xf]
      %v6694 = vld [vmem:[%s8 + $0x24] sm:$0xf]
      %v6695 = vld [vmem:[%s8 + $0x28] sm:$0xf]
      %v6696 = vld [vmem:[%s8 + $0x2c] sm:$0xf]
      %v6697 = vld [vmem:[%s8 + $0x30] sm:$0xf]
      %v6698 = vld [vmem:[%s8 + $0x34] sm:$0xf]
      %v6699 = vld [vmem:[%s8 + $0x38] sm:$0xf]
      %v6700 = vld [vmem:[%s8 + $0x3c] sm:$0xf]
      %v6701 = vld [vmem:[#allocation4 + $0x110] sm:$0xff]
      %v6702 = vld [vmem:[#allocation4 + $0x118] sm:$0xff]
      %v6703 = vld [vmem:[#allocation4 + $0x111] sm:$0xff]
      %v6704 = vld [vmem:[#allocation4 + $0x119] sm:$0xff]
      %v6705 = vld [vmem:[#allocation4 + $0x11f] sm:$0xff]
      %v6706 = vld [vmem:[#allocation4 + $0x127] sm:$0xff]
      %v6707 = vld [vmem:[#allocation4 + $0x120] sm:$0xff]
      %v6708 = vld [vmem:[#allocation4 + $0x128] sm:$0xff]
      %6711 = vrot.lane.b32.xlu0 %v6157, 32
      %v6712 = vpop.permute.xlu0 %6711
      %6713 = vrot.lane.b32.xlu0 %v6158, 32
      %v6714 = vpop.permute.xlu0 %6713
      %6715 = vrot.lane.b32.xlu0 %v6159, 32
      %v6716 = vpop.permute.xlu0 %6715
      %6717 = vrot.lane.b32.xlu0 %v6160, 32
      %v6718 = vpop.permute.xlu0 %6717
      %6719 = vrot.lane.b32.xlu0 %v6161, 32
      %v6720 = vpop.permute.xlu0 %6719
      %6721 = vrot.lane.b32.xlu0 %v6162, 32
      %v6722 = vpop.permute.xlu0 %6721
      %6723 = vrot.lane.b32.xlu0 %v6163, 32
      %v6724 = vpop.permute.xlu0 %6723
      %6725 = vrot.lane.b32.xlu0 %v6164, 32
      %v6726 = vpop.permute.xlu0 %6725
      %6727 = vrot.lane.b32.xlu0 %v6165, 32
      %v6728 = vpop.permute.xlu0 %6727
      %6729 = vrot.lane.b32.xlu0 %v6166, 32
      %v6730 = vpop.permute.xlu0 %6729
      %6731 = vrot.lane.b32.xlu0 %v6167, 32
      %v6732 = vpop.permute.xlu0 %6731
      %6733 = vrot.lane.b32.xlu0 %v6168, 32
      %v6734 = vpop.permute.xlu0 %6733
      %6735 = vrot.lane.b32.xlu0 %v6169, 32
      %v6736 = vpop.permute.xlu0 %6735
      %6737 = vrot.lane.b32.xlu0 %v6170, 32
      %v6738 = vpop.permute.xlu0 %6737
      %6739 = vrot.lane.b32.xlu0 %v6171, 32
      %v6740 = vpop.permute.xlu0 %6739
      %6741 = vrot.lane.b32.xlu0 %v6172, 32
      %v6742 = vpop.permute.xlu0 %6741
      %6743 = vrot.lane.b32.xlu0 %v6173, 32
      %v6744 = vpop.permute.xlu0 %6743
      %6745 = vrot.lane.b32.xlu0 %v6174, 32
      %v6746 = vpop.permute.xlu0 %6745
      %6747 = vrot.lane.b32.xlu0 %v6175, 32
      %v6748 = vpop.permute.xlu0 %6747
      %6749 = vrot.lane.b32.xlu0 %v6176, 32
      %v6750 = vpop.permute.xlu0 %6749
      %6751 = vrot.lane.b32.xlu0 %v6177, 32
      %v6752 = vpop.permute.xlu0 %6751
      %6753 = vrot.lane.b32.xlu0 %v6178, 32
      %v6754 = vpop.permute.xlu0 %6753
      %6755 = vrot.lane.b32.xlu0 %v6179, 32
      %v6756 = vpop.permute.xlu0 %6755
      %6757 = vrot.lane.b32.xlu0 %v6180, 32
      %v6758 = vpop.permute.xlu0 %6757
      %6759 = vrot.lane.b32.xlu0 %v6181, 32
      %v6760 = vpop.permute.xlu0 %6759
      %6761 = vrot.lane.b32.xlu0 %v6182, 32
      %v6762 = vpop.permute.xlu0 %6761
      %6763 = vrot.lane.b32.xlu0 %v6183, 32
      %v6764 = vpop.permute.xlu0 %6763
      %6765 = vrot.lane.b32.xlu0 %v6184, 32
      %v6766 = vpop.permute.xlu0 %6765
      %6767 = vrot.lane.b32.xlu0 %v6185, 32
      %v6768 = vpop.permute.xlu0 %6767
      %6769 = vrot.lane.b32.xlu0 %v6186, 32
      %v6770 = vpop.permute.xlu0 %6769
      %6771 = vrot.lane.b32.xlu0 %v6703, 32
      %v6772 = vpop.permute.xlu0 %6771
      %6773 = vrot.lane.b32.xlu0 %v6704, 32
      %v6774 = vpop.permute.xlu0 %6773
      %6809 = vrot.lane.b32.xlu0 %v6095, 64
      %v6810 = vpop.permute.xlu0 %6809
      %6811 = vrot.lane.b32.xlu0 %v6096, 64
      %v6812 = vpop.permute.xlu0 %6811
      %6813 = vrot.lane.b32.xlu0 %v6097, 64
      %v6814 = vpop.permute.xlu0 %6813
      %6815 = vrot.lane.b32.xlu0 %v6098, 64
      %v6816 = vpop.permute.xlu0 %6815
      %6817 = vrot.lane.b32.xlu0 %v6099, 64
      %v6818 = vpop.permute.xlu0 %6817
      %6819 = vrot.lane.b32.xlu0 %v6100, 64
      %v6820 = vpop.permute.xlu0 %6819
      %6821 = vrot.lane.b32.xlu0 %v6101, 64
      %v6822 = vpop.permute.xlu0 %6821
      %6823 = vrot.lane.b32.xlu0 %v6102, 64
      %v6824 = vpop.permute.xlu0 %6823
      %6825 = vrot.lane.b32.xlu0 %v6103, 64
      %v6826 = vpop.permute.xlu0 %6825
      %6827 = vrot.lane.b32.xlu0 %v6104, 64
      %v6828 = vpop.permute.xlu0 %6827
      %6829 = vrot.lane.b32.xlu0 %v6105, 64
      %v6830 = vpop.permute.xlu0 %6829
      %6831 = vrot.lane.b32.xlu0 %v6106, 64
      %v6832 = vpop.permute.xlu0 %6831
      %6833 = vrot.lane.b32.xlu0 %v6107, 64
      %v6834 = vpop.permute.xlu0 %6833
      %6835 = vrot.lane.b32.xlu0 %v6108, 64
      %v6836 = vpop.permute.xlu0 %6835
      %6837 = vrot.lane.b32.xlu0 %v6109, 64
      %v6838 = vpop.permute.xlu0 %6837
      %6839 = vrot.lane.b32.xlu0 %v6110, 64
      %v6840 = vpop.permute.xlu0 %6839
      %6841 = vrot.lane.b32.xlu0 %v6111, 64
      %v6842 = vpop.permute.xlu0 %6841
      %6843 = vrot.lane.b32.xlu0 %v6112, 64
      %v6844 = vpop.permute.xlu0 %6843
      %6845 = vrot.lane.b32.xlu0 %v6113, 64
      %v6846 = vpop.permute.xlu0 %6845
      %6847 = vrot.lane.b32.xlu0 %v6114, 64
      %v6848 = vpop.permute.xlu0 %6847
      %6849 = vrot.lane.b32.xlu0 %v6115, 64
      %v6850 = vpop.permute.xlu0 %6849
      %6851 = vrot.lane.b32.xlu0 %v6116, 64
      %v6852 = vpop.permute.xlu0 %6851
      %6853 = vrot.lane.b32.xlu0 %v6117, 64
      %v6854 = vpop.permute.xlu0 %6853
      %6855 = vrot.lane.b32.xlu0 %v6118, 64
      %v6856 = vpop.permute.xlu0 %6855
      %6857 = vrot.lane.b32.xlu0 %v6119, 64
      %v6858 = vpop.permute.xlu0 %6857
      %6859 = vrot.lane.b32.xlu0 %v6120, 64
      %v6860 = vpop.permute.xlu0 %6859
      %6861 = vrot.lane.b32.xlu0 %v6121, 64
      %v6862 = vpop.permute.xlu0 %6861
      %6863 = vrot.lane.b32.xlu0 %v6122, 64
      %v6864 = vpop.permute.xlu0 %6863
      %6865 = vrot.lane.b32.xlu0 %v6187, 64
      %v6866 = vpop.permute.xlu0 %6865
      %6867 = vrot.lane.b32.xlu0 %v6188, 64
      %v6868 = vpop.permute.xlu0 %6867
      %6869 = vrot.lane.b32.xlu0 %v6705, 64
      %v6870 = vpop.permute.xlu0 %6869
      %6871 = vrot.lane.b32.xlu0 %v6706, 64
      %v6872 = vpop.permute.xlu0 %6871
      %6909 = vrot.lane.b32.xlu0 %v6127, 96
      %v6910 = vpop.permute.xlu0 %6909
      %6911 = vrot.lane.b32.xlu0 %v6128, 96
      %v6912 = vpop.permute.xlu0 %6911
      %6913 = vrot.lane.b32.xlu0 %v6129, 96
      %v6914 = vpop.permute.xlu0 %6913
      %6915 = vrot.lane.b32.xlu0 %v6130, 96
      %v6916 = vpop.permute.xlu0 %6915
      %6917 = vrot.lane.b32.xlu0 %v6131, 96
      %v6918 = vpop.permute.xlu0 %6917
      %6919 = vrot.lane.b32.xlu0 %v6132, 96
      %v6920 = vpop.permute.xlu0 %6919
      %6921 = vrot.lane.b32.xlu0 %v6133, 96
      %v6922 = vpop.permute.xlu0 %6921
      %6923 = vrot.lane.b32.xlu0 %v6134, 96
      %v6924 = vpop.permute.xlu0 %6923
      %6925 = vrot.lane.b32.xlu0 %v6135, 96
      %v6926 = vpop.permute.xlu0 %6925
      %6927 = vrot.lane.b32.xlu0 %v6136, 96
      %v6928 = vpop.permute.xlu0 %6927
      %6929 = vrot.lane.b32.xlu0 %v6137, 96
      %v6930 = vpop.permute.xlu0 %6929
      %6931 = vrot.lane.b32.xlu0 %v6138, 96
      %v6932 = vpop.permute.xlu0 %6931
      %6933 = vrot.lane.b32.xlu0 %v6139, 96
      %v6934 = vpop.permute.xlu0 %6933
      %6935 = vrot.lane.b32.xlu0 %v6140, 96
      %v6936 = vpop.permute.xlu0 %6935
      %6937 = vrot.lane.b32.xlu0 %v6141, 96
      %v6938 = vpop.permute.xlu0 %6937
      %6939 = vrot.lane.b32.xlu0 %v6142, 96
      %v6940 = vpop.permute.xlu0 %6939
      %6941 = vrot.lane.b32.xlu0 %v6143, 96
      %v6942 = vpop.permute.xlu0 %6941
      %6943 = vrot.lane.b32.xlu0 %v6144, 96
      %v6944 = vpop.permute.xlu0 %6943
      %6945 = vrot.lane.b32.xlu0 %v6145, 96
      %v6946 = vpop.permute.xlu0 %6945
      %6947 = vrot.lane.b32.xlu0 %v6146, 96
      %v6948 = vpop.permute.xlu0 %6947
      %6949 = vrot.lane.b32.xlu0 %v6147, 96
      %v6950 = vpop.permute.xlu0 %6949
      %6951 = vrot.lane.b32.xlu0 %v6148, 96
      %v6952 = vpop.permute.xlu0 %6951
      %6953 = vrot.lane.b32.xlu0 %v6149, 96
      %v6954 = vpop.permute.xlu0 %6953
      %6955 = vrot.lane.b32.xlu0 %v6150, 96
      %v6956 = vpop.permute.xlu0 %6955
      %6957 = vrot.lane.b32.xlu0 %v6151, 96
      %v6958 = vpop.permute.xlu0 %6957
      %6959 = vrot.lane.b32.xlu0 %v6152, 96
      %v6960 = vpop.permute.xlu0 %6959
      %6961 = vrot.lane.b32.xlu0 %v6153, 96
      %v6962 = vpop.permute.xlu0 %6961
      %6963 = vrot.lane.b32.xlu0 %v6154, 96
      %v6964 = vpop.permute.xlu0 %6963
      %6965 = vrot.lane.b32.xlu0 %v6701, 96
      %v6966 = vpop.permute.xlu0 %6965
      %6967 = vrot.lane.b32.xlu0 %v6702, 96
      %v6968 = vpop.permute.xlu0 %6967
      %6969 = vrot.lane.b32.xlu0 %v6707, 96
      %v6970 = vpop.permute.xlu0 %6969
      %6971 = vrot.lane.b32.xlu0 %v6708, 96
      %v6972 = vpop.permute.xlu0 %6971
      %v7005 = vsel %vm2968, %v6125, %v6712
      %v7006 = vsel %vm2968, %v6126, %v6714
      %v7007 = vsel %vm2968, %v6127, %v6716
      %v7008 = vsel %vm2968, %v6128, %v6718
      %v7009 = vsel %vm2968, %v6129, %v6720
      %v7010 = vsel %vm2968, %v6130, %v6722
      %v7011 = vsel %vm2968, %v6131, %v6724
      %v7012 = vsel %vm2968, %v6132, %v6726
      %v7013 = vsel %vm2968, %v6133, %v6728
      %v7014 = vsel %vm2968, %v6134, %v6730
      %v7015 = vsel %vm2968, %v6135, %v6732
      %v7016 = vsel %vm2968, %v6136, %v6734
      %v7017 = vsel %vm2968, %v6137, %v6736
      %v7018 = vsel %vm2968, %v6138, %v6738
      %v7019 = vsel %vm2968, %v6139, %v6740
      %v7020 = vsel %vm2968, %v6140, %v6742
      %v7021 = vsel %vm2968, %v6141, %v6744
      %v7022 = vsel %vm2968, %v6142, %v6746
      %v7023 = vsel %vm2968, %v6143, %v6748
      %v7024 = vsel %vm2968, %v6144, %v6750
      %v7025 = vsel %vm2968, %v6145, %v6752
      %v7026 = vsel %vm2968, %v6146, %v6754
      %v7027 = vsel %vm2968, %v6147, %v6756
      %v7028 = vsel %vm2968, %v6148, %v6758
      %v7029 = vsel %vm2968, %v6149, %v6760
      %v7030 = vsel %vm2968, %v6150, %v6762
      %v7031 = vsel %vm2968, %v6151, %v6764
      %v7032 = vsel %vm2968, %v6152, %v6766
      %v7033 = vsel %vm2968, %v6153, %v6768
      %v7034 = vsel %vm2968, %v6154, %v6770
      %v7035 = vsel %vm2968, %v6701, %v6772
      %v7036 = vsel %vm2968, %v6702, %v6774
      %v7037 = vsel %vm4285, %v7005, %v6810
      %v7038 = vsel %vm4285, %v7006, %v6812
      %v7039 = vsel %vm4285, %v7007, %v6814
      %v7040 = vsel %vm4285, %v7008, %v6816
      %v7041 = vsel %vm4285, %v7009, %v6818
      %v7042 = vsel %vm4285, %v7010, %v6820
      %v7043 = vsel %vm4285, %v7011, %v6822
      %v7044 = vsel %vm4285, %v7012, %v6824
      %v7045 = vsel %vm4285, %v7013, %v6826
      %v7046 = vsel %vm4285, %v7014, %v6828
      %v7047 = vsel %vm4285, %v7015, %v6830
      %v7048 = vsel %vm4285, %v7016, %v6832
      %v7049 = vsel %vm4285, %v7017, %v6834
      %v7050 = vsel %vm4285, %v7018, %v6836
      %v7051 = vsel %vm4285, %v7019, %v6838
      %v7052 = vsel %vm4285, %v7020, %v6840
      %v7053 = vsel %vm4285, %v7021, %v6842
      %v7054 = vsel %vm4285, %v7022, %v6844
      %v7055 = vsel %vm4285, %v7023, %v6846
      %v7056 = vsel %vm4285, %v7024, %v6848
      %v7057 = vsel %vm4285, %v7025, %v6850
      %v7058 = vsel %vm4285, %v7026, %v6852
      %v7059 = vsel %vm4285, %v7027, %v6854
      %v7060 = vsel %vm4285, %v7028, %v6856
      %v7061 = vsel %vm4285, %v7029, %v6858
      %v7062 = vsel %vm4285, %v7030, %v6860
      %v7063 = vsel %vm4285, %v7031, %v6862
      %v7064 = vsel %vm4285, %v7032, %v6864
      %v7065 = vsel %vm4285, %v7033, %v6866
      %v7066 = vsel %vm4285, %v7034, %v6868
      %v7067 = vsel %vm4285, %v7035, %v6870
      %v7068 = vsel %vm4285, %v7036, %v6872
      %v7069 = vsel %vm4318, %v7037, %v6910
      %v7070 = vsel %vm4318, %v7038, %v6912
      %v7071 = vsel %vm4318, %v7039, %v6914
      %v7072 = vsel %vm4318, %v7040, %v6916
      %v7073 = vsel %vm4318, %v7041, %v6918
      %v7074 = vsel %vm4318, %v7042, %v6920
      %v7075 = vsel %vm4318, %v7043, %v6922
      %v7076 = vsel %vm4318, %v7044, %v6924
      %v7077 = vsel %vm4318, %v7045, %v6926
      %v7078 = vsel %vm4318, %v7046, %v6928
      %v7079 = vsel %vm4318, %v7047, %v6930
      %v7080 = vsel %vm4318, %v7048, %v6932
      %v7081 = vsel %vm4318, %v7049, %v6934
      %v7082 = vsel %vm4318, %v7050, %v6936
      %v7083 = vsel %vm4318, %v7051, %v6938
      %v7084 = vsel %vm4318, %v7052, %v6940
      %v7085 = vsel %vm4318, %v7053, %v6942
      %v7086 = vsel %vm4318, %v7054, %v6944
      %v7087 = vsel %vm4318, %v7055, %v6946
      %v7088 = vsel %vm4318, %v7056, %v6948
      %v7089 = vsel %vm4318, %v7057, %v6950
      %v7090 = vsel %vm4318, %v7058, %v6952
      %v7091 = vsel %vm4318, %v7059, %v6954
      %v7092 = vsel %vm4318, %v7060, %v6956
      %v7093 = vsel %vm4318, %v7061, %v6958
      %v7094 = vsel %vm4318, %v7062, %v6960
      %v7095 = vsel %vm4318, %v7063, %v6962
      %v7096 = vsel %vm4318, %v7064, %v6964
      %v7097 = vsel %vm4318, %v7065, %v6966
      %v7098 = vsel %vm4318, %v7066, %v6968
      %v7099 = vsel %vm4318, %v7067, %v6970
      %v7100 = vsel %vm4318, %v7068, %v6972
      %v7101 = vpack.c.bf16 %v7070, %v7069
      %v7102 = vpack.c.bf16 %v7072, %v7071
      %v7103 = vpack.c.bf16 %v7074, %v7073
      %v7104 = vpack.c.bf16 %v7076, %v7075
      %v7105 = vpack.c.bf16 %v7078, %v7077
      %v7106 = vpack.c.bf16 %v7080, %v7079
      %v7107 = vpack.c.bf16 %v7082, %v7081
      %v7108 = vpack.c.bf16 %v7084, %v7083
      %v7109 = vpack.c.bf16 %v7086, %v7085
      %v7110 = vpack.c.bf16 %v7088, %v7087
      %v7111 = vpack.c.bf16 %v7090, %v7089
      %v7112 = vpack.c.bf16 %v7092, %v7091
      %v7113 = vpack.c.bf16 %v7094, %v7093
      %v7114 = vpack.c.bf16 %v7096, %v7095
      %v7115 = vpack.c.bf16 %v7098, %v7097
      %v7116 = vpack.c.bf16 %v7100, %v7099
      %s7117 = scalar_lea.vmem %s8, 64
      %v7118 = vld [vmem:[%s7117] sm:$0xf]
      %v7119 = vld [vmem:[%s7117 + $0x4] sm:$0xf]
      %v7120 = vld [vmem:[%s7117 + $0x8] sm:$0xf]
      %v7121 = vld [vmem:[%s7117 + $0xc] sm:$0xf]
      %v7122 = vld [vmem:[%s7117 + $0x10] sm:$0xf]
      %v7123 = vld [vmem:[%s7117 + $0x14] sm:$0xf]
      %v7124 = vld [vmem:[%s7117 + $0x18] sm:$0xf]
      %v7125 = vld [vmem:[%s7117 + $0x1c] sm:$0xf]
      %v7126 = vld [vmem:[%s7117 + $0x20] sm:$0xf]
      %v7127 = vld [vmem:[%s7117 + $0x24] sm:$0xf]
      %v7128 = vld [vmem:[%s7117 + $0x28] sm:$0xf]
      %v7129 = vld [vmem:[%s7117 + $0x2c] sm:$0xf]
      %v7130 = vld [vmem:[%s7117 + $0x30] sm:$0xf]
      %v7131 = vld [vmem:[%s7117 + $0x34] sm:$0xf]
      %v7132 = vld [vmem:[%s7117 + $0x38] sm:$0xf]
      %v7133 = vld [vmem:[%s7117 + $0x3c] sm:$0xf]
      %v7150 = vunpack.c.l.b16 %v7118
      %v7151 = vunpack.c.l.b16 %v7119
      %v7152 = vunpack.c.l.b16 %v7120
      %v7153 = vunpack.c.l.b16 %v7121
      %v7154 = vunpack.c.l.b16 %v7122
      %v7155 = vunpack.c.l.b16 %v7123
      %v7156 = vunpack.c.l.b16 %v7124
      %v7157 = vunpack.c.l.b16 %v7125
      %v7158 = vunpack.c.l.b16 %v7126
      %v7159 = vunpack.c.l.b16 %v7127
      %v7160 = vunpack.c.l.b16 %v7128
      %v7161 = vunpack.c.l.b16 %v7129
      %v7162 = vunpack.c.l.b16 %v7130
      %v7163 = vunpack.c.l.b16 %v7131
      %v7164 = vunpack.c.l.b16 %v7132
      %v7165 = vunpack.c.l.b16 %v7133
      %v7166 = vpack.c.b16 %v7151, %v7150
      %v7167 = vpack.c.b16 %v7153, %v7152
      %v7168 = vpack.c.b16 %v7155, %v7154
      %v7169 = vpack.c.b16 %v7157, %v7156
      %v7170 = vpack.c.b16 %v7159, %v7158
      %v7171 = vpack.c.b16 %v7161, %v7160
      %v7172 = vpack.c.b16 %v7163, %v7162
      %v7173 = vpack.c.b16 %v7165, %v7164
      %7182 = vmatprep.subr.bf16.mxu0 0
      %7183 = vmatpush1.bf16.msra.mxu0 %v7173
      %7184 = vmatprep.subr.bf16.mxu0 0
      %7185 = vmatpush1.bf16.msra.mxu0 %v7172
      %7186 = vmatprep.subr.bf16.mxu0 0
      %7187 = vmatpush1.bf16.msra.mxu0 %v7171
      %7188 = vmatprep.subr.bf16.mxu0 0
      %7189 = vmatpush1.bf16.msra.mxu0 %v7170
      %7190 = vmatprep.subr.bf16.mxu0 0
      %7191 = vmatpush1.bf16.msra.mxu0 %v7169
      %7192 = vmatprep.subr.bf16.mxu0 0
      %7193 = vmatpush1.bf16.msra.mxu0 %v7168
      %7194 = vmatprep.subr.bf16.mxu0 0
      %7195 = vmatpush1.bf16.msra.mxu0 %v7167
      %7196 = vmatprep.subr.bf16.mxu0 0
      %7197 = vmatpush1.bf16.msra.mxu0 %v7166
      %7198 = vmatprep.subr.bf16.mxu0 0
      %7199 = vmatpush2.bf16.msra.mxu0 0
      %7200 = vmatprep.subr.bf16.mxu0 0
      %7201 = vmatpush2.bf16.msra.mxu0 0
      %7202 = vmatprep.subr.bf16.mxu0 0
      %7203 = vmatpush2.bf16.msra.mxu0 0
      %7204 = vmatprep.subr.bf16.mxu0 0
      %7205 = vmatpush2.bf16.msra.mxu0 0
      %7206 = vmatprep.subr.bf16.mxu0 0
      %7207 = vmatpush2.bf16.msra.mxu0 0
      %7208 = vmatprep.subr.bf16.mxu0 0
      %7209 = vmatpush2.bf16.msra.mxu0 0
      %7210 = vmatprep.subr.bf16.mxu0 0
      %7211 = vmatpush2.bf16.msra.mxu0 0
      %7212 = vmatprep.subr.bf16.mxu0 0
      %7213 = vmatpush2.bf16.msra.mxu0 0
      %7214 = vmatprep.mubr.bf16.mxu0 0
      %7215 = vmatmul.mubr.bf16.gmra.mxu0 %v7101
      %v7216 = vpop.f32.mrf.mxu0
      %v7217 = vadd.f32 0.0, %v7216
      %v7218 = vpop.f32.mrf.mxu0
      %v7219 = vpop.f32.mrf.mxu0
      %v7220 = vadd.f32 0.0, %v7219
      %v7221 = vpop.f32.mrf.mxu0
      %7222 = vmatprep.mubr.bf16.mxu0 0
      %7223 = vmatmul.mubr.bf16.gmra.mxu0 %v7102
      %v7224 = vpop.f32.mrf.mxu0
      %v7225 = vadd.f32 0.0, %v7224
      %v7226 = vpop.f32.mrf.mxu0
      %v7227 = vpop.f32.mrf.mxu0
      %v7228 = vadd.f32 0.0, %v7227
      %v7229 = vpop.f32.mrf.mxu0
      %7230 = vmatprep.mubr.bf16.mxu0 0
      %7231 = vmatmul.mubr.bf16.gmra.mxu0 %v7103
      %v7232 = vpop.f32.mrf.mxu0
      %v7233 = vadd.f32 0.0, %v7232
      %v7234 = vpop.f32.mrf.mxu0
      %v7235 = vpop.f32.mrf.mxu0
      %v7236 = vadd.f32 0.0, %v7235
      %v7237 = vpop.f32.mrf.mxu0
      %7238 = vmatprep.mubr.bf16.mxu0 0
      %7239 = vmatmul.mubr.bf16.gmra.mxu0 %v7104
      %v7240 = vpop.f32.mrf.mxu0
      %v7241 = vadd.f32 0.0, %v7240
      %v7242 = vpop.f32.mrf.mxu0
      %v7243 = vpop.f32.mrf.mxu0
      %v7244 = vadd.f32 0.0, %v7243
      %v7245 = vpop.f32.mrf.mxu0
      %7246 = vmatprep.mubr.bf16.mxu0 0
      %7247 = vmatmul.mubr.bf16.gmra.mxu0 %v7105
      %v7248 = vpop.f32.mrf.mxu0
      %v7249 = vadd.f32 0.0, %v7248
      %v7250 = vpop.f32.mrf.mxu0
      %v7251 = vpop.f32.mrf.mxu0
      %v7252 = vadd.f32 0.0, %v7251
      %v7253 = vpop.f32.mrf.mxu0
      %7254 = vmatprep.mubr.bf16.mxu0 0
      %7255 = vmatmul.mubr.bf16.gmra.mxu0 %v7106
      %v7256 = vpop.f32.mrf.mxu0
      %v7257 = vadd.f32 0.0, %v7256
      %v7258 = vpop.f32.mrf.mxu0
      %v7259 = vpop.f32.mrf.mxu0
      %v7260 = vadd.f32 0.0, %v7259
      %v7261 = vpop.f32.mrf.mxu0
      %7262 = vmatprep.mubr.bf16.mxu0 0
      %7263 = vmatmul.mubr.bf16.gmra.mxu0 %v7107
      %v7264 = vpop.f32.mrf.mxu0
      %v7265 = vadd.f32 0.0, %v7264
      %v7266 = vpop.f32.mrf.mxu0
      %v7267 = vpop.f32.mrf.mxu0
      %v7268 = vadd.f32 0.0, %v7267
      %v7269 = vpop.f32.mrf.mxu0
      %7270 = vmatprep.mubr.bf16.mxu0 0
      %7271 = vmatmul.mubr.bf16.gmra.mxu0 %v7108
      %v7272 = vpop.f32.mrf.mxu0
      %v7273 = vadd.f32 0.0, %v7272
      %v7274 = vpop.f32.mrf.mxu0
      %v7275 = vpop.f32.mrf.mxu0
      %v7276 = vadd.f32 0.0, %v7275
      %v7277 = vpop.f32.mrf.mxu0
      %7278 = vmatprep.mubr.bf16.mxu0 0
      %7279 = vmatmul.mubr.bf16.gmra.mxu0 %v7109
      %v7280 = vpop.f32.mrf.mxu0
      %v7281 = vadd.f32 0.0, %v7280
      %v7282 = vpop.f32.mrf.mxu0
      %v7283 = vpop.f32.mrf.mxu0
      %v7284 = vadd.f32 0.0, %v7283
      %v7285 = vpop.f32.mrf.mxu0
      %7286 = vmatprep.mubr.bf16.mxu0 0
      %7287 = vmatmul.mubr.bf16.gmra.mxu0 %v7110
      %v7288 = vpop.f32.mrf.mxu0
      %v7289 = vadd.f32 0.0, %v7288
      %v7290 = vpop.f32.mrf.mxu0
      %v7291 = vpop.f32.mrf.mxu0
      %v7292 = vadd.f32 0.0, %v7291
      %v7293 = vpop.f32.mrf.mxu0
      %7294 = vmatprep.mubr.bf16.mxu0 0
      %7295 = vmatmul.mubr.bf16.gmra.mxu0 %v7111
      %v7296 = vpop.f32.mrf.mxu0
      %v7297 = vadd.f32 0.0, %v7296
      %v7298 = vpop.f32.mrf.mxu0
      %v7299 = vpop.f32.mrf.mxu0
      %v7300 = vadd.f32 0.0, %v7299
      %v7301 = vpop.f32.mrf.mxu0
      %7302 = vmatprep.mubr.bf16.mxu0 0
      %7303 = vmatmul.mubr.bf16.gmra.mxu0 %v7112
      %v7304 = vpop.f32.mrf.mxu0
      %v7305 = vadd.f32 0.0, %v7304
      %v7306 = vpop.f32.mrf.mxu0
      %v7307 = vpop.f32.mrf.mxu0
      %v7308 = vadd.f32 0.0, %v7307
      %v7309 = vpop.f32.mrf.mxu0
      %7310 = vmatprep.mubr.bf16.mxu0 0
      %7311 = vmatmul.mubr.bf16.gmra.mxu0 %v7113
      %v7312 = vpop.f32.mrf.mxu0
      %v7313 = vadd.f32 0.0, %v7312
      %v7314 = vpop.f32.mrf.mxu0
      %v7315 = vpop.f32.mrf.mxu0
      %v7316 = vadd.f32 0.0, %v7315
      %v7317 = vpop.f32.mrf.mxu0
      %7318 = vmatprep.mubr.bf16.mxu0 0
      %7319 = vmatmul.mubr.bf16.gmra.mxu0 %v7114
      %v7320 = vpop.f32.mrf.mxu0
      %v7321 = vadd.f32 0.0, %v7320
      %v7322 = vpop.f32.mrf.mxu0
      %v7323 = vpop.f32.mrf.mxu0
      %v7324 = vadd.f32 0.0, %v7323
      %v7325 = vpop.f32.mrf.mxu0
      %7326 = vmatprep.mubr.bf16.mxu0 0
      %7327 = vmatmul.mubr.bf16.gmra.mxu0 %v7115
      %v7328 = vpop.f32.mrf.mxu0
      %v7329 = vadd.f32 0.0, %v7328
      %v7330 = vpop.f32.mrf.mxu0
      %v7331 = vpop.f32.mrf.mxu0
      %v7332 = vadd.f32 0.0, %v7331
      %v7333 = vpop.f32.mrf.mxu0
      %7334 = vmatprep.mubr.bf16.mxu0 0
      %7335 = vmatmul.mubr.bf16.gmra.mxu0 %v7116
      %v7336 = vpop.f32.mrf.mxu0
      %v7337 = vadd.f32 0.0, %v7336
      %v7338 = vpop.f32.mrf.mxu0
      %v7339 = vpop.f32.mrf.mxu0
      %v7340 = vadd.f32 0.0, %v7339
      %v7341 = vpop.f32.mrf.mxu0
      %7342 = vdwg.mxu0
      %v7359 = vunpack.c.l.b16 %v6685
      %v7360 = vunpack.c.l.b16 %v6686
      %v7361 = vunpack.c.l.b16 %v6687
      %v7362 = vunpack.c.l.b16 %v6688
      %v7363 = vunpack.c.l.b16 %v6689
      %v7364 = vunpack.c.l.b16 %v6690
      %v7365 = vunpack.c.l.b16 %v6691
      %v7366 = vunpack.c.l.b16 %v6692
      %v7367 = vunpack.c.l.b16 %v6693
      %v7368 = vunpack.c.l.b16 %v6694
      %v7369 = vunpack.c.l.b16 %v6695
      %v7370 = vunpack.c.l.b16 %v6696
      %v7371 = vunpack.c.l.b16 %v6697
      %v7372 = vunpack.c.l.b16 %v6698
      %v7373 = vunpack.c.l.b16 %v6699
      %v7374 = vunpack.c.l.b16 %v6700
      %v7375 = vpack.c.b16 %v7360, %v7359
      %v7376 = vpack.c.b16 %v7362, %v7361
      %v7377 = vpack.c.b16 %v7364, %v7363
      %v7378 = vpack.c.b16 %v7366, %v7365
      %v7379 = vpack.c.b16 %v7368, %v7367
      %v7380 = vpack.c.b16 %v7370, %v7369
      %v7381 = vpack.c.b16 %v7372, %v7371
      %v7382 = vpack.c.b16 %v7374, %v7373
      %7391 = vmatprep.subr.bf16.mxu0 0
      %7392 = vmatpush1.bf16.msra.mxu0 %v7382
      %7393 = vmatprep.subr.bf16.mxu0 0
      %7394 = vmatpush1.bf16.msra.mxu0 %v7381
      %7395 = vmatprep.subr.bf16.mxu0 0
      %7396 = vmatpush1.bf16.msra.mxu0 %v7380
      %7397 = vmatprep.subr.bf16.mxu0 0
      %7398 = vmatpush1.bf16.msra.mxu0 %v7379
      %7399 = vmatprep.subr.bf16.mxu0 0
      %7400 = vmatpush1.bf16.msra.mxu0 %v7378
      %7401 = vmatprep.subr.bf16.mxu0 0
      %7402 = vmatpush1.bf16.msra.mxu0 %v7377
      %7403 = vmatprep.subr.bf16.mxu0 0
      %7404 = vmatpush1.bf16.msra.mxu0 %v7376
      %7405 = vmatprep.subr.bf16.mxu0 0
      %7406 = vmatpush1.bf16.msra.mxu0 %v7375
      %7407 = vmatprep.subr.bf16.mxu0 0
      %7408 = vmatpush2.bf16.msra.mxu0 0
      %7409 = vmatprep.subr.bf16.mxu0 0
      %7410 = vmatpush2.bf16.msra.mxu0 0
      %7411 = vmatprep.subr.bf16.mxu0 0
      %7412 = vmatpush2.bf16.msra.mxu0 0
      %7413 = vmatprep.subr.bf16.mxu0 0
      %7414 = vmatpush2.bf16.msra.mxu0 0
      %7415 = vmatprep.subr.bf16.mxu0 0
      %7416 = vmatpush2.bf16.msra.mxu0 0
      %7417 = vmatprep.subr.bf16.mxu0 0
      %7418 = vmatpush2.bf16.msra.mxu0 0
      %7419 = vmatprep.subr.bf16.mxu0 0
      %7420 = vmatpush2.bf16.msra.mxu0 0
      %7421 = vmatprep.subr.bf16.mxu0 0
      %7422 = vmatpush2.bf16.msra.mxu0 0
      %7423 = vmatprep.mubr.bf16.mxu0 0
      %7424 = vmatmul.mubr.bf16.gmra.mxu0 %v6669
      %v7425 = vpop.f32.mrf.mxu0
      %v7426 = vadd.f32 %v7217, %v7425
      %v7427 = vpop.f32.mrf.mxu0
      %v7428 = vpop.f32.mrf.mxu0
      %v7429 = vadd.f32 %v7220, %v7428
      %v7430 = vpop.f32.mrf.mxu0
      %7431 = vmatprep.mubr.bf16.mxu0 0
      %7432 = vmatmul.mubr.bf16.gmra.mxu0 %v6670
      %v7433 = vpop.f32.mrf.mxu0
      %v7434 = vadd.f32 %v7225, %v7433
      %v7435 = vpop.f32.mrf.mxu0
      %v7436 = vpop.f32.mrf.mxu0
      %v7437 = vadd.f32 %v7228, %v7436
      %v7438 = vpop.f32.mrf.mxu0
      %7439 = vmatprep.mubr.bf16.mxu0 0
      %7440 = vmatmul.mubr.bf16.gmra.mxu0 %v6671
      %v7441 = vpop.f32.mrf.mxu0
      %v7442 = vadd.f32 %v7233, %v7441
      %v7443 = vpop.f32.mrf.mxu0
      %v7444 = vpop.f32.mrf.mxu0
      %v7445 = vadd.f32 %v7236, %v7444
      %v7446 = vpop.f32.mrf.mxu0
      %7447 = vmatprep.mubr.bf16.mxu0 0
      %7448 = vmatmul.mubr.bf16.gmra.mxu0 %v6672
      %v7449 = vpop.f32.mrf.mxu0
      %v7450 = vadd.f32 %v7241, %v7449
      %v7451 = vpop.f32.mrf.mxu0
      %v7452 = vpop.f32.mrf.mxu0
      %v7453 = vadd.f32 %v7244, %v7452
      %v7454 = vpop.f32.mrf.mxu0
      %7455 = vmatprep.mubr.bf16.mxu0 0
      %7456 = vmatmul.mubr.bf16.gmra.mxu0 %v6673
      %v7457 = vpop.f32.mrf.mxu0
      %v7458 = vadd.f32 %v7249, %v7457
      %v7459 = vpop.f32.mrf.mxu0
      %v7460 = vpop.f32.mrf.mxu0
      %v7461 = vadd.f32 %v7252, %v7460
      %v7462 = vpop.f32.mrf.mxu0
      %7463 = vmatprep.mubr.bf16.mxu0 0
      %7464 = vmatmul.mubr.bf16.gmra.mxu0 %v6674
      %v7465 = vpop.f32.mrf.mxu0
      %v7466 = vadd.f32 %v7257, %v7465
      %v7467 = vpop.f32.mrf.mxu0
      %v7468 = vpop.f32.mrf.mxu0
      %v7469 = vadd.f32 %v7260, %v7468
      %v7470 = vpop.f32.mrf.mxu0
      %7471 = vmatprep.mubr.bf16.mxu0 0
      %7472 = vmatmul.mubr.bf16.gmra.mxu0 %v6675
      %v7473 = vpop.f32.mrf.mxu0
      %v7474 = vadd.f32 %v7265, %v7473
      %v7475 = vpop.f32.mrf.mxu0
      %v7476 = vpop.f32.mrf.mxu0
      %v7477 = vadd.f32 %v7268, %v7476
      %v7478 = vpop.f32.mrf.mxu0
      %7479 = vmatprep.mubr.bf16.mxu0 0
      %7480 = vmatmul.mubr.bf16.gmra.mxu0 %v6676
      %v7481 = vpop.f32.mrf.mxu0
      %v7482 = vadd.f32 %v7273, %v7481
      %v7483 = vpop.f32.mrf.mxu0
      %v7484 = vpop.f32.mrf.mxu0
      %v7485 = vadd.f32 %v7276, %v7484
      %v7486 = vpop.f32.mrf.mxu0
      %7487 = vmatprep.mubr.bf16.mxu0 0
      %7488 = vmatmul.mubr.bf16.gmra.mxu0 %v6677
      %v7489 = vpop.f32.mrf.mxu0
      %v7490 = vadd.f32 %v7281, %v7489
      %v7491 = vpop.f32.mrf.mxu0
      %v7492 = vpop.f32.mrf.mxu0
      %v7493 = vadd.f32 %v7284, %v7492
      %v7494 = vpop.f32.mrf.mxu0
      %7495 = vmatprep.mubr.bf16.mxu0 0
      %7496 = vmatmul.mubr.bf16.gmra.mxu0 %v6678
      %v7497 = vpop.f32.mrf.mxu0
      %v7498 = vadd.f32 %v7289, %v7497
      %v7499 = vpop.f32.mrf.mxu0
      %v7500 = vpop.f32.mrf.mxu0
      %v7501 = vadd.f32 %v7292, %v7500
      %v7502 = vpop.f32.mrf.mxu0
      %7503 = vmatprep.mubr.bf16.mxu0 0
      %7504 = vmatmul.mubr.bf16.gmra.mxu0 %v6679
      %v7505 = vpop.f32.mrf.mxu0
      %v7506 = vadd.f32 %v7297, %v7505
      %v7507 = vpop.f32.mrf.mxu0
      %v7508 = vpop.f32.mrf.mxu0
      %v7509 = vadd.f32 %v7300, %v7508
      %v7510 = vpop.f32.mrf.mxu0
      %7511 = vmatprep.mubr.bf16.mxu0 0
      %7512 = vmatmul.mubr.bf16.gmra.mxu0 %v6680
      %v7513 = vpop.f32.mrf.mxu0
      %v7514 = vadd.f32 %v7305, %v7513
      %v7515 = vpop.f32.mrf.mxu0
      %v7516 = vpop.f32.mrf.mxu0
      %v7517 = vadd.f32 %v7308, %v7516
      %v7518 = vpop.f32.mrf.mxu0
      %7519 = vmatprep.mubr.bf16.mxu0 0
      %7520 = vmatmul.mubr.bf16.gmra.mxu0 %v6681
      %v7521 = vpop.f32.mrf.mxu0
      %v7522 = vadd.f32 %v7313, %v7521
      %v7523 = vpop.f32.mrf.mxu0
      %v7524 = vpop.f32.mrf.mxu0
      %v7525 = vadd.f32 %v7316, %v7524
      %v7526 = vpop.f32.mrf.mxu0
      %7527 = vmatprep.mubr.bf16.mxu0 0
      %7528 = vmatmul.mubr.bf16.gmra.mxu0 %v6682
      %v7529 = vpop.f32.mrf.mxu0
      %v7530 = vadd.f32 %v7321, %v7529
      %v7531 = vpop.f32.mrf.mxu0
      %v7532 = vpop.f32.mrf.mxu0
      %v7533 = vadd.f32 %v7324, %v7532
      %v7534 = vpop.f32.mrf.mxu0
      %7535 = vmatprep.mubr.bf16.mxu0 0
      %7536 = vmatmul.mubr.bf16.gmra.mxu0 %v6683
      %v7537 = vpop.f32.mrf.mxu0
      %v7538 = vadd.f32 %v7329, %v7537
      %v7539 = vpop.f32.mrf.mxu0
      %v7540 = vpop.f32.mrf.mxu0
      %v7541 = vadd.f32 %v7332, %v7540
      %v7542 = vpop.f32.mrf.mxu0
      %7543 = vmatprep.mubr.bf16.mxu0 0
      %7544 = vmatmul.mubr.bf16.gmra.mxu0 %v6684
      %v7545 = vpop.f32.mrf.mxu0
      %v7546 = vadd.f32 %v7337, %v7545
      %v7547 = vpop.f32.mrf.mxu0
      %v7548 = vpop.f32.mrf.mxu0
      %v7549 = vadd.f32 %v7340, %v7548
      %v7550 = vpop.f32.mrf.mxu0
      %7551 = vdwg.mxu0
      %v7552 = vld [vmem:[#allocation4 + $0x31] sm:$0xff]
      %v7553 = vld [vmem:[#allocation4 + $0x39] sm:$0xff]
      %v7554 = vld [vmem:[#allocation4 + $0x41] sm:$0xff]
      %v7555 = vld [vmem:[#allocation4 + $0x49] sm:$0xff]
      %v7556 = vld [vmem:[#allocation4 + $0x51] sm:$0xff]
      %v7557 = vld [vmem:[#allocation4 + $0x59] sm:$0xff]
      %v7558 = vld [vmem:[#allocation4 + $0x61] sm:$0xff]
      %v7559 = vld [vmem:[#allocation4 + $0x69] sm:$0xff]
      %v7560 = vld [vmem:[#allocation4 + $0x71] sm:$0xff]
      %v7561 = vld [vmem:[#allocation4 + $0x79] sm:$0xff]
      %v7562 = vld [vmem:[#allocation4 + $0x81] sm:$0xff]
      %v7563 = vld [vmem:[#allocation4 + $0x89] sm:$0xff]
      %v7564 = vld [vmem:[#allocation4 + $0x91] sm:$0xff]
      %v7565 = vld [vmem:[#allocation4 + $0x99] sm:$0xff]
      %v7566 = vld [vmem:[#allocation4 + $0xa1] sm:$0xff]
      %v7567 = vld [vmem:[#allocation4 + $0xa9] sm:$0xff]
      %v7568 = vld [vmem:[#allocation4 + $0xb1] sm:$0xff]
      %v7569 = vld [vmem:[#allocation4 + $0xb9] sm:$0xff]
      %v7570 = vld [vmem:[#allocation4 + $0xc1] sm:$0xff]
      %v7571 = vld [vmem:[#allocation4 + $0xc9] sm:$0xff]
      %v7572 = vld [vmem:[#allocation4 + $0xd1] sm:$0xff]
      %v7573 = vld [vmem:[#allocation4 + $0xd9] sm:$0xff]
      %v7574 = vld [vmem:[#allocation4 + $0xe1] sm:$0xff]
      %v7575 = vld [vmem:[#allocation4 + $0xe9] sm:$0xff]
      %v7576 = vld [vmem:[#allocation4 + $0xf1] sm:$0xff]
      %v7577 = vld [vmem:[#allocation4 + $0xf9] sm:$0xff]
      %v7578 = vld [vmem:[#allocation4 + $0x101] sm:$0xff]
      %v7579 = vld [vmem:[#allocation4 + $0x109] sm:$0xff]
      %v7580 = vld [vmem:[#allocation4 + $0x111] sm:$0xff]
      %v7581 = vld [vmem:[#allocation4 + $0x119] sm:$0xff]
      %v7582 = vld [vmem:[#allocation4 + $0x121] sm:$0xff]
      %v7583 = vld [vmem:[#allocation4 + $0x129] sm:$0xff]
      %7616 = vrot.lane.b32.xlu0 %v7552, 32
      %v7617 = vpop.permute.xlu0 %7616
      %7618 = vrot.lane.b32.xlu0 %v7553, 32
      %v7619 = vpop.permute.xlu0 %7618
      %7620 = vrot.lane.b32.xlu0 %v7554, 32
      %v7621 = vpop.permute.xlu0 %7620
      %7622 = vrot.lane.b32.xlu0 %v7555, 32
      %v7623 = vpop.permute.xlu0 %7622
      %7624 = vrot.lane.b32.xlu0 %v7556, 32
      %v7625 = vpop.permute.xlu0 %7624
      %7626 = vrot.lane.b32.xlu0 %v7557, 32
      %v7627 = vpop.permute.xlu0 %7626
      %7628 = vrot.lane.b32.xlu0 %v7558, 32
      %v7629 = vpop.permute.xlu0 %7628
      %7630 = vrot.lane.b32.xlu0 %v7559, 32
      %v7631 = vpop.permute.xlu0 %7630
      %7632 = vrot.lane.b32.xlu0 %v7560, 32
      %v7633 = vpop.permute.xlu0 %7632
      %7634 = vrot.lane.b32.xlu0 %v7561, 32
      %v7635 = vpop.permute.xlu0 %7634
      %7636 = vrot.lane.b32.xlu0 %v7562, 32
      %v7637 = vpop.permute.xlu0 %7636
      %7638 = vrot.lane.b32.xlu0 %v7563, 32
      %v7639 = vpop.permute.xlu0 %7638
      %7640 = vrot.lane.b32.xlu0 %v7564, 32
      %v7641 = vpop.permute.xlu0 %7640
      %7642 = vrot.lane.b32.xlu0 %v7565, 32
      %v7643 = vpop.permute.xlu0 %7642
      %7644 = vrot.lane.b32.xlu0 %v7566, 32
      %v7645 = vpop.permute.xlu0 %7644
      %7646 = vrot.lane.b32.xlu0 %v7567, 32
      %v7647 = vpop.permute.xlu0 %7646
      %7648 = vrot.lane.b32.xlu0 %v7568, 32
      %v7649 = vpop.permute.xlu0 %7648
      %7650 = vrot.lane.b32.xlu0 %v7569, 32
      %v7651 = vpop.permute.xlu0 %7650
      %7652 = vrot.lane.b32.xlu0 %v7570, 32
      %v7653 = vpop.permute.xlu0 %7652
      %7654 = vrot.lane.b32.xlu0 %v7571, 32
      %v7655 = vpop.permute.xlu0 %7654
      %7656 = vrot.lane.b32.xlu0 %v7572, 32
      %v7657 = vpop.permute.xlu0 %7656
      %7658 = vrot.lane.b32.xlu0 %v7573, 32
      %v7659 = vpop.permute.xlu0 %7658
      %7660 = vrot.lane.b32.xlu0 %v7574, 32
      %v7661 = vpop.permute.xlu0 %7660
      %7662 = vrot.lane.b32.xlu0 %v7575, 32
      %v7663 = vpop.permute.xlu0 %7662
      %7664 = vrot.lane.b32.xlu0 %v7576, 32
      %v7665 = vpop.permute.xlu0 %7664
      %7666 = vrot.lane.b32.xlu0 %v7577, 32
      %v7667 = vpop.permute.xlu0 %7666
      %7668 = vrot.lane.b32.xlu0 %v7578, 32
      %v7669 = vpop.permute.xlu0 %7668
      %7670 = vrot.lane.b32.xlu0 %v7579, 32
      %v7671 = vpop.permute.xlu0 %7670
      %7672 = vrot.lane.b32.xlu0 %v7580, 32
      %v7673 = vpop.permute.xlu0 %7672
      %7674 = vrot.lane.b32.xlu0 %v7581, 32
      %v7675 = vpop.permute.xlu0 %7674
      %7676 = vrot.lane.b32.xlu0 %v7582, 32
      %v7677 = vpop.permute.xlu0 %7676
      %7678 = vrot.lane.b32.xlu0 %v7583, 32
      %v7679 = vpop.permute.xlu0 %7678
      %7712 = vrot.lane.b32.xlu0 %v7552, 64
      %v7713 = vpop.permute.xlu0 %7712
      %7714 = vrot.lane.b32.xlu0 %v7553, 64
      %v7715 = vpop.permute.xlu0 %7714
      %7716 = vrot.lane.b32.xlu0 %v7554, 64
      %v7717 = vpop.permute.xlu0 %7716
      %7718 = vrot.lane.b32.xlu0 %v7555, 64
      %v7719 = vpop.permute.xlu0 %7718
      %7720 = vrot.lane.b32.xlu0 %v7556, 64
      %v7721 = vpop.permute.xlu0 %7720
      %7722 = vrot.lane.b32.xlu0 %v7557, 64
      %v7723 = vpop.permute.xlu0 %7722
      %7724 = vrot.lane.b32.xlu0 %v7558, 64
      %v7725 = vpop.permute.xlu0 %7724
      %7726 = vrot.lane.b32.xlu0 %v7559, 64
      %v7727 = vpop.permute.xlu0 %7726
      %7728 = vrot.lane.b32.xlu0 %v7560, 64
      %v7729 = vpop.permute.xlu0 %7728
      %7730 = vrot.lane.b32.xlu0 %v7561, 64
      %v7731 = vpop.permute.xlu0 %7730
      %7732 = vrot.lane.b32.xlu0 %v7562, 64
      %v7733 = vpop.permute.xlu0 %7732
      %7734 = vrot.lane.b32.xlu0 %v7563, 64
      %v7735 = vpop.permute.xlu0 %7734
      %7736 = vrot.lane.b32.xlu0 %v7564, 64
      %v7737 = vpop.permute.xlu0 %7736
      %7738 = vrot.lane.b32.xlu0 %v7565, 64
      %v7739 = vpop.permute.xlu0 %7738
      %7740 = vrot.lane.b32.xlu0 %v7566, 64
      %v7741 = vpop.permute.xlu0 %7740
      %7742 = vrot.lane.b32.xlu0 %v7567, 64
      %v7743 = vpop.permute.xlu0 %7742
      %7744 = vrot.lane.b32.xlu0 %v7568, 64
      %v7745 = vpop.permute.xlu0 %7744
      %7746 = vrot.lane.b32.xlu0 %v7569, 64
      %v7747 = vpop.permute.xlu0 %7746
      %7748 = vrot.lane.b32.xlu0 %v7570, 64
      %v7749 = vpop.permute.xlu0 %7748
      %7750 = vrot.lane.b32.xlu0 %v7571, 64
      %v7751 = vpop.permute.xlu0 %7750
      %7752 = vrot.lane.b32.xlu0 %v7572, 64
      %v7753 = vpop.permute.xlu0 %7752
      %7754 = vrot.lane.b32.xlu0 %v7573, 64
      %v7755 = vpop.permute.xlu0 %7754
      %7756 = vrot.lane.b32.xlu0 %v7574, 64
      %v7757 = vpop.permute.xlu0 %7756
      %7758 = vrot.lane.b32.xlu0 %v7575, 64
      %v7759 = vpop.permute.xlu0 %7758
      %7760 = vrot.lane.b32.xlu0 %v7576, 64
      %v7761 = vpop.permute.xlu0 %7760
      %7762 = vrot.lane.b32.xlu0 %v7577, 64
      %v7763 = vpop.permute.xlu0 %7762
      %7764 = vrot.lane.b32.xlu0 %v7578, 64
      %v7765 = vpop.permute.xlu0 %7764
      %7766 = vrot.lane.b32.xlu0 %v7579, 64
      %v7767 = vpop.permute.xlu0 %7766
      %7768 = vrot.lane.b32.xlu0 %v7580, 64
      %v7769 = vpop.permute.xlu0 %7768
      %7770 = vrot.lane.b32.xlu0 %v7581, 64
      %v7771 = vpop.permute.xlu0 %7770
      %7772 = vrot.lane.b32.xlu0 %v7582, 64
      %v7773 = vpop.permute.xlu0 %7772
      %7774 = vrot.lane.b32.xlu0 %v7583, 64
      %v7775 = vpop.permute.xlu0 %7774
      %7808 = vrot.lane.b32.xlu0 %v7552, 96
      %v7809 = vpop.permute.xlu0 %7808
      %7810 = vrot.lane.b32.xlu0 %v7553, 96
      %v7811 = vpop.permute.xlu0 %7810
      %7812 = vrot.lane.b32.xlu0 %v7554, 96
      %v7813 = vpop.permute.xlu0 %7812
      %7814 = vrot.lane.b32.xlu0 %v7555, 96
      %v7815 = vpop.permute.xlu0 %7814
      %7816 = vrot.lane.b32.xlu0 %v7556, 96
      %v7817 = vpop.permute.xlu0 %7816
      %7818 = vrot.lane.b32.xlu0 %v7557, 96
      %v7819 = vpop.permute.xlu0 %7818
      %7820 = vrot.lane.b32.xlu0 %v7558, 96
      %v7821 = vpop.permute.xlu0 %7820
      %7822 = vrot.lane.b32.xlu0 %v7559, 96
      %v7823 = vpop.permute.xlu0 %7822
      %7824 = vrot.lane.b32.xlu0 %v7560, 96
      %v7825 = vpop.permute.xlu0 %7824
      %7826 = vrot.lane.b32.xlu0 %v7561, 96
      %v7827 = vpop.permute.xlu0 %7826
      %7828 = vrot.lane.b32.xlu0 %v7562, 96
      %v7829 = vpop.permute.xlu0 %7828
      %7830 = vrot.lane.b32.xlu0 %v7563, 96
      %v7831 = vpop.permute.xlu0 %7830
      %7832 = vrot.lane.b32.xlu0 %v7564, 96
      %v7833 = vpop.permute.xlu0 %7832
      %7834 = vrot.lane.b32.xlu0 %v7565, 96
      %v7835 = vpop.permute.xlu0 %7834
      %7836 = vrot.lane.b32.xlu0 %v7566, 96
      %v7837 = vpop.permute.xlu0 %7836
      %7838 = vrot.lane.b32.xlu0 %v7567, 96
      %v7839 = vpop.permute.xlu0 %7838
      %7840 = vrot.lane.b32.xlu0 %v7568, 96
      %v7841 = vpop.permute.xlu0 %7840
      %7842 = vrot.lane.b32.xlu0 %v7569, 96
      %v7843 = vpop.permute.xlu0 %7842
      %7844 = vrot.lane.b32.xlu0 %v7570, 96
      %v7845 = vpop.permute.xlu0 %7844
      %7846 = vrot.lane.b32.xlu0 %v7571, 96
      %v7847 = vpop.permute.xlu0 %7846
      %7848 = vrot.lane.b32.xlu0 %v7572, 96
      %v7849 = vpop.permute.xlu0 %7848
      %7850 = vrot.lane.b32.xlu0 %v7573, 96
      %v7851 = vpop.permute.xlu0 %7850
      %7852 = vrot.lane.b32.xlu0 %v7574, 96
      %v7853 = vpop.permute.xlu0 %7852
      %7854 = vrot.lane.b32.xlu0 %v7575, 96
      %v7855 = vpop.permute.xlu0 %7854
      %7856 = vrot.lane.b32.xlu0 %v7576, 96
      %v7857 = vpop.permute.xlu0 %7856
      %7858 = vrot.lane.b32.xlu0 %v7577, 96
      %v7859 = vpop.permute.xlu0 %7858
      %7860 = vrot.lane.b32.xlu0 %v7578, 96
      %v7861 = vpop.permute.xlu0 %7860
      %7862 = vrot.lane.b32.xlu0 %v7579, 96
      %v7863 = vpop.permute.xlu0 %7862
      %7864 = vrot.lane.b32.xlu0 %v7580, 96
      %v7865 = vpop.permute.xlu0 %7864
      %7866 = vrot.lane.b32.xlu0 %v7581, 96
      %v7867 = vpop.permute.xlu0 %7866
      %7868 = vrot.lane.b32.xlu0 %v7582, 96
      %v7869 = vpop.permute.xlu0 %7868
      %7870 = vrot.lane.b32.xlu0 %v7583, 96
      %v7871 = vpop.permute.xlu0 %7870
      %v7904 = vsel %vm2968, %v7552, %v7617
      %v7905 = vsel %vm2968, %v7553, %v7619
      %v7906 = vsel %vm2968, %v7554, %v7621
      %v7907 = vsel %vm2968, %v7555, %v7623
      %v7908 = vsel %vm2968, %v7556, %v7625
      %v7909 = vsel %vm2968, %v7557, %v7627
      %v7910 = vsel %vm2968, %v7558, %v7629
      %v7911 = vsel %vm2968, %v7559, %v7631
      %v7912 = vsel %vm2968, %v7560, %v7633
      %v7913 = vsel %vm2968, %v7561, %v7635
      %v7914 = vsel %vm2968, %v7562, %v7637
      %v7915 = vsel %vm2968, %v7563, %v7639
      %v7916 = vsel %vm2968, %v7564, %v7641
      %v7917 = vsel %vm2968, %v7565, %v7643
      %v7918 = vsel %vm2968, %v7566, %v7645
      %v7919 = vsel %vm2968, %v7567, %v7647
      %v7920 = vsel %vm2968, %v7568, %v7649
      %v7921 = vsel %vm2968, %v7569, %v7651
      %v7922 = vsel %vm2968, %v7570, %v7653
      %v7923 = vsel %vm2968, %v7571, %v7655
      %v7924 = vsel %vm2968, %v7572, %v7657
      %v7925 = vsel %vm2968, %v7573, %v7659
      %v7926 = vsel %vm2968, %v7574, %v7661
      %v7927 = vsel %vm2968, %v7575, %v7663
      %v7928 = vsel %vm2968, %v7576, %v7665
      %v7929 = vsel %vm2968, %v7577, %v7667
      %v7930 = vsel %vm2968, %v7578, %v7669
      %v7931 = vsel %vm2968, %v7579, %v7671
      %v7932 = vsel %vm2968, %v7580, %v7673
      %v7933 = vsel %vm2968, %v7581, %v7675
      %v7934 = vsel %vm2968, %v7582, %v7677
      %v7935 = vsel %vm2968, %v7583, %v7679
      %v7936 = vsel %vm4285, %v7904, %v7713
      %v7937 = vsel %vm4285, %v7905, %v7715
      %v7938 = vsel %vm4285, %v7906, %v7717
      %v7939 = vsel %vm4285, %v7907, %v7719
      %v7940 = vsel %vm4285, %v7908, %v7721
      %v7941 = vsel %vm4285, %v7909, %v7723
      %v7942 = vsel %vm4285, %v7910, %v7725
      %v7943 = vsel %vm4285, %v7911, %v7727
      %v7944 = vsel %vm4285, %v7912, %v7729
      %v7945 = vsel %vm4285, %v7913, %v7731
      %v7946 = vsel %vm4285, %v7914, %v7733
      %v7947 = vsel %vm4285, %v7915, %v7735
      %v7948 = vsel %vm4285, %v7916, %v7737
      %v7949 = vsel %vm4285, %v7917, %v7739
      %v7950 = vsel %vm4285, %v7918, %v7741
      %v7951 = vsel %vm4285, %v7919, %v7743
      %v7952 = vsel %vm4285, %v7920, %v7745
      %v7953 = vsel %vm4285, %v7921, %v7747
      %v7954 = vsel %vm4285, %v7922, %v7749
      %v7955 = vsel %vm4285, %v7923, %v7751
      %v7956 = vsel %vm4285, %v7924, %v7753
      %v7957 = vsel %vm4285, %v7925, %v7755
      %v7958 = vsel %vm4285, %v7926, %v7757
      %v7959 = vsel %vm4285, %v7927, %v7759
      %v7960 = vsel %vm4285, %v7928, %v7761
      %v7961 = vsel %vm4285, %v7929, %v7763
      %v7962 = vsel %vm4285, %v7930, %v7765
      %v7963 = vsel %vm4285, %v7931, %v7767
      %v7964 = vsel %vm4285, %v7932, %v7769
      %v7965 = vsel %vm4285, %v7933, %v7771
      %v7966 = vsel %vm4285, %v7934, %v7773
      %v7967 = vsel %vm4285, %v7935, %v7775
      %v7968 = vsel %vm4318, %v7936, %v7809
      %v7969 = vsel %vm4318, %v7937, %v7811
      %v7970 = vsel %vm4318, %v7938, %v7813
      %v7971 = vsel %vm4318, %v7939, %v7815
      %v7972 = vsel %vm4318, %v7940, %v7817
      %v7973 = vsel %vm4318, %v7941, %v7819
      %v7974 = vsel %vm4318, %v7942, %v7821
      %v7975 = vsel %vm4318, %v7943, %v7823
      %v7976 = vsel %vm4318, %v7944, %v7825
      %v7977 = vsel %vm4318, %v7945, %v7827
      %v7978 = vsel %vm4318, %v7946, %v7829
      %v7979 = vsel %vm4318, %v7947, %v7831
      %v7980 = vsel %vm4318, %v7948, %v7833
      %v7981 = vsel %vm4318, %v7949, %v7835
      %v7982 = vsel %vm4318, %v7950, %v7837
      %v7983 = vsel %vm4318, %v7951, %v7839
      %v7984 = vsel %vm4318, %v7952, %v7841
      %v7985 = vsel %vm4318, %v7953, %v7843
      %v7986 = vsel %vm4318, %v7954, %v7845
      %v7987 = vsel %vm4318, %v7955, %v7847
      %v7988 = vsel %vm4318, %v7956, %v7849
      %v7989 = vsel %vm4318, %v7957, %v7851
      %v7990 = vsel %vm4318, %v7958, %v7853
      %v7991 = vsel %vm4318, %v7959, %v7855
      %v7992 = vsel %vm4318, %v7960, %v7857
      %v7993 = vsel %vm4318, %v7961, %v7859
      %v7994 = vsel %vm4318, %v7962, %v7861
      %v7995 = vsel %vm4318, %v7963, %v7863
      %v7996 = vsel %vm4318, %v7964, %v7865
      %v7997 = vsel %vm4318, %v7965, %v7867
      %v7998 = vsel %vm4318, %v7966, %v7869
      %v7999 = vsel %vm4318, %v7967, %v7871
      %v8000 = vpack.c.bf16 %v7969, %v7968
      %v8001 = vpack.c.bf16 %v7971, %v7970
      %v8002 = vpack.c.bf16 %v7973, %v7972
      %v8003 = vpack.c.bf16 %v7975, %v7974
      %v8004 = vpack.c.bf16 %v7977, %v7976
      %v8005 = vpack.c.bf16 %v7979, %v7978
      %v8006 = vpack.c.bf16 %v7981, %v7980
      %v8007 = vpack.c.bf16 %v7983, %v7982
      %v8008 = vpack.c.bf16 %v7985, %v7984
      %v8009 = vpack.c.bf16 %v7987, %v7986
      %v8010 = vpack.c.bf16 %v7989, %v7988
      %v8011 = vpack.c.bf16 %v7991, %v7990
      %v8012 = vpack.c.bf16 %v7993, %v7992
      %v8013 = vpack.c.bf16 %v7995, %v7994
      %v8014 = vpack.c.bf16 %v7997, %v7996
      %v8015 = vpack.c.bf16 %v7999, %v7998
      %s8016 = scalar_lea.vmem %s8, 128
      %v8017 = vld [vmem:[%s8016] sm:$0xf]
      %v8018 = vld [vmem:[%s8016 + $0x4] sm:$0xf]
      %v8019 = vld [vmem:[%s8016 + $0x8] sm:$0xf]
      %v8020 = vld [vmem:[%s8016 + $0xc] sm:$0xf]
      %v8021 = vld [vmem:[%s8016 + $0x10] sm:$0xf]
      %v8022 = vld [vmem:[%s8016 + $0x14] sm:$0xf]
      %v8023 = vld [vmem:[%s8016 + $0x18] sm:$0xf]
      %v8024 = vld [vmem:[%s8016 + $0x1c] sm:$0xf]
      %v8025 = vld [vmem:[%s8016 + $0x20] sm:$0xf]
      %v8026 = vld [vmem:[%s8016 + $0x24] sm:$0xf]
      %v8027 = vld [vmem:[%s8016 + $0x28] sm:$0xf]
      %v8028 = vld [vmem:[%s8016 + $0x2c] sm:$0xf]
      %v8029 = vld [vmem:[%s8016 + $0x30] sm:$0xf]
      %v8030 = vld [vmem:[%s8016 + $0x34] sm:$0xf]
      %v8031 = vld [vmem:[%s8016 + $0x38] sm:$0xf]
      %v8032 = vld [vmem:[%s8016 + $0x3c] sm:$0xf]
      %v8049 = vunpack.c.l.b16 %v8017
      %v8050 = vunpack.c.l.b16 %v8018
      %v8051 = vunpack.c.l.b16 %v8019
      %v8052 = vunpack.c.l.b16 %v8020
      %v8053 = vunpack.c.l.b16 %v8021
      %v8054 = vunpack.c.l.b16 %v8022
      %v8055 = vunpack.c.l.b16 %v8023
      %v8056 = vunpack.c.l.b16 %v8024
      %v8057 = vunpack.c.l.b16 %v8025
      %v8058 = vunpack.c.l.b16 %v8026
      %v8059 = vunpack.c.l.b16 %v8027
      %v8060 = vunpack.c.l.b16 %v8028
      %v8061 = vunpack.c.l.b16 %v8029
      %v8062 = vunpack.c.l.b16 %v8030
      %v8063 = vunpack.c.l.b16 %v8031
      %v8064 = vunpack.c.l.b16 %v8032
      %v8065 = vpack.c.b16 %v8050, %v8049
      %v8066 = vpack.c.b16 %v8052, %v8051
      %v8067 = vpack.c.b16 %v8054, %v8053
      %v8068 = vpack.c.b16 %v8056, %v8055
      %v8069 = vpack.c.b16 %v8058, %v8057
      %v8070 = vpack.c.b16 %v8060, %v8059
      %v8071 = vpack.c.b16 %v8062, %v8061
      %v8072 = vpack.c.b16 %v8064, %v8063
      %8081 = vmatprep.subr.bf16.mxu0 0
      %8082 = vmatpush1.bf16.msra.mxu0 %v8072
      %8083 = vmatprep.subr.bf16.mxu0 0
      %8084 = vmatpush1.bf16.msra.mxu0 %v8071
      %8085 = vmatprep.subr.bf16.mxu0 0
      %8086 = vmatpush1.bf16.msra.mxu0 %v8070
      %8087 = vmatprep.subr.bf16.mxu0 0
      %8088 = vmatpush1.bf16.msra.mxu0 %v8069
      %8089 = vmatprep.subr.bf16.mxu0 0
      %8090 = vmatpush1.bf16.msra.mxu0 %v8068
      %8091 = vmatprep.subr.bf16.mxu0 0
      %8092 = vmatpush1.bf16.msra.mxu0 %v8067
      %8093 = vmatprep.subr.bf16.mxu0 0
      %8094 = vmatpush1.bf16.msra.mxu0 %v8066
      %8095 = vmatprep.subr.bf16.mxu0 0
      %8096 = vmatpush1.bf16.msra.mxu0 %v8065
      %8097 = vmatprep.subr.bf16.mxu0 0
      %8098 = vmatpush2.bf16.msra.mxu0 0
      %8099 = vmatprep.subr.bf16.mxu0 0
      %8100 = vmatpush2.bf16.msra.mxu0 0
      %8101 = vmatprep.subr.bf16.mxu0 0
      %8102 = vmatpush2.bf16.msra.mxu0 0
      %8103 = vmatprep.subr.bf16.mxu0 0
      %8104 = vmatpush2.bf16.msra.mxu0 0
      %8105 = vmatprep.subr.bf16.mxu0 0
      %8106 = vmatpush2.bf16.msra.mxu0 0
      %8107 = vmatprep.subr.bf16.mxu0 0
      %8108 = vmatpush2.bf16.msra.mxu0 0
      %8109 = vmatprep.subr.bf16.mxu0 0
      %8110 = vmatpush2.bf16.msra.mxu0 0
      %8111 = vmatprep.subr.bf16.mxu0 0
      %8112 = vmatpush2.bf16.msra.mxu0 0
      %8113 = vmatprep.mubr.bf16.mxu0 0
      %8114 = vmatmul.mubr.bf16.gmra.mxu0 %v8000
      %v8115 = vpop.f32.mrf.mxu0
      %v8116 = vadd.f32 0.0, %v8115
      %v8117 = vpop.f32.mrf.mxu0
      %v8118 = vpop.f32.mrf.mxu0
      %v8119 = vadd.f32 0.0, %v8118
      %v8120 = vpop.f32.mrf.mxu0
      %8121 = vmatprep.mubr.bf16.mxu0 0
      %8122 = vmatmul.mubr.bf16.gmra.mxu0 %v8001
      %v8123 = vpop.f32.mrf.mxu0
      %v8124 = vadd.f32 0.0, %v8123
      %v8125 = vpop.f32.mrf.mxu0
      %v8126 = vpop.f32.mrf.mxu0
      %v8127 = vadd.f32 0.0, %v8126
      %v8128 = vpop.f32.mrf.mxu0
      %8129 = vmatprep.mubr.bf16.mxu0 0
      %8130 = vmatmul.mubr.bf16.gmra.mxu0 %v8002
      %v8131 = vpop.f32.mrf.mxu0
      %v8132 = vadd.f32 0.0, %v8131
      %v8133 = vpop.f32.mrf.mxu0
      %v8134 = vpop.f32.mrf.mxu0
      %v8135 = vadd.f32 0.0, %v8134
      %v8136 = vpop.f32.mrf.mxu0
      %8137 = vmatprep.mubr.bf16.mxu0 0
      %8138 = vmatmul.mubr.bf16.gmra.mxu0 %v8003
      %v8139 = vpop.f32.mrf.mxu0
      %v8140 = vadd.f32 0.0, %v8139
      %v8141 = vpop.f32.mrf.mxu0
      %v8142 = vpop.f32.mrf.mxu0
      %v8143 = vadd.f32 0.0, %v8142
      %v8144 = vpop.f32.mrf.mxu0
      %8145 = vmatprep.mubr.bf16.mxu0 0
      %8146 = vmatmul.mubr.bf16.gmra.mxu0 %v8004
      %v8147 = vpop.f32.mrf.mxu0
      %v8148 = vadd.f32 0.0, %v8147
      %v8149 = vpop.f32.mrf.mxu0
      %v8150 = vpop.f32.mrf.mxu0
      %v8151 = vadd.f32 0.0, %v8150
      %v8152 = vpop.f32.mrf.mxu0
      %8153 = vmatprep.mubr.bf16.mxu0 0
      %8154 = vmatmul.mubr.bf16.gmra.mxu0 %v8005
      %v8155 = vpop.f32.mrf.mxu0
      %v8156 = vadd.f32 0.0, %v8155
      %v8157 = vpop.f32.mrf.mxu0
      %v8158 = vpop.f32.mrf.mxu0
      %v8159 = vadd.f32 0.0, %v8158
      %v8160 = vpop.f32.mrf.mxu0
      %8161 = vmatprep.mubr.bf16.mxu0 0
      %8162 = vmatmul.mubr.bf16.gmra.mxu0 %v8006
      %v8163 = vpop.f32.mrf.mxu0
      %v8164 = vadd.f32 0.0, %v8163
      %v8165 = vpop.f32.mrf.mxu0
      %v8166 = vpop.f32.mrf.mxu0
      %v8167 = vadd.f32 0.0, %v8166
      %v8168 = vpop.f32.mrf.mxu0
      %8169 = vmatprep.mubr.bf16.mxu0 0
      %8170 = vmatmul.mubr.bf16.gmra.mxu0 %v8007
      %v8171 = vpop.f32.mrf.mxu0
      %v8172 = vadd.f32 0.0, %v8171
      %v8173 = vpop.f32.mrf.mxu0
      %v8174 = vpop.f32.mrf.mxu0
      %v8175 = vadd.f32 0.0, %v8174
      %v8176 = vpop.f32.mrf.mxu0
      %8177 = vmatprep.mubr.bf16.mxu0 0
      %8178 = vmatmul.mubr.bf16.gmra.mxu0 %v8008
      %v8179 = vpop.f32.mrf.mxu0
      %v8180 = vadd.f32 0.0, %v8179
      %v8181 = vpop.f32.mrf.mxu0
      %v8182 = vpop.f32.mrf.mxu0
      %v8183 = vadd.f32 0.0, %v8182
      %v8184 = vpop.f32.mrf.mxu0
      %8185 = vmatprep.mubr.bf16.mxu0 0
      %8186 = vmatmul.mubr.bf16.gmra.mxu0 %v8009
      %v8187 = vpop.f32.mrf.mxu0
      %v8188 = vadd.f32 0.0, %v8187
      %v8189 = vpop.f32.mrf.mxu0
      %v8190 = vpop.f32.mrf.mxu0
      %v8191 = vadd.f32 0.0, %v8190
      %v8192 = vpop.f32.mrf.mxu0
      %8193 = vmatprep.mubr.bf16.mxu0 0
      %8194 = vmatmul.mubr.bf16.gmra.mxu0 %v8010
      %v8195 = vpop.f32.mrf.mxu0
      %v8196 = vadd.f32 0.0, %v8195
      %v8197 = vpop.f32.mrf.mxu0
      %v8198 = vpop.f32.mrf.mxu0
      %v8199 = vadd.f32 0.0, %v8198
      %v8200 = vpop.f32.mrf.mxu0
      %8201 = vmatprep.mubr.bf16.mxu0 0
      %8202 = vmatmul.mubr.bf16.gmra.mxu0 %v8011
      %v8203 = vpop.f32.mrf.mxu0
      %v8204 = vadd.f32 0.0, %v8203
      %v8205 = vpop.f32.mrf.mxu0
      %v8206 = vpop.f32.mrf.mxu0
      %v8207 = vadd.f32 0.0, %v8206
      %v8208 = vpop.f32.mrf.mxu0
      %8209 = vmatprep.mubr.bf16.mxu0 0
      %8210 = vmatmul.mubr.bf16.gmra.mxu0 %v8012
      %v8211 = vpop.f32.mrf.mxu0
      %v8212 = vadd.f32 0.0, %v8211
      %v8213 = vpop.f32.mrf.mxu0
      %v8214 = vpop.f32.mrf.mxu0
      %v8215 = vadd.f32 0.0, %v8214
      %v8216 = vpop.f32.mrf.mxu0
      %8217 = vmatprep.mubr.bf16.mxu0 0
      %8218 = vmatmul.mubr.bf16.gmra.mxu0 %v8013
      %v8219 = vpop.f32.mrf.mxu0
      %v8220 = vadd.f32 0.0, %v8219
      %v8221 = vpop.f32.mrf.mxu0
      %v8222 = vpop.f32.mrf.mxu0
      %v8223 = vadd.f32 0.0, %v8222
      %v8224 = vpop.f32.mrf.mxu0
      %8225 = vmatprep.mubr.bf16.mxu0 0
      %8226 = vmatmul.mubr.bf16.gmra.mxu0 %v8014
      %v8227 = vpop.f32.mrf.mxu0
      %v8228 = vadd.f32 0.0, %v8227
      %v8229 = vpop.f32.mrf.mxu0
      %v8230 = vpop.f32.mrf.mxu0
      %v8231 = vadd.f32 0.0, %v8230
      %v8232 = vpop.f32.mrf.mxu0
      %8233 = vmatprep.mubr.bf16.mxu0 0
      %8234 = vmatmul.mubr.bf16.gmra.mxu0 %v8015
      %v8235 = vpop.f32.mrf.mxu0
      %v8236 = vadd.f32 0.0, %v8235
      %v8237 = vpop.f32.mrf.mxu0
      %v8238 = vpop.f32.mrf.mxu0
      %v8239 = vadd.f32 0.0, %v8238
      %v8240 = vpop.f32.mrf.mxu0
      %8241 = vdwg.mxu0
      %v8242 = vadd.f32 %v7426, %v8116
      %v8243 = vadd.f32 %v7429, %v8119
      %v8244 = vadd.f32 %v7434, %v8124
      %v8245 = vadd.f32 %v7437, %v8127
      %v8246 = vadd.f32 %v7442, %v8132
      %v8247 = vadd.f32 %v7445, %v8135
      %v8248 = vadd.f32 %v7450, %v8140
      %v8249 = vadd.f32 %v7453, %v8143
      %v8250 = vadd.f32 %v7458, %v8148
      %v8251 = vadd.f32 %v7461, %v8151
      %v8252 = vadd.f32 %v7466, %v8156
      %v8253 = vadd.f32 %v7469, %v8159
      %v8254 = vadd.f32 %v7474, %v8164
      %v8255 = vadd.f32 %v7477, %v8167
      %v8256 = vadd.f32 %v7482, %v8172
      %v8257 = vadd.f32 %v7485, %v8175
      %v8258 = vadd.f32 %v7490, %v8180
      %v8259 = vadd.f32 %v7493, %v8183
      %v8260 = vadd.f32 %v7498, %v8188
      %v8261 = vadd.f32 %v7501, %v8191
      %v8262 = vadd.f32 %v7506, %v8196
      %v8263 = vadd.f32 %v7509, %v8199
      %v8264 = vadd.f32 %v7514, %v8204
      %v8265 = vadd.f32 %v7517, %v8207
      %v8266 = vadd.f32 %v7522, %v8212
      %v8267 = vadd.f32 %v7525, %v8215
      %v8268 = vadd.f32 %v7530, %v8220
      %v8269 = vadd.f32 %v7533, %v8223
      %v8270 = vadd.f32 %v7538, %v8228
      %v8271 = vadd.f32 %v7541, %v8231
      %v8272 = vadd.f32 %v7546, %v8236
      %v8273 = vadd.f32 %v7549, %v8239
      %v8274 = vld [vmem:[%s9] sm:$0x1]
      %v8276 = vlaneseq
      %v8277 = vshrl.u32 %v8276, 7
      %v8278 = vsub.s32 0, %v8277
      %v8279 = vrot.slane %v8274, %v8278
      %v8281 = vadd.f32 %v8242, %v8279
      %v8282 = vadd.f32 %v8243, %v8279
      %v8283 = vadd.f32 %v8244, %v8279
      %v8284 = vadd.f32 %v8245, %v8279
      %v8285 = vadd.f32 %v8246, %v8279
      %v8286 = vadd.f32 %v8247, %v8279
      %v8287 = vadd.f32 %v8248, %v8279
      %v8288 = vadd.f32 %v8249, %v8279
      %v8289 = vadd.f32 %v8250, %v8279
      %v8290 = vadd.f32 %v8251, %v8279
      %v8291 = vadd.f32 %v8252, %v8279
      %v8292 = vadd.f32 %v8253, %v8279
      %v8293 = vadd.f32 %v8254, %v8279
      %v8294 = vadd.f32 %v8255, %v8279
      %v8295 = vadd.f32 %v8256, %v8279
      %v8296 = vadd.f32 %v8257, %v8279
      %v8297 = vadd.f32 %v8258, %v8279
      %v8298 = vadd.f32 %v8259, %v8279
      %v8299 = vadd.f32 %v8260, %v8279
      %v8300 = vadd.f32 %v8261, %v8279
      %v8301 = vadd.f32 %v8262, %v8279
      %v8302 = vadd.f32 %v8263, %v8279
      %v8303 = vadd.f32 %v8264, %v8279
      %v8304 = vadd.f32 %v8265, %v8279
      %v8305 = vadd.f32 %v8266, %v8279
      %v8306 = vadd.f32 %v8267, %v8279
      %v8307 = vadd.f32 %v8268, %v8279
      %v8308 = vadd.f32 %v8269, %v8279
      %v8309 = vadd.f32 %v8270, %v8279
      %v8310 = vadd.f32 %v8271, %v8279
      %v8311 = vadd.f32 %v8272, %v8279
      %v8312 = vadd.f32 %v8273, %v8279
      %v8313 = vld [vmem:[#allocation3 + $0x20] sm:$0xff]
      %v8314 = vld [vmem:[#allocation3 + $0x28] sm:$0xff]
      %v8315 = vld [vmem:[#allocation3 + $0x30] sm:$0xff]
      %v8316 = vld [vmem:[#allocation3 + $0x38] sm:$0xff]
      %v8317 = vld [vmem:[#allocation3 + $0x40] sm:$0xff]
      %v8318 = vld [vmem:[#allocation3 + $0x48] sm:$0xff]
      %v8319 = vld [vmem:[#allocation3 + $0x50] sm:$0xff]
      %v8320 = vld [vmem:[#allocation3 + $0x58] sm:$0xff]
      %v8321 = vld [vmem:[#allocation3 + $0x60] sm:$0xff]
      %v8322 = vld [vmem:[#allocation3 + $0x68] sm:$0xff]
      %v8323 = vld [vmem:[#allocation3 + $0x70] sm:$0xff]
      %v8324 = vld [vmem:[#allocation3 + $0x78] sm:$0xff]
      %v8325 = vld [vmem:[#allocation3 + $0x80] sm:$0xff]
      %v8326 = vld [vmem:[#allocation3 + $0x88] sm:$0xff]
      %v8327 = vld [vmem:[#allocation3 + $0x90] sm:$0xff]
      %v8328 = vld [vmem:[#allocation3 + $0x98] sm:$0xff]
      %v8329 = vld [vmem:[#allocation3 + $0xa0] sm:$0xff]
      %v8330 = vld [vmem:[#allocation3 + $0xa8] sm:$0xff]
      %v8331 = vld [vmem:[#allocation3 + $0xb0] sm:$0xff]
      %v8332 = vld [vmem:[#allocation3 + $0xb8] sm:$0xff]
      %v8333 = vld [vmem:[#allocation3 + $0xc0] sm:$0xff]
      %v8334 = vld [vmem:[#allocation3 + $0xc8] sm:$0xff]
      %v8335 = vld [vmem:[#allocation3 + $0xd0] sm:$0xff]
      %v8336 = vld [vmem:[#allocation3 + $0xd8] sm:$0xff]
      %v8337 = vld [vmem:[#allocation3 + $0xe0] sm:$0xff]
      %v8338 = vld [vmem:[#allocation3 + $0xe8] sm:$0xff]
      %v8339 = vld [vmem:[#allocation3 + $0xf0] sm:$0xff]
      %v8340 = vld [vmem:[#allocation3 + $0xf8] sm:$0xff]
      %v8341 = vld [vmem:[#allocation3 + $0x100] sm:$0xff]
      %v8342 = vld [vmem:[#allocation3 + $0x108] sm:$0xff]
      %v8343 = vld [vmem:[#allocation3 + $0x110] sm:$0xff]
      %v8344 = vld [vmem:[#allocation3 + $0x118] sm:$0xff]
      %v8345 = vadd.f32 %v8281, %v8313
      %v8346 = vadd.f32 %v8282, %v8314
      %v8347 = vadd.f32 %v8283, %v8315
      %v8348 = vadd.f32 %v8284, %v8316
      %v8349 = vadd.f32 %v8285, %v8317
      %v8350 = vadd.f32 %v8286, %v8318
      %v8351 = vadd.f32 %v8287, %v8319
      %v8352 = vadd.f32 %v8288, %v8320
      %v8353 = vadd.f32 %v8289, %v8321
      %v8354 = vadd.f32 %v8290, %v8322
      %v8355 = vadd.f32 %v8291, %v8323
      %v8356 = vadd.f32 %v8292, %v8324
      %v8357 = vadd.f32 %v8293, %v8325
      %v8358 = vadd.f32 %v8294, %v8326
      %v8359 = vadd.f32 %v8295, %v8327
      %v8360 = vadd.f32 %v8296, %v8328
      %v8361 = vadd.f32 %v8297, %v8329
      %v8362 = vadd.f32 %v8298, %v8330
      %v8363 = vadd.f32 %v8299, %v8331
      %v8364 = vadd.f32 %v8300, %v8332
      %v8365 = vadd.f32 %v8301, %v8333
      %v8366 = vadd.f32 %v8302, %v8334
      %v8367 = vadd.f32 %v8303, %v8335
      %v8368 = vadd.f32 %v8304, %v8336
      %v8369 = vadd.f32 %v8305, %v8337
      %v8370 = vadd.f32 %v8306, %v8338
      %v8371 = vadd.f32 %v8307, %v8339
      %v8372 = vadd.f32 %v8308, %v8340
      %v8373 = vadd.f32 %v8309, %v8341
      %v8374 = vadd.f32 %v8310, %v8342
      %v8375 = vadd.f32 %v8311, %v8343
      %v8376 = vadd.f32 %v8312, %v8344
      %v8377 = vmax.f32 %v8345, 0.0
      %v8378 = vmax.f32 %v8346, 0.0
      %v8379 = vmax.f32 %v8347, 0.0
      %v8380 = vmax.f32 %v8348, 0.0
      %v8381 = vmax.f32 %v8349, 0.0
      %v8382 = vmax.f32 %v8350, 0.0
      %v8383 = vmax.f32 %v8351, 0.0
      %v8384 = vmax.f32 %v8352, 0.0
      %v8385 = vmax.f32 %v8353, 0.0
      %v8386 = vmax.f32 %v8354, 0.0
      %v8387 = vmax.f32 %v8355, 0.0
      %v8388 = vmax.f32 %v8356, 0.0
      %v8389 = vmax.f32 %v8357, 0.0
      %v8390 = vmax.f32 %v8358, 0.0
      %v8391 = vmax.f32 %v8359, 0.0
      %v8392 = vmax.f32 %v8360, 0.0
      %v8393 = vmax.f32 %v8361, 0.0
      %v8394 = vmax.f32 %v8362, 0.0
      %v8395 = vmax.f32 %v8363, 0.0
      %v8396 = vmax.f32 %v8364, 0.0
      %v8397 = vmax.f32 %v8365, 0.0
      %v8398 = vmax.f32 %v8366, 0.0
      %v8399 = vmax.f32 %v8367, 0.0
      %v8400 = vmax.f32 %v8368, 0.0
      %v8401 = vmax.f32 %v8369, 0.0
      %v8402 = vmax.f32 %v8370, 0.0
      %v8403 = vmax.f32 %v8371, 0.0
      %v8404 = vmax.f32 %v8372, 0.0
      %v8405 = vmax.f32 %v8373, 0.0
      %v8406 = vmax.f32 %v8374, 0.0
      %v8407 = vmax.f32 %v8375, 0.0
      %v8408 = vmax.f32 %v8376, 0.0
      %v8409 = vsel %vm3675, %v8377, 0.0
      %v8410 = vsel %vm3676, %v8378, 0.0
      %v8411 = vsel %vm3677, %v8379, 0.0
      %v8412 = vsel %vm3678, %v8380, 0.0
      %v8413 = vsel %vm3679, %v8381, 0.0
      %v8414 = vsel %vm3680, %v8382, 0.0
      %v8415 = vsel %vm3681, %v8383, 0.0
      %v8416 = vsel %vm3682, %v8384, 0.0
      %v8417 = vsel %vm3683, %v8385, 0.0
      %v8418 = vsel %vm3684, %v8386, 0.0
      %v8419 = vsel %vm3685, %v8387, 0.0
      %v8420 = vsel %vm3686, %v8388, 0.0
      %v8421 = vsel %vm3687, %v8389, 0.0
      %v8422 = vsel %vm3688, %v8390, 0.0
      %v8423 = vsel %vm3689, %v8391, 0.0
      %v8424 = vsel %vm3690, %v8392, 0.0
      %v8425 = vsel %vm3691, %v8393, 0.0
      %v8426 = vsel %vm3692, %v8394, 0.0
      %v8427 = vsel %vm3693, %v8395, 0.0
      %v8428 = vsel %vm3694, %v8396, 0.0
      %v8429 = vsel %vm3695, %v8397, 0.0
      %v8430 = vsel %vm3696, %v8398, 0.0
      %v8431 = vsel %vm3697, %v8399, 0.0
      %v8432 = vsel %vm3698, %v8400, 0.0
      %v8433 = vsel %vm3699, %v8401, 0.0
      %v8434 = vsel %vm3700, %v8402, 0.0
      %v8435 = vsel %vm3701, %v8403, 0.0
      %v8436 = vsel %vm3702, %v8404, 0.0
      %v8437 = vsel %vm3703, %v8405, 0.0
      %v8438 = vsel %vm3704, %v8406, 0.0
      %v8439 = vsel %vm3705, %v8407, 0.0
      %v8440 = vsel %vm3706, %v8408, 0.0
      %v8441 = vld [vmem:[%s10] sm:$0xff]
      %v8442 = vld [vmem:[%s10 + $0x8] sm:$0xff]
      %v8443 = vld [vmem:[%s10 + $0x10] sm:$0xff]
      %v8444 = vld [vmem:[%s10 + $0x18] sm:$0xff]
      %v8445 = vld [vmem:[%s10 + $0x20] sm:$0xff]
      %v8446 = vld [vmem:[%s10 + $0x28] sm:$0xff]
      %v8447 = vld [vmem:[%s10 + $0x30] sm:$0xff]
      %v8448 = vld [vmem:[%s10 + $0x38] sm:$0xff]
      %v8449 = vld [vmem:[%s10 + $0x40] sm:$0xff]
      %v8450 = vld [vmem:[%s10 + $0x48] sm:$0xff]
      %v8451 = vld [vmem:[%s10 + $0x50] sm:$0xff]
      %v8452 = vld [vmem:[%s10 + $0x58] sm:$0xff]
      %v8453 = vld [vmem:[%s10 + $0x60] sm:$0xff]
      %v8454 = vld [vmem:[%s10 + $0x68] sm:$0xff]
      %v8455 = vld [vmem:[%s10 + $0x70] sm:$0xff]
      %v8456 = vld [vmem:[%s10 + $0x78] sm:$0xff]
      %v8457 = vld [vmem:[%s10 + $0x80] sm:$0xff]
      %v8458 = vld [vmem:[%s10 + $0x88] sm:$0xff]
      %v8459 = vld [vmem:[%s10 + $0x90] sm:$0xff]
      %v8460 = vld [vmem:[%s10 + $0x98] sm:$0xff]
      %v8461 = vld [vmem:[%s10 + $0xa0] sm:$0xff]
      %v8462 = vld [vmem:[%s10 + $0xa8] sm:$0xff]
      %v8463 = vld [vmem:[%s10 + $0xb0] sm:$0xff]
      %v8464 = vld [vmem:[%s10 + $0xb8] sm:$0xff]
      %v8465 = vld [vmem:[%s10 + $0xc0] sm:$0xff]
      %v8466 = vld [vmem:[%s10 + $0xc8] sm:$0xff]
      %v8467 = vld [vmem:[%s10 + $0xd0] sm:$0xff]
      %v8468 = vld [vmem:[%s10 + $0xd8] sm:$0xff]
      %v8469 = vld [vmem:[%s10 + $0xe0] sm:$0xff]
      %v8470 = vld [vmem:[%s10 + $0xe8] sm:$0xff]
      %v8471 = vld [vmem:[%s10 + $0xf0] sm:$0xff]
      %v8472 = vld [vmem:[%s10 + $0xf8] sm:$0xff]
      %v8473 = vld [vmem:[%s10 + $0x100] sm:$0xff]
      %v8474 = vld [vmem:[%s10 + $0x108] sm:$0xff]
      %v8475 = vld [vmem:[%s10 + $0x110] sm:$0xff]
      %v8476 = vld [vmem:[%s10 + $0x118] sm:$0xff]
      %v8477 = vld [vmem:[%s10 + $0x120] sm:$0xff]
      %v8478 = vld [vmem:[%s10 + $0x128] sm:$0xff]
      %v8479 = vld [vmem:[%s10 + $0x130] sm:$0xff]
      %v8480 = vld [vmem:[%s10 + $0x138] sm:$0xff]
      %v8481 = vld [vmem:[%s10 + $0x140] sm:$0x33]
      %v8482 = vpack.c.bf16 %v8410, %v8409
      %v8483 = vpack.c.bf16 %v8412, %v8411
      %v8484 = vpack.c.bf16 %v8414, %v8413
      %v8485 = vpack.c.bf16 %v8416, %v8415
      %v8486 = vpack.c.bf16 %v8418, %v8417
      %v8487 = vpack.c.bf16 %v8420, %v8419
      %v8488 = vpack.c.bf16 %v8422, %v8421
      %v8489 = vpack.c.bf16 %v8424, %v8423
      %v8490 = vpack.c.bf16 %v8426, %v8425
      %v8491 = vpack.c.bf16 %v8428, %v8427
      %v8492 = vpack.c.bf16 %v8430, %v8429
      %v8493 = vpack.c.bf16 %v8432, %v8431
      %v8494 = vpack.c.bf16 %v8434, %v8433
      %v8495 = vpack.c.bf16 %v8436, %v8435
      %v8496 = vpack.c.bf16 %v8438, %v8437
      %v8497 = vpack.c.bf16 %v8440, %v8439
      %v8539 = vunpack.c.l.b16 %v8441
      %v8540 = vunpack.c.h.b16 %v8441
      %v8541 = vunpack.c.l.b16 %v8442
      %v8542 = vunpack.c.h.b16 %v8442
      %v8543 = vunpack.c.l.b16 %v8443
      %v8544 = vunpack.c.h.b16 %v8443
      %v8545 = vunpack.c.l.b16 %v8444
      %v8546 = vunpack.c.h.b16 %v8444
      %v8547 = vunpack.c.l.b16 %v8445
      %v8548 = vunpack.c.h.b16 %v8445
      %v8549 = vunpack.c.l.b16 %v8446
      %v8550 = vunpack.c.h.b16 %v8446
      %v8551 = vunpack.c.l.b16 %v8447
      %v8552 = vunpack.c.h.b16 %v8447
      %v8553 = vunpack.c.l.b16 %v8448
      %v8554 = vunpack.c.h.b16 %v8448
      %v8555 = vunpack.c.l.b16 %v8449
      %v8556 = vunpack.c.h.b16 %v8449
      %v8557 = vunpack.c.l.b16 %v8450
      %v8558 = vunpack.c.h.b16 %v8450
      %v8559 = vunpack.c.l.b16 %v8451
      %v8560 = vunpack.c.h.b16 %v8451
      %v8561 = vunpack.c.l.b16 %v8452
      %v8562 = vunpack.c.h.b16 %v8452
      %v8563 = vunpack.c.l.b16 %v8453
      %v8564 = vunpack.c.h.b16 %v8453
      %v8565 = vunpack.c.l.b16 %v8454
      %v8566 = vunpack.c.h.b16 %v8454
      %v8567 = vunpack.c.l.b16 %v8455
      %v8568 = vunpack.c.h.b16 %v8455
      %v8569 = vunpack.c.l.b16 %v8456
      %v8570 = vunpack.c.h.b16 %v8456
      %v8571 = vunpack.c.l.b16 %v8457
      %v8572 = vunpack.c.h.b16 %v8457
      %v8573 = vunpack.c.l.b16 %v8458
      %v8574 = vunpack.c.h.b16 %v8458
      %v8575 = vunpack.c.l.b16 %v8459
      %v8576 = vunpack.c.h.b16 %v8459
      %v8577 = vunpack.c.l.b16 %v8460
      %v8578 = vunpack.c.h.b16 %v8460
      %v8579 = vunpack.c.l.b16 %v8461
      %v8580 = vunpack.c.h.b16 %v8461
      %v8581 = vunpack.c.l.b16 %v8462
      %v8582 = vunpack.c.h.b16 %v8462
      %v8583 = vunpack.c.l.b16 %v8463
      %v8584 = vunpack.c.h.b16 %v8463
      %v8585 = vunpack.c.l.b16 %v8464
      %v8586 = vunpack.c.h.b16 %v8464
      %v8587 = vunpack.c.l.b16 %v8465
      %v8588 = vunpack.c.h.b16 %v8465
      %v8589 = vunpack.c.l.b16 %v8466
      %v8590 = vunpack.c.h.b16 %v8466
      %v8591 = vunpack.c.l.b16 %v8467
      %v8592 = vunpack.c.h.b16 %v8467
      %v8593 = vunpack.c.l.b16 %v8468
      %v8594 = vunpack.c.h.b16 %v8468
      %v8595 = vunpack.c.l.b16 %v8469
      %v8596 = vunpack.c.h.b16 %v8469
      %v8597 = vunpack.c.l.b16 %v8470
      %v8598 = vunpack.c.h.b16 %v8470
      %v8599 = vunpack.c.l.b16 %v8471
      %v8600 = vunpack.c.h.b16 %v8471
      %v8601 = vunpack.c.l.b16 %v8472
      %v8602 = vunpack.c.h.b16 %v8472
      %v8603 = vunpack.c.l.b16 %v8473
      %v8604 = vunpack.c.h.b16 %v8473
      %v8605 = vunpack.c.l.b16 %v8474
      %v8606 = vunpack.c.h.b16 %v8474
      %v8607 = vunpack.c.l.b16 %v8475
      %v8608 = vunpack.c.h.b16 %v8475
      %v8609 = vunpack.c.l.b16 %v8476
      %v8610 = vunpack.c.h.b16 %v8476
      %v8611 = vunpack.c.l.b16 %v8477
      %v8612 = vunpack.c.h.b16 %v8477
      %v8613 = vunpack.c.l.b16 %v8478
      %v8614 = vunpack.c.h.b16 %v8478
      %v8615 = vunpack.c.l.b16 %v8479
      %v8616 = vunpack.c.h.b16 %v8479
      %v8617 = vunpack.c.l.b16 %v8480
      %v8618 = vunpack.c.h.b16 %v8480
      %v8619 = vunpack.c.l.b16 %v8481
      %v8620 = vunpack.c.h.b16 %v8481
      %v8621 = vpack.c.b16 %v8541, %v8539
      %v8622 = vpack.c.b16 %v8542, %v8540
      %v8623 = vpack.c.b16 %v8545, %v8543
      %v8624 = vpack.c.b16 %v8546, %v8544
      %v8625 = vpack.c.b16 %v8549, %v8547
      %v8626 = vpack.c.b16 %v8550, %v8548
      %v8627 = vpack.c.b16 %v8553, %v8551
      %v8628 = vpack.c.b16 %v8554, %v8552
      %v8629 = vpack.c.b16 %v8557, %v8555
      %v8630 = vpack.c.b16 %v8558, %v8556
      %v8631 = vpack.c.b16 %v8561, %v8559
      %v8632 = vpack.c.b16 %v8562, %v8560
      %v8633 = vpack.c.b16 %v8565, %v8563
      %v8634 = vpack.c.b16 %v8566, %v8564
      %v8635 = vpack.c.b16 %v8569, %v8567
      %v8636 = vpack.c.b16 %v8570, %v8568
      %v8637 = vpack.c.b16 %v8573, %v8571
      %v8638 = vpack.c.b16 %v8574, %v8572
      %v8639 = vpack.c.b16 %v8577, %v8575
      %v8640 = vpack.c.b16 %v8578, %v8576
      %v8641 = vpack.c.b16 %v8581, %v8579
      %v8642 = vpack.c.b16 %v8582, %v8580
      %v8643 = vpack.c.b16 %v8585, %v8583
      %v8644 = vpack.c.b16 %v8586, %v8584
      %v8645 = vpack.c.b16 %v8589, %v8587
      %v8646 = vpack.c.b16 %v8590, %v8588
      %v8647 = vpack.c.b16 %v8593, %v8591
      %v8648 = vpack.c.b16 %v8594, %v8592
      %v8649 = vpack.c.b16 %v8597, %v8595
      %v8650 = vpack.c.b16 %v8598, %v8596
      %v8651 = vpack.c.b16 %v8601, %v8599
      %v8652 = vpack.c.b16 %v8602, %v8600
      %v8653 = vpack.c.b16 %v8605, %v8603
      %v8654 = vpack.c.b16 %v8606, %v8604
      %v8655 = vpack.c.b16 %v8609, %v8607
      %v8656 = vpack.c.b16 %v8610, %v8608
      %v8657 = vpack.c.b16 %v8613, %v8611
      %v8658 = vpack.c.b16 %v8614, %v8612
      %v8659 = vpack.c.b16 %v8617, %v8615
      %v8660 = vpack.c.b16 %v8618, %v8616
      %v8661 = vpack.c.b16 %v8619, %v8619
      %v8662 = vpack.c.b16 %v8620, %v8620
      %8705 = vmatprep.subr.bf16.mxu0 0
      %8706 = vmatpush1.bf16.msra.mxu0 %v8489
      %8707 = vmatprep.subr.bf16.mxu0 0
      %8708 = vmatpush1.bf16.msra.mxu0 %v8488
      %8709 = vmatprep.subr.bf16.mxu0 0
      %8710 = vmatpush1.bf16.msra.mxu0 %v8487
      %8711 = vmatprep.subr.bf16.mxu0 0
      %8712 = vmatpush1.bf16.msra.mxu0 %v8486
      %8713 = vmatprep.subr.bf16.mxu0 0
      %8714 = vmatpush1.bf16.msra.mxu0 %v8485
      %8715 = vmatprep.subr.bf16.mxu0 0
      %8716 = vmatpush1.bf16.msra.mxu0 %v8484
      %8717 = vmatprep.subr.bf16.mxu0 0
      %8718 = vmatpush1.bf16.msra.mxu0 %v8483
      %8719 = vmatprep.subr.bf16.mxu0 0
      %8720 = vmatpush1.bf16.msra.mxu0 %v8482
      %8721 = vmatprep.subr.bf16.mxu0 0
      %8722 = vmatpush2.bf16.msra.mxu0 %v8497
      %8723 = vmatprep.subr.bf16.mxu0 0
      %8724 = vmatpush2.bf16.msra.mxu0 %v8496
      %8725 = vmatprep.subr.bf16.mxu0 0
      %8726 = vmatpush2.bf16.msra.mxu0 %v8495
      %8727 = vmatprep.subr.bf16.mxu0 0
      %8728 = vmatpush2.bf16.msra.mxu0 %v8494
      %8729 = vmatprep.subr.bf16.mxu0 0
      %8730 = vmatpush2.bf16.msra.mxu0 %v8493
      %8731 = vmatprep.subr.bf16.mxu0 0
      %8732 = vmatpush2.bf16.msra.mxu0 %v8492
      %8733 = vmatprep.subr.bf16.mxu0 0
      %8734 = vmatpush2.bf16.msra.mxu0 %v8491
      %8735 = vmatprep.subr.bf16.mxu0 0
      %8736 = vmatpush2.bf16.msra.mxu0 %v8490
      %8737 = vmatprep.mubr.bf16.mxu0 %v8622
      %8738 = vmatmul.mubr.bf16.gmra.mxu0 %v8621
      %v8739 = vpop.f32.mrf.mxu0
      %v8740 = vadd.f32 0.0, %v8739
      %v8741 = vpop.f32.mrf.mxu0
      %v8742 = vpop.f32.mrf.mxu0
      %v8743 = vadd.f32 0.0, %v8742
      %v8744 = vpop.f32.mrf.mxu0
      %8745 = vmatprep.mubr.bf16.mxu0 %v8624
      %8746 = vmatmul.mubr.bf16.gmra.mxu0 %v8623
      %v8747 = vpop.f32.mrf.mxu0
      %v8748 = vadd.f32 0.0, %v8747
      %v8749 = vpop.f32.mrf.mxu0
      %v8750 = vpop.f32.mrf.mxu0
      %v8751 = vadd.f32 0.0, %v8750
      %v8752 = vpop.f32.mrf.mxu0
      %8753 = vmatprep.mubr.bf16.mxu0 %v8626
      %8754 = vmatmul.mubr.bf16.gmra.mxu0 %v8625
      %v8755 = vpop.f32.mrf.mxu0
      %v8756 = vadd.f32 0.0, %v8755
      %v8757 = vpop.f32.mrf.mxu0
      %v8758 = vpop.f32.mrf.mxu0
      %v8759 = vadd.f32 0.0, %v8758
      %v8760 = vpop.f32.mrf.mxu0
      %8761 = vmatprep.mubr.bf16.mxu0 %v8628
      %8762 = vmatmul.mubr.bf16.gmra.mxu0 %v8627
      %v8763 = vpop.f32.mrf.mxu0
      %v8764 = vadd.f32 0.0, %v8763
      %v8765 = vpop.f32.mrf.mxu0
      %v8766 = vpop.f32.mrf.mxu0
      %v8767 = vadd.f32 0.0, %v8766
      %v8768 = vpop.f32.mrf.mxu0
      %8769 = vmatprep.mubr.bf16.mxu0 %v8630
      %8770 = vmatmul.mubr.bf16.gmra.mxu0 %v8629
      %v8771 = vpop.f32.mrf.mxu0
      %v8772 = vadd.f32 0.0, %v8771
      %v8773 = vpop.f32.mrf.mxu0
      %v8774 = vpop.f32.mrf.mxu0
      %v8775 = vadd.f32 0.0, %v8774
      %v8776 = vpop.f32.mrf.mxu0
      %8777 = vmatprep.mubr.bf16.mxu0 %v8632
      %8778 = vmatmul.mubr.bf16.gmra.mxu0 %v8631
      %v8779 = vpop.f32.mrf.mxu0
      %v8780 = vadd.f32 0.0, %v8779
      %v8781 = vpop.f32.mrf.mxu0
      %v8782 = vpop.f32.mrf.mxu0
      %v8783 = vadd.f32 0.0, %v8782
      %v8784 = vpop.f32.mrf.mxu0
      %8785 = vmatprep.mubr.bf16.mxu0 %v8634
      %8786 = vmatmul.mubr.bf16.gmra.mxu0 %v8633
      %v8787 = vpop.f32.mrf.mxu0
      %v8788 = vadd.f32 0.0, %v8787
      %v8789 = vpop.f32.mrf.mxu0
      %v8790 = vpop.f32.mrf.mxu0
      %v8791 = vadd.f32 0.0, %v8790
      %v8792 = vpop.f32.mrf.mxu0
      %8793 = vmatprep.mubr.bf16.mxu0 %v8636
      %8794 = vmatmul.mubr.bf16.gmra.mxu0 %v8635
      %v8795 = vpop.f32.mrf.mxu0
      %v8796 = vadd.f32 0.0, %v8795
      %v8797 = vpop.f32.mrf.mxu0
      %v8798 = vpop.f32.mrf.mxu0
      %v8799 = vadd.f32 0.0, %v8798
      %v8800 = vpop.f32.mrf.mxu0
      %8801 = vmatprep.mubr.bf16.mxu0 %v8638
      %8802 = vmatmul.mubr.bf16.gmra.mxu0 %v8637
      %v8803 = vpop.f32.mrf.mxu0
      %v8804 = vadd.f32 0.0, %v8803
      %v8805 = vpop.f32.mrf.mxu0
      %v8806 = vpop.f32.mrf.mxu0
      %v8807 = vadd.f32 0.0, %v8806
      %v8808 = vpop.f32.mrf.mxu0
      %8809 = vmatprep.mubr.bf16.mxu0 %v8640
      %8810 = vmatmul.mubr.bf16.gmra.mxu0 %v8639
      %v8811 = vpop.f32.mrf.mxu0
      %v8812 = vadd.f32 0.0, %v8811
      %v8813 = vpop.f32.mrf.mxu0
      %v8814 = vpop.f32.mrf.mxu0
      %v8815 = vadd.f32 0.0, %v8814
      %v8816 = vpop.f32.mrf.mxu0
      %8817 = vmatprep.mubr.bf16.mxu0 %v8642
      %8818 = vmatmul.mubr.bf16.gmra.mxu0 %v8641
      %v8819 = vpop.f32.mrf.mxu0
      %v8820 = vadd.f32 0.0, %v8819
      %v8821 = vpop.f32.mrf.mxu0
      %v8822 = vpop.f32.mrf.mxu0
      %v8823 = vadd.f32 0.0, %v8822
      %v8824 = vpop.f32.mrf.mxu0
      %8825 = vmatprep.mubr.bf16.mxu0 %v8644
      %8826 = vmatmul.mubr.bf16.gmra.mxu0 %v8643
      %v8827 = vpop.f32.mrf.mxu0
      %v8828 = vadd.f32 0.0, %v8827
      %v8829 = vpop.f32.mrf.mxu0
      %v8830 = vpop.f32.mrf.mxu0
      %v8831 = vadd.f32 0.0, %v8830
      %v8832 = vpop.f32.mrf.mxu0
      %8833 = vmatprep.mubr.bf16.mxu0 %v8646
      %8834 = vmatmul.mubr.bf16.gmra.mxu0 %v8645
      %v8835 = vpop.f32.mrf.mxu0
      %v8836 = vadd.f32 0.0, %v8835
      %v8837 = vpop.f32.mrf.mxu0
      %v8838 = vpop.f32.mrf.mxu0
      %v8839 = vadd.f32 0.0, %v8838
      %v8840 = vpop.f32.mrf.mxu0
      %8841 = vmatprep.mubr.bf16.mxu0 %v8648
      %8842 = vmatmul.mubr.bf16.gmra.mxu0 %v8647
      %v8843 = vpop.f32.mrf.mxu0
      %v8844 = vadd.f32 0.0, %v8843
      %v8845 = vpop.f32.mrf.mxu0
      %v8846 = vpop.f32.mrf.mxu0
      %v8847 = vadd.f32 0.0, %v8846
      %v8848 = vpop.f32.mrf.mxu0
      %8849 = vmatprep.mubr.bf16.mxu0 %v8650
      %8850 = vmatmul.mubr.bf16.gmra.mxu0 %v8649
      %v8851 = vpop.f32.mrf.mxu0
      %v8852 = vadd.f32 0.0, %v8851
      %v8853 = vpop.f32.mrf.mxu0
      %v8854 = vpop.f32.mrf.mxu0
      %v8855 = vadd.f32 0.0, %v8854
      %v8856 = vpop.f32.mrf.mxu0
      %8857 = vmatprep.mubr.bf16.mxu0 %v8652
      %8858 = vmatmul.mubr.bf16.gmra.mxu0 %v8651
      %v8859 = vpop.f32.mrf.mxu0
      %v8860 = vadd.f32 0.0, %v8859
      %v8861 = vpop.f32.mrf.mxu0
      %v8862 = vpop.f32.mrf.mxu0
      %v8863 = vadd.f32 0.0, %v8862
      %v8864 = vpop.f32.mrf.mxu0
      %8865 = vmatprep.mubr.bf16.mxu0 %v8654
      %8866 = vmatmul.mubr.bf16.gmra.mxu0 %v8653
      %v8867 = vpop.f32.mrf.mxu0
      %v8868 = vadd.f32 0.0, %v8867
      %v8869 = vpop.f32.mrf.mxu0
      %v8870 = vpop.f32.mrf.mxu0
      %v8871 = vadd.f32 0.0, %v8870
      %v8872 = vpop.f32.mrf.mxu0
      %8873 = vmatprep.mubr.bf16.mxu0 %v8656
      %8874 = vmatmul.mubr.bf16.gmra.mxu0 %v8655
      %v8875 = vpop.f32.mrf.mxu0
      %v8876 = vadd.f32 0.0, %v8875
      %v8877 = vpop.f32.mrf.mxu0
      %v8878 = vpop.f32.mrf.mxu0
      %v8879 = vadd.f32 0.0, %v8878
      %v8880 = vpop.f32.mrf.mxu0
      %8881 = vmatprep.mubr.bf16.mxu0 %v8658
      %8882 = vmatmul.mubr.bf16.gmra.mxu0 %v8657
      %v8883 = vpop.f32.mrf.mxu0
      %v8884 = vadd.f32 0.0, %v8883
      %v8885 = vpop.f32.mrf.mxu0
      %v8886 = vpop.f32.mrf.mxu0
      %v8887 = vadd.f32 0.0, %v8886
      %v8888 = vpop.f32.mrf.mxu0
      %8889 = vmatprep.mubr.bf16.mxu0 %v8660
      %8890 = vmatmul.mubr.bf16.gmra.mxu0 %v8659
      %v8891 = vpop.f32.mrf.mxu0
      %v8892 = vadd.f32 0.0, %v8891
      %v8893 = vpop.f32.mrf.mxu0
      %v8894 = vpop.f32.mrf.mxu0
      %v8895 = vadd.f32 0.0, %v8894
      %v8896 = vpop.f32.mrf.mxu0
      %8897 = vmatprep.mubr.bf16.mxu0 %v8662
      %8898 = vmatmul.mubr.bf16.gmra.mxu0 %v8661
      %v8899 = vpop.f32.mrf.mxu0
      %v8900 = vadd.f32 0.0, %v8899
      %v8901 = vpop.f32.mrf.mxu0
      %v8902 = vpop.f32.mrf.mxu0
      %v8903 = vpop.f32.mrf.mxu0
      %8904 = vdwg.mxu0
      %8905 = vst.msk [vmem:[#allocation5 + $0x10] sm:$0xff] %vm2968, %v8740
      %8906 = vst.msk [vmem:[#allocation5 + $0x18] sm:$0xff] %vm2968, %v8743
      %8907 = vst.msk [vmem:[#allocation5 + $0x20] sm:$0xff] %vm2968, %v8748
      %8908 = vst.msk [vmem:[#allocation5 + $0x28] sm:$0xff] %vm2968, %v8751
      %8909 = vst.msk [vmem:[#allocation5 + $0x30] sm:$0xff] %vm2968, %v8756
      %8910 = vst.msk [vmem:[#allocation5 + $0x38] sm:$0xff] %vm2968, %v8759
      %8911 = vst.msk [vmem:[#allocation5 + $0x40] sm:$0xff] %vm2968, %v8764
      %8912 = vst.msk [vmem:[#allocation5 + $0x48] sm:$0xff] %vm2968, %v8767
      %8913 = vst.msk [vmem:[#allocation5 + $0x50] sm:$0xff] %vm2968, %v8772
      %8914 = vst.msk [vmem:[#allocation5 + $0x58] sm:$0xff] %vm2968, %v8775
      %8915 = vst.msk [vmem:[#allocation5 + $0x60] sm:$0xff] %vm2968, %v8780
      %8916 = vst.msk [vmem:[#allocation5 + $0x68] sm:$0xff] %vm2968, %v8783
      %8917 = vst.msk [vmem:[#allocation5 + $0x70] sm:$0xff] %vm2968, %v8788
      %8918 = vst.msk [vmem:[#allocation5 + $0x78] sm:$0xff] %vm2968, %v8791
      %8919 = vst.msk [vmem:[#allocation5 + $0x80] sm:$0xff] %vm2968, %v8796
      %8920 = vst.msk [vmem:[#allocation5 + $0x88] sm:$0xff] %vm2968, %v8799
      %8921 = vst.msk [vmem:[#allocation5 + $0x90] sm:$0xff] %vm2968, %v8804
      %8922 = vst.msk [vmem:[#allocation5 + $0x98] sm:$0xff] %vm2968, %v8807
      %8923 = vst.msk [vmem:[#allocation5 + $0xa0] sm:$0xff] %vm2968, %v8812
      %8924 = vst.msk [vmem:[#allocation5 + $0xa8] sm:$0xff] %vm2968, %v8815
      %8925 = vst.msk [vmem:[#allocation5 + $0xb0] sm:$0xff] %vm2968, %v8820
      %8926 = vst.msk [vmem:[#allocation5 + $0xb8] sm:$0xff] %vm2968, %v8823
      %8927 = vst.msk [vmem:[#allocation5 + $0xc0] sm:$0xff] %vm2968, %v8828
      %8928 = vst.msk [vmem:[#allocation5 + $0xc8] sm:$0xff] %vm2968, %v8831
      %8929 = vst.msk [vmem:[#allocation5 + $0xd0] sm:$0xff] %vm2968, %v8836
      %8930 = vst.msk [vmem:[#allocation5 + $0xd8] sm:$0xff] %vm2968, %v8839
      %8931 = vst.msk [vmem:[#allocation5 + $0xe0] sm:$0xff] %vm2968, %v8844
      %8932 = vst.msk [vmem:[#allocation5 + $0xe8] sm:$0xff] %vm2968, %v8847
      %8933 = vst.msk [vmem:[#allocation5 + $0xf0] sm:$0xff] %vm2968, %v8852
      %8934 = vst.msk [vmem:[#allocation5 + $0xf8] sm:$0xff] %vm2968, %v8855
      %8935 = vst.msk [vmem:[#allocation5 + $0x100] sm:$0xff] %vm2968, %v8860
      %8936 = vst.msk [vmem:[#allocation5 + $0x108] sm:$0xff] %vm2968, %v8863
      %8937 = vst.msk [vmem:[#allocation5 + $0x110] sm:$0xff] %vm2968, %v8868
      %8938 = vst.msk [vmem:[#allocation5 + $0x118] sm:$0xff] %vm2968, %v8871
      %8939 = vst.msk [vmem:[#allocation5 + $0x120] sm:$0xff] %vm2968, %v8876
      %8940 = vst.msk [vmem:[#allocation5 + $0x128] sm:$0xff] %vm2968, %v8879
      %8941 = vst.msk [vmem:[#allocation5 + $0x130] sm:$0xff] %vm2968, %v8884
      %8942 = vst.msk [vmem:[#allocation5 + $0x138] sm:$0xff] %vm2968, %v8887
      %8943 = vst.msk [vmem:[#allocation5 + $0x140] sm:$0xff] %vm2968, %v8892
      %8944 = vst.msk [vmem:[#allocation5 + $0x148] sm:$0xff] %vm2968, %v8895
      %vm8945 = vcmask 257024
      %8946 = vst.msk [vmem:[#allocation5 + $0x150] sm:$0xf] %vm8945, %v8900
      %v8947 = vld [vmem:[#allocation5 + $0x6] sm:$0xff]
      %v8948 = vld [vmem:[#allocation5 + $0xe] sm:$0xff]
      %v8949 = vld [vmem:[#allocation5 + $0x16] sm:$0xff]
      %v8950 = vld [vmem:[#allocation5 + $0x1e] sm:$0xff]
      %v8951 = vld [vmem:[#allocation5 + $0x26] sm:$0xff]
      %v8952 = vld [vmem:[#allocation5 + $0x2e] sm:$0xff]
      %v8953 = vld [vmem:[#allocation5 + $0x36] sm:$0xff]
      %v8954 = vld [vmem:[#allocation5 + $0x3e] sm:$0xff]
      %v8955 = vld [vmem:[#allocation5 + $0x46] sm:$0xff]
      %v8956 = vld [vmem:[#allocation5 + $0x4e] sm:$0xff]
      %v8957 = vld [vmem:[#allocation5 + $0x56] sm:$0x1]
      %v8958 = vld [vmem:[#allocation5 + $0x57] sm:$0xff]
      %v8959 = vld [vmem:[#allocation5 + $0x5f] sm:$0xff]
      %v8960 = vld [vmem:[#allocation5 + $0x67] sm:$0xff]
      %v8961 = vld [vmem:[#allocation5 + $0x6f] sm:$0xff]
      %v8962 = vld [vmem:[#allocation5 + $0x77] sm:$0xff]
      %v8963 = vld [vmem:[#allocation5 + $0x7f] sm:$0xff]
      %v8964 = vld [vmem:[#allocation5 + $0x87] sm:$0xff]
      %v8965 = vld [vmem:[#allocation5 + $0x8f] sm:$0xff]
      %v8966 = vld [vmem:[#allocation5 + $0x97] sm:$0xff]
      %v8967 = vld [vmem:[#allocation5 + $0x9f] sm:$0xff]
      %v8968 = vld [vmem:[#allocation5 + $0xa7] sm:$0x1]
      %v8969 = vld [vmem:[#allocation5 + $0x7] sm:$0xff]
      %v8970 = vld [vmem:[#allocation5 + $0xf] sm:$0xff]
      %v8971 = vld [vmem:[#allocation5 + $0x17] sm:$0xff]
      %v8972 = vld [vmem:[#allocation5 + $0x1f] sm:$0xff]
      %v8973 = vld [vmem:[#allocation5 + $0x27] sm:$0xff]
      %v8974 = vld [vmem:[#allocation5 + $0x2f] sm:$0xff]
      %v8975 = vld [vmem:[#allocation5 + $0x37] sm:$0xff]
      %v8976 = vld [vmem:[#allocation5 + $0x3f] sm:$0xff]
      %v8977 = vld [vmem:[#allocation5 + $0x47] sm:$0xff]
      %v8978 = vld [vmem:[#allocation5 + $0x4f] sm:$0xff]
      %v8979 = vld [vmem:[#allocation5 + $0x57] sm:$0x1]
      %v8980 = vld [vmem:[#allocation5 + $0xa8] sm:$0xff]
      %v8981 = vld [vmem:[#allocation5 + $0xb0] sm:$0xff]
      %v8982 = vld [vmem:[#allocation5 + $0xb8] sm:$0xff]
      %v8983 = vld [vmem:[#allocation5 + $0xc0] sm:$0xff]
      %v8984 = vld [vmem:[#allocation5 + $0xc8] sm:$0xff]
      %v8985 = vld [vmem:[#allocation5 + $0xd0] sm:$0xff]
      %v8986 = vld [vmem:[#allocation5 + $0xd8] sm:$0xff]
      %v8987 = vld [vmem:[#allocation5 + $0xe0] sm:$0xff]
      %v8988 = vld [vmem:[#allocation5 + $0xe8] sm:$0xff]
      %v8989 = vld [vmem:[#allocation5 + $0xf0] sm:$0xff]
      %v8990 = vld [vmem:[#allocation5 + $0xf8] sm:$0x1]
      %9002 = vrot.lane.b32.xlu0 %v8958, 32
      %v9003 = vpop.permute.xlu0 %9002
      %9004 = vrot.lane.b32.xlu0 %v8959, 32
      %v9005 = vpop.permute.xlu0 %9004
      %9006 = vrot.lane.b32.xlu0 %v8960, 32
      %v9007 = vpop.permute.xlu0 %9006
      %9008 = vrot.lane.b32.xlu0 %v8961, 32
      %v9009 = vpop.permute.xlu0 %9008
      %9010 = vrot.lane.b32.xlu0 %v8962, 32
      %v9011 = vpop.permute.xlu0 %9010
      %9012 = vrot.lane.b32.xlu0 %v8963, 32
      %v9013 = vpop.permute.xlu0 %9012
      %9014 = vrot.lane.b32.xlu0 %v8964, 32
      %v9015 = vpop.permute.xlu0 %9014
      %9016 = vrot.lane.b32.xlu0 %v8965, 32
      %v9017 = vpop.permute.xlu0 %9016
      %9018 = vrot.lane.b32.xlu0 %v8966, 32
      %v9019 = vpop.permute.xlu0 %9018
      %9020 = vrot.lane.b32.xlu0 %v8967, 32
      %v9021 = vpop.permute.xlu0 %9020
      %9022 = vrot.lane.b32.xlu0 %v8968, 32
      %v9023 = vpop.permute.xlu0 %9022
      %9046 = vrot.lane.b32.xlu0 %v8969, 64
      %v9047 = vpop.permute.xlu0 %9046
      %9048 = vrot.lane.b32.xlu0 %v8970, 64
      %v9049 = vpop.permute.xlu0 %9048
      %9050 = vrot.lane.b32.xlu0 %v8971, 64
      %v9051 = vpop.permute.xlu0 %9050
      %9052 = vrot.lane.b32.xlu0 %v8972, 64
      %v9053 = vpop.permute.xlu0 %9052
      %9054 = vrot.lane.b32.xlu0 %v8973, 64
      %v9055 = vpop.permute.xlu0 %9054
      %9056 = vrot.lane.b32.xlu0 %v8974, 64
      %v9057 = vpop.permute.xlu0 %9056
      %9058 = vrot.lane.b32.xlu0 %v8975, 64
      %v9059 = vpop.permute.xlu0 %9058
      %9060 = vrot.lane.b32.xlu0 %v8976, 64
      %v9061 = vpop.permute.xlu0 %9060
      %9062 = vrot.lane.b32.xlu0 %v8977, 64
      %v9063 = vpop.permute.xlu0 %9062
      %9064 = vrot.lane.b32.xlu0 %v8978, 64
      %v9065 = vpop.permute.xlu0 %9064
      %9066 = vrot.lane.b32.xlu0 %v8979, 64
      %v9067 = vpop.permute.xlu0 %9066
      %9090 = vrot.lane.b32.xlu0 %v8980, 96
      %v9091 = vpop.permute.xlu0 %9090
      %9092 = vrot.lane.b32.xlu0 %v8981, 96
      %v9093 = vpop.permute.xlu0 %9092
      %9094 = vrot.lane.b32.xlu0 %v8982, 96
      %v9095 = vpop.permute.xlu0 %9094
      %9096 = vrot.lane.b32.xlu0 %v8983, 96
      %v9097 = vpop.permute.xlu0 %9096
      %9098 = vrot.lane.b32.xlu0 %v8984, 96
      %v9099 = vpop.permute.xlu0 %9098
      %9100 = vrot.lane.b32.xlu0 %v8985, 96
      %v9101 = vpop.permute.xlu0 %9100
      %9102 = vrot.lane.b32.xlu0 %v8986, 96
      %v9103 = vpop.permute.xlu0 %9102
      %9104 = vrot.lane.b32.xlu0 %v8987, 96
      %v9105 = vpop.permute.xlu0 %9104
      %9106 = vrot.lane.b32.xlu0 %v8988, 96
      %v9107 = vpop.permute.xlu0 %9106
      %9108 = vrot.lane.b32.xlu0 %v8989, 96
      %v9109 = vpop.permute.xlu0 %9108
      %9110 = vrot.lane.b32.xlu0 %v8990, 96
      %v9111 = vpop.permute.xlu0 %9110
      %v9123 = vsel %vm2968, %v8947, %v9003
      %v9124 = vsel %vm2968, %v8948, %v9005
      %v9125 = vsel %vm2968, %v8949, %v9007
      %v9126 = vsel %vm2968, %v8950, %v9009
      %v9127 = vsel %vm2968, %v8951, %v9011
      %v9128 = vsel %vm2968, %v8952, %v9013
      %v9129 = vsel %vm2968, %v8953, %v9015
      %v9130 = vsel %vm2968, %v8954, %v9017
      %v9131 = vsel %vm2968, %v8955, %v9019
      %v9132 = vsel %vm2968, %v8956, %v9021
      %v9133 = vsel %vm2968, %v8957, %v9023
      %v9134 = vsel %vm4285, %v9123, %v9047
      %v9135 = vsel %vm4285, %v9124, %v9049
      %v9136 = vsel %vm4285, %v9125, %v9051
      %v9137 = vsel %vm4285, %v9126, %v9053
      %v9138 = vsel %vm4285, %v9127, %v9055
      %v9139 = vsel %vm4285, %v9128, %v9057
      %v9140 = vsel %vm4285, %v9129, %v9059
      %v9141 = vsel %vm4285, %v9130, %v9061
      %v9142 = vsel %vm4285, %v9131, %v9063
      %v9143 = vsel %vm4285, %v9132, %v9065
      %v9144 = vsel %vm4285, %v9133, %v9067
      %v9145 = vsel %vm4318, %v9134, %v9091
      %v9146 = vsel %vm4318, %v9135, %v9093
      %v9147 = vsel %vm4318, %v9136, %v9095
      %v9148 = vsel %vm4318, %v9137, %v9097
      %v9149 = vsel %vm4318, %v9138, %v9099
      %v9150 = vsel %vm4318, %v9139, %v9101
      %v9151 = vsel %vm4318, %v9140, %v9103
      %v9152 = vsel %vm4318, %v9141, %v9105
      %v9153 = vsel %vm4318, %v9142, %v9107
      %v9154 = vsel %vm4318, %v9143, %v9109
      %v9155 = vsel %vm4318, %v9144, %v9111
      %v9156 = vpack.c.bf16 %v9146, %v9145
      %v9157 = vpack.c.bf16 %v9148, %v9147
      %v9158 = vpack.c.bf16 %v9150, %v9149
      %v9159 = vpack.c.bf16 %v9152, %v9151
      %v9160 = vpack.c.bf16 %v9154, %v9153
      %v9161 = vpack.c.bf16 %v9155, %v9155
      %v9162 = vld [vmem:[%s11] sm:$0xf]
      %v9163 = vld [vmem:[%s11 + $0x4] sm:$0xf]
      %v9164 = vld [vmem:[%s11 + $0x8] sm:$0xf]
      %v9165 = vld [vmem:[%s11 + $0xc] sm:$0xf]
      %v9166 = vld [vmem:[%s11 + $0x10] sm:$0xf]
      %v9167 = vld [vmem:[%s11 + $0x14] sm:$0xf]
      %v9168 = vld [vmem:[%s11 + $0x18] sm:$0xf]
      %v9169 = vld [vmem:[%s11 + $0x1c] sm:$0xf]
      %v9170 = vld [vmem:[%s11 + $0x20] sm:$0xf]
      %v9171 = vld [vmem:[%s11 + $0x24] sm:$0xf]
      %v9172 = vld [vmem:[%s11 + $0x28] sm:$0xf]
      %v9173 = vld [vmem:[%s11 + $0x2c] sm:$0xf]
      %v9174 = vld [vmem:[%s11 + $0x30] sm:$0xf]
      %v9175 = vld [vmem:[%s11 + $0x34] sm:$0xf]
      %v9176 = vld [vmem:[%s11 + $0x38] sm:$0xf]
      %v9177 = vld [vmem:[%s11 + $0x3c] sm:$0xf]
      %v9178 = vld [vmem:[#allocation5 + $0xf9] sm:$0xff]
      %v9179 = vld [vmem:[#allocation5 + $0x101] sm:$0xff]
      %v9180 = vld [vmem:[#allocation5 + $0x109] sm:$0xff]
      %v9181 = vld [vmem:[#allocation5 + $0x111] sm:$0xff]
      %v9182 = vld [vmem:[#allocation5 + $0x119] sm:$0xff]
      %v9183 = vld [vmem:[#allocation5 + $0x121] sm:$0xff]
      %v9184 = vld [vmem:[#allocation5 + $0x129] sm:$0xff]
      %v9185 = vld [vmem:[#allocation5 + $0x131] sm:$0xff]
      %v9186 = vld [vmem:[#allocation5 + $0x139] sm:$0xff]
      %v9187 = vld [vmem:[#allocation5 + $0x141] sm:$0xff]
      %v9188 = vld [vmem:[#allocation5 + $0x149] sm:$0x1]
      %v9189 = vld [vmem:[#allocation5 + $0xa9] sm:$0xff]
      %v9190 = vld [vmem:[#allocation5 + $0xb1] sm:$0xff]
      %v9191 = vld [vmem:[#allocation5 + $0xb9] sm:$0xff]
      %v9192 = vld [vmem:[#allocation5 + $0xc1] sm:$0xff]
      %v9193 = vld [vmem:[#allocation5 + $0xc9] sm:$0xff]
      %v9194 = vld [vmem:[#allocation5 + $0xd1] sm:$0xff]
      %v9195 = vld [vmem:[#allocation5 + $0xd9] sm:$0xff]
      %v9196 = vld [vmem:[#allocation5 + $0xe1] sm:$0xff]
      %v9197 = vld [vmem:[#allocation5 + $0xe9] sm:$0xff]
      %v9198 = vld [vmem:[#allocation5 + $0xf1] sm:$0xff]
      %v9199 = vld [vmem:[#allocation5 + $0xf9] sm:$0x1]
      %v9200 = vld [vmem:[#allocation5 + $0x5f] sm:$0x1]
      %v9201 = vld [vmem:[#allocation5 + $0x60] sm:$0xff]
      %v9202 = vld [vmem:[#allocation5 + $0x68] sm:$0xff]
      %v9203 = vld [vmem:[#allocation5 + $0x70] sm:$0xff]
      %v9204 = vld [vmem:[#allocation5 + $0x78] sm:$0xff]
      %v9205 = vld [vmem:[#allocation5 + $0x80] sm:$0xff]
      %v9206 = vld [vmem:[#allocation5 + $0x88] sm:$0xff]
      %v9207 = vld [vmem:[#allocation5 + $0x90] sm:$0xff]
      %v9208 = vld [vmem:[#allocation5 + $0x98] sm:$0xff]
      %v9209 = vld [vmem:[#allocation5 + $0xa0] sm:$0xff]
      %v9210 = vld [vmem:[#allocation5 + $0xb0] sm:$0x1]
      %9222 = vrot.lane.b32.xlu0 %v9189, 32
      %v9223 = vpop.permute.xlu0 %9222
      %9224 = vrot.lane.b32.xlu0 %v9190, 32
      %v9225 = vpop.permute.xlu0 %9224
      %9226 = vrot.lane.b32.xlu0 %v9191, 32
      %v9227 = vpop.permute.xlu0 %9226
      %9228 = vrot.lane.b32.xlu0 %v9192, 32
      %v9229 = vpop.permute.xlu0 %9228
      %9230 = vrot.lane.b32.xlu0 %v9193, 32
      %v9231 = vpop.permute.xlu0 %9230
      %9232 = vrot.lane.b32.xlu0 %v9194, 32
      %v9233 = vpop.permute.xlu0 %9232
      %9234 = vrot.lane.b32.xlu0 %v9195, 32
      %v9235 = vpop.permute.xlu0 %9234
      %9236 = vrot.lane.b32.xlu0 %v9196, 32
      %v9237 = vpop.permute.xlu0 %9236
      %9238 = vrot.lane.b32.xlu0 %v9197, 32
      %v9239 = vpop.permute.xlu0 %9238
      %9240 = vrot.lane.b32.xlu0 %v9198, 32
      %v9241 = vpop.permute.xlu0 %9240
      %9242 = vrot.lane.b32.xlu0 %v9199, 32
      %v9243 = vpop.permute.xlu0 %9242
      %9256 = vrot.lane.b32.xlu0 %v8958, 64
      %v9257 = vpop.permute.xlu0 %9256
      %9258 = vrot.lane.b32.xlu0 %v9200, 64
      %v9259 = vpop.permute.xlu0 %9258
      %9272 = vrot.lane.b32.xlu0 %v9201, 96
      %v9273 = vpop.permute.xlu0 %9272
      %9274 = vrot.lane.b32.xlu0 %v9202, 96
      %v9275 = vpop.permute.xlu0 %9274
      %9276 = vrot.lane.b32.xlu0 %v9203, 96
      %v9277 = vpop.permute.xlu0 %9276
      %9278 = vrot.lane.b32.xlu0 %v9204, 96
      %v9279 = vpop.permute.xlu0 %9278
      %9280 = vrot.lane.b32.xlu0 %v9205, 96
      %v9281 = vpop.permute.xlu0 %9280
      %9282 = vrot.lane.b32.xlu0 %v9206, 96
      %v9283 = vpop.permute.xlu0 %9282
      %9284 = vrot.lane.b32.xlu0 %v9207, 96
      %v9285 = vpop.permute.xlu0 %9284
      %9286 = vrot.lane.b32.xlu0 %v9208, 96
      %v9287 = vpop.permute.xlu0 %9286
      %9288 = vrot.lane.b32.xlu0 %v9209, 96
      %v9289 = vpop.permute.xlu0 %9288
      %9290 = vrot.lane.b32.xlu0 %v9210, 96
      %v9291 = vpop.permute.xlu0 %9290
      %v9302 = vsel %vm2968, %v9178, %v9223
      %v9303 = vsel %vm2968, %v9179, %v9225
      %v9304 = vsel %vm2968, %v9180, %v9227
      %v9305 = vsel %vm2968, %v9181, %v9229
      %v9306 = vsel %vm2968, %v9182, %v9231
      %v9307 = vsel %vm2968, %v9183, %v9233
      %v9308 = vsel %vm2968, %v9184, %v9235
      %v9309 = vsel %vm2968, %v9185, %v9237
      %v9310 = vsel %vm2968, %v9186, %v9239
      %v9311 = vsel %vm2968, %v9187, %v9241
      %v9312 = vsel %vm2968, %v9188, %v9243
      %v9313 = vsel %vm4285, %v9302, %v9049
      %v9314 = vsel %vm4285, %v9303, %v9051
      %v9315 = vsel %vm4285, %v9304, %v9053
      %v9316 = vsel %vm4285, %v9305, %v9055
      %v9317 = vsel %vm4285, %v9306, %v9057
      %v9318 = vsel %vm4285, %v9307, %v9059
      %v9319 = vsel %vm4285, %v9308, %v9061
      %v9320 = vsel %vm4285, %v9309, %v9063
      %v9321 = vsel %vm4285, %v9310, %v9065
      %v9322 = vsel %vm4285, %v9311, %v9257
      %v9323 = vsel %vm4285, %v9312, %v9259
      %v9324 = vsel %vm4318, %v9313, %v9273
      %v9325 = vsel %vm4318, %v9314, %v9275
      %v9326 = vsel %vm4318, %v9315, %v9277
      %v9327 = vsel %vm4318, %v9316, %v9279
      %v9328 = vsel %vm4318, %v9317, %v9281
      %v9329 = vsel %vm4318, %v9318, %v9283
      %v9330 = vsel %vm4318, %v9319, %v9285
      %v9331 = vsel %vm4318, %v9320, %v9287
      %v9332 = vsel %vm4318, %v9321, %v9289
      %v9333 = vsel %vm4318, %v9322, %v9091
      %v9334 = vsel %vm4318, %v9323, %v9291
      %v9335 = vpack.c.bf16 %v9325, %v9324
      %v9336 = vpack.c.bf16 %v9327, %v9326
      %v9337 = vpack.c.bf16 %v9329, %v9328
      %v9338 = vpack.c.bf16 %v9331, %v9330
      %v9339 = vpack.c.bf16 %v9333, %v9332
      %v9340 = vpack.c.bf16 %v9334, %v9334
      %s9341 = scalar_lea.vmem %s11, 64
      %v9342 = vld [vmem:[%s9341] sm:$0xf]
      %v9343 = vld [vmem:[%s9341 + $0x4] sm:$0xf]
      %v9344 = vld [vmem:[%s9341 + $0x8] sm:$0xf]
      %v9345 = vld [vmem:[%s9341 + $0xc] sm:$0xf]
      %v9346 = vld [vmem:[%s9341 + $0x10] sm:$0xf]
      %v9347 = vld [vmem:[%s9341 + $0x14] sm:$0xf]
      %v9348 = vld [vmem:[%s9341 + $0x18] sm:$0xf]
      %v9349 = vld [vmem:[%s9341 + $0x1c] sm:$0xf]
      %v9350 = vld [vmem:[%s9341 + $0x20] sm:$0xf]
      %v9351 = vld [vmem:[%s9341 + $0x24] sm:$0xf]
      %v9352 = vld [vmem:[%s9341 + $0x28] sm:$0xf]
      %v9353 = vld [vmem:[%s9341 + $0x2c] sm:$0xf]
      %v9354 = vld [vmem:[%s9341 + $0x30] sm:$0xf]
      %v9355 = vld [vmem:[%s9341 + $0x34] sm:$0xf]
      %v9356 = vld [vmem:[%s9341 + $0x38] sm:$0xf]
      %v9357 = vld [vmem:[%s9341 + $0x3c] sm:$0xf]
      %v9374 = vunpack.c.l.b16 %v9342
      %v9375 = vunpack.c.l.b16 %v9343
      %v9376 = vunpack.c.l.b16 %v9344
      %v9377 = vunpack.c.l.b16 %v9345
      %v9378 = vunpack.c.l.b16 %v9346
      %v9379 = vunpack.c.l.b16 %v9347
      %v9380 = vunpack.c.l.b16 %v9348
      %v9381 = vunpack.c.l.b16 %v9349
      %v9382 = vunpack.c.l.b16 %v9350
      %v9383 = vunpack.c.l.b16 %v9351
      %v9384 = vunpack.c.l.b16 %v9352
      %v9385 = vunpack.c.l.b16 %v9353
      %v9386 = vunpack.c.l.b16 %v9354
      %v9387 = vunpack.c.l.b16 %v9355
      %v9388 = vunpack.c.l.b16 %v9356
      %v9389 = vunpack.c.l.b16 %v9357
      %v9390 = vpack.c.b16 %v9375, %v9374
      %v9391 = vpack.c.b16 %v9377, %v9376
      %v9392 = vpack.c.b16 %v9379, %v9378
      %v9393 = vpack.c.b16 %v9381, %v9380
      %v9394 = vpack.c.b16 %v9383, %v9382
      %v9395 = vpack.c.b16 %v9385, %v9384
      %v9396 = vpack.c.b16 %v9387, %v9386
      %v9397 = vpack.c.b16 %v9389, %v9388
      %9406 = vmatprep.subr.bf16.mxu0 0
      %9407 = vmatpush1.bf16.msra.mxu0 %v9397
      %9408 = vmatprep.subr.bf16.mxu0 0
      %9409 = vmatpush1.bf16.msra.mxu0 %v9396
      %9410 = vmatprep.subr.bf16.mxu0 0
      %9411 = vmatpush1.bf16.msra.mxu0 %v9395
      %9412 = vmatprep.subr.bf16.mxu0 0
      %9413 = vmatpush1.bf16.msra.mxu0 %v9394
      %9414 = vmatprep.subr.bf16.mxu0 0
      %9415 = vmatpush1.bf16.msra.mxu0 %v9393
      %9416 = vmatprep.subr.bf16.mxu0 0
      %9417 = vmatpush1.bf16.msra.mxu0 %v9392
      %9418 = vmatprep.subr.bf16.mxu0 0
      %9419 = vmatpush1.bf16.msra.mxu0 %v9391
      %9420 = vmatprep.subr.bf16.mxu0 0
      %9421 = vmatpush1.bf16.msra.mxu0 %v9390
      %9422 = vmatprep.subr.bf16.mxu0 0
      %9423 = vmatpush2.bf16.msra.mxu0 0
      %9424 = vmatprep.subr.bf16.mxu0 0
      %9425 = vmatpush2.bf16.msra.mxu0 0
      %9426 = vmatprep.subr.bf16.mxu0 0
      %9427 = vmatpush2.bf16.msra.mxu0 0
      %9428 = vmatprep.subr.bf16.mxu0 0
      %9429 = vmatpush2.bf16.msra.mxu0 0
      %9430 = vmatprep.subr.bf16.mxu0 0
      %9431 = vmatpush2.bf16.msra.mxu0 0
      %9432 = vmatprep.subr.bf16.mxu0 0
      %9433 = vmatpush2.bf16.msra.mxu0 0
      %9434 = vmatprep.subr.bf16.mxu0 0
      %9435 = vmatpush2.bf16.msra.mxu0 0
      %9436 = vmatprep.subr.bf16.mxu0 0
      %9437 = vmatpush2.bf16.msra.mxu0 0
      %9438 = vmatprep.mubr.bf16.mxu0 0
      %9439 = vmatmul.mubr.bf16.gmra.mxu0 %v9335
      %v9440 = vpop.f32.mrf.mxu0
      %v9441 = vadd.f32 0.0, %v9440
      %v9442 = vpop.f32.mrf.mxu0
      %v9443 = vpop.f32.mrf.mxu0
      %v9444 = vadd.f32 0.0, %v9443
      %v9445 = vpop.f32.mrf.mxu0
      %9446 = vmatprep.mubr.bf16.mxu0 0
      %9447 = vmatmul.mubr.bf16.gmra.mxu0 %v9336
      %v9448 = vpop.f32.mrf.mxu0
      %v9449 = vadd.f32 0.0, %v9448
      %v9450 = vpop.f32.mrf.mxu0
      %v9451 = vpop.f32.mrf.mxu0
      %v9452 = vadd.f32 0.0, %v9451
      %v9453 = vpop.f32.mrf.mxu0
      %9454 = vmatprep.mubr.bf16.mxu0 0
      %9455 = vmatmul.mubr.bf16.gmra.mxu0 %v9337
      %v9456 = vpop.f32.mrf.mxu0
      %v9457 = vadd.f32 0.0, %v9456
      %v9458 = vpop.f32.mrf.mxu0
      %v9459 = vpop.f32.mrf.mxu0
      %v9460 = vadd.f32 0.0, %v9459
      %v9461 = vpop.f32.mrf.mxu0
      %9462 = vmatprep.mubr.bf16.mxu0 0
      %9463 = vmatmul.mubr.bf16.gmra.mxu0 %v9338
      %v9464 = vpop.f32.mrf.mxu0
      %v9465 = vadd.f32 0.0, %v9464
      %v9466 = vpop.f32.mrf.mxu0
      %v9467 = vpop.f32.mrf.mxu0
      %v9468 = vadd.f32 0.0, %v9467
      %v9469 = vpop.f32.mrf.mxu0
      %9470 = vmatprep.mubr.bf16.mxu0 0
      %9471 = vmatmul.mubr.bf16.gmra.mxu0 %v9339
      %v9472 = vpop.f32.mrf.mxu0
      %v9473 = vadd.f32 0.0, %v9472
      %v9474 = vpop.f32.mrf.mxu0
      %v9475 = vpop.f32.mrf.mxu0
      %v9476 = vadd.f32 0.0, %v9475
      %v9477 = vpop.f32.mrf.mxu0
      %9478 = vmatprep.mubr.bf16.mxu0 0
      %9479 = vmatmul.mubr.bf16.gmra.mxu0 %v9340
      %v9480 = vpop.f32.mrf.mxu0
      %v9481 = vadd.f32 0.0, %v9480
      %v9482 = vpop.f32.mrf.mxu0
      %v9483 = vpop.f32.mrf.mxu0
      %v9484 = vpop.f32.mrf.mxu0
      %9485 = vdwg.mxu0
      %v9502 = vunpack.c.l.b16 %v9162
      %v9503 = vunpack.c.l.b16 %v9163
      %v9504 = vunpack.c.l.b16 %v9164
      %v9505 = vunpack.c.l.b16 %v9165
      %v9506 = vunpack.c.l.b16 %v9166
      %v9507 = vunpack.c.l.b16 %v9167
      %v9508 = vunpack.c.l.b16 %v9168
      %v9509 = vunpack.c.l.b16 %v9169
      %v9510 = vunpack.c.l.b16 %v9170
      %v9511 = vunpack.c.l.b16 %v9171
      %v9512 = vunpack.c.l.b16 %v9172
      %v9513 = vunpack.c.l.b16 %v9173
      %v9514 = vunpack.c.l.b16 %v9174
      %v9515 = vunpack.c.l.b16 %v9175
      %v9516 = vunpack.c.l.b16 %v9176
      %v9517 = vunpack.c.l.b16 %v9177
      %v9518 = vpack.c.b16 %v9503, %v9502
      %v9519 = vpack.c.b16 %v9505, %v9504
      %v9520 = vpack.c.b16 %v9507, %v9506
      %v9521 = vpack.c.b16 %v9509, %v9508
      %v9522 = vpack.c.b16 %v9511, %v9510
      %v9523 = vpack.c.b16 %v9513, %v9512
      %v9524 = vpack.c.b16 %v9515, %v9514
      %v9525 = vpack.c.b16 %v9517, %v9516
      %9534 = vmatprep.subr.bf16.mxu0 0
      %9535 = vmatpush1.bf16.msra.mxu0 %v9525
      %9536 = vmatprep.subr.bf16.mxu0 0
      %9537 = vmatpush1.bf16.msra.mxu0 %v9524
      %9538 = vmatprep.subr.bf16.mxu0 0
      %9539 = vmatpush1.bf16.msra.mxu0 %v9523
      %9540 = vmatprep.subr.bf16.mxu0 0
      %9541 = vmatpush1.bf16.msra.mxu0 %v9522
      %9542 = vmatprep.subr.bf16.mxu0 0
      %9543 = vmatpush1.bf16.msra.mxu0 %v9521
      %9544 = vmatprep.subr.bf16.mxu0 0
      %9545 = vmatpush1.bf16.msra.mxu0 %v9520
      %9546 = vmatprep.subr.bf16.mxu0 0
      %9547 = vmatpush1.bf16.msra.mxu0 %v9519
      %9548 = vmatprep.subr.bf16.mxu0 0
      %9549 = vmatpush1.bf16.msra.mxu0 %v9518
      %9550 = vmatprep.subr.bf16.mxu0 0
      %9551 = vmatpush2.bf16.msra.mxu0 0
      %9552 = vmatprep.subr.bf16.mxu0 0
      %9553 = vmatpush2.bf16.msra.mxu0 0
      %9554 = vmatprep.subr.bf16.mxu0 0
      %9555 = vmatpush2.bf16.msra.mxu0 0
      %9556 = vmatprep.subr.bf16.mxu0 0
      %9557 = vmatpush2.bf16.msra.mxu0 0
      %9558 = vmatprep.subr.bf16.mxu0 0
      %9559 = vmatpush2.bf16.msra.mxu0 0
      %9560 = vmatprep.subr.bf16.mxu0 0
      %9561 = vmatpush2.bf16.msra.mxu0 0
      %9562 = vmatprep.subr.bf16.mxu0 0
      %9563 = vmatpush2.bf16.msra.mxu0 0
      %9564 = vmatprep.subr.bf16.mxu0 0
      %9565 = vmatpush2.bf16.msra.mxu0 0
      %9566 = vmatprep.mubr.bf16.mxu0 0
      %9567 = vmatmul.mubr.bf16.gmra.mxu0 %v9156
      %v9568 = vpop.f32.mrf.mxu0
      %v9569 = vadd.f32 %v9441, %v9568
      %v9570 = vpop.f32.mrf.mxu0
      %v9571 = vpop.f32.mrf.mxu0
      %v9572 = vadd.f32 %v9444, %v9571
      %v9573 = vpop.f32.mrf.mxu0
      %9574 = vmatprep.mubr.bf16.mxu0 0
      %9575 = vmatmul.mubr.bf16.gmra.mxu0 %v9157
      %v9576 = vpop.f32.mrf.mxu0
      %v9577 = vadd.f32 %v9449, %v9576
      %v9578 = vpop.f32.mrf.mxu0
      %v9579 = vpop.f32.mrf.mxu0
      %v9580 = vadd.f32 %v9452, %v9579
      %v9581 = vpop.f32.mrf.mxu0
      %9582 = vmatprep.mubr.bf16.mxu0 0
      %9583 = vmatmul.mubr.bf16.gmra.mxu0 %v9158
      %v9584 = vpop.f32.mrf.mxu0
      %v9585 = vadd.f32 %v9457, %v9584
      %v9586 = vpop.f32.mrf.mxu0
      %v9587 = vpop.f32.mrf.mxu0
      %v9588 = vadd.f32 %v9460, %v9587
      %v9589 = vpop.f32.mrf.mxu0
      %9590 = vmatprep.mubr.bf16.mxu0 0
      %9591 = vmatmul.mubr.bf16.gmra.mxu0 %v9159
      %v9592 = vpop.f32.mrf.mxu0
      %v9593 = vadd.f32 %v9465, %v9592
      %v9594 = vpop.f32.mrf.mxu0
      %v9595 = vpop.f32.mrf.mxu0
      %v9596 = vadd.f32 %v9468, %v9595
      %v9597 = vpop.f32.mrf.mxu0
      %9598 = vmatprep.mubr.bf16.mxu0 0
      %9599 = vmatmul.mubr.bf16.gmra.mxu0 %v9160
      %v9600 = vpop.f32.mrf.mxu0
      %v9601 = vadd.f32 %v9473, %v9600
      %v9602 = vpop.f32.mrf.mxu0
      %v9603 = vpop.f32.mrf.mxu0
      %v9604 = vadd.f32 %v9476, %v9603
      %v9605 = vpop.f32.mrf.mxu0
      %9606 = vmatprep.mubr.bf16.mxu0 0
      %9607 = vmatmul.mubr.bf16.gmra.mxu0 %v9161
      %v9608 = vpop.f32.mrf.mxu0
      %v9609 = vadd.f32 %v9481, %v9608
      %v9610 = vpop.f32.mrf.mxu0
      %v9611 = vpop.f32.mrf.mxu0
      %v9612 = vpop.f32.mrf.mxu0
      %9613 = vdwg.mxu0
      %v9614 = vld [vmem:[#allocation5 + $0x10] sm:$0xff]
      %v9615 = vld [vmem:[#allocation5 + $0x18] sm:$0xff]
      %v9616 = vld [vmem:[#allocation5 + $0x20] sm:$0xff]
      %v9617 = vld [vmem:[#allocation5 + $0x28] sm:$0xff]
      %v9618 = vld [vmem:[#allocation5 + $0x30] sm:$0xff]
      %v9619 = vld [vmem:[#allocation5 + $0x38] sm:$0xff]
      %v9620 = vld [vmem:[#allocation5 + $0x40] sm:$0xff]
      %v9621 = vld [vmem:[#allocation5 + $0x48] sm:$0xff]
      %v9622 = vld [vmem:[#allocation5 + $0x50] sm:$0xff]
      %v9623 = vld [vmem:[#allocation5 + $0x58] sm:$0xff]
      %v9624 = vld [vmem:[#allocation5 + $0x60] sm:$0x1]
      %9636 = vrot.lane.b32.xlu0 %v9614, 32
      %v9637 = vpop.permute.xlu0 %9636
      %9638 = vrot.lane.b32.xlu0 %v9615, 32
      %v9639 = vpop.permute.xlu0 %9638
      %9640 = vrot.lane.b32.xlu0 %v9616, 32
      %v9641 = vpop.permute.xlu0 %9640
      %9642 = vrot.lane.b32.xlu0 %v9617, 32
      %v9643 = vpop.permute.xlu0 %9642
      %9644 = vrot.lane.b32.xlu0 %v9618, 32
      %v9645 = vpop.permute.xlu0 %9644
      %9646 = vrot.lane.b32.xlu0 %v9619, 32
      %v9647 = vpop.permute.xlu0 %9646
      %9648 = vrot.lane.b32.xlu0 %v9620, 32
      %v9649 = vpop.permute.xlu0 %9648
      %9650 = vrot.lane.b32.xlu0 %v9621, 32
      %v9651 = vpop.permute.xlu0 %9650
      %9652 = vrot.lane.b32.xlu0 %v9622, 32
      %v9653 = vpop.permute.xlu0 %9652
      %9654 = vrot.lane.b32.xlu0 %v9623, 32
      %v9655 = vpop.permute.xlu0 %9654
      %9656 = vrot.lane.b32.xlu0 %v9624, 32
      %v9657 = vpop.permute.xlu0 %9656
      %9669 = vrot.lane.b32.xlu0 %v9614, 64
      %v9670 = vpop.permute.xlu0 %9669
      %9671 = vrot.lane.b32.xlu0 %v9615, 64
      %v9672 = vpop.permute.xlu0 %9671
      %9673 = vrot.lane.b32.xlu0 %v9616, 64
      %v9674 = vpop.permute.xlu0 %9673
      %9675 = vrot.lane.b32.xlu0 %v9617, 64
      %v9676 = vpop.permute.xlu0 %9675
      %9677 = vrot.lane.b32.xlu0 %v9618, 64
      %v9678 = vpop.permute.xlu0 %9677
      %9679 = vrot.lane.b32.xlu0 %v9619, 64
      %v9680 = vpop.permute.xlu0 %9679
      %9681 = vrot.lane.b32.xlu0 %v9620, 64
      %v9682 = vpop.permute.xlu0 %9681
      %9683 = vrot.lane.b32.xlu0 %v9621, 64
      %v9684 = vpop.permute.xlu0 %9683
      %9685 = vrot.lane.b32.xlu0 %v9622, 64
      %v9686 = vpop.permute.xlu0 %9685
      %9687 = vrot.lane.b32.xlu0 %v9623, 64
      %v9688 = vpop.permute.xlu0 %9687
      %9689 = vrot.lane.b32.xlu0 %v9624, 64
      %v9690 = vpop.permute.xlu0 %9689
      %9702 = vrot.lane.b32.xlu0 %v9614, 96
      %v9703 = vpop.permute.xlu0 %9702
      %9704 = vrot.lane.b32.xlu0 %v9615, 96
      %v9705 = vpop.permute.xlu0 %9704
      %9706 = vrot.lane.b32.xlu0 %v9616, 96
      %v9707 = vpop.permute.xlu0 %9706
      %9708 = vrot.lane.b32.xlu0 %v9617, 96
      %v9709 = vpop.permute.xlu0 %9708
      %9710 = vrot.lane.b32.xlu0 %v9618, 96
      %v9711 = vpop.permute.xlu0 %9710
      %9712 = vrot.lane.b32.xlu0 %v9619, 96
      %v9713 = vpop.permute.xlu0 %9712
      %9714 = vrot.lane.b32.xlu0 %v9620, 96
      %v9715 = vpop.permute.xlu0 %9714
      %9716 = vrot.lane.b32.xlu0 %v9621, 96
      %v9717 = vpop.permute.xlu0 %9716
      %9718 = vrot.lane.b32.xlu0 %v9622, 96
      %v9719 = vpop.permute.xlu0 %9718
      %9720 = vrot.lane.b32.xlu0 %v9623, 96
      %v9721 = vpop.permute.xlu0 %9720
      %9722 = vrot.lane.b32.xlu0 %v9624, 96
      %v9723 = vpop.permute.xlu0 %9722
      %v9735 = vsel %vm2968, %v9614, %v9637
      %v9736 = vsel %vm2968, %v9615, %v9639
      %v9737 = vsel %vm2968, %v9616, %v9641
      %v9738 = vsel %vm2968, %v9617, %v9643
      %v9739 = vsel %vm2968, %v9618, %v9645
      %v9740 = vsel %vm2968, %v9619, %v9647
      %v9741 = vsel %vm2968, %v9620, %v9649
      %v9742 = vsel %vm2968, %v9621, %v9651
      %v9743 = vsel %vm2968, %v9622, %v9653
      %v9744 = vsel %vm2968, %v9623, %v9655
      %v9745 = vsel %vm2968, %v9624, %v9657
      %v9746 = vsel %vm4285, %v9735, %v9670
      %v9747 = vsel %vm4285, %v9736, %v9672
      %v9748 = vsel %vm4285, %v9737, %v9674
      %v9749 = vsel %vm4285, %v9738, %v9676
      %v9750 = vsel %vm4285, %v9739, %v9678
      %v9751 = vsel %vm4285, %v9740, %v9680
      %v9752 = vsel %vm4285, %v9741, %v9682
      %v9753 = vsel %vm4285, %v9742, %v9684
      %v9754 = vsel %vm4285, %v9743, %v9686
      %v9755 = vsel %vm4285, %v9744, %v9688
      %v9756 = vsel %vm4285, %v9745, %v9690
      %v9757 = vsel %vm4318, %v9746, %v9703
      %v9758 = vsel %vm4318, %v9747, %v9705
      %v9759 = vsel %vm4318, %v9748, %v9707
      %v9760 = vsel %vm4318, %v9749, %v9709
      %v9761 = vsel %vm4318, %v9750, %v9711
      %v9762 = vsel %vm4318, %v9751, %v9713
      %v9763 = vsel %vm4318, %v9752, %v9715
      %v9764 = vsel %vm4318, %v9753, %v9717
      %v9765 = vsel %vm4318, %v9754, %v9719
      %v9766 = vsel %vm4318, %v9755, %v9721
      %v9767 = vsel %vm4318, %v9756, %v9723
      %v9768 = vpack.c.bf16 %v9758, %v9757
      %v9769 = vpack.c.bf16 %v9760, %v9759
      %v9770 = vpack.c.bf16 %v9762, %v9761
      %v9771 = vpack.c.bf16 %v9764, %v9763
      %v9772 = vpack.c.bf16 %v9766, %v9765
      %v9773 = vpack.c.bf16 %v9767, %v9767
      %s9774 = scalar_lea.vmem %s11, 128
      %v9775 = vld [vmem:[%s9774] sm:$0xf]
      %v9776 = vld [vmem:[%s9774 + $0x4] sm:$0xf]
      %v9777 = vld [vmem:[%s9774 + $0x8] sm:$0xf]
      %v9778 = vld [vmem:[%s9774 + $0xc] sm:$0xf]
      %v9779 = vld [vmem:[%s9774 + $0x10] sm:$0xf]
      %v9780 = vld [vmem:[%s9774 + $0x14] sm:$0xf]
      %v9781 = vld [vmem:[%s9774 + $0x18] sm:$0xf]
      %v9782 = vld [vmem:[%s9774 + $0x1c] sm:$0xf]
      %v9783 = vld [vmem:[%s9774 + $0x20] sm:$0xf]
      %v9784 = vld [vmem:[%s9774 + $0x24] sm:$0xf]
      %v9785 = vld [vmem:[%s9774 + $0x28] sm:$0xf]
      %v9786 = vld [vmem:[%s9774 + $0x2c] sm:$0xf]
      %v9787 = vld [vmem:[%s9774 + $0x30] sm:$0xf]
      %v9788 = vld [vmem:[%s9774 + $0x34] sm:$0xf]
      %v9789 = vld [vmem:[%s9774 + $0x38] sm:$0xf]
      %v9790 = vld [vmem:[%s9774 + $0x3c] sm:$0xf]
      %v9807 = vunpack.c.l.b16 %v9775
      %v9808 = vunpack.c.l.b16 %v9776
      %v9809 = vunpack.c.l.b16 %v9777
      %v9810 = vunpack.c.l.b16 %v9778
      %v9811 = vunpack.c.l.b16 %v9779
      %v9812 = vunpack.c.l.b16 %v9780
      %v9813 = vunpack.c.l.b16 %v9781
      %v9814 = vunpack.c.l.b16 %v9782
      %v9815 = vunpack.c.l.b16 %v9783
      %v9816 = vunpack.c.l.b16 %v9784
      %v9817 = vunpack.c.l.b16 %v9785
      %v9818 = vunpack.c.l.b16 %v9786
      %v9819 = vunpack.c.l.b16 %v9787
      %v9820 = vunpack.c.l.b16 %v9788
      %v9821 = vunpack.c.l.b16 %v9789
      %v9822 = vunpack.c.l.b16 %v9790
      %v9823 = vpack.c.b16 %v9808, %v9807
      %v9824 = vpack.c.b16 %v9810, %v9809
      %v9825 = vpack.c.b16 %v9812, %v9811
      %v9826 = vpack.c.b16 %v9814, %v9813
      %v9827 = vpack.c.b16 %v9816, %v9815
      %v9828 = vpack.c.b16 %v9818, %v9817
      %v9829 = vpack.c.b16 %v9820, %v9819
      %v9830 = vpack.c.b16 %v9822, %v9821
      %9839 = vmatprep.subr.bf16.mxu0 0
      %9840 = vmatpush1.bf16.msra.mxu0 %v9830
      %9841 = vmatprep.subr.bf16.mxu0 0
      %9842 = vmatpush1.bf16.msra.mxu0 %v9829
      %9843 = vmatprep.subr.bf16.mxu0 0
      %9844 = vmatpush1.bf16.msra.mxu0 %v9828
      %9845 = vmatprep.subr.bf16.mxu0 0
      %9846 = vmatpush1.bf16.msra.mxu0 %v9827
      %9847 = vmatprep.subr.bf16.mxu0 0
      %9848 = vmatpush1.bf16.msra.mxu0 %v9826
      %9849 = vmatprep.subr.bf16.mxu0 0
      %9850 = vmatpush1.bf16.msra.mxu0 %v9825
      %9851 = vmatprep.subr.bf16.mxu0 0
      %9852 = vmatpush1.bf16.msra.mxu0 %v9824
      %9853 = vmatprep.subr.bf16.mxu0 0
      %9854 = vmatpush1.bf16.msra.mxu0 %v9823
      %9855 = vmatprep.subr.bf16.mxu0 0
      %9856 = vmatpush2.bf16.msra.mxu0 0
      %9857 = vmatprep.subr.bf16.mxu0 0
      %9858 = vmatpush2.bf16.msra.mxu0 0
      %9859 = vmatprep.subr.bf16.mxu0 0
      %9860 = vmatpush2.bf16.msra.mxu0 0
      %9861 = vmatprep.subr.bf16.mxu0 0
      %9862 = vmatpush2.bf16.msra.mxu0 0
      %9863 = vmatprep.subr.bf16.mxu0 0
      %9864 = vmatpush2.bf16.msra.mxu0 0
      %9865 = vmatprep.subr.bf16.mxu0 0
      %9866 = vmatpush2.bf16.msra.mxu0 0
      %9867 = vmatprep.subr.bf16.mxu0 0
      %9868 = vmatpush2.bf16.msra.mxu0 0
      %9869 = vmatprep.subr.bf16.mxu0 0
      %9870 = vmatpush2.bf16.msra.mxu0 0
      %9871 = vmatprep.mubr.bf16.mxu0 0
      %9872 = vmatmul.mubr.bf16.gmra.mxu0 %v9768
      %v9873 = vpop.f32.mrf.mxu0
      %v9874 = vadd.f32 0.0, %v9873
      %v9875 = vpop.f32.mrf.mxu0
      %v9876 = vpop.f32.mrf.mxu0
      %v9877 = vadd.f32 0.0, %v9876
      %v9878 = vpop.f32.mrf.mxu0
      %9879 = vmatprep.mubr.bf16.mxu0 0
      %9880 = vmatmul.mubr.bf16.gmra.mxu0 %v9769
      %v9881 = vpop.f32.mrf.mxu0
      %v9882 = vadd.f32 0.0, %v9881
      %v9883 = vpop.f32.mrf.mxu0
      %v9884 = vpop.f32.mrf.mxu0
      %v9885 = vadd.f32 0.0, %v9884
      %v9886 = vpop.f32.mrf.mxu0
      %9887 = vmatprep.mubr.bf16.mxu0 0
      %9888 = vmatmul.mubr.bf16.gmra.mxu0 %v9770
      %v9889 = vpop.f32.mrf.mxu0
      %v9890 = vadd.f32 0.0, %v9889
      %v9891 = vpop.f32.mrf.mxu0
      %v9892 = vpop.f32.mrf.mxu0
      %v9893 = vadd.f32 0.0, %v9892
      %v9894 = vpop.f32.mrf.mxu0
      %9895 = vmatprep.mubr.bf16.mxu0 0
      %9896 = vmatmul.mubr.bf16.gmra.mxu0 %v9771
      %v9897 = vpop.f32.mrf.mxu0
      %v9898 = vadd.f32 0.0, %v9897
      %v9899 = vpop.f32.mrf.mxu0
      %v9900 = vpop.f32.mrf.mxu0
      %v9901 = vadd.f32 0.0, %v9900
      %v9902 = vpop.f32.mrf.mxu0
      %9903 = vmatprep.mubr.bf16.mxu0 0
      %9904 = vmatmul.mubr.bf16.gmra.mxu0 %v9772
      %v9905 = vpop.f32.mrf.mxu0
      %v9906 = vadd.f32 0.0, %v9905
      %v9907 = vpop.f32.mrf.mxu0
      %v9908 = vpop.f32.mrf.mxu0
      %v9909 = vadd.f32 0.0, %v9908
      %v9910 = vpop.f32.mrf.mxu0
      %9911 = vmatprep.mubr.bf16.mxu0 0
      %9912 = vmatmul.mubr.bf16.gmra.mxu0 %v9773
      %v9913 = vpop.f32.mrf.mxu0
      %v9914 = vadd.f32 0.0, %v9913
      %v9915 = vpop.f32.mrf.mxu0
      %v9916 = vpop.f32.mrf.mxu0
      %v9917 = vpop.f32.mrf.mxu0
      %9918 = vdwg.mxu0
      %v9919 = vadd.f32 %v9569, %v9874
      %v9920 = vadd.f32 %v9572, %v9877
      %v9921 = vadd.f32 %v9577, %v9882
      %v9922 = vadd.f32 %v9580, %v9885
      %v9923 = vadd.f32 %v9585, %v9890
      %v9924 = vadd.f32 %v9588, %v9893
      %v9925 = vadd.f32 %v9593, %v9898
      %v9926 = vadd.f32 %v9596, %v9901
      %v9927 = vadd.f32 %v9601, %v9906
      %v9928 = vadd.f32 %v9604, %v9909
      %v9929 = vadd.f32 %v9609, %v9914
      %v9930 = vld [vmem:[%s12] sm:$0x1]
      %v9932 = vlaneseq
      %v9933 = vshrl.u32 %v9932, 7
      %v9934 = vsub.s32 0, %v9933
      %v9935 = vrot.slane %v9930, %v9934
      %v9937 = vadd.f32 %v9919, %v9935
      %v9938 = vadd.f32 %v9920, %v9935
      %v9939 = vadd.f32 %v9921, %v9935
      %v9940 = vadd.f32 %v9922, %v9935
      %v9941 = vadd.f32 %v9923, %v9935
      %v9942 = vadd.f32 %v9924, %v9935
      %v9943 = vadd.f32 %v9925, %v9935
      %v9944 = vadd.f32 %v9926, %v9935
      %v9945 = vadd.f32 %v9927, %v9935
      %v9946 = vadd.f32 %v9928, %v9935
      %v9947 = vadd.f32 %v9929, %v9935
      %v9948 = vmax.f32 %v9937, 0.0
      %v9949 = vmax.f32 %v9938, 0.0
      %v9950 = vmax.f32 %v9939, 0.0
      %v9951 = vmax.f32 %v9940, 0.0
      %v9952 = vmax.f32 %v9941, 0.0
      %v9953 = vmax.f32 %v9942, 0.0
      %v9954 = vmax.f32 %v9943, 0.0
      %v9955 = vmax.f32 %v9944, 0.0
      %v9956 = vmax.f32 %v9945, 0.0
      %v9957 = vmax.f32 %v9946, 0.0
      %v9958 = vmax.f32 %v9947, 0.0
      %v9959 = vsel %vm933, 1, 0
      %v9960 = vsel %vm934, 1, 0
      %v9961 = vsel %vm935, 1, 0
      %v9962 = vsel %vm936, 1, 0
      %v9963 = vsel %vm937, 1, 0
      %v9964 = vsel %vm938, 1, 0
      %v9965 = vsel %vm939, 1, 0
      %v9966 = vsel %vm940, 1, 0
      %v9967 = vsel %vm941, 1, 0
      %v9968 = vsel %vm942, 1, 0
      %v9969 = vsel %vm943, 1, 0
      %9970 = vset.pattern.permute.xlu0 0
      %9971 = vperm.xlu0 %9970, %v9959
      %v9972 = vpop.permute.xlu0 %9971
      %9973 = vset.pattern.permute.xlu0 0
      %9974 = vperm.xlu0 %9973, %v9960
      %v9975 = vpop.permute.xlu0 %9974
      %9976 = vset.pattern.permute.xlu0 0
      %9977 = vperm.xlu0 %9976, %v9961
      %v9978 = vpop.permute.xlu0 %9977
      %9979 = vset.pattern.permute.xlu0 0
      %9980 = vperm.xlu0 %9979, %v9962
      %v9981 = vpop.permute.xlu0 %9980
      %9982 = vset.pattern.permute.xlu0 0
      %9983 = vperm.xlu0 %9982, %v9963
      %v9984 = vpop.permute.xlu0 %9983
      %9985 = vset.pattern.permute.xlu0 0
      %9986 = vperm.xlu0 %9985, %v9964
      %v9987 = vpop.permute.xlu0 %9986
      %9988 = vset.pattern.permute.xlu0 0
      %9989 = vperm.xlu0 %9988, %v9965
      %v9990 = vpop.permute.xlu0 %9989
      %9991 = vset.pattern.permute.xlu0 0
      %9992 = vperm.xlu0 %9991, %v9966
      %v9993 = vpop.permute.xlu0 %9992
      %9994 = vset.pattern.permute.xlu0 0
      %9995 = vperm.xlu0 %9994, %v9967
      %v9996 = vpop.permute.xlu0 %9995
      %9997 = vset.pattern.permute.xlu0 0
      %9998 = vperm.xlu0 %9997, %v9968
      %v9999 = vpop.permute.xlu0 %9998
      %10000 = vset.pattern.permute.xlu0 0
      %10001 = vperm.xlu0 %10000, %v9969
      %v10002 = vpop.permute.xlu0 %10001
      %vm10003 = vcmp.eq.s32.totalorder %v9972, 1
      %vm10004 = vcmp.eq.s32.totalorder %v9975, 1
      %vm10005 = vcmp.eq.s32.totalorder %v9978, 1
      %vm10006 = vcmp.eq.s32.totalorder %v9981, 1
      %vm10007 = vcmp.eq.s32.totalorder %v9984, 1
      %vm10008 = vcmp.eq.s32.totalorder %v9987, 1
      %vm10009 = vcmp.eq.s32.totalorder %v9990, 1
      %vm10010 = vcmp.eq.s32.totalorder %v9993, 1
      %vm10011 = vcmp.eq.s32.totalorder %v9996, 1
      %vm10012 = vcmp.eq.s32.totalorder %v9999, 1
      %vm10013 = vcmp.eq.s32.totalorder %v10002, 1
      %v10014 = vsel %vm10003, %v9948, 0.0
      %v10015 = vsel %vm10004, %v9949, 0.0
      %v10016 = vsel %vm10005, %v9950, 0.0
      %v10017 = vsel %vm10006, %v9951, 0.0
      %v10018 = vsel %vm10007, %v9952, 0.0
      %v10019 = vsel %vm10008, %v9953, 0.0
      %v10020 = vsel %vm10009, %v9954, 0.0
      %v10021 = vsel %vm10010, %v9955, 0.0
      %v10022 = vsel %vm10011, %v9956, 0.0
      %v10023 = vsel %vm10012, %v9957, 0.0
      %v10024 = vsel %vm10013, %v9958, 0.0
      %10025 = vst.msk [vmem:[#allocation6 + $0x10] sm:$0xff] %vm4285, %v10014
      %10026 = vst.msk [vmem:[#allocation6 + $0x18] sm:$0xff] %vm4285, %v10015
      %10027 = vst.msk [vmem:[#allocation6 + $0x20] sm:$0xff] %vm4285, %v10016
      %10028 = vst.msk [vmem:[#allocation6 + $0x28] sm:$0xff] %vm4285, %v10017
      %10029 = vst.msk [vmem:[#allocation6 + $0x30] sm:$0xff] %vm4285, %v10018
      %10030 = vst.msk [vmem:[#allocation6 + $0x38] sm:$0xff] %vm4285, %v10019
      %10031 = vst.msk [vmem:[#allocation6 + $0x40] sm:$0xff] %vm4285, %v10020
      %10032 = vst.msk [vmem:[#allocation6 + $0x48] sm:$0xff] %vm4285, %v10021
      %10033 = vst.msk [vmem:[#allocation6 + $0x50] sm:$0xff] %vm4285, %v10022
      %10034 = vst.msk [vmem:[#allocation6 + $0x58] sm:$0xff] %vm4285, %v10023
      %vm10035 = vcmask 516096
      %10036 = vst.msk [vmem:[#allocation6 + $0x60] sm:$0x1] %vm10035, %v10024
      %v10037 = vld [vmem:[#allocation5 + $0xf9] sm:$0xff]
      %v10038 = vld [vmem:[#allocation5 + $0x101] sm:$0xff]
      %v10039 = vld [vmem:[#allocation5 + $0x109] sm:$0xff]
      %v10040 = vld [vmem:[#allocation5 + $0x111] sm:$0xff]
      %v10041 = vld [vmem:[#allocation5 + $0x119] sm:$0xff]
      %v10042 = vld [vmem:[#allocation5 + $0x121] sm:$0xff]
      %v10043 = vld [vmem:[#allocation5 + $0x129] sm:$0xff]
      %v10044 = vld [vmem:[#allocation5 + $0x131] sm:$0xff]
      %v10045 = vld [vmem:[#allocation5 + $0x139] sm:$0xff]
      %v10046 = vld [vmem:[#allocation5 + $0x141] sm:$0xff]
      %v10047 = vld [vmem:[#allocation5 + $0x149] sm:$0x1]
      %v10048 = vpack.c.bf16 %v10038, %v10037
      %v10049 = vpack.c.bf16 %v10040, %v10039
      %v10050 = vpack.c.bf16 %v10042, %v10041
      %v10051 = vpack.c.bf16 %v10044, %v10043
      %v10052 = vpack.c.bf16 %v10046, %v10045
      %v10053 = vpack.c.bf16 %v10047, %v10047
      %v10054 = vld [vmem:[%s13] sm:$0xf]
      %v10055 = vld [vmem:[%s13 + $0x4] sm:$0xf]
      %v10056 = vld [vmem:[%s13 + $0x8] sm:$0xf]
      %v10057 = vld [vmem:[%s13 + $0xc] sm:$0xf]
      %v10058 = vld [vmem:[%s14] sm:$0x1]
      %v10060 = vlaneseq
      %v10061 = vshrl.u32 %v10060, 7
      %v10062 = vsub.s32 0, %v10061
      %v10063 = vrot.slane %v10058, %v10062
      %v10069 = vunpack.c.l.b16 %v10054
      %v10070 = vunpack.c.l.b16 %v10055
      %v10071 = vunpack.c.l.b16 %v10056
      %v10072 = vunpack.c.l.b16 %v10057
      %v10073 = vpack.c.b16 %v10070, %v10069
      %v10074 = vpack.c.b16 %v10072, %v10071
      %v10078 = vsel %vm2968, %v10048, 0
      %v10081 = vsel %vm2968, %v10049, 0
      %v10084 = vsel %vm2968, %v10050, 0
      %v10087 = vsel %vm2968, %v10051, 0
      %v10090 = vsel %vm2968, %v10052, 0
      %v10093 = vsel %vm2968, %v10053, 0
      %10095 = vmatprep.subr.bf16.mxu0 0
      %10096 = vmatpush1.bf16.msra.mxu0 0
      %10097 = vmatprep.subr.bf16.mxu0 0
      %10098 = vmatpush1.bf16.msra.mxu0 0
      %10099 = vmatprep.subr.bf16.mxu0 0
      %10100 = vmatpush1.bf16.msra.mxu0 0
      %10101 = vmatprep.subr.bf16.mxu0 0
      %10102 = vmatpush1.bf16.msra.mxu0 0
      %10103 = vmatprep.subr.bf16.mxu0 0
      %10104 = vmatpush1.bf16.msra.mxu0 0
      %10105 = vmatprep.subr.bf16.mxu0 0
      %10106 = vmatpush1.bf16.msra.mxu0 0
      %10107 = vmatprep.subr.bf16.mxu0 0
      %10108 = vmatpush1.bf16.msra.mxu0 %v10074
      %10109 = vmatprep.subr.bf16.mxu0 0
      %10110 = vmatpush1.bf16.msra.mxu0 %v10073
      %10111 = vmatprep.subr.bf16.mxu0 0
      %10112 = vmatpush2.bf16.msra.mxu0 0
      %10113 = vmatprep.subr.bf16.mxu0 0
      %10114 = vmatpush2.bf16.msra.mxu0 0
      %10115 = vmatprep.subr.bf16.mxu0 0
      %10116 = vmatpush2.bf16.msra.mxu0 0
      %10117 = vmatprep.subr.bf16.mxu0 0
      %10118 = vmatpush2.bf16.msra.mxu0 0
      %10119 = vmatprep.subr.bf16.mxu0 0
      %10120 = vmatpush2.bf16.msra.mxu0 0
      %10121 = vmatprep.subr.bf16.mxu0 0
      %10122 = vmatpush2.bf16.msra.mxu0 0
      %10123 = vmatprep.subr.bf16.mxu0 0
      %10124 = vmatpush2.bf16.msra.mxu0 0
      %10125 = vmatprep.subr.bf16.mxu0 0
      %10126 = vmatpush2.bf16.msra.mxu0 0
      %10127 = vmatprep.mubr.bf16.mxu0 0
      %10128 = vmatmul.mubr.bf16.gmra.mxu0 %v10078
      %v10129 = vpop.f32.mrf.mxu0
      %v10130 = vadd.f32 %v10063, %v10129
      %v10131 = vpop.f32.mrf.mxu0
      %v10132 = vpop.f32.mrf.mxu0
      %v10133 = vadd.f32 %v10063, %v10132
      %v10134 = vpop.f32.mrf.mxu0
      %10135 = vmatprep.mubr.bf16.mxu0 0
      %10136 = vmatmul.mubr.bf16.gmra.mxu0 %v10081
      %v10137 = vpop.f32.mrf.mxu0
      %v10138 = vadd.f32 %v10063, %v10137
      %v10139 = vpop.f32.mrf.mxu0
      %v10140 = vpop.f32.mrf.mxu0
      %v10141 = vadd.f32 %v10063, %v10140
      %v10142 = vpop.f32.mrf.mxu0
      %10143 = vmatprep.mubr.bf16.mxu0 0
      %10144 = vmatmul.mubr.bf16.gmra.mxu0 %v10084
      %v10145 = vpop.f32.mrf.mxu0
      %v10146 = vadd.f32 %v10063, %v10145
      %v10147 = vpop.f32.mrf.mxu0
      %v10148 = vpop.f32.mrf.mxu0
      %v10149 = vadd.f32 %v10063, %v10148
      %v10150 = vpop.f32.mrf.mxu0
      %10151 = vmatprep.mubr.bf16.mxu0 0
      %10152 = vmatmul.mubr.bf16.gmra.mxu0 %v10087
      %v10153 = vpop.f32.mrf.mxu0
      %v10154 = vadd.f32 %v10063, %v10153
      %v10155 = vpop.f32.mrf.mxu0
      %v10156 = vpop.f32.mrf.mxu0
      %v10157 = vadd.f32 %v10063, %v10156
      %v10158 = vpop.f32.mrf.mxu0
      %10159 = vmatprep.mubr.bf16.mxu0 0
      %10160 = vmatmul.mubr.bf16.gmra.mxu0 %v10090
      %v10161 = vpop.f32.mrf.mxu0
      %v10162 = vadd.f32 %v10063, %v10161
      %v10163 = vpop.f32.mrf.mxu0
      %v10164 = vpop.f32.mrf.mxu0
      %v10165 = vadd.f32 %v10063, %v10164
      %v10166 = vpop.f32.mrf.mxu0
      %10167 = vmatprep.mubr.bf16.mxu0 0
      %10168 = vmatmul.mubr.bf16.gmra.mxu0 %v10093
      %v10169 = vpop.f32.mrf.mxu0
      %v10170 = vadd.f32 %v10063, %v10169
      %v10171 = vpop.f32.mrf.mxu0
      %v10172 = vpop.f32.mrf.mxu0
      %v10173 = vpop.f32.mrf.mxu0
      %10174 = vdwg.mxu0
      %v10175 = vld [vmem:[#allocation6 + $0x6] sm:$0xff]
      %v10176 = vld [vmem:[#allocation6 + $0xe] sm:$0xff]
      %v10177 = vld [vmem:[#allocation6 + $0x16] sm:$0xff]
      %v10178 = vld [vmem:[#allocation6 + $0x1e] sm:$0xff]
      %v10179 = vld [vmem:[#allocation6 + $0x26] sm:$0xff]
      %v10180 = vld [vmem:[#allocation6 + $0x2e] sm:$0xff]
      %v10181 = vld [vmem:[#allocation6 + $0x36] sm:$0xff]
      %v10182 = vld [vmem:[#allocation6 + $0x3e] sm:$0xff]
      %v10183 = vld [vmem:[#allocation6 + $0x46] sm:$0xff]
      %v10184 = vld [vmem:[#allocation6 + $0x4e] sm:$0xff]
      %v10185 = vld [vmem:[#allocation6 + $0x56] sm:$0x1]
      %v10186 = vld [vmem:[#allocation6 + $0x7] sm:$0xff]
      %v10187 = vld [vmem:[#allocation6 + $0xf] sm:$0xff]
      %v10188 = vld [vmem:[#allocation6 + $0x17] sm:$0xff]
      %v10189 = vld [vmem:[#allocation6 + $0x1f] sm:$0xff]
      %v10190 = vld [vmem:[#allocation6 + $0x27] sm:$0xff]
      %v10191 = vld [vmem:[#allocation6 + $0x2f] sm:$0xff]
      %v10192 = vld [vmem:[#allocation6 + $0x37] sm:$0xff]
      %v10193 = vld [vmem:[#allocation6 + $0x3f] sm:$0xff]
      %v10194 = vld [vmem:[#allocation6 + $0x47] sm:$0xff]
      %v10195 = vld [vmem:[#allocation6 + $0x4f] sm:$0xff]
      %v10196 = vld [vmem:[#allocation6 + $0x57] sm:$0x1]
      %10208 = vrot.lane.b32.xlu0 %v10186, 64
      %v10209 = vpop.permute.xlu0 %10208
      %10210 = vrot.lane.b32.xlu0 %v10187, 64
      %v10211 = vpop.permute.xlu0 %10210
      %10212 = vrot.lane.b32.xlu0 %v10188, 64
      %v10213 = vpop.permute.xlu0 %10212
      %10214 = vrot.lane.b32.xlu0 %v10189, 64
      %v10215 = vpop.permute.xlu0 %10214
      %10216 = vrot.lane.b32.xlu0 %v10190, 64
      %v10217 = vpop.permute.xlu0 %10216
      %10218 = vrot.lane.b32.xlu0 %v10191, 64
      %v10219 = vpop.permute.xlu0 %10218
      %10220 = vrot.lane.b32.xlu0 %v10192, 64
      %v10221 = vpop.permute.xlu0 %10220
      %10222 = vrot.lane.b32.xlu0 %v10193, 64
      %v10223 = vpop.permute.xlu0 %10222
      %10224 = vrot.lane.b32.xlu0 %v10194, 64
      %v10225 = vpop.permute.xlu0 %10224
      %10226 = vrot.lane.b32.xlu0 %v10195, 64
      %v10227 = vpop.permute.xlu0 %10226
      %10228 = vrot.lane.b32.xlu0 %v10196, 64
      %v10229 = vpop.permute.xlu0 %10228
      %v10241 = vsel %vm4285, %v10175, %v10209
      %v10242 = vsel %vm4285, %v10176, %v10211
      %v10243 = vsel %vm4285, %v10177, %v10213
      %v10244 = vsel %vm4285, %v10178, %v10215
      %v10245 = vsel %vm4285, %v10179, %v10217
      %v10246 = vsel %vm4285, %v10180, %v10219
      %v10247 = vsel %vm4285, %v10181, %v10221
      %v10248 = vsel %vm4285, %v10182, %v10223
      %v10249 = vsel %vm4285, %v10183, %v10225
      %v10250 = vsel %vm4285, %v10184, %v10227
      %v10251 = vsel %vm4285, %v10185, %v10229
      %v10252 = vpack.c.bf16 %v10242, %v10241
      %v10253 = vpack.c.bf16 %v10244, %v10243
      %v10254 = vpack.c.bf16 %v10246, %v10245
      %v10255 = vpack.c.bf16 %v10248, %v10247
      %v10256 = vpack.c.bf16 %v10250, %v10249
      %v10257 = vpack.c.bf16 %v10251, %v10251
      %v10258 = vld [vmem:[%s15] sm:$0xf]
      %v10259 = vld [vmem:[%s15 + $0x4] sm:$0xf]
      %v10260 = vld [vmem:[%s15 + $0x8] sm:$0xf]
      %v10261 = vld [vmem:[%s15 + $0xc] sm:$0xf]
      %v10262 = vld [vmem:[%s15 + $0x10] sm:$0xf]
      %v10263 = vld [vmem:[%s15 + $0x14] sm:$0xf]
      %v10264 = vld [vmem:[%s15 + $0x18] sm:$0xf]
      %v10265 = vld [vmem:[%s15 + $0x1c] sm:$0xf]
      %v10266 = vld [vmem:[%s15 + $0x20] sm:$0xf]
      %v10267 = vld [vmem:[%s15 + $0x24] sm:$0xf]
      %v10268 = vld [vmem:[%s15 + $0x28] sm:$0xf]
      %v10269 = vld [vmem:[%s15 + $0x2c] sm:$0xf]
      %v10270 = vld [vmem:[%s15 + $0x30] sm:$0xf]
      %v10271 = vld [vmem:[%s15 + $0x34] sm:$0xf]
      %v10272 = vld [vmem:[%s15 + $0x38] sm:$0xf]
      %v10273 = vld [vmem:[%s15 + $0x3c] sm:$0xf]
      %v10274 = vld [vmem:[#allocation6 + $0x8] sm:$0xff]
      %v10275 = vld [vmem:[#allocation6 + $0x10] sm:$0xff]
      %v10276 = vld [vmem:[#allocation6 + $0x18] sm:$0xff]
      %v10277 = vld [vmem:[#allocation6 + $0x20] sm:$0xff]
      %v10278 = vld [vmem:[#allocation6 + $0x28] sm:$0xff]
      %v10279 = vld [vmem:[#allocation6 + $0x30] sm:$0xff]
      %v10280 = vld [vmem:[#allocation6 + $0x38] sm:$0xff]
      %v10281 = vld [vmem:[#allocation6 + $0x40] sm:$0xff]
      %v10282 = vld [vmem:[#allocation6 + $0x48] sm:$0xff]
      %v10283 = vld [vmem:[#allocation6 + $0x50] sm:$0xff]
      %v10284 = vld [vmem:[#allocation6 + $0x58] sm:$0x1]
      %v10285 = vld [vmem:[#allocation6 + $0x57] sm:$0xff]
      %v10286 = vld [vmem:[#allocation6 + $0x5f] sm:$0x1]
      %10289 = vrot.lane.b32.xlu0 %v10285, 64
      %v10290 = vpop.permute.xlu0 %10289
      %10291 = vrot.lane.b32.xlu0 %v10286, 64
      %v10292 = vpop.permute.xlu0 %10291
      %v10295 = vsel %vm4285, %v10274, %v10211
      %v10296 = vsel %vm4285, %v10275, %v10213
      %v10297 = vsel %vm4285, %v10276, %v10215
      %v10298 = vsel %vm4285, %v10277, %v10217
      %v10299 = vsel %vm4285, %v10278, %v10219
      %v10300 = vsel %vm4285, %v10279, %v10221
      %v10301 = vsel %vm4285, %v10280, %v10223
      %v10302 = vsel %vm4285, %v10281, %v10225
      %v10303 = vsel %vm4285, %v10282, %v10227
      %v10304 = vsel %vm4285, %v10283, %v10290
      %v10305 = vsel %vm4285, %v10284, %v10292
      %v10306 = vpack.c.bf16 %v10296, %v10295
      %v10307 = vpack.c.bf16 %v10298, %v10297
      %v10308 = vpack.c.bf16 %v10300, %v10299
      %v10309 = vpack.c.bf16 %v10302, %v10301
      %v10310 = vpack.c.bf16 %v10304, %v10303
      %v10311 = vpack.c.bf16 %v10305, %v10305
      %s10312 = scalar_lea.vmem %s15, 64
      %v10313 = vld [vmem:[%s10312] sm:$0xf]
      %v10314 = vld [vmem:[%s10312 + $0x4] sm:$0xf]
      %v10315 = vld [vmem:[%s10312 + $0x8] sm:$0xf]
      %v10316 = vld [vmem:[%s10312 + $0xc] sm:$0xf]
      %v10317 = vld [vmem:[%s10312 + $0x10] sm:$0xf]
      %v10318 = vld [vmem:[%s10312 + $0x14] sm:$0xf]
      %v10319 = vld [vmem:[%s10312 + $0x18] sm:$0xf]
      %v10320 = vld [vmem:[%s10312 + $0x1c] sm:$0xf]
      %v10321 = vld [vmem:[%s10312 + $0x20] sm:$0xf]
      %v10322 = vld [vmem:[%s10312 + $0x24] sm:$0xf]
      %v10323 = vld [vmem:[%s10312 + $0x28] sm:$0xf]
      %v10324 = vld [vmem:[%s10312 + $0x2c] sm:$0xf]
      %v10325 = vld [vmem:[%s10312 + $0x30] sm:$0xf]
      %v10326 = vld [vmem:[%s10312 + $0x34] sm:$0xf]
      %v10327 = vld [vmem:[%s10312 + $0x38] sm:$0xf]
      %v10328 = vld [vmem:[%s10312 + $0x3c] sm:$0xf]
      %v10345 = vunpack.c.l.b16 %v10313
      %v10346 = vunpack.c.l.b16 %v10314
      %v10347 = vunpack.c.l.b16 %v10315
      %v10348 = vunpack.c.l.b16 %v10316
      %v10349 = vunpack.c.l.b16 %v10317
      %v10350 = vunpack.c.l.b16 %v10318
      %v10351 = vunpack.c.l.b16 %v10319
      %v10352 = vunpack.c.l.b16 %v10320
      %v10353 = vunpack.c.l.b16 %v10321
      %v10354 = vunpack.c.l.b16 %v10322
      %v10355 = vunpack.c.l.b16 %v10323
      %v10356 = vunpack.c.l.b16 %v10324
      %v10357 = vunpack.c.l.b16 %v10325
      %v10358 = vunpack.c.l.b16 %v10326
      %v10359 = vunpack.c.l.b16 %v10327
      %v10360 = vunpack.c.l.b16 %v10328
      %v10361 = vpack.c.b16 %v10346, %v10345
      %v10362 = vpack.c.b16 %v10348, %v10347
      %v10363 = vpack.c.b16 %v10350, %v10349
      %v10364 = vpack.c.b16 %v10352, %v10351
      %v10365 = vpack.c.b16 %v10354, %v10353
      %v10366 = vpack.c.b16 %v10356, %v10355
      %v10367 = vpack.c.b16 %v10358, %v10357
      %v10368 = vpack.c.b16 %v10360, %v10359
      %10377 = vmatprep.subr.bf16.mxu0 0
      %10378 = vmatpush1.bf16.msra.mxu0 %v10368
      %10379 = vmatprep.subr.bf16.mxu0 0
      %10380 = vmatpush1.bf16.msra.mxu0 %v10367
      %10381 = vmatprep.subr.bf16.mxu0 0
      %10382 = vmatpush1.bf16.msra.mxu0 %v10366
      %10383 = vmatprep.subr.bf16.mxu0 0
      %10384 = vmatpush1.bf16.msra.mxu0 %v10365
      %10385 = vmatprep.subr.bf16.mxu0 0
      %10386 = vmatpush1.bf16.msra.mxu0 %v10364
      %10387 = vmatprep.subr.bf16.mxu0 0
      %10388 = vmatpush1.bf16.msra.mxu0 %v10363
      %10389 = vmatprep.subr.bf16.mxu0 0
      %10390 = vmatpush1.bf16.msra.mxu0 %v10362
      %10391 = vmatprep.subr.bf16.mxu0 0
      %10392 = vmatpush1.bf16.msra.mxu0 %v10361
      %10393 = vmatprep.subr.bf16.mxu0 0
      %10394 = vmatpush2.bf16.msra.mxu0 0
      %10395 = vmatprep.subr.bf16.mxu0 0
      %10396 = vmatpush2.bf16.msra.mxu0 0
      %10397 = vmatprep.subr.bf16.mxu0 0
      %10398 = vmatpush2.bf16.msra.mxu0 0
      %10399 = vmatprep.subr.bf16.mxu0 0
      %10400 = vmatpush2.bf16.msra.mxu0 0
      %10401 = vmatprep.subr.bf16.mxu0 0
      %10402 = vmatpush2.bf16.msra.mxu0 0
      %10403 = vmatprep.subr.bf16.mxu0 0
      %10404 = vmatpush2.bf16.msra.mxu0 0
      %10405 = vmatprep.subr.bf16.mxu0 0
      %10406 = vmatpush2.bf16.msra.mxu0 0
      %10407 = vmatprep.subr.bf16.mxu0 0
      %10408 = vmatpush2.bf16.msra.mxu0 0
      %10409 = vmatprep.mubr.bf16.mxu0 0
      %10410 = vmatmul.mubr.bf16.gmra.mxu0 %v10306
      %v10411 = vpop.f32.mrf.mxu0
      %v10412 = vadd.f32 0.0, %v10411
      %v10413 = vpop.f32.mrf.mxu0
      %v10414 = vpop.f32.mrf.mxu0
      %v10415 = vadd.f32 0.0, %v10414
      %v10416 = vpop.f32.mrf.mxu0
      %10417 = vmatprep.mubr.bf16.mxu0 0
      %10418 = vmatmul.mubr.bf16.gmra.mxu0 %v10307
      %v10419 = vpop.f32.mrf.mxu0
      %v10420 = vadd.f32 0.0, %v10419
      %v10421 = vpop.f32.mrf.mxu0
      %v10422 = vpop.f32.mrf.mxu0
      %v10423 = vadd.f32 0.0, %v10422
      %v10424 = vpop.f32.mrf.mxu0
      %10425 = vmatprep.mubr.bf16.mxu0 0
      %10426 = vmatmul.mubr.bf16.gmra.mxu0 %v10308
      %v10427 = vpop.f32.mrf.mxu0
      %v10428 = vadd.f32 0.0, %v10427
      %v10429 = vpop.f32.mrf.mxu0
      %v10430 = vpop.f32.mrf.mxu0
      %v10431 = vadd.f32 0.0, %v10430
      %v10432 = vpop.f32.mrf.mxu0
      %10433 = vmatprep.mubr.bf16.mxu0 0
      %10434 = vmatmul.mubr.bf16.gmra.mxu0 %v10309
      %v10435 = vpop.f32.mrf.mxu0
      %v10436 = vadd.f32 0.0, %v10435
      %v10437 = vpop.f32.mrf.mxu0
      %v10438 = vpop.f32.mrf.mxu0
      %v10439 = vadd.f32 0.0, %v10438
      %v10440 = vpop.f32.mrf.mxu0
      %10441 = vmatprep.mubr.bf16.mxu0 0
      %10442 = vmatmul.mubr.bf16.gmra.mxu0 %v10310
      %v10443 = vpop.f32.mrf.mxu0
      %v10444 = vadd.f32 0.0, %v10443
      %v10445 = vpop.f32.mrf.mxu0
      %v10446 = vpop.f32.mrf.mxu0
      %v10447 = vadd.f32 0.0, %v10446
      %v10448 = vpop.f32.mrf.mxu0
      %10449 = vmatprep.mubr.bf16.mxu0 0
      %10450 = vmatmul.mubr.bf16.gmra.mxu0 %v10311
      %v10451 = vpop.f32.mrf.mxu0
      %v10452 = vadd.f32 0.0, %v10451
      %v10453 = vpop.f32.mrf.mxu0
      %v10454 = vpop.f32.mrf.mxu0
      %v10455 = vpop.f32.mrf.mxu0
      %10456 = vdwg.mxu0
      %v10473 = vunpack.c.l.b16 %v10258
      %v10474 = vunpack.c.l.b16 %v10259
      %v10475 = vunpack.c.l.b16 %v10260
      %v10476 = vunpack.c.l.b16 %v10261
      %v10477 = vunpack.c.l.b16 %v10262
      %v10478 = vunpack.c.l.b16 %v10263
      %v10479 = vunpack.c.l.b16 %v10264
      %v10480 = vunpack.c.l.b16 %v10265
      %v10481 = vunpack.c.l.b16 %v10266
      %v10482 = vunpack.c.l.b16 %v10267
      %v10483 = vunpack.c.l.b16 %v10268
      %v10484 = vunpack.c.l.b16 %v10269
      %v10485 = vunpack.c.l.b16 %v10270
      %v10486 = vunpack.c.l.b16 %v10271
      %v10487 = vunpack.c.l.b16 %v10272
      %v10488 = vunpack.c.l.b16 %v10273
      %v10489 = vpack.c.b16 %v10474, %v10473
      %v10490 = vpack.c.b16 %v10476, %v10475
      %v10491 = vpack.c.b16 %v10478, %v10477
      %v10492 = vpack.c.b16 %v10480, %v10479
      %v10493 = vpack.c.b16 %v10482, %v10481
      %v10494 = vpack.c.b16 %v10484, %v10483
      %v10495 = vpack.c.b16 %v10486, %v10485
      %v10496 = vpack.c.b16 %v10488, %v10487
      %10505 = vmatprep.subr.bf16.mxu0 0
      %10506 = vmatpush1.bf16.msra.mxu0 %v10496
      %10507 = vmatprep.subr.bf16.mxu0 0
      %10508 = vmatpush1.bf16.msra.mxu0 %v10495
      %10509 = vmatprep.subr.bf16.mxu0 0
      %10510 = vmatpush1.bf16.msra.mxu0 %v10494
      %10511 = vmatprep.subr.bf16.mxu0 0
      %10512 = vmatpush1.bf16.msra.mxu0 %v10493
      %10513 = vmatprep.subr.bf16.mxu0 0
      %10514 = vmatpush1.bf16.msra.mxu0 %v10492
      %10515 = vmatprep.subr.bf16.mxu0 0
      %10516 = vmatpush1.bf16.msra.mxu0 %v10491
      %10517 = vmatprep.subr.bf16.mxu0 0
      %10518 = vmatpush1.bf16.msra.mxu0 %v10490
      %10519 = vmatprep.subr.bf16.mxu0 0
      %10520 = vmatpush1.bf16.msra.mxu0 %v10489
      %10521 = vmatprep.subr.bf16.mxu0 0
      %10522 = vmatpush2.bf16.msra.mxu0 0
      %10523 = vmatprep.subr.bf16.mxu0 0
      %10524 = vmatpush2.bf16.msra.mxu0 0
      %10525 = vmatprep.subr.bf16.mxu0 0
      %10526 = vmatpush2.bf16.msra.mxu0 0
      %10527 = vmatprep.subr.bf16.mxu0 0
      %10528 = vmatpush2.bf16.msra.mxu0 0
      %10529 = vmatprep.subr.bf16.mxu0 0
      %10530 = vmatpush2.bf16.msra.mxu0 0
      %10531 = vmatprep.subr.bf16.mxu0 0
      %10532 = vmatpush2.bf16.msra.mxu0 0
      %10533 = vmatprep.subr.bf16.mxu0 0
      %10534 = vmatpush2.bf16.msra.mxu0 0
      %10535 = vmatprep.subr.bf16.mxu0 0
      %10536 = vmatpush2.bf16.msra.mxu0 0
      %10537 = vmatprep.mubr.bf16.mxu0 0
      %10538 = vmatmul.mubr.bf16.gmra.mxu0 %v10252
      %v10539 = vpop.f32.mrf.mxu0
      %v10540 = vadd.f32 %v10412, %v10539
      %v10541 = vpop.f32.mrf.mxu0
      %v10542 = vpop.f32.mrf.mxu0
      %v10543 = vadd.f32 %v10415, %v10542
      %v10544 = vpop.f32.mrf.mxu0
      %10545 = vmatprep.mubr.bf16.mxu0 0
      %10546 = vmatmul.mubr.bf16.gmra.mxu0 %v10253
      %v10547 = vpop.f32.mrf.mxu0
      %v10548 = vadd.f32 %v10420, %v10547
      %v10549 = vpop.f32.mrf.mxu0
      %v10550 = vpop.f32.mrf.mxu0
      %v10551 = vadd.f32 %v10423, %v10550
      %v10552 = vpop.f32.mrf.mxu0
      %10553 = vmatprep.mubr.bf16.mxu0 0
      %10554 = vmatmul.mubr.bf16.gmra.mxu0 %v10254
      %v10555 = vpop.f32.mrf.mxu0
      %v10556 = vadd.f32 %v10428, %v10555
      %v10557 = vpop.f32.mrf.mxu0
      %v10558 = vpop.f32.mrf.mxu0
      %v10559 = vadd.f32 %v10431, %v10558
      %v10560 = vpop.f32.mrf.mxu0
      %10561 = vmatprep.mubr.bf16.mxu0 0
      %10562 = vmatmul.mubr.bf16.gmra.mxu0 %v10255
      %v10563 = vpop.f32.mrf.mxu0
      %v10564 = vadd.f32 %v10436, %v10563
      %v10565 = vpop.f32.mrf.mxu0
      %v10566 = vpop.f32.mrf.mxu0
      %v10567 = vadd.f32 %v10439, %v10566
      %v10568 = vpop.f32.mrf.mxu0
      %10569 = vmatprep.mubr.bf16.mxu0 0
      %10570 = vmatmul.mubr.bf16.gmra.mxu0 %v10256
      %v10571 = vpop.f32.mrf.mxu0
      %v10572 = vadd.f32 %v10444, %v10571
      %v10573 = vpop.f32.mrf.mxu0
      %v10574 = vpop.f32.mrf.mxu0
      %v10575 = vadd.f32 %v10447, %v10574
      %v10576 = vpop.f32.mrf.mxu0
      %10577 = vmatprep.mubr.bf16.mxu0 0
      %10578 = vmatmul.mubr.bf16.gmra.mxu0 %v10257
      %v10579 = vpop.f32.mrf.mxu0
      %v10580 = vadd.f32 %v10452, %v10579
      %v10581 = vpop.f32.mrf.mxu0
      %v10582 = vpop.f32.mrf.mxu0
      %v10583 = vpop.f32.mrf.mxu0
      %10584 = vdwg.mxu0
      %v10585 = vld [vmem:[#allocation6 + $0x10] sm:$0xff]
      %v10586 = vld [vmem:[#allocation6 + $0x18] sm:$0xff]
      %v10587 = vld [vmem:[#allocation6 + $0x20] sm:$0xff]
      %v10588 = vld [vmem:[#allocation6 + $0x28] sm:$0xff]
      %v10589 = vld [vmem:[#allocation6 + $0x30] sm:$0xff]
      %v10590 = vld [vmem:[#allocation6 + $0x38] sm:$0xff]
      %v10591 = vld [vmem:[#allocation6 + $0x40] sm:$0xff]
      %v10592 = vld [vmem:[#allocation6 + $0x48] sm:$0xff]
      %v10593 = vld [vmem:[#allocation6 + $0x50] sm:$0xff]
      %v10594 = vld [vmem:[#allocation6 + $0x58] sm:$0xff]
      %v10595 = vld [vmem:[#allocation6 + $0x60] sm:$0x1]
      %v10596 = vld [vmem:[#allocation6 + $0x11] sm:$0xff]
      %v10597 = vld [vmem:[#allocation6 + $0x19] sm:$0xff]
      %v10598 = vld [vmem:[#allocation6 + $0x21] sm:$0xff]
      %v10599 = vld [vmem:[#allocation6 + $0x29] sm:$0xff]
      %v10600 = vld [vmem:[#allocation6 + $0x31] sm:$0xff]
      %v10601 = vld [vmem:[#allocation6 + $0x39] sm:$0xff]
      %v10602 = vld [vmem:[#allocation6 + $0x41] sm:$0xff]
      %v10603 = vld [vmem:[#allocation6 + $0x49] sm:$0xff]
      %v10604 = vld [vmem:[#allocation6 + $0x51] sm:$0xff]
      %v10605 = vld [vmem:[#allocation6 + $0x59] sm:$0xff]
      %v10606 = vld [vmem:[#allocation6 + $0x61] sm:$0x1]
      %10618 = vrot.lane.b32.xlu0 %v10596, 64
      %v10619 = vpop.permute.xlu0 %10618
      %10620 = vrot.lane.b32.xlu0 %v10597, 64
      %v10621 = vpop.permute.xlu0 %10620
      %10622 = vrot.lane.b32.xlu0 %v10598, 64
      %v10623 = vpop.permute.xlu0 %10622
      %10624 = vrot.lane.b32.xlu0 %v10599, 64
      %v10625 = vpop.permute.xlu0 %10624
      %10626 = vrot.lane.b32.xlu0 %v10600, 64
      %v10627 = vpop.permute.xlu0 %10626
      %10628 = vrot.lane.b32.xlu0 %v10601, 64
      %v10629 = vpop.permute.xlu0 %10628
      %10630 = vrot.lane.b32.xlu0 %v10602, 64
      %v10631 = vpop.permute.xlu0 %10630
      %10632 = vrot.lane.b32.xlu0 %v10603, 64
      %v10633 = vpop.permute.xlu0 %10632
      %10634 = vrot.lane.b32.xlu0 %v10604, 64
      %v10635 = vpop.permute.xlu0 %10634
      %10636 = vrot.lane.b32.xlu0 %v10605, 64
      %v10637 = vpop.permute.xlu0 %10636
      %10638 = vrot.lane.b32.xlu0 %v10606, 64
      %v10639 = vpop.permute.xlu0 %10638
      %v10651 = vsel %vm4285, %v10585, %v10619
      %v10652 = vsel %vm4285, %v10586, %v10621
      %v10653 = vsel %vm4285, %v10587, %v10623
      %v10654 = vsel %vm4285, %v10588, %v10625
      %v10655 = vsel %vm4285, %v10589, %v10627
      %v10656 = vsel %vm4285, %v10590, %v10629
      %v10657 = vsel %vm4285, %v10591, %v10631
      %v10658 = vsel %vm4285, %v10592, %v10633
      %v10659 = vsel %vm4285, %v10593, %v10635
      %v10660 = vsel %vm4285, %v10594, %v10637
      %v10661 = vsel %vm4285, %v10595, %v10639
      %v10662 = vpack.c.bf16 %v10652, %v10651
      %v10663 = vpack.c.bf16 %v10654, %v10653
      %v10664 = vpack.c.bf16 %v10656, %v10655
      %v10665 = vpack.c.bf16 %v10658, %v10657
      %v10666 = vpack.c.bf16 %v10660, %v10659
      %v10667 = vpack.c.bf16 %v10661, %v10661
      %s10668 = scalar_lea.vmem %s15, 128
      %v10669 = vld [vmem:[%s10668] sm:$0xf]
      %v10670 = vld [vmem:[%s10668 + $0x4] sm:$0xf]
      %v10671 = vld [vmem:[%s10668 + $0x8] sm:$0xf]
      %v10672 = vld [vmem:[%s10668 + $0xc] sm:$0xf]
      %v10673 = vld [vmem:[%s10668 + $0x10] sm:$0xf]
      %v10674 = vld [vmem:[%s10668 + $0x14] sm:$0xf]
      %v10675 = vld [vmem:[%s10668 + $0x18] sm:$0xf]
      %v10676 = vld [vmem:[%s10668 + $0x1c] sm:$0xf]
      %v10677 = vld [vmem:[%s10668 + $0x20] sm:$0xf]
      %v10678 = vld [vmem:[%s10668 + $0x24] sm:$0xf]
      %v10679 = vld [vmem:[%s10668 + $0x28] sm:$0xf]
      %v10680 = vld [vmem:[%s10668 + $0x2c] sm:$0xf]
      %v10681 = vld [vmem:[%s10668 + $0x30] sm:$0xf]
      %v10682 = vld [vmem:[%s10668 + $0x34] sm:$0xf]
      %v10683 = vld [vmem:[%s10668 + $0x38] sm:$0xf]
      %v10684 = vld [vmem:[%s10668 + $0x3c] sm:$0xf]
      %v10701 = vunpack.c.l.b16 %v10669
      %v10702 = vunpack.c.l.b16 %v10670
      %v10703 = vunpack.c.l.b16 %v10671
      %v10704 = vunpack.c.l.b16 %v10672
      %v10705 = vunpack.c.l.b16 %v10673
      %v10706 = vunpack.c.l.b16 %v10674
      %v10707 = vunpack.c.l.b16 %v10675
      %v10708 = vunpack.c.l.b16 %v10676
      %v10709 = vunpack.c.l.b16 %v10677
      %v10710 = vunpack.c.l.b16 %v10678
      %v10711 = vunpack.c.l.b16 %v10679
      %v10712 = vunpack.c.l.b16 %v10680
      %v10713 = vunpack.c.l.b16 %v10681
      %v10714 = vunpack.c.l.b16 %v10682
      %v10715 = vunpack.c.l.b16 %v10683
      %v10716 = vunpack.c.l.b16 %v10684
      %v10717 = vpack.c.b16 %v10702, %v10701
      %v10718 = vpack.c.b16 %v10704, %v10703
      %v10719 = vpack.c.b16 %v10706, %v10705
      %v10720 = vpack.c.b16 %v10708, %v10707
      %v10721 = vpack.c.b16 %v10710, %v10709
      %v10722 = vpack.c.b16 %v10712, %v10711
      %v10723 = vpack.c.b16 %v10714, %v10713
      %v10724 = vpack.c.b16 %v10716, %v10715
      %10733 = vmatprep.subr.bf16.mxu0 0
      %10734 = vmatpush1.bf16.msra.mxu0 %v10724
      %10735 = vmatprep.subr.bf16.mxu0 0
      %10736 = vmatpush1.bf16.msra.mxu0 %v10723
      %10737 = vmatprep.subr.bf16.mxu0 0
      %10738 = vmatpush1.bf16.msra.mxu0 %v10722
      %10739 = vmatprep.subr.bf16.mxu0 0
      %10740 = vmatpush1.bf16.msra.mxu0 %v10721
      %10741 = vmatprep.subr.bf16.mxu0 0
      %10742 = vmatpush1.bf16.msra.mxu0 %v10720
      %10743 = vmatprep.subr.bf16.mxu0 0
      %10744 = vmatpush1.bf16.msra.mxu0 %v10719
      %10745 = vmatprep.subr.bf16.mxu0 0
      %10746 = vmatpush1.bf16.msra.mxu0 %v10718
      %10747 = vmatprep.subr.bf16.mxu0 0
      %10748 = vmatpush1.bf16.msra.mxu0 %v10717
      %10749 = vmatprep.subr.bf16.mxu0 0
      %10750 = vmatpush2.bf16.msra.mxu0 0
      %10751 = vmatprep.subr.bf16.mxu0 0
      %10752 = vmatpush2.bf16.msra.mxu0 0
      %10753 = vmatprep.subr.bf16.mxu0 0
      %10754 = vmatpush2.bf16.msra.mxu0 0
      %10755 = vmatprep.subr.bf16.mxu0 0
      %10756 = vmatpush2.bf16.msra.mxu0 0
      %10757 = vmatprep.subr.bf16.mxu0 0
      %10758 = vmatpush2.bf16.msra.mxu0 0
      %10759 = vmatprep.subr.bf16.mxu0 0
      %10760 = vmatpush2.bf16.msra.mxu0 0
      %10761 = vmatprep.subr.bf16.mxu0 0
      %10762 = vmatpush2.bf16.msra.mxu0 0
      %10763 = vmatprep.subr.bf16.mxu0 0
      %10764 = vmatpush2.bf16.msra.mxu0 0
      %10765 = vmatprep.mubr.bf16.mxu0 0
      %10766 = vmatmul.mubr.bf16.gmra.mxu0 %v10662
      %v10767 = vpop.f32.mrf.mxu0
      %v10768 = vadd.f32 0.0, %v10767
      %v10769 = vpop.f32.mrf.mxu0
      %v10770 = vpop.f32.mrf.mxu0
      %v10771 = vadd.f32 0.0, %v10770
      %v10772 = vpop.f32.mrf.mxu0
      %10773 = vmatprep.mubr.bf16.mxu0 0
      %10774 = vmatmul.mubr.bf16.gmra.mxu0 %v10663
      %v10775 = vpop.f32.mrf.mxu0
      %v10776 = vadd.f32 0.0, %v10775
      %v10777 = vpop.f32.mrf.mxu0
      %v10778 = vpop.f32.mrf.mxu0
      %v10779 = vadd.f32 0.0, %v10778
      %v10780 = vpop.f32.mrf.mxu0
      %10781 = vmatprep.mubr.bf16.mxu0 0
      %10782 = vmatmul.mubr.bf16.gmra.mxu0 %v10664
      %v10783 = vpop.f32.mrf.mxu0
      %v10784 = vadd.f32 0.0, %v10783
      %v10785 = vpop.f32.mrf.mxu0
      %v10786 = vpop.f32.mrf.mxu0
      %v10787 = vadd.f32 0.0, %v10786
      %v10788 = vpop.f32.mrf.mxu0
      %10789 = vmatprep.mubr.bf16.mxu0 0
      %10790 = vmatmul.mubr.bf16.gmra.mxu0 %v10665
      %v10791 = vpop.f32.mrf.mxu0
      %v10792 = vadd.f32 0.0, %v10791
      %v10793 = vpop.f32.mrf.mxu0
      %v10794 = vpop.f32.mrf.mxu0
      %v10795 = vadd.f32 0.0, %v10794
      %v10796 = vpop.f32.mrf.mxu0
      %10797 = vmatprep.mubr.bf16.mxu0 0
      %10798 = vmatmul.mubr.bf16.gmra.mxu0 %v10666
      %v10799 = vpop.f32.mrf.mxu0
      %v10800 = vadd.f32 0.0, %v10799
      %v10801 = vpop.f32.mrf.mxu0
      %v10802 = vpop.f32.mrf.mxu0
      %v10803 = vadd.f32 0.0, %v10802
      %v10804 = vpop.f32.mrf.mxu0
      %10805 = vmatprep.mubr.bf16.mxu0 0
      %10806 = vmatmul.mubr.bf16.gmra.mxu0 %v10667
      %v10807 = vpop.f32.mrf.mxu0
      %v10808 = vadd.f32 0.0, %v10807
      %v10809 = vpop.f32.mrf.mxu0
      %v10810 = vpop.f32.mrf.mxu0
      %v10811 = vpop.f32.mrf.mxu0
      %10812 = vdwg.mxu0
      %v10813 = vadd.f32 %v10540, %v10768
      %v10814 = vadd.f32 %v10543, %v10771
      %v10815 = vadd.f32 %v10548, %v10776
      %v10816 = vadd.f32 %v10551, %v10779
      %v10817 = vadd.f32 %v10556, %v10784
      %v10818 = vadd.f32 %v10559, %v10787
      %v10819 = vadd.f32 %v10564, %v10792
      %v10820 = vadd.f32 %v10567, %v10795
      %v10821 = vadd.f32 %v10572, %v10800
      %v10822 = vadd.f32 %v10575, %v10803
      %v10823 = vadd.f32 %v10580, %v10808
      %v10824 = vld [vmem:[#allocation6 + $0x18] sm:$0xff]
      %v10825 = vld [vmem:[#allocation6 + $0x20] sm:$0xff]
      %v10826 = vld [vmem:[#allocation6 + $0x28] sm:$0xff]
      %v10827 = vld [vmem:[#allocation6 + $0x30] sm:$0xff]
      %v10828 = vld [vmem:[#allocation6 + $0x38] sm:$0xff]
      %v10829 = vld [vmem:[#allocation6 + $0x40] sm:$0xff]
      %v10830 = vld [vmem:[#allocation6 + $0x48] sm:$0xff]
      %v10831 = vld [vmem:[#allocation6 + $0x50] sm:$0xff]
      %v10832 = vld [vmem:[#allocation6 + $0x58] sm:$0xff]
      %v10833 = vld [vmem:[#allocation6 + $0x60] sm:$0xff]
      %v10834 = vld [vmem:[#allocation6 + $0x68] sm:$0x1]
      %v10835 = vld [vmem:[#allocation6 + $0x19] sm:$0xff]
      %v10836 = vld [vmem:[#allocation6 + $0x21] sm:$0xff]
      %v10837 = vld [vmem:[#allocation6 + $0x29] sm:$0xff]
      %v10838 = vld [vmem:[#allocation6 + $0x31] sm:$0xff]
      %v10839 = vld [vmem:[#allocation6 + $0x39] sm:$0xff]
      %v10840 = vld [vmem:[#allocation6 + $0x41] sm:$0xff]
      %v10841 = vld [vmem:[#allocation6 + $0x49] sm:$0xff]
      %v10842 = vld [vmem:[#allocation6 + $0x51] sm:$0xff]
      %v10843 = vld [vmem:[#allocation6 + $0x59] sm:$0xff]
      %v10844 = vld [vmem:[#allocation6 + $0x61] sm:$0xff]
      %v10845 = vld [vmem:[#allocation6 + $0x69] sm:$0x1]
      %10857 = vrot.lane.b32.xlu0 %v10835, 64
      %v10858 = vpop.permute.xlu0 %10857
      %10859 = vrot.lane.b32.xlu0 %v10836, 64
      %v10860 = vpop.permute.xlu0 %10859
      %10861 = vrot.lane.b32.xlu0 %v10837, 64
      %v10862 = vpop.permute.xlu0 %10861
      %10863 = vrot.lane.b32.xlu0 %v10838, 64
      %v10864 = vpop.permute.xlu0 %10863
      %10865 = vrot.lane.b32.xlu0 %v10839, 64
      %v10866 = vpop.permute.xlu0 %10865
      %10867 = vrot.lane.b32.xlu0 %v10840, 64
      %v10868 = vpop.permute.xlu0 %10867
      %10869 = vrot.lane.b32.xlu0 %v10841, 64
      %v10870 = vpop.permute.xlu0 %10869
      %10871 = vrot.lane.b32.xlu0 %v10842, 64
      %v10872 = vpop.permute.xlu0 %10871
      %10873 = vrot.lane.b32.xlu0 %v10843, 64
      %v10874 = vpop.permute.xlu0 %10873
      %10875 = vrot.lane.b32.xlu0 %v10844, 64
      %v10876 = vpop.permute.xlu0 %10875
      %10877 = vrot.lane.b32.xlu0 %v10845, 64
      %v10878 = vpop.permute.xlu0 %10877
      %v10890 = vsel %vm4285, %v10824, %v10858
      %v10891 = vsel %vm4285, %v10825, %v10860
      %v10892 = vsel %vm4285, %v10826, %v10862
      %v10893 = vsel %vm4285, %v10827, %v10864
      %v10894 = vsel %vm4285, %v10828, %v10866
      %v10895 = vsel %vm4285, %v10829, %v10868
      %v10896 = vsel %vm4285, %v10830, %v10870
      %v10897 = vsel %vm4285, %v10831, %v10872
      %v10898 = vsel %vm4285, %v10832, %v10874
      %v10899 = vsel %vm4285, %v10833, %v10876
      %v10900 = vsel %vm4285, %v10834, %v10878
      %v10901 = vpack.c.bf16 %v10891, %v10890
      %v10902 = vpack.c.bf16 %v10893, %v10892
      %v10903 = vpack.c.bf16 %v10895, %v10894
      %v10904 = vpack.c.bf16 %v10897, %v10896
      %v10905 = vpack.c.bf16 %v10899, %v10898
      %v10906 = vpack.c.bf16 %v10900, %v10900
      %s10907 = scalar_lea.vmem %s15, 192
      %v10908 = vld [vmem:[%s10907] sm:$0xf]
      %v10909 = vld [vmem:[%s10907 + $0x4] sm:$0xf]
      %v10910 = vld [vmem:[%s10907 + $0x8] sm:$0xf]
      %v10911 = vld [vmem:[%s10907 + $0xc] sm:$0xf]
      %v10912 = vld [vmem:[%s10907 + $0x10] sm:$0xf]
      %v10913 = vld [vmem:[%s10907 + $0x14] sm:$0xf]
      %v10914 = vld [vmem:[%s10907 + $0x18] sm:$0xf]
      %v10915 = vld [vmem:[%s10907 + $0x1c] sm:$0xf]
      %v10916 = vld [vmem:[%s10907 + $0x20] sm:$0xf]
      %v10917 = vld [vmem:[%s10907 + $0x24] sm:$0xf]
      %v10918 = vld [vmem:[%s10907 + $0x28] sm:$0xf]
      %v10919 = vld [vmem:[%s10907 + $0x2c] sm:$0xf]
      %v10920 = vld [vmem:[%s10907 + $0x30] sm:$0xf]
      %v10921 = vld [vmem:[%s10907 + $0x34] sm:$0xf]
      %v10922 = vld [vmem:[%s10907 + $0x38] sm:$0xf]
      %v10923 = vld [vmem:[%s10907 + $0x3c] sm:$0xf]
      %v10940 = vunpack.c.l.b16 %v10908
      %v10941 = vunpack.c.l.b16 %v10909
      %v10942 = vunpack.c.l.b16 %v10910
      %v10943 = vunpack.c.l.b16 %v10911
      %v10944 = vunpack.c.l.b16 %v10912
      %v10945 = vunpack.c.l.b16 %v10913
      %v10946 = vunpack.c.l.b16 %v10914
      %v10947 = vunpack.c.l.b16 %v10915
      %v10948 = vunpack.c.l.b16 %v10916
      %v10949 = vunpack.c.l.b16 %v10917
      %v10950 = vunpack.c.l.b16 %v10918
      %v10951 = vunpack.c.l.b16 %v10919
      %v10952 = vunpack.c.l.b16 %v10920
      %v10953 = vunpack.c.l.b16 %v10921
      %v10954 = vunpack.c.l.b16 %v10922
      %v10955 = vunpack.c.l.b16 %v10923
      %v10956 = vpack.c.b16 %v10941, %v10940
      %v10957 = vpack.c.b16 %v10943, %v10942
      %v10958 = vpack.c.b16 %v10945, %v10944
      %v10959 = vpack.c.b16 %v10947, %v10946
      %v10960 = vpack.c.b16 %v10949, %v10948
      %v10961 = vpack.c.b16 %v10951, %v10950
      %v10962 = vpack.c.b16 %v10953, %v10952
      %v10963 = vpack.c.b16 %v10955, %v10954
      %10972 = vmatprep.subr.bf16.mxu0 0
      %10973 = vmatpush1.bf16.msra.mxu0 %v10963
      %10974 = vmatprep.subr.bf16.mxu0 0
      %10975 = vmatpush1.bf16.msra.mxu0 %v10962
      %10976 = vmatprep.subr.bf16.mxu0 0
      %10977 = vmatpush1.bf16.msra.mxu0 %v10961
      %10978 = vmatprep.subr.bf16.mxu0 0
      %10979 = vmatpush1.bf16.msra.mxu0 %v10960
      %10980 = vmatprep.subr.bf16.mxu0 0
      %10981 = vmatpush1.bf16.msra.mxu0 %v10959
      %10982 = vmatprep.subr.bf16.mxu0 0
      %10983 = vmatpush1.bf16.msra.mxu0 %v10958
      %10984 = vmatprep.subr.bf16.mxu0 0
      %10985 = vmatpush1.bf16.msra.mxu0 %v10957
      %10986 = vmatprep.subr.bf16.mxu0 0
      %10987 = vmatpush1.bf16.msra.mxu0 %v10956
      %10988 = vmatprep.subr.bf16.mxu0 0
      %10989 = vmatpush2.bf16.msra.mxu0 0
      %10990 = vmatprep.subr.bf16.mxu0 0
      %10991 = vmatpush2.bf16.msra.mxu0 0
      %10992 = vmatprep.subr.bf16.mxu0 0
      %10993 = vmatpush2.bf16.msra.mxu0 0
      %10994 = vmatprep.subr.bf16.mxu0 0
      %10995 = vmatpush2.bf16.msra.mxu0 0
      %10996 = vmatprep.subr.bf16.mxu0 0
      %10997 = vmatpush2.bf16.msra.mxu0 0
      %10998 = vmatprep.subr.bf16.mxu0 0
      %10999 = vmatpush2.bf16.msra.mxu0 0
      %11000 = vmatprep.subr.bf16.mxu0 0
      %11001 = vmatpush2.bf16.msra.mxu0 0
      %11002 = vmatprep.subr.bf16.mxu0 0
      %11003 = vmatpush2.bf16.msra.mxu0 0
      %11004 = vmatprep.mubr.bf16.mxu0 0
      %11005 = vmatmul.mubr.bf16.gmra.mxu0 %v10901
      %v11006 = vpop.f32.mrf.mxu0
      %v11007 = vadd.f32 0.0, %v11006
      %v11008 = vpop.f32.mrf.mxu0
      %v11009 = vpop.f32.mrf.mxu0
      %v11010 = vadd.f32 0.0, %v11009
      %v11011 = vpop.f32.mrf.mxu0
      %11012 = vmatprep.mubr.bf16.mxu0 0
      %11013 = vmatmul.mubr.bf16.gmra.mxu0 %v10902
      %v11014 = vpop.f32.mrf.mxu0
      %v11015 = vadd.f32 0.0, %v11014
      %v11016 = vpop.f32.mrf.mxu0
      %v11017 = vpop.f32.mrf.mxu0
      %v11018 = vadd.f32 0.0, %v11017
      %v11019 = vpop.f32.mrf.mxu0
      %11020 = vmatprep.mubr.bf16.mxu0 0
      %11021 = vmatmul.mubr.bf16.gmra.mxu0 %v10903
      %v11022 = vpop.f32.mrf.mxu0
      %v11023 = vadd.f32 0.0, %v11022
      %v11024 = vpop.f32.mrf.mxu0
      %v11025 = vpop.f32.mrf.mxu0
      %v11026 = vadd.f32 0.0, %v11025
      %v11027 = vpop.f32.mrf.mxu0
      %11028 = vmatprep.mubr.bf16.mxu0 0
      %11029 = vmatmul.mubr.bf16.gmra.mxu0 %v10904
      %v11030 = vpop.f32.mrf.mxu0
      %v11031 = vadd.f32 0.0, %v11030
      %v11032 = vpop.f32.mrf.mxu0
      %v11033 = vpop.f32.mrf.mxu0
      %v11034 = vadd.f32 0.0, %v11033
      %v11035 = vpop.f32.mrf.mxu0
      %11036 = vmatprep.mubr.bf16.mxu0 0
      %11037 = vmatmul.mubr.bf16.gmra.mxu0 %v10905
      %v11038 = vpop.f32.mrf.mxu0
      %v11039 = vadd.f32 0.0, %v11038
      %v11040 = vpop.f32.mrf.mxu0
      %v11041 = vpop.f32.mrf.mxu0
      %v11042 = vadd.f32 0.0, %v11041
      %v11043 = vpop.f32.mrf.mxu0
      %11044 = vmatprep.mubr.bf16.mxu0 0
      %11045 = vmatmul.mubr.bf16.gmra.mxu0 %v10906
      %v11046 = vpop.f32.mrf.mxu0
      %v11047 = vadd.f32 0.0, %v11046
      %v11048 = vpop.f32.mrf.mxu0
      %v11049 = vpop.f32.mrf.mxu0
      %v11050 = vpop.f32.mrf.mxu0
      %11051 = vdwg.mxu0
      %v11052 = vadd.f32 %v10813, %v11007
      %v11053 = vadd.f32 %v10814, %v11010
      %v11054 = vadd.f32 %v10815, %v11015
      %v11055 = vadd.f32 %v10816, %v11018
      %v11056 = vadd.f32 %v10817, %v11023
      %v11057 = vadd.f32 %v10818, %v11026
      %v11058 = vadd.f32 %v10819, %v11031
      %v11059 = vadd.f32 %v10820, %v11034
      %v11060 = vadd.f32 %v10821, %v11039
      %v11061 = vadd.f32 %v10822, %v11042
      %v11062 = vadd.f32 %v10823, %v11047
      %v11063 = vld [vmem:[#allocation6 + $0x1a] sm:$0xff]
      %v11064 = vld [vmem:[#allocation6 + $0x22] sm:$0xff]
      %v11065 = vld [vmem:[#allocation6 + $0x2a] sm:$0xff]
      %v11066 = vld [vmem:[#allocation6 + $0x32] sm:$0xff]
      %v11067 = vld [vmem:[#allocation6 + $0x3a] sm:$0xff]
      %v11068 = vld [vmem:[#allocation6 + $0x42] sm:$0xff]
      %v11069 = vld [vmem:[#allocation6 + $0x4a] sm:$0xff]
      %v11070 = vld [vmem:[#allocation6 + $0x52] sm:$0xff]
      %v11071 = vld [vmem:[#allocation6 + $0x5a] sm:$0xff]
      %v11072 = vld [vmem:[#allocation6 + $0x62] sm:$0xff]
      %v11073 = vld [vmem:[#allocation6 + $0x6a] sm:$0x1]
      %11085 = vrot.lane.b32.xlu0 %v11063, 64
      %v11086 = vpop.permute.xlu0 %11085
      %11087 = vrot.lane.b32.xlu0 %v11064, 64
      %v11088 = vpop.permute.xlu0 %11087
      %11089 = vrot.lane.b32.xlu0 %v11065, 64
      %v11090 = vpop.permute.xlu0 %11089
      %11091 = vrot.lane.b32.xlu0 %v11066, 64
      %v11092 = vpop.permute.xlu0 %11091
      %11093 = vrot.lane.b32.xlu0 %v11067, 64
      %v11094 = vpop.permute.xlu0 %11093
      %11095 = vrot.lane.b32.xlu0 %v11068, 64
      %v11096 = vpop.permute.xlu0 %11095
      %11097 = vrot.lane.b32.xlu0 %v11069, 64
      %v11098 = vpop.permute.xlu0 %11097
      %11099 = vrot.lane.b32.xlu0 %v11070, 64
      %v11100 = vpop.permute.xlu0 %11099
      %11101 = vrot.lane.b32.xlu0 %v11071, 64
      %v11102 = vpop.permute.xlu0 %11101
      %11103 = vrot.lane.b32.xlu0 %v11072, 64
      %v11104 = vpop.permute.xlu0 %11103
      %11105 = vrot.lane.b32.xlu0 %v11073, 64
      %v11106 = vpop.permute.xlu0 %11105
      %v11118 = vsel %vm4285, %v11063, %v11086
      %v11119 = vsel %vm4285, %v11064, %v11088
      %v11120 = vsel %vm4285, %v11065, %v11090
      %v11121 = vsel %vm4285, %v11066, %v11092
      %v11122 = vsel %vm4285, %v11067, %v11094
      %v11123 = vsel %vm4285, %v11068, %v11096
      %v11124 = vsel %vm4285, %v11069, %v11098
      %v11125 = vsel %vm4285, %v11070, %v11100
      %v11126 = vsel %vm4285, %v11071, %v11102
      %v11127 = vsel %vm4285, %v11072, %v11104
      %v11128 = vsel %vm4285, %v11073, %v11106
      %v11129 = vpack.c.bf16 %v11119, %v11118
      %v11130 = vpack.c.bf16 %v11121, %v11120
      %v11131 = vpack.c.bf16 %v11123, %v11122
      %v11132 = vpack.c.bf16 %v11125, %v11124
      %v11133 = vpack.c.bf16 %v11127, %v11126
      %v11134 = vpack.c.bf16 %v11128, %v11128
      %s11135 = scalar_lea.vmem %s15, 256
      %v11136 = vld [vmem:[%s11135] sm:$0xf]
      %v11137 = vld [vmem:[%s11135 + $0x4] sm:$0xf]
      %v11138 = vld [vmem:[%s11135 + $0x8] sm:$0xf]
      %v11139 = vld [vmem:[%s11135 + $0xc] sm:$0xf]
      %v11140 = vld [vmem:[%s11135 + $0x10] sm:$0xf]
      %v11141 = vld [vmem:[%s11135 + $0x14] sm:$0xf]
      %v11142 = vld [vmem:[%s11135 + $0x18] sm:$0xf]
      %v11143 = vld [vmem:[%s11135 + $0x1c] sm:$0xf]
      %v11144 = vld [vmem:[%s11135 + $0x20] sm:$0xf]
      %v11145 = vld [vmem:[%s11135 + $0x24] sm:$0xf]
      %v11146 = vld [vmem:[%s11135 + $0x28] sm:$0xf]
      %v11147 = vld [vmem:[%s11135 + $0x2c] sm:$0xf]
      %v11148 = vld [vmem:[%s11135 + $0x30] sm:$0xf]
      %v11149 = vld [vmem:[%s11135 + $0x34] sm:$0xf]
      %v11150 = vld [vmem:[%s11135 + $0x38] sm:$0xf]
      %v11151 = vld [vmem:[%s11135 + $0x3c] sm:$0xf]
      %v11168 = vunpack.c.l.b16 %v11136
      %v11169 = vunpack.c.l.b16 %v11137
      %v11170 = vunpack.c.l.b16 %v11138
      %v11171 = vunpack.c.l.b16 %v11139
      %v11172 = vunpack.c.l.b16 %v11140
      %v11173 = vunpack.c.l.b16 %v11141
      %v11174 = vunpack.c.l.b16 %v11142
      %v11175 = vunpack.c.l.b16 %v11143
      %v11176 = vunpack.c.l.b16 %v11144
      %v11177 = vunpack.c.l.b16 %v11145
      %v11178 = vunpack.c.l.b16 %v11146
      %v11179 = vunpack.c.l.b16 %v11147
      %v11180 = vunpack.c.l.b16 %v11148
      %v11181 = vunpack.c.l.b16 %v11149
      %v11182 = vunpack.c.l.b16 %v11150
      %v11183 = vunpack.c.l.b16 %v11151
      %v11184 = vpack.c.b16 %v11169, %v11168
      %v11185 = vpack.c.b16 %v11171, %v11170
      %v11186 = vpack.c.b16 %v11173, %v11172
      %v11187 = vpack.c.b16 %v11175, %v11174
      %v11188 = vpack.c.b16 %v11177, %v11176
      %v11189 = vpack.c.b16 %v11179, %v11178
      %v11190 = vpack.c.b16 %v11181, %v11180
      %v11191 = vpack.c.b16 %v11183, %v11182
      %11200 = vmatprep.subr.bf16.mxu0 0
      %11201 = vmatpush1.bf16.msra.mxu0 %v11191
      %11202 = vmatprep.subr.bf16.mxu0 0
      %11203 = vmatpush1.bf16.msra.mxu0 %v11190
      %11204 = vmatprep.subr.bf16.mxu0 0
      %11205 = vmatpush1.bf16.msra.mxu0 %v11189
      %11206 = vmatprep.subr.bf16.mxu0 0
      %11207 = vmatpush1.bf16.msra.mxu0 %v11188
      %11208 = vmatprep.subr.bf16.mxu0 0
      %11209 = vmatpush1.bf16.msra.mxu0 %v11187
      %11210 = vmatprep.subr.bf16.mxu0 0
      %11211 = vmatpush1.bf16.msra.mxu0 %v11186
      %11212 = vmatprep.subr.bf16.mxu0 0
      %11213 = vmatpush1.bf16.msra.mxu0 %v11185
      %11214 = vmatprep.subr.bf16.mxu0 0
      %11215 = vmatpush1.bf16.msra.mxu0 %v11184
      %11216 = vmatprep.subr.bf16.mxu0 0
      %11217 = vmatpush2.bf16.msra.mxu0 0
      %11218 = vmatprep.subr.bf16.mxu0 0
      %11219 = vmatpush2.bf16.msra.mxu0 0
      %11220 = vmatprep.subr.bf16.mxu0 0
      %11221 = vmatpush2.bf16.msra.mxu0 0
      %11222 = vmatprep.subr.bf16.mxu0 0
      %11223 = vmatpush2.bf16.msra.mxu0 0
      %11224 = vmatprep.subr.bf16.mxu0 0
      %11225 = vmatpush2.bf16.msra.mxu0 0
      %11226 = vmatprep.subr.bf16.mxu0 0
      %11227 = vmatpush2.bf16.msra.mxu0 0
      %11228 = vmatprep.subr.bf16.mxu0 0
      %11229 = vmatpush2.bf16.msra.mxu0 0
      %11230 = vmatprep.subr.bf16.mxu0 0
      %11231 = vmatpush2.bf16.msra.mxu0 0
      %11232 = vmatprep.mubr.bf16.mxu0 0
      %11233 = vmatmul.mubr.bf16.gmra.mxu0 %v11129
      %v11234 = vpop.f32.mrf.mxu0
      %v11235 = vadd.f32 0.0, %v11234
      %v11236 = vpop.f32.mrf.mxu0
      %v11237 = vpop.f32.mrf.mxu0
      %v11238 = vadd.f32 0.0, %v11237
      %v11239 = vpop.f32.mrf.mxu0
      %11240 = vmatprep.mubr.bf16.mxu0 0
      %11241 = vmatmul.mubr.bf16.gmra.mxu0 %v11130
      %v11242 = vpop.f32.mrf.mxu0
      %v11243 = vadd.f32 0.0, %v11242
      %v11244 = vpop.f32.mrf.mxu0
      %v11245 = vpop.f32.mrf.mxu0
      %v11246 = vadd.f32 0.0, %v11245
      %v11247 = vpop.f32.mrf.mxu0
      %11248 = vmatprep.mubr.bf16.mxu0 0
      %11249 = vmatmul.mubr.bf16.gmra.mxu0 %v11131
      %v11250 = vpop.f32.mrf.mxu0
      %v11251 = vadd.f32 0.0, %v11250
      %v11252 = vpop.f32.mrf.mxu0
      %v11253 = vpop.f32.mrf.mxu0
      %v11254 = vadd.f32 0.0, %v11253
      %v11255 = vpop.f32.mrf.mxu0
      %11256 = vmatprep.mubr.bf16.mxu0 0
      %11257 = vmatmul.mubr.bf16.gmra.mxu0 %v11132
      %v11258 = vpop.f32.mrf.mxu0
      %v11259 = vadd.f32 0.0, %v11258
      %v11260 = vpop.f32.mrf.mxu0
      %v11261 = vpop.f32.mrf.mxu0
      %v11262 = vadd.f32 0.0, %v11261
      %v11263 = vpop.f32.mrf.mxu0
      %11264 = vmatprep.mubr.bf16.mxu0 0
      %11265 = vmatmul.mubr.bf16.gmra.mxu0 %v11133
      %v11266 = vpop.f32.mrf.mxu0
      %v11267 = vadd.f32 0.0, %v11266
      %v11268 = vpop.f32.mrf.mxu0
      %v11269 = vpop.f32.mrf.mxu0
      %v11270 = vadd.f32 0.0, %v11269
      %v11271 = vpop.f32.mrf.mxu0
      %11272 = vmatprep.mubr.bf16.mxu0 0
      %11273 = vmatmul.mubr.bf16.gmra.mxu0 %v11134
      %v11274 = vpop.f32.mrf.mxu0
      %v11275 = vadd.f32 0.0, %v11274
      %v11276 = vpop.f32.mrf.mxu0
      %v11277 = vpop.f32.mrf.mxu0
      %v11278 = vpop.f32.mrf.mxu0
      %11279 = vdwg.mxu0
      %v11280 = vadd.f32 %v11052, %v11235
      %v11281 = vadd.f32 %v11053, %v11238
      %v11282 = vadd.f32 %v11054, %v11243
      %v11283 = vadd.f32 %v11055, %v11246
      %v11284 = vadd.f32 %v11056, %v11251
      %v11285 = vadd.f32 %v11057, %v11254
      %v11286 = vadd.f32 %v11058, %v11259
      %v11287 = vadd.f32 %v11059, %v11262
      %v11288 = vadd.f32 %v11060, %v11267
      %v11289 = vadd.f32 %v11061, %v11270
      %v11290 = vadd.f32 %v11062, %v11275
      %v11291 = vld [vmem:[%s16] sm:$0x1]
      %v11293 = vlaneseq
      %v11294 = vshrl.u32 %v11293, 7
      %v11295 = vsub.s32 0, %v11294
      %v11296 = vrot.slane %v11291, %v11295
      %v11298 = vadd.f32 %v11280, %v11296
      %v11299 = vadd.f32 %v11281, %v11296
      %v11300 = vadd.f32 %v11282, %v11296
      %v11301 = vadd.f32 %v11283, %v11296
      %v11302 = vadd.f32 %v11284, %v11296
      %v11303 = vadd.f32 %v11285, %v11296
      %v11304 = vadd.f32 %v11286, %v11296
      %v11305 = vadd.f32 %v11287, %v11296
      %v11306 = vadd.f32 %v11288, %v11296
      %v11307 = vadd.f32 %v11289, %v11296
      %v11308 = vadd.f32 %v11290, %v11296
      %v11309 = vadd.f32 %v11298, %v10130
      %v11310 = vadd.f32 %v11299, %v10133
      %v11311 = vadd.f32 %v11300, %v10138
      %v11312 = vadd.f32 %v11301, %v10141
      %v11313 = vadd.f32 %v11302, %v10146
      %v11314 = vadd.f32 %v11303, %v10149
      %v11315 = vadd.f32 %v11304, %v10154
      %v11316 = vadd.f32 %v11305, %v10157
      %v11317 = vadd.f32 %v11306, %v10162
      %v11318 = vadd.f32 %v11307, %v10165
      %v11319 = vadd.f32 %v11308, %v10170
      %v11320 = vmax.f32 %v11309, 0.0
      %v11321 = vmax.f32 %v11310, 0.0
      %v11322 = vmax.f32 %v11311, 0.0
      %v11323 = vmax.f32 %v11312, 0.0
      %v11324 = vmax.f32 %v11313, 0.0
      %v11325 = vmax.f32 %v11314, 0.0
      %v11326 = vmax.f32 %v11315, 0.0
      %v11327 = vmax.f32 %v11316, 0.0
      %v11328 = vmax.f32 %v11317, 0.0
      %v11329 = vmax.f32 %v11318, 0.0
      %v11330 = vmax.f32 %v11319, 0.0
      %v11331 = vsel %vm10003, %v11320, 0.0
      %v11332 = vsel %vm10004, %v11321, 0.0
      %v11333 = vsel %vm10005, %v11322, 0.0
      %v11334 = vsel %vm10006, %v11323, 0.0
      %v11335 = vsel %vm10007, %v11324, 0.0
      %v11336 = vsel %vm10008, %v11325, 0.0
      %v11337 = vsel %vm10009, %v11326, 0.0
      %v11338 = vsel %vm10010, %v11327, 0.0
      %v11339 = vsel %vm10011, %v11328, 0.0
      %v11340 = vsel %vm10012, %v11329, 0.0
      %v11341 = vsel %vm10013, %v11330, 0.0
      %v11342 = vsel %vm4285, %v11331, 0.0
      %v11343 = vsel %vm4285, %v11332, 0.0
      %v11344 = vadd.f32 %v11342, %v11343
      %v11345 = vsel %vm4285, %v11333, 0.0
      %v11346 = vadd.f32 %v11344, %v11345
      %v11347 = vsel %vm4285, %v11334, 0.0
      %v11348 = vadd.f32 %v11346, %v11347
      %v11349 = vsel %vm4285, %v11335, 0.0
      %v11350 = vadd.f32 %v11348, %v11349
      %v11351 = vsel %vm4285, %v11336, 0.0
      %v11352 = vadd.f32 %v11350, %v11351
      %v11353 = vsel %vm4285, %v11337, 0.0
      %v11354 = vadd.f32 %v11352, %v11353
      %v11355 = vsel %vm4285, %v11338, 0.0
      %v11356 = vadd.f32 %v11354, %v11355
      %v11357 = vsel %vm4285, %v11339, 0.0
      %v11358 = vadd.f32 %v11356, %v11357
      %v11359 = vsel %vm4285, %v11340, 0.0
      %v11360 = vadd.f32 %v11358, %v11359
      %v11361 = vsel %vm10035, %v11341, 0.0
      %v11362 = vadd.f32 %v11360, %v11361
      %v11363 = vrot.slane %v11362, 4
      %v11364 = vadd.f32 %v11362, %v11363
      %v11365 = vrot.slane %v11364, 2
      %v11366 = vadd.f32 %v11364, %v11365
      %v11367 = vrot.slane %v11366, 1
      %v11368 = vadd.f32 %v11366, %v11367
      %v11369 = vmul.f32 %v11368, 0.020408163
      %v11370 = vld [vmem:[%s17] sm:$0xff]
      %v11371 = vld [vmem:[%s17 + $0x8] sm:$0xff]
      %v11372 = vld [vmem:[%s17 + $0x10] sm:$0xff]
      %v11373 = vld [vmem:[%s17 + $0x18] sm:$0xff]
      %v11374 = vld [vmem:[%s17 + $0x20] sm:$0xff]
      %v11375 = vld [vmem:[%s17 + $0x28] sm:$0xff]
      %v11376 = vld [vmem:[%s17 + $0x30] sm:$0xff]
      %v11377 = vld [vmem:[%s17 + $0x38] sm:$0xff]
      %v11378 = vld [vmem:[#allocation7] sm:$0x1]
      %v11380 = vsel %vm4285, %v11369, 0
      %11382 = vmatprep.subr.mxu0 0.0
      %11383 = vmatpush1.msra.mxu0 0.0
      %11384 = vmatprep.subr.mxu0 0.0
      %11385 = vmatpush1.msra.mxu0 0.0
      %11386 = vmatprep.subr.mxu0 0.0
      %11387 = vmatpush1.msra.mxu0 0.0
      %11388 = vmatprep.subr.mxu0 0.0
      %11389 = vmatpush1.msra.mxu0 0.0
      %11390 = vmatprep.subr.mxu0 0.0
      %11391 = vmatpush1.msra.mxu0 0.0
      %11392 = vmatprep.subr.mxu0 0.0
      %11393 = vmatpush1.msra.mxu0 0.0
      %11394 = vmatprep.subr.mxu0 0.0
      %11395 = vmatpush1.msra.mxu0 0.0
      %11396 = vmatprep.subr.mxu0 0.0
      %11397 = vmatpush1.msra.mxu0 0.0
      %11398 = vmatprep.subr.mxu0 0.0
      %11399 = vmatpush1.msra.mxu0 %v11377
      %11400 = vmatprep.subr.mxu0 0.0
      %11401 = vmatpush1.msra.mxu0 %v11376
      %11402 = vmatprep.subr.mxu0 0.0
      %11403 = vmatpush1.msra.mxu0 %v11375
      %11404 = vmatprep.subr.mxu0 0.0
      %11405 = vmatpush1.msra.mxu0 %v11374
      %11406 = vmatprep.subr.mxu0 0.0
      %11407 = vmatpush1.msra.mxu0 %v11373
      %11408 = vmatprep.subr.mxu0 0.0
      %11409 = vmatpush1.msra.mxu0 %v11372
      %11410 = vmatprep.subr.mxu0 0.0
      %11411 = vmatpush1.msra.mxu0 %v11371
      %11412 = vmatprep.subr.mxu0 0.0
      %11413 = vmatpush1.msra.mxu0 %v11370
      %11414 = vmatprep.subr.mxu0 0.0
      %11415 = vmatpush2.msra.mxu0 0.0
      %11416 = vmatprep.subr.mxu0 0.0
      %11417 = vmatpush2.msra.mxu0 0.0
      %11418 = vmatprep.subr.mxu0 0.0
      %11419 = vmatpush2.msra.mxu0 0.0
      %11420 = vmatprep.subr.mxu0 0.0
      %11421 = vmatpush2.msra.mxu0 0.0
      %11422 = vmatprep.subr.mxu0 0.0
      %11423 = vmatpush2.msra.mxu0 0.0
      %11424 = vmatprep.subr.mxu0 0.0
      %11425 = vmatpush2.msra.mxu0 0.0
      %11426 = vmatprep.subr.mxu0 0.0
      %11427 = vmatpush2.msra.mxu0 0.0
      %11428 = vmatprep.subr.mxu0 0.0
      %11429 = vmatpush2.msra.mxu0 0.0
      %11430 = vmatprep.subr.mxu0 0.0
      %11431 = vmatpush2.msra.mxu0 0.0
      %11432 = vmatprep.subr.mxu0 0.0
      %11433 = vmatpush2.msra.mxu0 0.0
      %11434 = vmatprep.subr.mxu0 0.0
      %11435 = vmatpush2.msra.mxu0 0.0
      %11436 = vmatprep.subr.mxu0 0.0
      %11437 = vmatpush2.msra.mxu0 0.0
      %11438 = vmatprep.subr.mxu0 0.0
      %11439 = vmatpush2.msra.mxu0 0.0
      %11440 = vmatprep.subr.mxu0 0.0
      %11441 = vmatpush2.msra.mxu0 0.0
      %11442 = vmatprep.subr.mxu0 0.0
      %11443 = vmatpush2.msra.mxu0 0.0
      %11444 = vmatprep.subr.mxu0 0.0
      %11445 = vmatpush2.msra.mxu0 0.0
      %11446 = vmatprep.mubr.f32.mxu0 0.0
      %11447 = vmatmul.mubr.f32.gmra.mxu0 %v11380
      %v11448 = vpop.f32.mrf.mxu0
      %v11449 = vadd.f32 %v11378, %v11448
      %v11450 = vpop.f32.mrf.mxu0
      %11451 = vdwg.mxu0
      %v11452 = vxor.u32 %v11449, 2147483648
      %v11453 = vmul.f32 %v11452, 1.442695
      %v11454 = vpow.pop %v11453
      %v11455 = vadd.f32 %v11454, 1.0
      %v11456 = vrcp.pop %v11455
      %v11457 = vmul.f32 1.0, %v11456
      %vm11458 = vcmask 0
      %11459 = vst.msk [vmem:[%s600] sm:$0x1] %vm11458, %v11457
      %p11460 = scmp.lt.s32.totalorder %s32, 1
      %s11461 = scalar_select %p11460, %s32, 1
      %s11462 = scalar_lea.vmem %s19, %s11461
      // Predicated region
      $region97: #{resnetlike_forward.1} parent=95 // pred_check
        %p11463 = pneg %p454
      $region98: #{resnetlike_forward.1} parent=95 // pred_check_branch
        %11465 = sbr.rel (%p11463) target = $region100
      $region99: #{resnetlike_forward.1} parent=95 // pred_region
        _
      $region100: #{resnetlike_forward.1} parent=95 // pred_fallthru
        _
    $region96: #{resnetlike_forward.1} parent=5 // pred_fallthru
      _
    %p11466 = scmp.le.s32.totalorder 2, %s27
    // Predicated region
    $region101: #{resnetlike_forward.1} parent=5 // pred_check
      %p11467 = pneg %p11466
    $region102: #{resnetlike_forward.1} parent=5 // pred_check_branch
      %11469 = sbr.rel (%p11467) target = $region104
    $region103: #{resnetlike_forward.1} parent=5 // pred_region
      %s11470 = ssub.s32 %s27, 2
      // Predicated region
      $region105: #{resnetlike_forward.1} parent=103 // pred_check
        %p11471 = pneg %p460
      $region106: #{resnetlike_forward.1} parent=103 // pred_check_branch
        %11473 = sbr.rel (%p11471) target = $region108
      $region107: #{resnetlike_forward.1} parent=103 // pred_region
        %p11474 = scmp.lt.s32.totalorder %s33, 1
        %s11475 = scalar_select %p11474, %s33, 1
        %s11476 = scalar_lea.vmem %s19, %s11475
      $region108: #{resnetlike_forward.1} parent=103 // pred_fallthru
        _
    $region104: #{resnetlike_forward.1} parent=5 // pred_fallthru
      _
  $region6: #{resnetlike_forward.1} parent=0 // loop_footer
    %s31 = sadd.s32 1, %s27
  $region7: #{resnetlike_forward.1} parent=0 // loop_footer_branch
    %26 = sbr.rel target = $region3
  $region8: #{resnetlike_forward.1} parent=0 // loop_exit
    _

</llo_original>
